<compile_context>
chip_gen: v7x
topology: tpu7x:2x2x1
jax: 0.10.0
libtpu: 0.0.40
codegen_flags: <defaults>
</compile_context>

<pallas_src>
import functools

import jax
import jax.numpy as jnp
from jax import lax
from jax.experimental import pallas as pl
from jax.experimental.pallas import tpu as pltpu


_CORNERS = ((0, 0), (1, 0), (0, 1), (1, 1))   # (dx, dy); flat offset = dy*W+dx


def _round_up(x, m):
    return (x + m - 1) // m * m


# ----------------------------------------------------------------------------
# Fused kernel: MSDeformAttn3D core + SpatialCrossAttention aggregation.
# grid = (batch, Lq-tile, camera); camera is a reduction ("arbitrary") axis
# accumulating vis-masked per-camera attention outputs into VMEM scratch.
# ----------------------------------------------------------------------------
def _sca_kernel(q_ref, v_ref, bx_ref, by_ref, vis_ref,
                wqk_ref, bqk_ref, wprj_ref, bprj_ref, wout_ref, bout_ref,
                o_ref, acc_ref, cnt_ref,
                *, H, P, dh, feat_h, feat_w, lv_chunk, n_chunks, n_batch):
    f32 = jnp.float32
    bf16 = jnp.bfloat16
    HP = H * P
    W = feat_w

    cam = pl.program_id(2)
    n_cam = pl.num_programs(2)

    @pl.when(cam == 0)
    def _():
        acc_ref[...] = jnp.zeros_like(acc_ref)
        cnt_ref[...] = jnp.zeros_like(cnt_ref)

    q = q_ref[...]                       # (TQ, d)  bf16  queries + pos emb
    tq, dm = q.shape

    # ---- single fused query-side projection: [off_x | off_y | attn logits]
    qk = jnp.dot(q, wqk_ref[...], preferred_element_type=f32) + bqk_ref[...]
    off_x = qk[:, :HP]
    off_y = qk[:, HP:2 * HP]
    aw = qk[:, 2 * HP:]                  # (TQ, H*P) attention logits

    # ---- hoisted sampling geometry at full (TQ, H*P) lane width ----
    # bx/by already hold ref*size - 0.5 (grid_sample align_corners=False).
    x = bx_ref[...] + off_x
    y = by_ref[...] + off_y
    x0 = jnp.floor(x)
    y0 = jnp.floor(y)
    fx = x - x0
    fy = y - y0
    # Biased base (top-left) flat index.  For any valid corner (dx, dy) the
    # gathered value row is exactly fb - (W+1) + dy*W + dx, in [0, Lv).
    fb = (y0 * float(W) + x0 + float(W + 1)).astype(jnp.int32)   # (TQ, H*P)

    bwv = []                             # bilinear weight * validity, 4x
    for dx, dy in _CORNERS:
        cx = x0 + dx
        cy = y0 + dy
        bw = (fx if dx else 1.0 - fx) * (fy if dy else 1.0 - fy)
        valid = ((cx >= 0.0) & (cx <= float(W - 1)) &
                 (cy >= 0.0) & (cy <= float(feat_h - 1)))        # zero padding
        bwv.append(jnp.where(valid, bw, 0.0))                    # (TQ, H*P)

    # ---- corner offsets folded into XLU rolls of the value block ----
    # v_ref has (W+1) leading zero rows (and zero tail padding), so wrapped
    # rows brought in by the roll are zeros; invalid corners carry zero weight.
    lv_ext = v_ref.shape[0]
    v00 = v_ref[...]                     # (Lv_ext, d) bf16
    v32 = v00.astype(f32)                # roll in f32 (packed-dtype safe)
    v_corner = [v00]
    for off in (1, W, W + 1):
        v_corner.append(pltpu.roll(v32, shift=lv_ext - off, axis=0).astype(bf16))

    lanes = [lax.broadcasted_iota(jnp.int32, (1, lv_chunk), 1) + ck * lv_chunk
             for ck in range(n_chunks)]
    wprj = wprj_ref[...]                 # (d, d) bf16

    # ---- per-head gather-as-matmul (Lv chunked) + folded output projection
    cam_out = jnp.zeros((tq, dm), f32)
    for h in range(H):
        aw_h = aw[:, h * P:(h + 1) * P]
        m_h = jnp.max(aw_h, axis=-1, keepdims=True)      # per-head max (safe)
        e_h = jnp.exp(aw_h - m_h)                        # (TQ, P)
        s_h = jnp.sum(e_h, axis=-1, keepdims=True)       # >= 1 by construction
        w_h = [e_h * bwv[c][:, h * P:(h + 1) * P] for c in range(4)]
        fb_h = fb[:, h * P:(h + 1) * P]

        hv = jnp.zeros((tq, dh), f32)
        for ck in range(n_chunks):
            lane = lanes[ck]
            bmats = [jnp.zeros((tq, lv_chunk), f32) for _ in range(4)]
            for p in range(P):
                hit = fb_h[:, p:p + 1] == lane           # ONE shared compare
                for c in range(4):
                    bmats[c] = bmats[c] + jnp.where(hit, w_h[c][:, p:p + 1], 0.0)
            lo = ck * lv_chunk
            for c in range(4):
                hv = hv + jnp.dot(
                    bmats[c].astype(bf16),
                    v_corner[c][lo:lo + lv_chunk, h * dh:(h + 1) * dh],
                    preferred_element_type=f32)          # (TQ, dh)

        hv = hv * pl.reciprocal(s_h, approx=True)        # softmax denominator
        # fold MSDeformAttn output_proj per head -> no head concat
        cam_out = cam_out + jnp.dot(hv.astype(bf16),
                                    wprj[h * dh:(h + 1) * dh, :],
                                    preferred_element_type=f32)
    cam_out = cam_out + bprj_ref[...]

    # ---- fused SpatialCrossAttention aggregation over the camera axis ----
    vis = vis_ref[...]
    acc_ref[...] += cam_out * vis
    cnt_ref[...] += vis

    @pl.when(cam == n_cam - 1)
    def _():
        # reference code increments `count` once per batch sample j as well,
        # so the normaliser carries an extra factor of n_batch (reproduced).
        cnt = jnp.maximum(cnt_ref[...] * float(n_batch), 1.0)
        slots = acc_ref[...] / cnt
        o_ref[...] = (jnp.dot(slots.astype(bf16), wout_ref[...],
                              preferred_element_type=f32) + bout_ref[...])


# ----------------------------------------------------------------------------
# Wrapper (plain-JAX glue + pallas_call plumbing)
# ----------------------------------------------------------------------------
def spatial_cross_attention(queries, embeds, features, reference_points_3d,
                            bev_mask, params, *, n_heads, n_points, z_candi,
                            q_tile=None, lv_chunk=None, vmem_limit_bytes=None):
    pos_emb, lvl_emb, cam_emb = embeds
    b, n, Lq, d = queries.shape
    H = n_heads
    P = 2 * n_points                     # MSDeformAttn3D is built with 2*n_points
    D = len(z_candi)
    assert P % D == 0 and d % H == 0
    dh = d // H
    HP = H * P

    # ---- glue: flatten features, add level / camera embeddings ----
    # TODO(synk): multi-level (n_levels > 1) feature path is not wired in.
    assert len(features) == 1
    f = features[0]                      # NCHW (b*n, c, h', w')
    c, fh, fw = f.shape[1], f.shape[2], f.shape[3]
    Lv = fh * fw
    assert Lv < (1 << 24)                # flat indices are exact in f32

    x = f.reshape(b, n, c, Lv)
    x = x + lvl_emb[0][None, None, :, None]
    x = x + cam_emb[None, :, :, None]
    value_in = jnp.transpose(x, (0, 1, 3, 2))                   # (b, n, Lv, d)

    # HOISTED value projection: depends only on (batch, camera), so do it once
    # here instead of once per q-tile grid step inside the kernel.
    val = (jnp.einsum("bnvd,de->bnve", value_in, params["w_val"])
           + params["b_val"][0])

    # Extended value block: (W+1) leading zero rows (biased base index) and a
    # zero tail pad up to a multiple of lv_chunk (roll wrap-around lands on 0).
    if lv_chunk is None:
        lv_chunk = min(512, _round_up(Lv + fw + 1, 128))
    assert lv_chunk % 128 == 0
    Lv_ext = _round_up(Lv + fw + 1, lv_chunk)
    n_chunks = Lv_ext // lv_chunk
    v_ext = jnp.concatenate(
        [jnp.zeros((b, n, fw + 1, d), val.dtype),
         val,
         jnp.zeros((b, n, Lv_ext - Lv - (fw + 1), d), val.dtype)],
        axis=2).astype(jnp.bfloat16)                            # (b,n,Lv_ext,d)

    q_pos = (queries + pos_emb).astype(jnp.bfloat16)            # (b, n, Lq, d)

    # Pre-tiled, pre-scaled sampling bases (no in-kernel concat of D-wide
    # slices).  Column h*P + p -> z-anchor p % D (BEVFormer flatten ordering).
    rep = HP // D
    base_x = (jnp.tile(reference_points_3d[..., 0], (1, 1, 1, rep))
              * float(fw) - 0.5).astype(jnp.float32)            # (b,n,Lq,H*P)
    base_y = (jnp.tile(reference_points_3d[..., 1], (1, 1, 1, rep))
              * float(fh) - 0.5).astype(jnp.float32)

    # Per-camera visibility, built (like the reference) from batch sample 0.
    # TODO(synk): the PyTorch `bev_mask[:, i, ..., 0]` indexing is degenerate;
    #             interpreted as the intended "visible at any z anchor".
    vis = (jnp.sum(bev_mask[0].astype(jnp.float32), axis=-1) > 0)
    vis = vis.astype(jnp.float32)[:, :, None]                   # (n, Lq, 1)

    # Fused query-side weights [off_x | off_y | attn]; bf16 MXU operands
    # (f32 accumulation in the kernel) also halve weight/value DMA bytes.
    w_qk = jnp.concatenate([params["w_off_k"], params["w_att"]],
                           axis=1).astype(jnp.bfloat16)         # (d, 3*H*P)
    b_qk = jnp.concatenate([params["b_off_k"], params["b_att"]], axis=1)
    w_prj = params["w_prj"].astype(jnp.bfloat16)
    w_out = params["w_out"].astype(jnp.bfloat16)

    if q_tile is None:
        # Safe default across generations (incl. v7x 64 MiB VMEM); raise to
        # 512-1024 on v5e/v6e to amortise the per-step value refetch.
        q_tile = min(Lq, 256)
    assert Lq % q_tile == 0 and q_tile % 8 == 0
    n_qt = Lq // q_tile
    # v7x megacore note: b * n_qt should be >= 2 (and balanced) so both
    # TensorCores get work on the two "parallel" axes.

    if vmem_limit_bytes is None:
        # Footprint-based limit (+50% headroom) instead of a blanket maximum.
        blocks = 2 * (q_tile * d * 2 + Lv_ext * d * 2 + 2 * q_tile * HP * 4
                      + q_tile * 4 + q_tile * d * 4)            # double-buffered
        weights = 2 * (d * 3 * HP * 2 + 3 * HP * 4 + 2 * d * d * 2 + 2 * d * 4)
        live = (5 * Lv_ext * d * 4                              # rolled values
                + 4 * q_tile * lv_chunk * 4                     # B accumulators
                + 16 * q_tile * HP * 4                          # geometry temps
                + 4 * q_tile * d * 4)
        scratch = q_tile * d * 4 + q_tile * 4
        est = blocks + weights + live + scratch
        vmem_limit_bytes = int(min(max(int(1.5 * est), 32 * 1024 * 1024),
                                   96 * 1024 * 1024))

    kern = functools.partial(_sca_kernel, H=H, P=P, dh=dh, feat_h=fh, feat_w=fw,
                             lv_chunk=lv_chunk, n_chunks=n_chunks, n_batch=b)

    qmap = lambda j, t, i: (j, i, t, 0)
    vmap_ = lambda j, t, i: (j, i, 0, 0)
    vismap = lambda j, t, i: (i, t, 0)
    wmap = lambda j, t, i: (0, 0)
    omap = lambda j, t, i: (j, t, 0)        # camera-invariant -> resident acc

    out = pl.pallas_call(
        kern,
        out_shape=jax.ShapeDtypeStruct((b, Lq, d), jnp.float32),
        grid=(b, n_qt, n),
        in_specs=[
            pl.BlockSpec((None, None, q_tile, d), qmap),     # queries + pos
            pl.BlockSpec((None, None, Lv_ext, d), vmap_),    # projected values
            pl.BlockSpec((None, None, q_tile, HP), qmap),    # base x
            pl.BlockSpec((None, None, q_tile, HP), qmap),    # base y
            pl.BlockSpec((None, q_tile, 1), vismap),         # visibility
            pl.BlockSpec((d, 3 * HP), wmap),                 # w_off|w_att fused
            pl.BlockSpec((1, 3 * HP), wmap),                 # b_off|b_att fused
            pl.BlockSpec((d, d), wmap),                      # w_prj
            pl.BlockSpec((1, d), wmap),                      # b_prj
            pl.BlockSpec((d, d), wmap),                      # w_out
            pl.BlockSpec((1, d), wmap),                      # b_out
        ],
        out_specs=pl.BlockSpec((None, q_tile, d), omap),
        scratch_shapes=[pltpu.VMEM((q_tile, d), jnp.float32),
                        pltpu.VMEM((q_tile, 1), jnp.float32)],
        compiler_params=pltpu.CompilerParams(
            dimension_semantics=("parallel", "parallel", "arbitrary"),
            vmem_limit_bytes=vmem_limit_bytes),
    )(q_pos, v_ext, base_x, base_y, vis,
      w_qk, b_qk, w_prj, params["b_prj"], w_out, params["b_out"])
    return out


# ----------------------------------------------------------------------------
# Deterministic synthetic parameters
# ----------------------------------------------------------------------------
def _xavier(key, shape):
    limit = (6.0 / (shape[0] + shape[1])) ** 0.5
    return jax.random.uniform(key, shape, jnp.float32, -limit, limit)


def make_params(key, d, n_heads, n_points):
    H, P = n_heads, 2 * n_points
    ks = jax.random.split(key, 8)
    # sampling_offsets Linear(d, H*1*P*2) in PyTorch column order ((h*P+p)*2+xy)
    w_off = 0.05 * jax.random.normal(ks[0], (d, 2 * H * P), jnp.float32)
    b_off = 0.05 * jax.random.normal(ks[1], (2 * H * P,), jnp.float32)
    # permute columns to the kernel layout: [all x (h-major, p-minor) | all y]
    perm = jnp.array([(h * P + p) * 2 + xy
                      for xy in range(2) for h in range(H) for p in range(P)],
                     dtype=jnp.int32)
    return dict(
        w_off_k=w_off[:, perm], b_off_k=b_off[perm][None, :],
        w_att=_xavier(ks[2], (d, H * P)), b_att=jnp.zeros((1, H * P), jnp.float32),
        w_val=_xavier(ks[3], (d, d)), b_val=jnp.zeros((1, d), jnp.float32),
        w_prj=_xavier(ks[4], (d, d)), b_prj=jnp.zeros((1, d), jnp.float32),
        # SpatialCrossAttention.output_proj: xavier weight, zero bias
        w_out=_xavier(ks[5], (d, d)), b_out=jnp.zeros((1, d), jnp.float32),
    )


# ----------------------------------------------------------------------------
# Pure-JAX (f32) dense reference for a numerical self-check
# ----------------------------------------------------------------------------
def _reference_sca(queries, embeds, features, reference_points_3d, bev_mask,
                   params, *, n_heads, n_points, z_candi):
    pos_emb, lvl_emb, cam_emb = embeds
    b, n, Lq, d = queries.shape
    H, P, D = n_heads, 2 * n_points, len(z_candi)
    dh = d // H
    f = features[0]
    c, fh, fw = f.shape[1], f.shape[2], f.shape[3]
    x = f.reshape(b, n, c, fh * fw)
    x = x + lvl_emb[0][None, None, :, None] + cam_emb[None, :, :, None]
    value_in = jnp.transpose(x, (0, 1, 3, 2))                       # (b,n,Lv,d)
    q_pos = queries + pos_emb

    off = jnp.einsum("bnqd,de->bnqe", q_pos, params["w_off_k"]) + params["b_off_k"][0]
    aw = jnp.einsum("bnqd,de->bnqe", q_pos, params["w_att"]) + params["b_att"][0]
    val = jnp.einsum("bnvd,de->bnve", value_in, params["w_val"]) + params["b_val"][0]

    a = jax.nn.softmax(aw.reshape(b, n, Lq, H, P), axis=-1)
    off_x = off[..., :H * P].reshape(b, n, Lq, H, P)
    off_y = off[..., H * P:].reshape(b, n, Lq, H, P)
    rep = P // D
    refx = jnp.tile(reference_points_3d[..., 0], (1, 1, 1, rep))[:, :, :, None, :]
    refy = jnp.tile(reference_points_3d[..., 1], (1, 1, 1, rep))[:, :, :, None, :]
    x_ = refx * fw + off_x - 0.5
    y_ = refy * fh + off_y - 0.5
    x0 = jnp.floor(x_)
    y0 = jnp.floor(y_)
    fx = x_ - x0
    fy = y_ - y0

    bi = jnp.arange(b)[:, None, None, None, None]
    ni = jnp.arange(n)[None, :, None, None, None]
    sampled = jnp.zeros((b, n, Lq, H, d), jnp.float32)
    for dx, dy in ((0, 0), (1, 0), (0, 1), (1, 1)):
        cx = x0 + dx
        cy = y0 + dy
        bw = (fx if dx else 1.0 - fx) * (fy if dy else 1.0 - fy)
        valid = ((cx >= 0.0) & (cx <= fw - 1.0) &
                 (cy >= 0.0) & (cy <= fh - 1.0)).astype(jnp.float32)
        w = a * bw * valid                                          # (b,n,Lq,H,P)
        flat = (jnp.clip(cy, 0.0, fh - 1.0) * fw +
                jnp.clip(cx, 0.0, fw - 1.0)).astype(jnp.int32)
        g = val[bi, ni, flat]                                       # (b,n,Lq,H,P,d)
        sampled = sampled + jnp.sum(w[..., None] * g, axis=4)
    feat = jnp.concatenate([sampled[..., h, h * dh:(h + 1) * dh]
                            for h in range(H)], axis=-1)            # (b,n,Lq,d)
    attn = jnp.einsum("bnqd,de->bnqe", feat, params["w_prj"]) + params["b_prj"][0]

    vis = (jnp.sum(bev_mask[0].astype(jnp.float32), axis=-1) > 0).astype(jnp.float32)
    slots = jnp.sum(attn * vis[None, :, :, None], axis=1)           # (b,Lq,d)
    cnt = jnp.maximum(jnp.sum(vis, axis=0) * float(b), 1.0)         # (Lq,)
    slots = slots / cnt[None, :, None]
    return jnp.einsum("bqd,de->bqe", slots, params["w_out"]) + params["b_out"][0]


if __name__ == "__main__":
    cfg = {"bev": {"h": 8, "w": 8}, "encoder": {"z_candi": [-1.0, 0.0, 1.0, 2.0]}}
    d_model, n_heads, n_points, n_levels = 32, 4, 4, 1
    b, n_cam = 2, 2
    Lq = cfg["bev"]["h"] * cfg["bev"]["w"]          # 64 BEV queries
    D = len(cfg["encoder"]["z_candi"])              # 4 z anchors
    feat_h, feat_w = 8, 8

    key = jax.random.PRNGKey(0)
    kp, *ki = jax.random.split(key, 9)
    params = make_params(kp, d_model, n_heads, n_points)

    queries = jax.random.normal(ki[0], (b, n_cam, Lq, d_model), jnp.float32)
    pos_emb = 0.1 * jax.random.normal(ki[1], (b, 1, Lq, d_model), jnp.float32)
    lvl_emb = 0.1 * jax.random.normal(ki[2], (n_levels, d_model), jnp.float32)
    cam_emb = 0.1 * jax.random.normal(ki[3], (n_cam, d_model), jnp.float32)
    features = [jax.random.normal(ki[4], (b * n_cam, d_model, feat_h, feat_w),
                                  jnp.float32)]
    reference_points_3d = jax.random.uniform(ki[5], (b, n_cam, Lq, D, 2),
                                             jnp.float32)
    bev_mask = jax.random.bernoulli(ki[6], 0.6, (b, n_cam, Lq, D))

    out = spatial_cross_attention(
        queries, (pos_emb, lvl_emb, cam_emb), features,
        reference_points_3d, bev_mask, params,
        n_heads=n_heads, n_points=n_points,
        z_candi=cfg["encoder"]["z_candi"], q_tile=32)
    out = jax.block_until_ready(out)

    assert out.shape == (b, Lq, d_model)
    assert bool(jnp.all(jnp.isfinite(out)))

    ref = _reference_sca(queries, (pos_emb, lvl_emb, cam_emb), features,
                         reference_points_3d, bev_mask, params,
                         n_heads=n_heads, n_points=n_points,
                         z_candi=cfg["encoder"]["z_candi"])
    err = float(jnp.max(jnp.abs(out - ref)))
    assert err < 1e-1, f"mismatch vs pure-JAX reference: {err}"
    print("KERNEL_OK")
</pallas_src>

<mosaic_0001>
module attributes {stable_mosaic.version = 11 : i64} {
  func.func @_sca_kernel(%arg0: i32, %arg1: i32, %arg2: i32, %arg3: memref<1x1x32x32xbf16, #tpu.memory_space<vmem>>, %arg4: memref<1x1x128x32xbf16, #tpu.memory_space<vmem>>, %arg5: memref<1x1x32x32xf32, #tpu.memory_space<vmem>>, %arg6: memref<1x1x32x32xf32, #tpu.memory_space<vmem>>, %arg7: memref<1x32x1xf32, #tpu.memory_space<vmem>>, %arg8: memref<32x96xbf16, #tpu.memory_space<vmem>>, %arg9: memref<1x96xf32, #tpu.memory_space<vmem>>, %arg10: memref<32x32xbf16, #tpu.memory_space<vmem>>, %arg11: memref<1x32xf32, #tpu.memory_space<vmem>>, %arg12: memref<32x32xbf16, #tpu.memory_space<vmem>>, %arg13: memref<1x32xf32, #tpu.memory_space<vmem>>, %arg14: memref<1x32x32xf32, #tpu.memory_space<vmem>>, %arg15: memref<32x32xf32, #tpu.memory_space<vmem>>, %arg16: memref<32x1xf32, #tpu.memory_space<vmem>>) attributes {dimension_semantics = [#tpu.dimension_semantics<parallel>, #tpu.dimension_semantics<parallel>, #tpu.dimension_semantics<arbitrary>], iteration_bounds = array<i64: 2, 2, 2>, scalar_prefetch = 0 : i64, scratch_operands = 2 : i64, tpu.core_type = #tpu.core_type<tc>, window_params = [{transform_indices = @transform_0, window_bounds = array<i64: 1, 1, 32, 32>}, {transform_indices = @transform_1, window_bounds = array<i64: 1, 1, 128, 32>}, {transform_indices = @transform_2, window_bounds = array<i64: 1, 1, 32, 32>}, {transform_indices = @transform_3, window_bounds = array<i64: 1, 1, 32, 32>}, {transform_indices = @transform_4, window_bounds = array<i64: 1, 32, 1>}, {pipeline_mode = #tpu.pipeline_mode<synchronous>, transform_indices = @transform_5, window_bounds = array<i64: 32, 96>}, {pipeline_mode = #tpu.pipeline_mode<synchronous>, transform_indices = @transform_6, window_bounds = array<i64: 1, 96>}, {pipeline_mode = #tpu.pipeline_mode<synchronous>, transform_indices = @transform_7, window_bounds = array<i64: 32, 32>}, {pipeline_mode = #tpu.pipeline_mode<synchronous>, transform_indices = @transform_8, window_bounds = array<i64: 1, 32>}, {pipeline_mode = #tpu.pipeline_mode<synchronous>, transform_indices = @transform_9, window_bounds = array<i64: 32, 32>}, {pipeline_mode = #tpu.pipeline_mode<synchronous>, transform_indices = @transform_10, window_bounds = array<i64: 1, 32>}, {transform_indices = @transform_11, window_bounds = array<i64: 1, 32, 32>}]} {
    %c0_i32 = arith.constant 0 : i32
    %0 = arith.cmpi eq, %arg2, %c0_i32 : i32
    %1 = arith.extui %0 : i1 to i32
    %c0_i32_0 = arith.constant 0 : i32
    %2 = arith.cmpi ne, %1, %c0_i32_0 : i32
    scf.if %2 {
      %cst_248 = arith.constant 0.000000e+00 : f32
      %1215 = vector.broadcast %cst_248 : f32 to vector<32x32xf32>
      %c0_249 = arith.constant 0 : index
      %c0_250 = arith.constant 0 : index
      %1216 = vector.load %arg15[%c0_249, %c0_250] : memref<32x32xf32, #tpu.memory_space<vmem>>, vector<32x32xf32>
      tpu.vector_store %arg15[%c0_249, %c0_250], %1215 {strides = array<i32>} : memref<32x32xf32, #tpu.memory_space<vmem>>, vector<32x32xf32>,
      %cst_251 = arith.constant 0.000000e+00 : f32
      %1217 = vector.broadcast %cst_251 : f32 to vector<32x1xf32>
      %c0_252 = arith.constant 0 : index
      %c0_253 = arith.constant 0 : index
      %1218 = vector.load %arg16[%c0_252, %c0_253] : memref<32x1xf32, #tpu.memory_space<vmem>>, vector<32x1xf32>
      tpu.vector_store %arg16[%c0_252, %c0_253], %1217 {strides = array<i32>} : memref<32x1xf32, #tpu.memory_space<vmem>>, vector<32x1xf32>,
    } else {
    }
    %c0 = arith.constant 0 : index
    %c0_1 = arith.constant 0 : index
    %c0_2 = arith.constant 0 : index
    %c0_3 = arith.constant 0 : index
    %3 = vector.load %arg3[%c0, %c0_1, %c0_2, %c0_3] : memref<1x1x32x32xbf16, #tpu.memory_space<vmem>>, vector<1x1x32x32xbf16>
    %4 = vector.shape_cast %3 : vector<1x1x32x32xbf16> to vector<32x32xbf16>
    %c0_4 = arith.constant 0 : index
    %c0_5 = arith.constant 0 : index
    %5 = vector.load %arg8[%c0_4, %c0_5] : memref<32x96xbf16, #tpu.memory_space<vmem>>, vector<32x96xbf16>
    %cst = arith.constant dense<0.000000e+00> : vector<32x96xf32>
    %6 = tpu.matmul %4, %5, %cst {dimension_numbers = #tpu.dot_dimension_numbers<[1], [0], [0], [1], [0, 0, 1, 1], [], []>} : vector<32x32xbf16>, vector<32x96xbf16>, vector<32x96xf32> -> vector<32x96xf32>
    %c0_6 = arith.constant 0 : index
    %c0_7 = arith.constant 0 : index
    %7 = vector.load %arg9[%c0_6, %c0_7] : memref<1x96xf32, #tpu.memory_space<vmem>>, vector<1x96xf32>
    %8 = vector.broadcast %7 : vector<1x96xf32> to vector<32x96xf32>
    %9 = arith.addf %6, %8 : vector<32x96xf32>
    %10 = vector.extract_strided_slice %9 {offsets = [0, 0], sizes = [32, 32], strides = [1, 1]} : vector<32x96xf32> to vector<32x32xf32>
    %11 = vector.extract_strided_slice %9 {offsets = [0, 32], sizes = [32, 32], strides = [1, 1]} : vector<32x96xf32> to vector<32x32xf32>
    %12 = vector.extract_strided_slice %9 {offsets = [0, 64], sizes = [32, 32], strides = [1, 1]} : vector<32x96xf32> to vector<32x32xf32>
    %c0_8 = arith.constant 0 : index
    %c0_9 = arith.constant 0 : index
    %c0_10 = arith.constant 0 : index
    %c0_11 = arith.constant 0 : index
    %13 = vector.load %arg5[%c0_8, %c0_9, %c0_10, %c0_11] : memref<1x1x32x32xf32, #tpu.memory_space<vmem>>, vector<1x1x32x32xf32>
    %14 = vector.shape_cast %13 : vector<1x1x32x32xf32> to vector<32x32xf32>
    %15 = arith.addf %14, %10 : vector<32x32xf32>
    %c0_12 = arith.constant 0 : index
    %c0_13 = arith.constant 0 : index
    %c0_14 = arith.constant 0 : index
    %c0_15 = arith.constant 0 : index
    %16 = vector.load %arg6[%c0_12, %c0_13, %c0_14, %c0_15] : memref<1x1x32x32xf32, #tpu.memory_space<vmem>>, vector<1x1x32x32xf32>
    %17 = vector.shape_cast %16 : vector<1x1x32x32xf32> to vector<32x32xf32>
    %18 = arith.addf %17, %11 : vector<32x32xf32>
    %19 = math.floor %15 : vector<32x32xf32>
    %20 = math.floor %18 : vector<32x32xf32>
    %21 = arith.subf %15, %19 : vector<32x32xf32>
    %22 = arith.subf %18, %20 : vector<32x32xf32>
    %cst_16 = arith.constant 8.000000e+00 : f32
    %23 = vector.broadcast %cst_16 : f32 to vector<32x32xf32>
    %24 = arith.mulf %20, %23 : vector<32x32xf32>
    %25 = arith.addf %24, %19 : vector<32x32xf32>
    %cst_17 = arith.constant 9.000000e+00 : f32
    %26 = vector.broadcast %cst_17 : f32 to vector<32x32xf32>
    %27 = arith.addf %25, %26 : vector<32x32xf32>
    %28 = arith.fptosi %27 : vector<32x32xf32> to vector<32x32xi32>
    %cst_18 = arith.constant 0.000000e+00 : f32
    %29 = vector.broadcast %cst_18 : f32 to vector<32x32xf32>
    %30 = arith.addf %19, %29 : vector<32x32xf32>
    %cst_19 = arith.constant 0.000000e+00 : f32
    %31 = vector.broadcast %cst_19 : f32 to vector<32x32xf32>
    %32 = arith.addf %20, %31 : vector<32x32xf32>
    %cst_20 = arith.constant 1.000000e+00 : f32
    %33 = vector.broadcast %cst_20 : f32 to vector<32x32xf32>
    %34 = arith.subf %33, %21 : vector<32x32xf32>
    %cst_21 = arith.constant 1.000000e+00 : f32
    %35 = vector.broadcast %cst_21 : f32 to vector<32x32xf32>
    %36 = arith.subf %35, %22 : vector<32x32xf32>
    %37 = arith.mulf %34, %36 : vector<32x32xf32>
    %cst_22 = arith.constant 0.000000e+00 : f32
    %38 = vector.broadcast %cst_22 : f32 to vector<32x32xf32>
    %39 = arith.cmpf oge, %30, %38 : vector<32x32xf32>
    %cst_23 = arith.constant 7.000000e+00 : f32
    %40 = vector.broadcast %cst_23 : f32 to vector<32x32xf32>
    %41 = arith.cmpf ole, %30, %40 : vector<32x32xf32>
    %42 = arith.andi %39, %41 : vector<32x32xi1>
    %cst_24 = arith.constant 0.000000e+00 : f32
    %43 = vector.broadcast %cst_24 : f32 to vector<32x32xf32>
    %44 = arith.cmpf oge, %32, %43 : vector<32x32xf32>
    %45 = arith.andi %42, %44 : vector<32x32xi1>
    %cst_25 = arith.constant 7.000000e+00 : f32
    %46 = vector.broadcast %cst_25 : f32 to vector<32x32xf32>
    %47 = arith.cmpf ole, %32, %46 : vector<32x32xf32>
    %48 = arith.andi %45, %47 : vector<32x32xi1>
    %cst_26 = arith.constant 0.000000e+00 : f32
    %49 = vector.broadcast %cst_26 : f32 to vector<32x32xf32>
    %50 = arith.select %48, %37, %49 : vector<32x32xi1>, vector<32x32xf32>
    %cst_27 = arith.constant 1.000000e+00 : f32
    %51 = vector.broadcast %cst_27 : f32 to vector<32x32xf32>
    %52 = arith.addf %19, %51 : vector<32x32xf32>
    %cst_28 = arith.constant 0.000000e+00 : f32
    %53 = vector.broadcast %cst_28 : f32 to vector<32x32xf32>
    %54 = arith.addf %20, %53 : vector<32x32xf32>
    %cst_29 = arith.constant 1.000000e+00 : f32
    %55 = vector.broadcast %cst_29 : f32 to vector<32x32xf32>
    %56 = arith.subf %55, %22 : vector<32x32xf32>
    %57 = arith.mulf %21, %56 : vector<32x32xf32>
    %cst_30 = arith.constant 0.000000e+00 : f32
    %58 = vector.broadcast %cst_30 : f32 to vector<32x32xf32>
    %59 = arith.cmpf oge, %52, %58 : vector<32x32xf32>
    %cst_31 = arith.constant 7.000000e+00 : f32
    %60 = vector.broadcast %cst_31 : f32 to vector<32x32xf32>
    %61 = arith.cmpf ole, %52, %60 : vector<32x32xf32>
    %62 = arith.andi %59, %61 : vector<32x32xi1>
    %cst_32 = arith.constant 0.000000e+00 : f32
    %63 = vector.broadcast %cst_32 : f32 to vector<32x32xf32>
    %64 = arith.cmpf oge, %54, %63 : vector<32x32xf32>
    %65 = arith.andi %62, %64 : vector<32x32xi1>
    %cst_33 = arith.constant 7.000000e+00 : f32
    %66 = vector.broadcast %cst_33 : f32 to vector<32x32xf32>
    %67 = arith.cmpf ole, %54, %66 : vector<32x32xf32>
    %68 = arith.andi %65, %67 : vector<32x32xi1>
    %cst_34 = arith.constant 0.000000e+00 : f32
    %69 = vector.broadcast %cst_34 : f32 to vector<32x32xf32>
    %70 = arith.select %68, %57, %69 : vector<32x32xi1>, vector<32x32xf32>
    %cst_35 = arith.constant 0.000000e+00 : f32
    %71 = vector.broadcast %cst_35 : f32 to vector<32x32xf32>
    %72 = arith.addf %19, %71 : vector<32x32xf32>
    %cst_36 = arith.constant 1.000000e+00 : f32
    %73 = vector.broadcast %cst_36 : f32 to vector<32x32xf32>
    %74 = arith.addf %20, %73 : vector<32x32xf32>
    %cst_37 = arith.constant 1.000000e+00 : f32
    %75 = vector.broadcast %cst_37 : f32 to vector<32x32xf32>
    %76 = arith.subf %75, %21 : vector<32x32xf32>
    %77 = arith.mulf %76, %22 : vector<32x32xf32>
    %cst_38 = arith.constant 0.000000e+00 : f32
    %78 = vector.broadcast %cst_38 : f32 to vector<32x32xf32>
    %79 = arith.cmpf oge, %72, %78 : vector<32x32xf32>
    %cst_39 = arith.constant 7.000000e+00 : f32
    %80 = vector.broadcast %cst_39 : f32 to vector<32x32xf32>
    %81 = arith.cmpf ole, %72, %80 : vector<32x32xf32>
    %82 = arith.andi %79, %81 : vector<32x32xi1>
    %cst_40 = arith.constant 0.000000e+00 : f32
    %83 = vector.broadcast %cst_40 : f32 to vector<32x32xf32>
    %84 = arith.cmpf oge, %74, %83 : vector<32x32xf32>
    %85 = arith.andi %82, %84 : vector<32x32xi1>
    %cst_41 = arith.constant 7.000000e+00 : f32
    %86 = vector.broadcast %cst_41 : f32 to vector<32x32xf32>
    %87 = arith.cmpf ole, %74, %86 : vector<32x32xf32>
    %88 = arith.andi %85, %87 : vector<32x32xi1>
    %cst_42 = arith.constant 0.000000e+00 : f32
    %89 = vector.broadcast %cst_42 : f32 to vector<32x32xf32>
    %90 = arith.select %88, %77, %89 : vector<32x32xi1>, vector<32x32xf32>
    %cst_43 = arith.constant 1.000000e+00 : f32
    %91 = vector.broadcast %cst_43 : f32 to vector<32x32xf32>
    %92 = arith.addf %19, %91 : vector<32x32xf32>
    %cst_44 = arith.constant 1.000000e+00 : f32
    %93 = vector.broadcast %cst_44 : f32 to vector<32x32xf32>
    %94 = arith.addf %20, %93 : vector<32x32xf32>
    %95 = arith.mulf %21, %22 : vector<32x32xf32>
    %cst_45 = arith.constant 0.000000e+00 : f32
    %96 = vector.broadcast %cst_45 : f32 to vector<32x32xf32>
    %97 = arith.cmpf oge, %92, %96 : vector<32x32xf32>
    %cst_46 = arith.constant 7.000000e+00 : f32
    %98 = vector.broadcast %cst_46 : f32 to vector<32x32xf32>
    %99 = arith.cmpf ole, %92, %98 : vector<32x32xf32>
    %100 = arith.andi %97, %99 : vector<32x32xi1>
    %cst_47 = arith.constant 0.000000e+00 : f32
    %101 = vector.broadcast %cst_47 : f32 to vector<32x32xf32>
    %102 = arith.cmpf oge, %94, %101 : vector<32x32xf32>
    %103 = arith.andi %100, %102 : vector<32x32xi1>
    %cst_48 = arith.constant 7.000000e+00 : f32
    %104 = vector.broadcast %cst_48 : f32 to vector<32x32xf32>
    %105 = arith.cmpf ole, %94, %104 : vector<32x32xf32>
    %106 = arith.andi %103, %105 : vector<32x32xi1>
    %cst_49 = arith.constant 0.000000e+00 : f32
    %107 = vector.broadcast %cst_49 : f32 to vector<32x32xf32>
    %108 = arith.select %106, %95, %107 : vector<32x32xi1>, vector<32x32xf32>
    %c0_50 = arith.constant 0 : index
    %c0_51 = arith.constant 0 : index
    %c0_52 = arith.constant 0 : index
    %c0_53 = arith.constant 0 : index
    %109 = vector.load %arg4[%c0_50, %c0_51, %c0_52, %c0_53] : memref<1x1x128x32xbf16, #tpu.memory_space<vmem>>, vector<1x1x128x32xbf16>
    %110 = vector.shape_cast %109 : vector<1x1x128x32xbf16> to vector<128x32xbf16>
    %111 = arith.extf %110 : vector<128x32xbf16> to vector<128x32xf32>
    %c127_i32 = arith.constant 127 : i32
    %112 = tpu.dynamic_rotate %111 by %c127_i32 dim 0 : vector<128x32xf32>, i32 -> vector<128x32xf32>
    %113 = arith.truncf %112 : vector<128x32xf32> to vector<128x32xbf16>
    %c120_i32 = arith.constant 120 : i32
    %114 = tpu.dynamic_rotate %111 by %c120_i32 dim 0 : vector<128x32xf32>, i32 -> vector<128x32xf32>
    %115 = arith.truncf %114 : vector<128x32xf32> to vector<128x32xbf16>
    %c119_i32 = arith.constant 119 : i32
    %116 = tpu.dynamic_rotate %111 by %c119_i32 dim 0 : vector<128x32xf32>, i32 -> vector<128x32xf32>
    %117 = arith.truncf %116 : vector<128x32xf32> to vector<128x32xbf16>
    %118 = tpu.iota {dimensions = array<i32: 1>} : vector<1x128xi32>
    %c0_i32_54 = arith.constant 0 : i32
    %119 = vector.broadcast %c0_i32_54 : i32 to vector<1x128xi32>
    %120 = arith.addi %118, %119 : vector<1x128xi32>
    %c0_55 = arith.constant 0 : index
    %c0_56 = arith.constant 0 : index
    %121 = vector.load %arg10[%c0_55, %c0_56] : memref<32x32xbf16, #tpu.memory_space<vmem>>, vector<32x32xbf16>
    %cst_57 = arith.constant 0.000000e+00 : f32
    %122 = vector.broadcast %cst_57 : f32 to vector<32x32xf32>
    %123 = vector.extract_strided_slice %12 {offsets = [0, 0], sizes = [32, 8], strides = [1, 1]} : vector<32x32xf32> to vector<32x8xf32>
    %cst_58 = arith.constant dense<0xFF800000> : vector<32xf32>
    %124 = vector.multi_reduction <maximumf>, %123, %cst_58 [1] : vector<32x8xf32> to vector<32xf32>
    %125 = vector.shape_cast %124 : vector<32xf32> to vector<32x1xf32>
    %126 = vector.broadcast %125 : vector<32x1xf32> to vector<32x8xf32>
    %127 = arith.subf %123, %126 : vector<32x8xf32>
    %128 = math.exp %127 : vector<32x8xf32>
    %cst_59 = arith.constant dense<0.000000e+00> : vector<32xf32>
    %129 = vector.multi_reduction <add>, %128, %cst_59 [1] : vector<32x8xf32> to vector<32xf32>
    %130 = vector.shape_cast %129 : vector<32xf32> to vector<32x1xf32>
    %131 = vector.extract_strided_slice %50 {offsets = [0, 0], sizes = [32, 8], strides = [1, 1]} : vector<32x32xf32> to vector<32x8xf32>
    %132 = arith.mulf %128, %131 : vector<32x8xf32>
    %133 = vector.extract_strided_slice %70 {offsets = [0, 0], sizes = [32, 8], strides = [1, 1]} : vector<32x32xf32> to vector<32x8xf32>
    %134 = arith.mulf %128, %133 : vector<32x8xf32>
    %135 = vector.extract_strided_slice %90 {offsets = [0, 0], sizes = [32, 8], strides = [1, 1]} : vector<32x32xf32> to vector<32x8xf32>
    %136 = arith.mulf %128, %135 : vector<32x8xf32>
    %137 = vector.extract_strided_slice %108 {offsets = [0, 0], sizes = [32, 8], strides = [1, 1]} : vector<32x32xf32> to vector<32x8xf32>
    %138 = arith.mulf %128, %137 : vector<32x8xf32>
    %139 = vector.extract_strided_slice %28 {offsets = [0, 0], sizes = [32, 8], strides = [1, 1]} : vector<32x32xi32> to vector<32x8xi32>
    %cst_60 = arith.constant 0.000000e+00 : f32
    %140 = vector.broadcast %cst_60 : f32 to vector<32x8xf32>
    %cst_61 = arith.constant 0.000000e+00 : f32
    %141 = vector.broadcast %cst_61 : f32 to vector<32x128xf32>
    %cst_62 = arith.constant 0.000000e+00 : f32
    %142 = vector.broadcast %cst_62 : f32 to vector<32x128xf32>
    %cst_63 = arith.constant 0.000000e+00 : f32
    %143 = vector.broadcast %cst_63 : f32 to vector<32x128xf32>
    %cst_64 = arith.constant 0.000000e+00 : f32
    %144 = vector.broadcast %cst_64 : f32 to vector<32x128xf32>
    %145 = vector.extract_strided_slice %139 {offsets = [0, 0], sizes = [32, 1], strides = [1, 1]} : vector<32x8xi32> to vector<32x1xi32>
    %146 = vector.broadcast %145 : vector<32x1xi32> to vector<32x128xi32>
    %147 = vector.broadcast %120 : vector<1x128xi32> to vector<32x128xi32>
    %148 = arith.cmpi eq, %146, %147 : vector<32x128xi32>
    %149 = vector.extract_strided_slice %132 {offsets = [0, 0], sizes = [32, 1], strides = [1, 1]} : vector<32x8xf32> to vector<32x1xf32>
    %cst_65 = arith.constant 0.000000e+00 : f32
    %150 = vector.shape_cast %149 : vector<32x1xf32> to vector<32x1xf32>
    %151 = vector.broadcast %150 : vector<32x1xf32> to vector<32x128xf32>
    %152 = vector.broadcast %cst_65 : f32 to vector<32x128xf32>
    %153 = arith.select %148, %151, %152 : vector<32x128xi1>, vector<32x128xf32>
    %154 = arith.addf %141, %153 : vector<32x128xf32>
    %155 = vector.extract_strided_slice %134 {offsets = [0, 0], sizes = [32, 1], strides = [1, 1]} : vector<32x8xf32> to vector<32x1xf32>
    %cst_66 = arith.constant 0.000000e+00 : f32
    %156 = vector.shape_cast %155 : vector<32x1xf32> to vector<32x1xf32>
    %157 = vector.broadcast %156 : vector<32x1xf32> to vector<32x128xf32>
    %158 = vector.broadcast %cst_66 : f32 to vector<32x128xf32>
    %159 = arith.select %148, %157, %158 : vector<32x128xi1>, vector<32x128xf32>
    %160 = arith.addf %142, %159 : vector<32x128xf32>
    %161 = vector.extract_strided_slice %136 {offsets = [0, 0], sizes = [32, 1], strides = [1, 1]} : vector<32x8xf32> to vector<32x1xf32>
    %cst_67 = arith.constant 0.000000e+00 : f32
    %162 = vector.shape_cast %161 : vector<32x1xf32> to vector<32x1xf32>
    %163 = vector.broadcast %162 : vector<32x1xf32> to vector<32x128xf32>
    %164 = vector.broadcast %cst_67 : f32 to vector<32x128xf32>
    %165 = arith.select %148, %163, %164 : vector<32x128xi1>, vector<32x128xf32>
    %166 = arith.addf %143, %165 : vector<32x128xf32>
    %167 = vector.extract_strided_slice %138 {offsets = [0, 0], sizes = [32, 1], strides = [1, 1]} : vector<32x8xf32> to vector<32x1xf32>
    %cst_68 = arith.constant 0.000000e+00 : f32
    %168 = vector.shape_cast %167 : vector<32x1xf32> to vector<32x1xf32>
    %169 = vector.broadcast %168 : vector<32x1xf32> to vector<32x128xf32>
    %170 = vector.broadcast %cst_68 : f32 to vector<32x128xf32>
    %171 = arith.select %148, %169, %170 : vector<32x128xi1>, vector<32x128xf32>
    %172 = arith.addf %144, %171 : vector<32x128xf32>
    %173 = vector.extract_strided_slice %139 {offsets = [0, 1], sizes = [32, 1], strides = [1, 1]} : vector<32x8xi32> to vector<32x1xi32>
    %174 = vector.broadcast %173 : vector<32x1xi32> to vector<32x128xi32>
    %175 = vector.broadcast %120 : vector<1x128xi32> to vector<32x128xi32>
    %176 = arith.cmpi eq, %174, %175 : vector<32x128xi32>
    %177 = vector.extract_strided_slice %132 {offsets = [0, 1], sizes = [32, 1], strides = [1, 1]} : vector<32x8xf32> to vector<32x1xf32>
    %cst_69 = arith.constant 0.000000e+00 : f32
    %178 = vector.shape_cast %177 : vector<32x1xf32> to vector<32x1xf32>
    %179 = vector.broadcast %178 : vector<32x1xf32> to vector<32x128xf32>
    %180 = vector.broadcast %cst_69 : f32 to vector<32x128xf32>
    %181 = arith.select %176, %179, %180 : vector<32x128xi1>, vector<32x128xf32>
    %182 = arith.addf %154, %181 : vector<32x128xf32>
    %183 = vector.extract_strided_slice %134 {offsets = [0, 1], sizes = [32, 1], strides = [1, 1]} : vector<32x8xf32> to vector<32x1xf32>
    %cst_70 = arith.constant 0.000000e+00 : f32
    %184 = vector.shape_cast %183 : vector<32x1xf32> to vector<32x1xf32>
    %185 = vector.broadcast %184 : vector<32x1xf32> to vector<32x128xf32>
    %186 = vector.broadcast %cst_70 : f32 to vector<32x128xf32>
    %187 = arith.select %176, %185, %186 : vector<32x128xi1>, vector<32x128xf32>
    %188 = arith.addf %160, %187 : vector<32x128xf32>
    %189 = vector.extract_strided_slice %136 {offsets = [0, 1], sizes = [32, 1], strides = [1, 1]} : vector<32x8xf32> to vector<32x1xf32>
    %cst_71 = arith.constant 0.000000e+00 : f32
    %190 = vector.shape_cast %189 : vector<32x1xf32> to vector<32x1xf32>
    %191 = vector.broadcast %190 : vector<32x1xf32> to vector<32x128xf32>
    %192 = vector.broadcast %cst_71 : f32 to vector<32x128xf32>
    %193 = arith.select %176, %191, %192 : vector<32x128xi1>, vector<32x128xf32>
    %194 = arith.addf %166, %193 : vector<32x128xf32>
    %195 = vector.extract_strided_slice %138 {offsets = [0, 1], sizes = [32, 1], strides = [1, 1]} : vector<32x8xf32> to vector<32x1xf32>
    %cst_72 = arith.constant 0.000000e+00 : f32
    %196 = vector.shape_cast %195 : vector<32x1xf32> to vector<32x1xf32>
    %197 = vector.broadcast %196 : vector<32x1xf32> to vector<32x128xf32>
    %198 = vector.broadcast %cst_72 : f32 to vector<32x128xf32>
    %199 = arith.select %176, %197, %198 : vector<32x128xi1>, vector<32x128xf32>
    %200 = arith.addf %172, %199 : vector<32x128xf32>
    %201 = vector.extract_strided_slice %139 {offsets = [0, 2], sizes = [32, 1], strides = [1, 1]} : vector<32x8xi32> to vector<32x1xi32>
    %202 = vector.broadcast %201 : vector<32x1xi32> to vector<32x128xi32>
    %203 = vector.broadcast %120 : vector<1x128xi32> to vector<32x128xi32>
    %204 = arith.cmpi eq, %202, %203 : vector<32x128xi32>
    %205 = vector.extract_strided_slice %132 {offsets = [0, 2], sizes = [32, 1], strides = [1, 1]} : vector<32x8xf32> to vector<32x1xf32>
    %cst_73 = arith.constant 0.000000e+00 : f32
    %206 = vector.shape_cast %205 : vector<32x1xf32> to vector<32x1xf32>
    %207 = vector.broadcast %206 : vector<32x1xf32> to vector<32x128xf32>
    %208 = vector.broadcast %cst_73 : f32 to vector<32x128xf32>
    %209 = arith.select %204, %207, %208 : vector<32x128xi1>, vector<32x128xf32>
    %210 = arith.addf %182, %209 : vector<32x128xf32>
    %211 = vector.extract_strided_slice %134 {offsets = [0, 2], sizes = [32, 1], strides = [1, 1]} : vector<32x8xf32> to vector<32x1xf32>
    %cst_74 = arith.constant 0.000000e+00 : f32
    %212 = vector.shape_cast %211 : vector<32x1xf32> to vector<32x1xf32>
    %213 = vector.broadcast %212 : vector<32x1xf32> to vector<32x128xf32>
    %214 = vector.broadcast %cst_74 : f32 to vector<32x128xf32>
    %215 = arith.select %204, %213, %214 : vector<32x128xi1>, vector<32x128xf32>
    %216 = arith.addf %188, %215 : vector<32x128xf32>
    %217 = vector.extract_strided_slice %136 {offsets = [0, 2], sizes = [32, 1], strides = [1, 1]} : vector<32x8xf32> to vector<32x1xf32>
    %cst_75 = arith.constant 0.000000e+00 : f32
    %218 = vector.shape_cast %217 : vector<32x1xf32> to vector<32x1xf32>
    %219 = vector.broadcast %218 : vector<32x1xf32> to vector<32x128xf32>
    %220 = vector.broadcast %cst_75 : f32 to vector<32x128xf32>
    %221 = arith.select %204, %219, %220 : vector<32x128xi1>, vector<32x128xf32>
    %222 = arith.addf %194, %221 : vector<32x128xf32>
    %223 = vector.extract_strided_slice %138 {offsets = [0, 2], sizes = [32, 1], strides = [1, 1]} : vector<32x8xf32> to vector<32x1xf32>
    %cst_76 = arith.constant 0.000000e+00 : f32
    %224 = vector.shape_cast %223 : vector<32x1xf32> to vector<32x1xf32>
    %225 = vector.broadcast %224 : vector<32x1xf32> to vector<32x128xf32>
    %226 = vector.broadcast %cst_76 : f32 to vector<32x128xf32>
    %227 = arith.select %204, %225, %226 : vector<32x128xi1>, vector<32x128xf32>
    %228 = arith.addf %200, %227 : vector<32x128xf32>
    %229 = vector.extract_strided_slice %139 {offsets = [0, 3], sizes = [32, 1], strides = [1, 1]} : vector<32x8xi32> to vector<32x1xi32>
    %230 = vector.broadcast %229 : vector<32x1xi32> to vector<32x128xi32>
    %231 = vector.broadcast %120 : vector<1x128xi32> to vector<32x128xi32>
    %232 = arith.cmpi eq, %230, %231 : vector<32x128xi32>
    %233 = vector.extract_strided_slice %132 {offsets = [0, 3], sizes = [32, 1], strides = [1, 1]} : vector<32x8xf32> to vector<32x1xf32>
    %cst_77 = arith.constant 0.000000e+00 : f32
    %234 = vector.shape_cast %233 : vector<32x1xf32> to vector<32x1xf32>
    %235 = vector.broadcast %234 : vector<32x1xf32> to vector<32x128xf32>
    %236 = vector.broadcast %cst_77 : f32 to vector<32x128xf32>
    %237 = arith.select %232, %235, %236 : vector<32x128xi1>, vector<32x128xf32>
    %238 = arith.addf %210, %237 : vector<32x128xf32>
    %239 = vector.extract_strided_slice %134 {offsets = [0, 3], sizes = [32, 1], strides = [1, 1]} : vector<32x8xf32> to vector<32x1xf32>
    %cst_78 = arith.constant 0.000000e+00 : f32
    %240 = vector.shape_cast %239 : vector<32x1xf32> to vector<32x1xf32>
    %241 = vector.broadcast %240 : vector<32x1xf32> to vector<32x128xf32>
    %242 = vector.broadcast %cst_78 : f32 to vector<32x128xf32>
    %243 = arith.select %232, %241, %242 : vector<32x128xi1>, vector<32x128xf32>
    %244 = arith.addf %216, %243 : vector<32x128xf32>
    %245 = vector.extract_strided_slice %136 {offsets = [0, 3], sizes = [32, 1], strides = [1, 1]} : vector<32x8xf32> to vector<32x1xf32>
    %cst_79 = arith.constant 0.000000e+00 : f32
    %246 = vector.shape_cast %245 : vector<32x1xf32> to vector<32x1xf32>
    %247 = vector.broadcast %246 : vector<32x1xf32> to vector<32x128xf32>
    %248 = vector.broadcast %cst_79 : f32 to vector<32x128xf32>
    %249 = arith.select %232, %247, %248 : vector<32x128xi1>, vector<32x128xf32>
    %250 = arith.addf %222, %249 : vector<32x128xf32>
    %251 = vector.extract_strided_slice %138 {offsets = [0, 3], sizes = [32, 1], strides = [1, 1]} : vector<32x8xf32> to vector<32x1xf32>
    %cst_80 = arith.constant 0.000000e+00 : f32
    %252 = vector.shape_cast %251 : vector<32x1xf32> to vector<32x1xf32>
    %253 = vector.broadcast %252 : vector<32x1xf32> to vector<32x128xf32>
    %254 = vector.broadcast %cst_80 : f32 to vector<32x128xf32>
    %255 = arith.select %232, %253, %254 : vector<32x128xi1>, vector<32x128xf32>
    %256 = arith.addf %228, %255 : vector<32x128xf32>
    %257 = vector.extract_strided_slice %139 {offsets = [0, 4], sizes = [32, 1], strides = [1, 1]} : vector<32x8xi32> to vector<32x1xi32>
    %258 = vector.broadcast %257 : vector<32x1xi32> to vector<32x128xi32>
    %259 = vector.broadcast %120 : vector<1x128xi32> to vector<32x128xi32>
    %260 = arith.cmpi eq, %258, %259 : vector<32x128xi32>
    %261 = vector.extract_strided_slice %132 {offsets = [0, 4], sizes = [32, 1], strides = [1, 1]} : vector<32x8xf32> to vector<32x1xf32>
    %cst_81 = arith.constant 0.000000e+00 : f32
    %262 = vector.shape_cast %261 : vector<32x1xf32> to vector<32x1xf32>
    %263 = vector.broadcast %262 : vector<32x1xf32> to vector<32x128xf32>
    %264 = vector.broadcast %cst_81 : f32 to vector<32x128xf32>
    %265 = arith.select %260, %263, %264 : vector<32x128xi1>, vector<32x128xf32>
    %266 = arith.addf %238, %265 : vector<32x128xf32>
    %267 = vector.extract_strided_slice %134 {offsets = [0, 4], sizes = [32, 1], strides = [1, 1]} : vector<32x8xf32> to vector<32x1xf32>
    %cst_82 = arith.constant 0.000000e+00 : f32
    %268 = vector.shape_cast %267 : vector<32x1xf32> to vector<32x1xf32>
    %269 = vector.broadcast %268 : vector<32x1xf32> to vector<32x128xf32>
    %270 = vector.broadcast %cst_82 : f32 to vector<32x128xf32>
    %271 = arith.select %260, %269, %270 : vector<32x128xi1>, vector<32x128xf32>
    %272 = arith.addf %244, %271 : vector<32x128xf32>
    %273 = vector.extract_strided_slice %136 {offsets = [0, 4], sizes = [32, 1], strides = [1, 1]} : vector<32x8xf32> to vector<32x1xf32>
    %cst_83 = arith.constant 0.000000e+00 : f32
    %274 = vector.shape_cast %273 : vector<32x1xf32> to vector<32x1xf32>
    %275 = vector.broadcast %274 : vector<32x1xf32> to vector<32x128xf32>
    %276 = vector.broadcast %cst_83 : f32 to vector<32x128xf32>
    %277 = arith.select %260, %275, %276 : vector<32x128xi1>, vector<32x128xf32>
    %278 = arith.addf %250, %277 : vector<32x128xf32>
    %279 = vector.extract_strided_slice %138 {offsets = [0, 4], sizes = [32, 1], strides = [1, 1]} : vector<32x8xf32> to vector<32x1xf32>
    %cst_84 = arith.constant 0.000000e+00 : f32
    %280 = vector.shape_cast %279 : vector<32x1xf32> to vector<32x1xf32>
    %281 = vector.broadcast %280 : vector<32x1xf32> to vector<32x128xf32>
    %282 = vector.broadcast %cst_84 : f32 to vector<32x128xf32>
    %283 = arith.select %260, %281, %282 : vector<32x128xi1>, vector<32x128xf32>
    %284 = arith.addf %256, %283 : vector<32x128xf32>
    %285 = vector.extract_strided_slice %139 {offsets = [0, 5], sizes = [32, 1], strides = [1, 1]} : vector<32x8xi32> to vector<32x1xi32>
    %286 = vector.broadcast %285 : vector<32x1xi32> to vector<32x128xi32>
    %287 = vector.broadcast %120 : vector<1x128xi32> to vector<32x128xi32>
    %288 = arith.cmpi eq, %286, %287 : vector<32x128xi32>
    %289 = vector.extract_strided_slice %132 {offsets = [0, 5], sizes = [32, 1], strides = [1, 1]} : vector<32x8xf32> to vector<32x1xf32>
    %cst_85 = arith.constant 0.000000e+00 : f32
    %290 = vector.shape_cast %289 : vector<32x1xf32> to vector<32x1xf32>
    %291 = vector.broadcast %290 : vector<32x1xf32> to vector<32x128xf32>
    %292 = vector.broadcast %cst_85 : f32 to vector<32x128xf32>
    %293 = arith.select %288, %291, %292 : vector<32x128xi1>, vector<32x128xf32>
    %294 = arith.addf %266, %293 : vector<32x128xf32>
    %295 = vector.extract_strided_slice %134 {offsets = [0, 5], sizes = [32, 1], strides = [1, 1]} : vector<32x8xf32> to vector<32x1xf32>
    %cst_86 = arith.constant 0.000000e+00 : f32
    %296 = vector.shape_cast %295 : vector<32x1xf32> to vector<32x1xf32>
    %297 = vector.broadcast %296 : vector<32x1xf32> to vector<32x128xf32>
    %298 = vector.broadcast %cst_86 : f32 to vector<32x128xf32>
    %299 = arith.select %288, %297, %298 : vector<32x128xi1>, vector<32x128xf32>
    %300 = arith.addf %272, %299 : vector<32x128xf32>
    %301 = vector.extract_strided_slice %136 {offsets = [0, 5], sizes = [32, 1], strides = [1, 1]} : vector<32x8xf32> to vector<32x1xf32>
    %cst_87 = arith.constant 0.000000e+00 : f32
    %302 = vector.shape_cast %301 : vector<32x1xf32> to vector<32x1xf32>
    %303 = vector.broadcast %302 : vector<32x1xf32> to vector<32x128xf32>
    %304 = vector.broadcast %cst_87 : f32 to vector<32x128xf32>
    %305 = arith.select %288, %303, %304 : vector<32x128xi1>, vector<32x128xf32>
    %306 = arith.addf %278, %305 : vector<32x128xf32>
    %307 = vector.extract_strided_slice %138 {offsets = [0, 5], sizes = [32, 1], strides = [1, 1]} : vector<32x8xf32> to vector<32x1xf32>
    %cst_88 = arith.constant 0.000000e+00 : f32
    %308 = vector.shape_cast %307 : vector<32x1xf32> to vector<32x1xf32>
    %309 = vector.broadcast %308 : vector<32x1xf32> to vector<32x128xf32>
    %310 = vector.broadcast %cst_88 : f32 to vector<32x128xf32>
    %311 = arith.select %288, %309, %310 : vector<32x128xi1>, vector<32x128xf32>
    %312 = arith.addf %284, %311 : vector<32x128xf32>
    %313 = vector.extract_strided_slice %139 {offsets = [0, 6], sizes = [32, 1], strides = [1, 1]} : vector<32x8xi32> to vector<32x1xi32>
    %314 = vector.broadcast %313 : vector<32x1xi32> to vector<32x128xi32>
    %315 = vector.broadcast %120 : vector<1x128xi32> to vector<32x128xi32>
    %316 = arith.cmpi eq, %314, %315 : vector<32x128xi32>
    %317 = vector.extract_strided_slice %132 {offsets = [0, 6], sizes = [32, 1], strides = [1, 1]} : vector<32x8xf32> to vector<32x1xf32>
    %cst_89 = arith.constant 0.000000e+00 : f32
    %318 = vector.shape_cast %317 : vector<32x1xf32> to vector<32x1xf32>
    %319 = vector.broadcast %318 : vector<32x1xf32> to vector<32x128xf32>
    %320 = vector.broadcast %cst_89 : f32 to vector<32x128xf32>
    %321 = arith.select %316, %319, %320 : vector<32x128xi1>, vector<32x128xf32>
    %322 = arith.addf %294, %321 : vector<32x128xf32>
    %323 = vector.extract_strided_slice %134 {offsets = [0, 6], sizes = [32, 1], strides = [1, 1]} : vector<32x8xf32> to vector<32x1xf32>
    %cst_90 = arith.constant 0.000000e+00 : f32
    %324 = vector.shape_cast %323 : vector<32x1xf32> to vector<32x1xf32>
    %325 = vector.broadcast %324 : vector<32x1xf32> to vector<32x128xf32>
    %326 = vector.broadcast %cst_90 : f32 to vector<32x128xf32>
    %327 = arith.select %316, %325, %326 : vector<32x128xi1>, vector<32x128xf32>
    %328 = arith.addf %300, %327 : vector<32x128xf32>
    %329 = vector.extract_strided_slice %136 {offsets = [0, 6], sizes = [32, 1], strides = [1, 1]} : vector<32x8xf32> to vector<32x1xf32>
    %cst_91 = arith.constant 0.000000e+00 : f32
    %330 = vector.shape_cast %329 : vector<32x1xf32> to vector<32x1xf32>
    %331 = vector.broadcast %330 : vector<32x1xf32> to vector<32x128xf32>
    %332 = vector.broadcast %cst_91 : f32 to vector<32x128xf32>
    %333 = arith.select %316, %331, %332 : vector<32x128xi1>, vector<32x128xf32>
    %334 = arith.addf %306, %333 : vector<32x128xf32>
    %335 = vector.extract_strided_slice %138 {offsets = [0, 6], sizes = [32, 1], strides = [1, 1]} : vector<32x8xf32> to vector<32x1xf32>
    %cst_92 = arith.constant 0.000000e+00 : f32
    %336 = vector.shape_cast %335 : vector<32x1xf32> to vector<32x1xf32>
    %337 = vector.broadcast %336 : vector<32x1xf32> to vector<32x128xf32>
    %338 = vector.broadcast %cst_92 : f32 to vector<32x128xf32>
    %339 = arith.select %316, %337, %338 : vector<32x128xi1>, vector<32x128xf32>
    %340 = arith.addf %312, %339 : vector<32x128xf32>
    %341 = vector.extract_strided_slice %139 {offsets = [0, 7], sizes = [32, 1], strides = [1, 1]} : vector<32x8xi32> to vector<32x1xi32>
    %342 = vector.broadcast %341 : vector<32x1xi32> to vector<32x128xi32>
    %343 = vector.broadcast %120 : vector<1x128xi32> to vector<32x128xi32>
    %344 = arith.cmpi eq, %342, %343 : vector<32x128xi32>
    %345 = vector.extract_strided_slice %132 {offsets = [0, 7], sizes = [32, 1], strides = [1, 1]} : vector<32x8xf32> to vector<32x1xf32>
    %cst_93 = arith.constant 0.000000e+00 : f32
    %346 = vector.shape_cast %345 : vector<32x1xf32> to vector<32x1xf32>
    %347 = vector.broadcast %346 : vector<32x1xf32> to vector<32x128xf32>
    %348 = vector.broadcast %cst_93 : f32 to vector<32x128xf32>
    %349 = arith.select %344, %347, %348 : vector<32x128xi1>, vector<32x128xf32>
    %350 = arith.addf %322, %349 : vector<32x128xf32>
    %351 = vector.extract_strided_slice %134 {offsets = [0, 7], sizes = [32, 1], strides = [1, 1]} : vector<32x8xf32> to vector<32x1xf32>
    %cst_94 = arith.constant 0.000000e+00 : f32
    %352 = vector.shape_cast %351 : vector<32x1xf32> to vector<32x1xf32>
    %353 = vector.broadcast %352 : vector<32x1xf32> to vector<32x128xf32>
    %354 = vector.broadcast %cst_94 : f32 to vector<32x128xf32>
    %355 = arith.select %344, %353, %354 : vector<32x128xi1>, vector<32x128xf32>
    %356 = arith.addf %328, %355 : vector<32x128xf32>
    %357 = vector.extract_strided_slice %136 {offsets = [0, 7], sizes = [32, 1], strides = [1, 1]} : vector<32x8xf32> to vector<32x1xf32>
    %cst_95 = arith.constant 0.000000e+00 : f32
    %358 = vector.shape_cast %357 : vector<32x1xf32> to vector<32x1xf32>
    %359 = vector.broadcast %358 : vector<32x1xf32> to vector<32x128xf32>
    %360 = vector.broadcast %cst_95 : f32 to vector<32x128xf32>
    %361 = arith.select %344, %359, %360 : vector<32x128xi1>, vector<32x128xf32>
    %362 = arith.addf %334, %361 : vector<32x128xf32>
    %363 = vector.extract_strided_slice %138 {offsets = [0, 7], sizes = [32, 1], strides = [1, 1]} : vector<32x8xf32> to vector<32x1xf32>
    %cst_96 = arith.constant 0.000000e+00 : f32
    %364 = vector.shape_cast %363 : vector<32x1xf32> to vector<32x1xf32>
    %365 = vector.broadcast %364 : vector<32x1xf32> to vector<32x128xf32>
    %366 = vector.broadcast %cst_96 : f32 to vector<32x128xf32>
    %367 = arith.select %344, %365, %366 : vector<32x128xi1>, vector<32x128xf32>
    %368 = arith.addf %340, %367 : vector<32x128xf32>
    %369 = arith.truncf %350 : vector<32x128xf32> to vector<32x128xbf16>
    %370 = vector.extract_strided_slice %110 {offsets = [0, 0], sizes = [128, 8], strides = [1, 1]} : vector<128x32xbf16> to vector<128x8xbf16>
    %cst_97 = arith.constant dense<0.000000e+00> : vector<32x8xf32>
    %371 = tpu.matmul %369, %370, %cst_97 {dimension_numbers = #tpu.dot_dimension_numbers<[1], [0], [0], [1], [0, 0, 1, 1], [], []>} : vector<32x128xbf16>, vector<128x8xbf16>, vector<32x8xf32> -> vector<32x8xf32>
    %372 = arith.addf %140, %371 : vector<32x8xf32>
    %373 = arith.truncf %356 : vector<32x128xf32> to vector<32x128xbf16>
    %374 = vector.extract_strided_slice %113 {offsets = [0, 0], sizes = [128, 8], strides = [1, 1]} : vector<128x32xbf16> to vector<128x8xbf16>
    %cst_98 = arith.constant dense<0.000000e+00> : vector<32x8xf32>
    %375 = tpu.matmul %373, %374, %cst_98 {dimension_numbers = #tpu.dot_dimension_numbers<[1], [0], [0], [1], [0, 0, 1, 1], [], []>} : vector<32x128xbf16>, vector<128x8xbf16>, vector<32x8xf32> -> vector<32x8xf32>
    %376 = arith.addf %372, %375 : vector<32x8xf32>
    %377 = arith.truncf %362 : vector<32x128xf32> to vector<32x128xbf16>
    %378 = vector.extract_strided_slice %115 {offsets = [0, 0], sizes = [128, 8], strides = [1, 1]} : vector<128x32xbf16> to vector<128x8xbf16>
    %cst_99 = arith.constant dense<0.000000e+00> : vector<32x8xf32>
    %379 = tpu.matmul %377, %378, %cst_99 {dimension_numbers = #tpu.dot_dimension_numbers<[1], [0], [0], [1], [0, 0, 1, 1], [], []>} : vector<32x128xbf16>, vector<128x8xbf16>, vector<32x8xf32> -> vector<32x8xf32>
    %380 = arith.addf %376, %379 : vector<32x8xf32>
    %381 = arith.truncf %368 : vector<32x128xf32> to vector<32x128xbf16>
    %382 = vector.extract_strided_slice %117 {offsets = [0, 0], sizes = [128, 8], strides = [1, 1]} : vector<128x32xbf16> to vector<128x8xbf16>
    %cst_100 = arith.constant dense<0.000000e+00> : vector<32x8xf32>
    %383 = tpu.matmul %381, %382, %cst_100 {dimension_numbers = #tpu.dot_dimension_numbers<[1], [0], [0], [1], [0, 0, 1, 1], [], []>} : vector<32x128xbf16>, vector<128x8xbf16>, vector<32x8xf32> -> vector<32x8xf32>
    %384 = arith.addf %380, %383 : vector<32x8xf32>
    %385 = tpu.reciprocal %130 {approx = true} : vector<32x1xf32> -> vector<32x1xf32>
    %386 = vector.broadcast %385 : vector<32x1xf32> to vector<32x8xf32>
    %387 = arith.mulf %384, %386 : vector<32x8xf32>
    %388 = arith.truncf %387 : vector<32x8xf32> to vector<32x8xbf16>
    %389 = vector.extract_strided_slice %121 {offsets = [0, 0], sizes = [8, 32], strides = [1, 1]} : vector<32x32xbf16> to vector<8x32xbf16>
    %cst_101 = arith.constant dense<0.000000e+00> : vector<32x32xf32>
    %390 = tpu.matmul %388, %389, %cst_101 {dimension_numbers = #tpu.dot_dimension_numbers<[1], [0], [0], [1], [0, 0, 1, 1], [], []>} : vector<32x8xbf16>, vector<8x32xbf16>, vector<32x32xf32> -> vector<32x32xf32>
    %391 = arith.addf %122, %390 : vector<32x32xf32>
    %392 = vector.extract_strided_slice %12 {offsets = [0, 8], sizes = [32, 8], strides = [1, 1]} : vector<32x32xf32> to vector<32x8xf32>
    %cst_102 = arith.constant dense<0xFF800000> : vector<32xf32>
    %393 = vector.multi_reduction <maximumf>, %392, %cst_102 [1] : vector<32x8xf32> to vector<32xf32>
    %394 = vector.shape_cast %393 : vector<32xf32> to vector<32x1xf32>
    %395 = vector.broadcast %394 : vector<32x1xf32> to vector<32x8xf32>
    %396 = arith.subf %392, %395 : vector<32x8xf32>
    %397 = math.exp %396 : vector<32x8xf32>
    %cst_103 = arith.constant dense<0.000000e+00> : vector<32xf32>
    %398 = vector.multi_reduction <add>, %397, %cst_103 [1] : vector<32x8xf32> to vector<32xf32>
    %399 = vector.shape_cast %398 : vector<32xf32> to vector<32x1xf32>
    %400 = vector.extract_strided_slice %50 {offsets = [0, 8], sizes = [32, 8], strides = [1, 1]} : vector<32x32xf32> to vector<32x8xf32>
    %401 = arith.mulf %397, %400 : vector<32x8xf32>
    %402 = vector.extract_strided_slice %70 {offsets = [0, 8], sizes = [32, 8], strides = [1, 1]} : vector<32x32xf32> to vector<32x8xf32>
    %403 = arith.mulf %397, %402 : vector<32x8xf32>
    %404 = vector.extract_strided_slice %90 {offsets = [0, 8], sizes = [32, 8], strides = [1, 1]} : vector<32x32xf32> to vector<32x8xf32>
    %405 = arith.mulf %397, %404 : vector<32x8xf32>
    %406 = vector.extract_strided_slice %108 {offsets = [0, 8], sizes = [32, 8], strides = [1, 1]} : vector<32x32xf32> to vector<32x8xf32>
    %407 = arith.mulf %397, %406 : vector<32x8xf32>
    %408 = vector.extract_strided_slice %28 {offsets = [0, 8], sizes = [32, 8], strides = [1, 1]} : vector<32x32xi32> to vector<32x8xi32>
    %cst_104 = arith.constant 0.000000e+00 : f32
    %409 = vector.broadcast %cst_104 : f32 to vector<32x8xf32>
    %cst_105 = arith.constant 0.000000e+00 : f32
    %410 = vector.broadcast %cst_105 : f32 to vector<32x128xf32>
    %cst_106 = arith.constant 0.000000e+00 : f32
    %411 = vector.broadcast %cst_106 : f32 to vector<32x128xf32>
    %cst_107 = arith.constant 0.000000e+00 : f32
    %412 = vector.broadcast %cst_107 : f32 to vector<32x128xf32>
    %cst_108 = arith.constant 0.000000e+00 : f32
    %413 = vector.broadcast %cst_108 : f32 to vector<32x128xf32>
    %414 = vector.extract_strided_slice %408 {offsets = [0, 0], sizes = [32, 1], strides = [1, 1]} : vector<32x8xi32> to vector<32x1xi32>
    %415 = vector.broadcast %414 : vector<32x1xi32> to vector<32x128xi32>
    %416 = vector.broadcast %120 : vector<1x128xi32> to vector<32x128xi32>
    %417 = arith.cmpi eq, %415, %416 : vector<32x128xi32>
    %418 = vector.extract_strided_slice %401 {offsets = [0, 0], sizes = [32, 1], strides = [1, 1]} : vector<32x8xf32> to vector<32x1xf32>
    %cst_109 = arith.constant 0.000000e+00 : f32
    %419 = vector.shape_cast %418 : vector<32x1xf32> to vector<32x1xf32>
    %420 = vector.broadcast %419 : vector<32x1xf32> to vector<32x128xf32>
    %421 = vector.broadcast %cst_109 : f32 to vector<32x128xf32>
    %422 = arith.select %417, %420, %421 : vector<32x128xi1>, vector<32x128xf32>
    %423 = arith.addf %410, %422 : vector<32x128xf32>
    %424 = vector.extract_strided_slice %403 {offsets = [0, 0], sizes = [32, 1], strides = [1, 1]} : vector<32x8xf32> to vector<32x1xf32>
    %cst_110 = arith.constant 0.000000e+00 : f32
    %425 = vector.shape_cast %424 : vector<32x1xf32> to vector<32x1xf32>
    %426 = vector.broadcast %425 : vector<32x1xf32> to vector<32x128xf32>
    %427 = vector.broadcast %cst_110 : f32 to vector<32x128xf32>
    %428 = arith.select %417, %426, %427 : vector<32x128xi1>, vector<32x128xf32>
    %429 = arith.addf %411, %428 : vector<32x128xf32>
    %430 = vector.extract_strided_slice %405 {offsets = [0, 0], sizes = [32, 1], strides = [1, 1]} : vector<32x8xf32> to vector<32x1xf32>
    %cst_111 = arith.constant 0.000000e+00 : f32
    %431 = vector.shape_cast %430 : vector<32x1xf32> to vector<32x1xf32>
    %432 = vector.broadcast %431 : vector<32x1xf32> to vector<32x128xf32>
    %433 = vector.broadcast %cst_111 : f32 to vector<32x128xf32>
    %434 = arith.select %417, %432, %433 : vector<32x128xi1>, vector<32x128xf32>
    %435 = arith.addf %412, %434 : vector<32x128xf32>
    %436 = vector.extract_strided_slice %407 {offsets = [0, 0], sizes = [32, 1], strides = [1, 1]} : vector<32x8xf32> to vector<32x1xf32>
    %cst_112 = arith.constant 0.000000e+00 : f32
    %437 = vector.shape_cast %436 : vector<32x1xf32> to vector<32x1xf32>
    %438 = vector.broadcast %437 : vector<32x1xf32> to vector<32x128xf32>
    %439 = vector.broadcast %cst_112 : f32 to vector<32x128xf32>
    %440 = arith.select %417, %438, %439 : vector<32x128xi1>, vector<32x128xf32>
    %441 = arith.addf %413, %440 : vector<32x128xf32>
    %442 = vector.extract_strided_slice %408 {offsets = [0, 1], sizes = [32, 1], strides = [1, 1]} : vector<32x8xi32> to vector<32x1xi32>
    %443 = vector.broadcast %442 : vector<32x1xi32> to vector<32x128xi32>
    %444 = vector.broadcast %120 : vector<1x128xi32> to vector<32x128xi32>
    %445 = arith.cmpi eq, %443, %444 : vector<32x128xi32>
    %446 = vector.extract_strided_slice %401 {offsets = [0, 1], sizes = [32, 1], strides = [1, 1]} : vector<32x8xf32> to vector<32x1xf32>
    %cst_113 = arith.constant 0.000000e+00 : f32
    %447 = vector.shape_cast %446 : vector<32x1xf32> to vector<32x1xf32>
    %448 = vector.broadcast %447 : vector<32x1xf32> to vector<32x128xf32>
    %449 = vector.broadcast %cst_113 : f32 to vector<32x128xf32>
    %450 = arith.select %445, %448, %449 : vector<32x128xi1>, vector<32x128xf32>
    %451 = arith.addf %423, %450 : vector<32x128xf32>
    %452 = vector.extract_strided_slice %403 {offsets = [0, 1], sizes = [32, 1], strides = [1, 1]} : vector<32x8xf32> to vector<32x1xf32>
    %cst_114 = arith.constant 0.000000e+00 : f32
    %453 = vector.shape_cast %452 : vector<32x1xf32> to vector<32x1xf32>
    %454 = vector.broadcast %453 : vector<32x1xf32> to vector<32x128xf32>
    %455 = vector.broadcast %cst_114 : f32 to vector<32x128xf32>
    %456 = arith.select %445, %454, %455 : vector<32x128xi1>, vector<32x128xf32>
    %457 = arith.addf %429, %456 : vector<32x128xf32>
    %458 = vector.extract_strided_slice %405 {offsets = [0, 1], sizes = [32, 1], strides = [1, 1]} : vector<32x8xf32> to vector<32x1xf32>
    %cst_115 = arith.constant 0.000000e+00 : f32
    %459 = vector.shape_cast %458 : vector<32x1xf32> to vector<32x1xf32>
    %460 = vector.broadcast %459 : vector<32x1xf32> to vector<32x128xf32>
    %461 = vector.broadcast %cst_115 : f32 to vector<32x128xf32>
    %462 = arith.select %445, %460, %461 : vector<32x128xi1>, vector<32x128xf32>
    %463 = arith.addf %435, %462 : vector<32x128xf32>
    %464 = vector.extract_strided_slice %407 {offsets = [0, 1], sizes = [32, 1], strides = [1, 1]} : vector<32x8xf32> to vector<32x1xf32>
    %cst_116 = arith.constant 0.000000e+00 : f32
    %465 = vector.shape_cast %464 : vector<32x1xf32> to vector<32x1xf32>
    %466 = vector.broadcast %465 : vector<32x1xf32> to vector<32x128xf32>
    %467 = vector.broadcast %cst_116 : f32 to vector<32x128xf32>
    %468 = arith.select %445, %466, %467 : vector<32x128xi1>, vector<32x128xf32>
    %469 = arith.addf %441, %468 : vector<32x128xf32>
    %470 = vector.extract_strided_slice %408 {offsets = [0, 2], sizes = [32, 1], strides = [1, 1]} : vector<32x8xi32> to vector<32x1xi32>
    %471 = vector.broadcast %470 : vector<32x1xi32> to vector<32x128xi32>
    %472 = vector.broadcast %120 : vector<1x128xi32> to vector<32x128xi32>
    %473 = arith.cmpi eq, %471, %472 : vector<32x128xi32>
    %474 = vector.extract_strided_slice %401 {offsets = [0, 2], sizes = [32, 1], strides = [1, 1]} : vector<32x8xf32> to vector<32x1xf32>
    %cst_117 = arith.constant 0.000000e+00 : f32
    %475 = vector.shape_cast %474 : vector<32x1xf32> to vector<32x1xf32>
    %476 = vector.broadcast %475 : vector<32x1xf32> to vector<32x128xf32>
    %477 = vector.broadcast %cst_117 : f32 to vector<32x128xf32>
    %478 = arith.select %473, %476, %477 : vector<32x128xi1>, vector<32x128xf32>
    %479 = arith.addf %451, %478 : vector<32x128xf32>
    %480 = vector.extract_strided_slice %403 {offsets = [0, 2], sizes = [32, 1], strides = [1, 1]} : vector<32x8xf32> to vector<32x1xf32>
    %cst_118 = arith.constant 0.000000e+00 : f32
    %481 = vector.shape_cast %480 : vector<32x1xf32> to vector<32x1xf32>
    %482 = vector.broadcast %481 : vector<32x1xf32> to vector<32x128xf32>
    %483 = vector.broadcast %cst_118 : f32 to vector<32x128xf32>
    %484 = arith.select %473, %482, %483 : vector<32x128xi1>, vector<32x128xf32>
    %485 = arith.addf %457, %484 : vector<32x128xf32>
    %486 = vector.extract_strided_slice %405 {offsets = [0, 2], sizes = [32, 1], strides = [1, 1]} : vector<32x8xf32> to vector<32x1xf32>
    %cst_119 = arith.constant 0.000000e+00 : f32
    %487 = vector.shape_cast %486 : vector<32x1xf32> to vector<32x1xf32>
    %488 = vector.broadcast %487 : vector<32x1xf32> to vector<32x128xf32>
    %489 = vector.broadcast %cst_119 : f32 to vector<32x128xf32>
    %490 = arith.select %473, %488, %489 : vector<32x128xi1>, vector<32x128xf32>
    %491 = arith.addf %463, %490 : vector<32x128xf32>
    %492 = vector.extract_strided_slice %407 {offsets = [0, 2], sizes = [32, 1], strides = [1, 1]} : vector<32x8xf32> to vector<32x1xf32>
    %cst_120 = arith.constant 0.000000e+00 : f32
    %493 = vector.shape_cast %492 : vector<32x1xf32> to vector<32x1xf32>
    %494 = vector.broadcast %493 : vector<32x1xf32> to vector<32x128xf32>
    %495 = vector.broadcast %cst_120 : f32 to vector<32x128xf32>
    %496 = arith.select %473, %494, %495 : vector<32x128xi1>, vector<32x128xf32>
    %497 = arith.addf %469, %496 : vector<32x128xf32>
    %498 = vector.extract_strided_slice %408 {offsets = [0, 3], sizes = [32, 1], strides = [1, 1]} : vector<32x8xi32> to vector<32x1xi32>
    %499 = vector.broadcast %498 : vector<32x1xi32> to vector<32x128xi32>
    %500 = vector.broadcast %120 : vector<1x128xi32> to vector<32x128xi32>
    %501 = arith.cmpi eq, %499, %500 : vector<32x128xi32>
    %502 = vector.extract_strided_slice %401 {offsets = [0, 3], sizes = [32, 1], strides = [1, 1]} : vector<32x8xf32> to vector<32x1xf32>
    %cst_121 = arith.constant 0.000000e+00 : f32
    %503 = vector.shape_cast %502 : vector<32x1xf32> to vector<32x1xf32>
    %504 = vector.broadcast %503 : vector<32x1xf32> to vector<32x128xf32>
    %505 = vector.broadcast %cst_121 : f32 to vector<32x128xf32>
    %506 = arith.select %501, %504, %505 : vector<32x128xi1>, vector<32x128xf32>
    %507 = arith.addf %479, %506 : vector<32x128xf32>
    %508 = vector.extract_strided_slice %403 {offsets = [0, 3], sizes = [32, 1], strides = [1, 1]} : vector<32x8xf32> to vector<32x1xf32>
    %cst_122 = arith.constant 0.000000e+00 : f32
    %509 = vector.shape_cast %508 : vector<32x1xf32> to vector<32x1xf32>
    %510 = vector.broadcast %509 : vector<32x1xf32> to vector<32x128xf32>
    %511 = vector.broadcast %cst_122 : f32 to vector<32x128xf32>
    %512 = arith.select %501, %510, %511 : vector<32x128xi1>, vector<32x128xf32>
    %513 = arith.addf %485, %512 : vector<32x128xf32>
    %514 = vector.extract_strided_slice %405 {offsets = [0, 3], sizes = [32, 1], strides = [1, 1]} : vector<32x8xf32> to vector<32x1xf32>
    %cst_123 = arith.constant 0.000000e+00 : f32
    %515 = vector.shape_cast %514 : vector<32x1xf32> to vector<32x1xf32>
    %516 = vector.broadcast %515 : vector<32x1xf32> to vector<32x128xf32>
    %517 = vector.broadcast %cst_123 : f32 to vector<32x128xf32>
    %518 = arith.select %501, %516, %517 : vector<32x128xi1>, vector<32x128xf32>
    %519 = arith.addf %491, %518 : vector<32x128xf32>
    %520 = vector.extract_strided_slice %407 {offsets = [0, 3], sizes = [32, 1], strides = [1, 1]} : vector<32x8xf32> to vector<32x1xf32>
    %cst_124 = arith.constant 0.000000e+00 : f32
    %521 = vector.shape_cast %520 : vector<32x1xf32> to vector<32x1xf32>
    %522 = vector.broadcast %521 : vector<32x1xf32> to vector<32x128xf32>
    %523 = vector.broadcast %cst_124 : f32 to vector<32x128xf32>
    %524 = arith.select %501, %522, %523 : vector<32x128xi1>, vector<32x128xf32>
    %525 = arith.addf %497, %524 : vector<32x128xf32>
    %526 = vector.extract_strided_slice %408 {offsets = [0, 4], sizes = [32, 1], strides = [1, 1]} : vector<32x8xi32> to vector<32x1xi32>
    %527 = vector.broadcast %526 : vector<32x1xi32> to vector<32x128xi32>
    %528 = vector.broadcast %120 : vector<1x128xi32> to vector<32x128xi32>
    %529 = arith.cmpi eq, %527, %528 : vector<32x128xi32>
    %530 = vector.extract_strided_slice %401 {offsets = [0, 4], sizes = [32, 1], strides = [1, 1]} : vector<32x8xf32> to vector<32x1xf32>
    %cst_125 = arith.constant 0.000000e+00 : f32
    %531 = vector.shape_cast %530 : vector<32x1xf32> to vector<32x1xf32>
    %532 = vector.broadcast %531 : vector<32x1xf32> to vector<32x128xf32>
    %533 = vector.broadcast %cst_125 : f32 to vector<32x128xf32>
    %534 = arith.select %529, %532, %533 : vector<32x128xi1>, vector<32x128xf32>
    %535 = arith.addf %507, %534 : vector<32x128xf32>
    %536 = vector.extract_strided_slice %403 {offsets = [0, 4], sizes = [32, 1], strides = [1, 1]} : vector<32x8xf32> to vector<32x1xf32>
    %cst_126 = arith.constant 0.000000e+00 : f32
    %537 = vector.shape_cast %536 : vector<32x1xf32> to vector<32x1xf32>
    %538 = vector.broadcast %537 : vector<32x1xf32> to vector<32x128xf32>
    %539 = vector.broadcast %cst_126 : f32 to vector<32x128xf32>
    %540 = arith.select %529, %538, %539 : vector<32x128xi1>, vector<32x128xf32>
    %541 = arith.addf %513, %540 : vector<32x128xf32>
    %542 = vector.extract_strided_slice %405 {offsets = [0, 4], sizes = [32, 1], strides = [1, 1]} : vector<32x8xf32> to vector<32x1xf32>
    %cst_127 = arith.constant 0.000000e+00 : f32
    %543 = vector.shape_cast %542 : vector<32x1xf32> to vector<32x1xf32>
    %544 = vector.broadcast %543 : vector<32x1xf32> to vector<32x128xf32>
    %545 = vector.broadcast %cst_127 : f32 to vector<32x128xf32>
    %546 = arith.select %529, %544, %545 : vector<32x128xi1>, vector<32x128xf32>
    %547 = arith.addf %519, %546 : vector<32x128xf32>
    %548 = vector.extract_strided_slice %407 {offsets = [0, 4], sizes = [32, 1], strides = [1, 1]} : vector<32x8xf32> to vector<32x1xf32>
    %cst_128 = arith.constant 0.000000e+00 : f32
    %549 = vector.shape_cast %548 : vector<32x1xf32> to vector<32x1xf32>
    %550 = vector.broadcast %549 : vector<32x1xf32> to vector<32x128xf32>
    %551 = vector.broadcast %cst_128 : f32 to vector<32x128xf32>
    %552 = arith.select %529, %550, %551 : vector<32x128xi1>, vector<32x128xf32>
    %553 = arith.addf %525, %552 : vector<32x128xf32>
    %554 = vector.extract_strided_slice %408 {offsets = [0, 5], sizes = [32, 1], strides = [1, 1]} : vector<32x8xi32> to vector<32x1xi32>
    %555 = vector.broadcast %554 : vector<32x1xi32> to vector<32x128xi32>
    %556 = vector.broadcast %120 : vector<1x128xi32> to vector<32x128xi32>
    %557 = arith.cmpi eq, %555, %556 : vector<32x128xi32>
    %558 = vector.extract_strided_slice %401 {offsets = [0, 5], sizes = [32, 1], strides = [1, 1]} : vector<32x8xf32> to vector<32x1xf32>
    %cst_129 = arith.constant 0.000000e+00 : f32
    %559 = vector.shape_cast %558 : vector<32x1xf32> to vector<32x1xf32>
    %560 = vector.broadcast %559 : vector<32x1xf32> to vector<32x128xf32>
    %561 = vector.broadcast %cst_129 : f32 to vector<32x128xf32>
    %562 = arith.select %557, %560, %561 : vector<32x128xi1>, vector<32x128xf32>
    %563 = arith.addf %535, %562 : vector<32x128xf32>
    %564 = vector.extract_strided_slice %403 {offsets = [0, 5], sizes = [32, 1], strides = [1, 1]} : vector<32x8xf32> to vector<32x1xf32>
    %cst_130 = arith.constant 0.000000e+00 : f32
    %565 = vector.shape_cast %564 : vector<32x1xf32> to vector<32x1xf32>
    %566 = vector.broadcast %565 : vector<32x1xf32> to vector<32x128xf32>
    %567 = vector.broadcast %cst_130 : f32 to vector<32x128xf32>
    %568 = arith.select %557, %566, %567 : vector<32x128xi1>, vector<32x128xf32>
    %569 = arith.addf %541, %568 : vector<32x128xf32>
    %570 = vector.extract_strided_slice %405 {offsets = [0, 5], sizes = [32, 1], strides = [1, 1]} : vector<32x8xf32> to vector<32x1xf32>
    %cst_131 = arith.constant 0.000000e+00 : f32
    %571 = vector.shape_cast %570 : vector<32x1xf32> to vector<32x1xf32>
    %572 = vector.broadcast %571 : vector<32x1xf32> to vector<32x128xf32>
    %573 = vector.broadcast %cst_131 : f32 to vector<32x128xf32>
    %574 = arith.select %557, %572, %573 : vector<32x128xi1>, vector<32x128xf32>
    %575 = arith.addf %547, %574 : vector<32x128xf32>
    %576 = vector.extract_strided_slice %407 {offsets = [0, 5], sizes = [32, 1], strides = [1, 1]} : vector<32x8xf32> to vector<32x1xf32>
    %cst_132 = arith.constant 0.000000e+00 : f32
    %577 = vector.shape_cast %576 : vector<32x1xf32> to vector<32x1xf32>
    %578 = vector.broadcast %577 : vector<32x1xf32> to vector<32x128xf32>
    %579 = vector.broadcast %cst_132 : f32 to vector<32x128xf32>
    %580 = arith.select %557, %578, %579 : vector<32x128xi1>, vector<32x128xf32>
    %581 = arith.addf %553, %580 : vector<32x128xf32>
    %582 = vector.extract_strided_slice %408 {offsets = [0, 6], sizes = [32, 1], strides = [1, 1]} : vector<32x8xi32> to vector<32x1xi32>
    %583 = vector.broadcast %582 : vector<32x1xi32> to vector<32x128xi32>
    %584 = vector.broadcast %120 : vector<1x128xi32> to vector<32x128xi32>
    %585 = arith.cmpi eq, %583, %584 : vector<32x128xi32>
    %586 = vector.extract_strided_slice %401 {offsets = [0, 6], sizes = [32, 1], strides = [1, 1]} : vector<32x8xf32> to vector<32x1xf32>
    %cst_133 = arith.constant 0.000000e+00 : f32
    %587 = vector.shape_cast %586 : vector<32x1xf32> to vector<32x1xf32>
    %588 = vector.broadcast %587 : vector<32x1xf32> to vector<32x128xf32>
    %589 = vector.broadcast %cst_133 : f32 to vector<32x128xf32>
    %590 = arith.select %585, %588, %589 : vector<32x128xi1>, vector<32x128xf32>
    %591 = arith.addf %563, %590 : vector<32x128xf32>
    %592 = vector.extract_strided_slice %403 {offsets = [0, 6], sizes = [32, 1], strides = [1, 1]} : vector<32x8xf32> to vector<32x1xf32>
    %cst_134 = arith.constant 0.000000e+00 : f32
    %593 = vector.shape_cast %592 : vector<32x1xf32> to vector<32x1xf32>
    %594 = vector.broadcast %593 : vector<32x1xf32> to vector<32x128xf32>
    %595 = vector.broadcast %cst_134 : f32 to vector<32x128xf32>
    %596 = arith.select %585, %594, %595 : vector<32x128xi1>, vector<32x128xf32>
    %597 = arith.addf %569, %596 : vector<32x128xf32>
    %598 = vector.extract_strided_slice %405 {offsets = [0, 6], sizes = [32, 1], strides = [1, 1]} : vector<32x8xf32> to vector<32x1xf32>
    %cst_135 = arith.constant 0.000000e+00 : f32
    %599 = vector.shape_cast %598 : vector<32x1xf32> to vector<32x1xf32>
    %600 = vector.broadcast %599 : vector<32x1xf32> to vector<32x128xf32>
    %601 = vector.broadcast %cst_135 : f32 to vector<32x128xf32>
    %602 = arith.select %585, %600, %601 : vector<32x128xi1>, vector<32x128xf32>
    %603 = arith.addf %575, %602 : vector<32x128xf32>
    %604 = vector.extract_strided_slice %407 {offsets = [0, 6], sizes = [32, 1], strides = [1, 1]} : vector<32x8xf32> to vector<32x1xf32>
    %cst_136 = arith.constant 0.000000e+00 : f32
    %605 = vector.shape_cast %604 : vector<32x1xf32> to vector<32x1xf32>
    %606 = vector.broadcast %605 : vector<32x1xf32> to vector<32x128xf32>
    %607 = vector.broadcast %cst_136 : f32 to vector<32x128xf32>
    %608 = arith.select %585, %606, %607 : vector<32x128xi1>, vector<32x128xf32>
    %609 = arith.addf %581, %608 : vector<32x128xf32>
    %610 = vector.extract_strided_slice %408 {offsets = [0, 7], sizes = [32, 1], strides = [1, 1]} : vector<32x8xi32> to vector<32x1xi32>
    %611 = vector.broadcast %610 : vector<32x1xi32> to vector<32x128xi32>
    %612 = vector.broadcast %120 : vector<1x128xi32> to vector<32x128xi32>
    %613 = arith.cmpi eq, %611, %612 : vector<32x128xi32>
    %614 = vector.extract_strided_slice %401 {offsets = [0, 7], sizes = [32, 1], strides = [1, 1]} : vector<32x8xf32> to vector<32x1xf32>
    %cst_137 = arith.constant 0.000000e+00 : f32
    %615 = vector.shape_cast %614 : vector<32x1xf32> to vector<32x1xf32>
    %616 = vector.broadcast %615 : vector<32x1xf32> to vector<32x128xf32>
    %617 = vector.broadcast %cst_137 : f32 to vector<32x128xf32>
    %618 = arith.select %613, %616, %617 : vector<32x128xi1>, vector<32x128xf32>
    %619 = arith.addf %591, %618 : vector<32x128xf32>
    %620 = vector.extract_strided_slice %403 {offsets = [0, 7], sizes = [32, 1], strides = [1, 1]} : vector<32x8xf32> to vector<32x1xf32>
    %cst_138 = arith.constant 0.000000e+00 : f32
    %621 = vector.shape_cast %620 : vector<32x1xf32> to vector<32x1xf32>
    %622 = vector.broadcast %621 : vector<32x1xf32> to vector<32x128xf32>
    %623 = vector.broadcast %cst_138 : f32 to vector<32x128xf32>
    %624 = arith.select %613, %622, %623 : vector<32x128xi1>, vector<32x128xf32>
    %625 = arith.addf %597, %624 : vector<32x128xf32>
    %626 = vector.extract_strided_slice %405 {offsets = [0, 7], sizes = [32, 1], strides = [1, 1]} : vector<32x8xf32> to vector<32x1xf32>
    %cst_139 = arith.constant 0.000000e+00 : f32
    %627 = vector.shape_cast %626 : vector<32x1xf32> to vector<32x1xf32>
    %628 = vector.broadcast %627 : vector<32x1xf32> to vector<32x128xf32>
    %629 = vector.broadcast %cst_139 : f32 to vector<32x128xf32>
    %630 = arith.select %613, %628, %629 : vector<32x128xi1>, vector<32x128xf32>
    %631 = arith.addf %603, %630 : vector<32x128xf32>
    %632 = vector.extract_strided_slice %407 {offsets = [0, 7], sizes = [32, 1], strides = [1, 1]} : vector<32x8xf32> to vector<32x1xf32>
    %cst_140 = arith.constant 0.000000e+00 : f32
    %633 = vector.shape_cast %632 : vector<32x1xf32> to vector<32x1xf32>
    %634 = vector.broadcast %633 : vector<32x1xf32> to vector<32x128xf32>
    %635 = vector.broadcast %cst_140 : f32 to vector<32x128xf32>
    %636 = arith.select %613, %634, %635 : vector<32x128xi1>, vector<32x128xf32>
    %637 = arith.addf %609, %636 : vector<32x128xf32>
    %638 = arith.truncf %619 : vector<32x128xf32> to vector<32x128xbf16>
    %639 = vector.extract_strided_slice %110 {offsets = [0, 8], sizes = [128, 8], strides = [1, 1]} : vector<128x32xbf16> to vector<128x8xbf16>
    %cst_141 = arith.constant dense<0.000000e+00> : vector<32x8xf32>
    %640 = tpu.matmul %638, %639, %cst_141 {dimension_numbers = #tpu.dot_dimension_numbers<[1], [0], [0], [1], [0, 0, 1, 1], [], []>} : vector<32x128xbf16>, vector<128x8xbf16>, vector<32x8xf32> -> vector<32x8xf32>
    %641 = arith.addf %409, %640 : vector<32x8xf32>
    %642 = arith.truncf %625 : vector<32x128xf32> to vector<32x128xbf16>
    %643 = vector.extract_strided_slice %113 {offsets = [0, 8], sizes = [128, 8], strides = [1, 1]} : vector<128x32xbf16> to vector<128x8xbf16>
    %cst_142 = arith.constant dense<0.000000e+00> : vector<32x8xf32>
    %644 = tpu.matmul %642, %643, %cst_142 {dimension_numbers = #tpu.dot_dimension_numbers<[1], [0], [0], [1], [0, 0, 1, 1], [], []>} : vector<32x128xbf16>, vector<128x8xbf16>, vector<32x8xf32> -> vector<32x8xf32>
    %645 = arith.addf %641, %644 : vector<32x8xf32>
    %646 = arith.truncf %631 : vector<32x128xf32> to vector<32x128xbf16>
    %647 = vector.extract_strided_slice %115 {offsets = [0, 8], sizes = [128, 8], strides = [1, 1]} : vector<128x32xbf16> to vector<128x8xbf16>
    %cst_143 = arith.constant dense<0.000000e+00> : vector<32x8xf32>
    %648 = tpu.matmul %646, %647, %cst_143 {dimension_numbers = #tpu.dot_dimension_numbers<[1], [0], [0], [1], [0, 0, 1, 1], [], []>} : vector<32x128xbf16>, vector<128x8xbf16>, vector<32x8xf32> -> vector<32x8xf32>
    %649 = arith.addf %645, %648 : vector<32x8xf32>
    %650 = arith.truncf %637 : vector<32x128xf32> to vector<32x128xbf16>
    %651 = vector.extract_strided_slice %117 {offsets = [0, 8], sizes = [128, 8], strides = [1, 1]} : vector<128x32xbf16> to vector<128x8xbf16>
    %cst_144 = arith.constant dense<0.000000e+00> : vector<32x8xf32>
    %652 = tpu.matmul %650, %651, %cst_144 {dimension_numbers = #tpu.dot_dimension_numbers<[1], [0], [0], [1], [0, 0, 1, 1], [], []>} : vector<32x128xbf16>, vector<128x8xbf16>, vector<32x8xf32> -> vector<32x8xf32>
    %653 = arith.addf %649, %652 : vector<32x8xf32>
    %654 = tpu.reciprocal %399 {approx = true} : vector<32x1xf32> -> vector<32x1xf32>
    %655 = vector.broadcast %654 : vector<32x1xf32> to vector<32x8xf32>
    %656 = arith.mulf %653, %655 : vector<32x8xf32>
    %657 = arith.truncf %656 : vector<32x8xf32> to vector<32x8xbf16>
    %658 = vector.extract_strided_slice %121 {offsets = [8, 0], sizes = [8, 32], strides = [1, 1]} : vector<32x32xbf16> to vector<8x32xbf16>
    %cst_145 = arith.constant dense<0.000000e+00> : vector<32x32xf32>
    %659 = tpu.matmul %657, %658, %cst_145 {dimension_numbers = #tpu.dot_dimension_numbers<[1], [0], [0], [1], [0, 0, 1, 1], [], []>} : vector<32x8xbf16>, vector<8x32xbf16>, vector<32x32xf32> -> vector<32x32xf32>
    %660 = arith.addf %391, %659 : vector<32x32xf32>
    %661 = vector.extract_strided_slice %12 {offsets = [0, 16], sizes = [32, 8], strides = [1, 1]} : vector<32x32xf32> to vector<32x8xf32>
    %cst_146 = arith.constant dense<0xFF800000> : vector<32xf32>
    %662 = vector.multi_reduction <maximumf>, %661, %cst_146 [1] : vector<32x8xf32> to vector<32xf32>
    %663 = vector.shape_cast %662 : vector<32xf32> to vector<32x1xf32>
    %664 = vector.broadcast %663 : vector<32x1xf32> to vector<32x8xf32>
    %665 = arith.subf %661, %664 : vector<32x8xf32>
    %666 = math.exp %665 : vector<32x8xf32>
    %cst_147 = arith.constant dense<0.000000e+00> : vector<32xf32>
    %667 = vector.multi_reduction <add>, %666, %cst_147 [1] : vector<32x8xf32> to vector<32xf32>
    %668 = vector.shape_cast %667 : vector<32xf32> to vector<32x1xf32>
    %669 = vector.extract_strided_slice %50 {offsets = [0, 16], sizes = [32, 8], strides = [1, 1]} : vector<32x32xf32> to vector<32x8xf32>
    %670 = arith.mulf %666, %669 : vector<32x8xf32>
    %671 = vector.extract_strided_slice %70 {offsets = [0, 16], sizes = [32, 8], strides = [1, 1]} : vector<32x32xf32> to vector<32x8xf32>
    %672 = arith.mulf %666, %671 : vector<32x8xf32>
    %673 = vector.extract_strided_slice %90 {offsets = [0, 16], sizes = [32, 8], strides = [1, 1]} : vector<32x32xf32> to vector<32x8xf32>
    %674 = arith.mulf %666, %673 : vector<32x8xf32>
    %675 = vector.extract_strided_slice %108 {offsets = [0, 16], sizes = [32, 8], strides = [1, 1]} : vector<32x32xf32> to vector<32x8xf32>
    %676 = arith.mulf %666, %675 : vector<32x8xf32>
    %677 = vector.extract_strided_slice %28 {offsets = [0, 16], sizes = [32, 8], strides = [1, 1]} : vector<32x32xi32> to vector<32x8xi32>
    %cst_148 = arith.constant 0.000000e+00 : f32
    %678 = vector.broadcast %cst_148 : f32 to vector<32x8xf32>
    %cst_149 = arith.constant 0.000000e+00 : f32
    %679 = vector.broadcast %cst_149 : f32 to vector<32x128xf32>
    %cst_150 = arith.constant 0.000000e+00 : f32
    %680 = vector.broadcast %cst_150 : f32 to vector<32x128xf32>
    %cst_151 = arith.constant 0.000000e+00 : f32
    %681 = vector.broadcast %cst_151 : f32 to vector<32x128xf32>
    %cst_152 = arith.constant 0.000000e+00 : f32
    %682 = vector.broadcast %cst_152 : f32 to vector<32x128xf32>
    %683 = vector.extract_strided_slice %677 {offsets = [0, 0], sizes = [32, 1], strides = [1, 1]} : vector<32x8xi32> to vector<32x1xi32>
    %684 = vector.broadcast %683 : vector<32x1xi32> to vector<32x128xi32>
    %685 = vector.broadcast %120 : vector<1x128xi32> to vector<32x128xi32>
    %686 = arith.cmpi eq, %684, %685 : vector<32x128xi32>
    %687 = vector.extract_strided_slice %670 {offsets = [0, 0], sizes = [32, 1], strides = [1, 1]} : vector<32x8xf32> to vector<32x1xf32>
    %cst_153 = arith.constant 0.000000e+00 : f32
    %688 = vector.shape_cast %687 : vector<32x1xf32> to vector<32x1xf32>
    %689 = vector.broadcast %688 : vector<32x1xf32> to vector<32x128xf32>
    %690 = vector.broadcast %cst_153 : f32 to vector<32x128xf32>
    %691 = arith.select %686, %689, %690 : vector<32x128xi1>, vector<32x128xf32>
    %692 = arith.addf %679, %691 : vector<32x128xf32>
    %693 = vector.extract_strided_slice %672 {offsets = [0, 0], sizes = [32, 1], strides = [1, 1]} : vector<32x8xf32> to vector<32x1xf32>
    %cst_154 = arith.constant 0.000000e+00 : f32
    %694 = vector.shape_cast %693 : vector<32x1xf32> to vector<32x1xf32>
    %695 = vector.broadcast %694 : vector<32x1xf32> to vector<32x128xf32>
    %696 = vector.broadcast %cst_154 : f32 to vector<32x128xf32>
    %697 = arith.select %686, %695, %696 : vector<32x128xi1>, vector<32x128xf32>
    %698 = arith.addf %680, %697 : vector<32x128xf32>
    %699 = vector.extract_strided_slice %674 {offsets = [0, 0], sizes = [32, 1], strides = [1, 1]} : vector<32x8xf32> to vector<32x1xf32>
    %cst_155 = arith.constant 0.000000e+00 : f32
    %700 = vector.shape_cast %699 : vector<32x1xf32> to vector<32x1xf32>
    %701 = vector.broadcast %700 : vector<32x1xf32> to vector<32x128xf32>
    %702 = vector.broadcast %cst_155 : f32 to vector<32x128xf32>
    %703 = arith.select %686, %701, %702 : vector<32x128xi1>, vector<32x128xf32>
    %704 = arith.addf %681, %703 : vector<32x128xf32>
    %705 = vector.extract_strided_slice %676 {offsets = [0, 0], sizes = [32, 1], strides = [1, 1]} : vector<32x8xf32> to vector<32x1xf32>
    %cst_156 = arith.constant 0.000000e+00 : f32
    %706 = vector.shape_cast %705 : vector<32x1xf32> to vector<32x1xf32>
    %707 = vector.broadcast %706 : vector<32x1xf32> to vector<32x128xf32>
    %708 = vector.broadcast %cst_156 : f32 to vector<32x128xf32>
    %709 = arith.select %686, %707, %708 : vector<32x128xi1>, vector<32x128xf32>
    %710 = arith.addf %682, %709 : vector<32x128xf32>
    %711 = vector.extract_strided_slice %677 {offsets = [0, 1], sizes = [32, 1], strides = [1, 1]} : vector<32x8xi32> to vector<32x1xi32>
    %712 = vector.broadcast %711 : vector<32x1xi32> to vector<32x128xi32>
    %713 = vector.broadcast %120 : vector<1x128xi32> to vector<32x128xi32>
    %714 = arith.cmpi eq, %712, %713 : vector<32x128xi32>
    %715 = vector.extract_strided_slice %670 {offsets = [0, 1], sizes = [32, 1], strides = [1, 1]} : vector<32x8xf32> to vector<32x1xf32>
    %cst_157 = arith.constant 0.000000e+00 : f32
    %716 = vector.shape_cast %715 : vector<32x1xf32> to vector<32x1xf32>
    %717 = vector.broadcast %716 : vector<32x1xf32> to vector<32x128xf32>
    %718 = vector.broadcast %cst_157 : f32 to vector<32x128xf32>
    %719 = arith.select %714, %717, %718 : vector<32x128xi1>, vector<32x128xf32>
    %720 = arith.addf %692, %719 : vector<32x128xf32>
    %721 = vector.extract_strided_slice %672 {offsets = [0, 1], sizes = [32, 1], strides = [1, 1]} : vector<32x8xf32> to vector<32x1xf32>
    %cst_158 = arith.constant 0.000000e+00 : f32
    %722 = vector.shape_cast %721 : vector<32x1xf32> to vector<32x1xf32>
    %723 = vector.broadcast %722 : vector<32x1xf32> to vector<32x128xf32>
    %724 = vector.broadcast %cst_158 : f32 to vector<32x128xf32>
    %725 = arith.select %714, %723, %724 : vector<32x128xi1>, vector<32x128xf32>
    %726 = arith.addf %698, %725 : vector<32x128xf32>
    %727 = vector.extract_strided_slice %674 {offsets = [0, 1], sizes = [32, 1], strides = [1, 1]} : vector<32x8xf32> to vector<32x1xf32>
    %cst_159 = arith.constant 0.000000e+00 : f32
    %728 = vector.shape_cast %727 : vector<32x1xf32> to vector<32x1xf32>
    %729 = vector.broadcast %728 : vector<32x1xf32> to vector<32x128xf32>
    %730 = vector.broadcast %cst_159 : f32 to vector<32x128xf32>
    %731 = arith.select %714, %729, %730 : vector<32x128xi1>, vector<32x128xf32>
    %732 = arith.addf %704, %731 : vector<32x128xf32>
    %733 = vector.extract_strided_slice %676 {offsets = [0, 1], sizes = [32, 1], strides = [1, 1]} : vector<32x8xf32> to vector<32x1xf32>
    %cst_160 = arith.constant 0.000000e+00 : f32
    %734 = vector.shape_cast %733 : vector<32x1xf32> to vector<32x1xf32>
    %735 = vector.broadcast %734 : vector<32x1xf32> to vector<32x128xf32>
    %736 = vector.broadcast %cst_160 : f32 to vector<32x128xf32>
    %737 = arith.select %714, %735, %736 : vector<32x128xi1>, vector<32x128xf32>
    %738 = arith.addf %710, %737 : vector<32x128xf32>
    %739 = vector.extract_strided_slice %677 {offsets = [0, 2], sizes = [32, 1], strides = [1, 1]} : vector<32x8xi32> to vector<32x1xi32>
    %740 = vector.broadcast %739 : vector<32x1xi32> to vector<32x128xi32>
    %741 = vector.broadcast %120 : vector<1x128xi32> to vector<32x128xi32>
    %742 = arith.cmpi eq, %740, %741 : vector<32x128xi32>
    %743 = vector.extract_strided_slice %670 {offsets = [0, 2], sizes = [32, 1], strides = [1, 1]} : vector<32x8xf32> to vector<32x1xf32>
    %cst_161 = arith.constant 0.000000e+00 : f32
    %744 = vector.shape_cast %743 : vector<32x1xf32> to vector<32x1xf32>
    %745 = vector.broadcast %744 : vector<32x1xf32> to vector<32x128xf32>
    %746 = vector.broadcast %cst_161 : f32 to vector<32x128xf32>
    %747 = arith.select %742, %745, %746 : vector<32x128xi1>, vector<32x128xf32>
    %748 = arith.addf %720, %747 : vector<32x128xf32>
    %749 = vector.extract_strided_slice %672 {offsets = [0, 2], sizes = [32, 1], strides = [1, 1]} : vector<32x8xf32> to vector<32x1xf32>
    %cst_162 = arith.constant 0.000000e+00 : f32
    %750 = vector.shape_cast %749 : vector<32x1xf32> to vector<32x1xf32>
    %751 = vector.broadcast %750 : vector<32x1xf32> to vector<32x128xf32>
    %752 = vector.broadcast %cst_162 : f32 to vector<32x128xf32>
    %753 = arith.select %742, %751, %752 : vector<32x128xi1>, vector<32x128xf32>
    %754 = arith.addf %726, %753 : vector<32x128xf32>
    %755 = vector.extract_strided_slice %674 {offsets = [0, 2], sizes = [32, 1], strides = [1, 1]} : vector<32x8xf32> to vector<32x1xf32>
    %cst_163 = arith.constant 0.000000e+00 : f32
    %756 = vector.shape_cast %755 : vector<32x1xf32> to vector<32x1xf32>
    %757 = vector.broadcast %756 : vector<32x1xf32> to vector<32x128xf32>
    %758 = vector.broadcast %cst_163 : f32 to vector<32x128xf32>
    %759 = arith.select %742, %757, %758 : vector<32x128xi1>, vector<32x128xf32>
    %760 = arith.addf %732, %759 : vector<32x128xf32>
    %761 = vector.extract_strided_slice %676 {offsets = [0, 2], sizes = [32, 1], strides = [1, 1]} : vector<32x8xf32> to vector<32x1xf32>
    %cst_164 = arith.constant 0.000000e+00 : f32
    %762 = vector.shape_cast %761 : vector<32x1xf32> to vector<32x1xf32>
    %763 = vector.broadcast %762 : vector<32x1xf32> to vector<32x128xf32>
    %764 = vector.broadcast %cst_164 : f32 to vector<32x128xf32>
    %765 = arith.select %742, %763, %764 : vector<32x128xi1>, vector<32x128xf32>
    %766 = arith.addf %738, %765 : vector<32x128xf32>
    %767 = vector.extract_strided_slice %677 {offsets = [0, 3], sizes = [32, 1], strides = [1, 1]} : vector<32x8xi32> to vector<32x1xi32>
    %768 = vector.broadcast %767 : vector<32x1xi32> to vector<32x128xi32>
    %769 = vector.broadcast %120 : vector<1x128xi32> to vector<32x128xi32>
    %770 = arith.cmpi eq, %768, %769 : vector<32x128xi32>
    %771 = vector.extract_strided_slice %670 {offsets = [0, 3], sizes = [32, 1], strides = [1, 1]} : vector<32x8xf32> to vector<32x1xf32>
    %cst_165 = arith.constant 0.000000e+00 : f32
    %772 = vector.shape_cast %771 : vector<32x1xf32> to vector<32x1xf32>
    %773 = vector.broadcast %772 : vector<32x1xf32> to vector<32x128xf32>
    %774 = vector.broadcast %cst_165 : f32 to vector<32x128xf32>
    %775 = arith.select %770, %773, %774 : vector<32x128xi1>, vector<32x128xf32>
    %776 = arith.addf %748, %775 : vector<32x128xf32>
    %777 = vector.extract_strided_slice %672 {offsets = [0, 3], sizes = [32, 1], strides = [1, 1]} : vector<32x8xf32> to vector<32x1xf32>
    %cst_166 = arith.constant 0.000000e+00 : f32
    %778 = vector.shape_cast %777 : vector<32x1xf32> to vector<32x1xf32>
    %779 = vector.broadcast %778 : vector<32x1xf32> to vector<32x128xf32>
    %780 = vector.broadcast %cst_166 : f32 to vector<32x128xf32>
    %781 = arith.select %770, %779, %780 : vector<32x128xi1>, vector<32x128xf32>
    %782 = arith.addf %754, %781 : vector<32x128xf32>
    %783 = vector.extract_strided_slice %674 {offsets = [0, 3], sizes = [32, 1], strides = [1, 1]} : vector<32x8xf32> to vector<32x1xf32>
    %cst_167 = arith.constant 0.000000e+00 : f32
    %784 = vector.shape_cast %783 : vector<32x1xf32> to vector<32x1xf32>
    %785 = vector.broadcast %784 : vector<32x1xf32> to vector<32x128xf32>
    %786 = vector.broadcast %cst_167 : f32 to vector<32x128xf32>
    %787 = arith.select %770, %785, %786 : vector<32x128xi1>, vector<32x128xf32>
    %788 = arith.addf %760, %787 : vector<32x128xf32>
    %789 = vector.extract_strided_slice %676 {offsets = [0, 3], sizes = [32, 1], strides = [1, 1]} : vector<32x8xf32> to vector<32x1xf32>
    %cst_168 = arith.constant 0.000000e+00 : f32
    %790 = vector.shape_cast %789 : vector<32x1xf32> to vector<32x1xf32>
    %791 = vector.broadcast %790 : vector<32x1xf32> to vector<32x128xf32>
    %792 = vector.broadcast %cst_168 : f32 to vector<32x128xf32>
    %793 = arith.select %770, %791, %792 : vector<32x128xi1>, vector<32x128xf32>
    %794 = arith.addf %766, %793 : vector<32x128xf32>
    %795 = vector.extract_strided_slice %677 {offsets = [0, 4], sizes = [32, 1], strides = [1, 1]} : vector<32x8xi32> to vector<32x1xi32>
    %796 = vector.broadcast %795 : vector<32x1xi32> to vector<32x128xi32>
    %797 = vector.broadcast %120 : vector<1x128xi32> to vector<32x128xi32>
    %798 = arith.cmpi eq, %796, %797 : vector<32x128xi32>
    %799 = vector.extract_strided_slice %670 {offsets = [0, 4], sizes = [32, 1], strides = [1, 1]} : vector<32x8xf32> to vector<32x1xf32>
    %cst_169 = arith.constant 0.000000e+00 : f32
    %800 = vector.shape_cast %799 : vector<32x1xf32> to vector<32x1xf32>
    %801 = vector.broadcast %800 : vector<32x1xf32> to vector<32x128xf32>
    %802 = vector.broadcast %cst_169 : f32 to vector<32x128xf32>
    %803 = arith.select %798, %801, %802 : vector<32x128xi1>, vector<32x128xf32>
    %804 = arith.addf %776, %803 : vector<32x128xf32>
    %805 = vector.extract_strided_slice %672 {offsets = [0, 4], sizes = [32, 1], strides = [1, 1]} : vector<32x8xf32> to vector<32x1xf32>
    %cst_170 = arith.constant 0.000000e+00 : f32
    %806 = vector.shape_cast %805 : vector<32x1xf32> to vector<32x1xf32>
    %807 = vector.broadcast %806 : vector<32x1xf32> to vector<32x128xf32>
    %808 = vector.broadcast %cst_170 : f32 to vector<32x128xf32>
    %809 = arith.select %798, %807, %808 : vector<32x128xi1>, vector<32x128xf32>
    %810 = arith.addf %782, %809 : vector<32x128xf32>
    %811 = vector.extract_strided_slice %674 {offsets = [0, 4], sizes = [32, 1], strides = [1, 1]} : vector<32x8xf32> to vector<32x1xf32>
    %cst_171 = arith.constant 0.000000e+00 : f32
    %812 = vector.shape_cast %811 : vector<32x1xf32> to vector<32x1xf32>
    %813 = vector.broadcast %812 : vector<32x1xf32> to vector<32x128xf32>
    %814 = vector.broadcast %cst_171 : f32 to vector<32x128xf32>
    %815 = arith.select %798, %813, %814 : vector<32x128xi1>, vector<32x128xf32>
    %816 = arith.addf %788, %815 : vector<32x128xf32>
    %817 = vector.extract_strided_slice %676 {offsets = [0, 4], sizes = [32, 1], strides = [1, 1]} : vector<32x8xf32> to vector<32x1xf32>
    %cst_172 = arith.constant 0.000000e+00 : f32
    %818 = vector.shape_cast %817 : vector<32x1xf32> to vector<32x1xf32>
    %819 = vector.broadcast %818 : vector<32x1xf32> to vector<32x128xf32>
    %820 = vector.broadcast %cst_172 : f32 to vector<32x128xf32>
    %821 = arith.select %798, %819, %820 : vector<32x128xi1>, vector<32x128xf32>
    %822 = arith.addf %794, %821 : vector<32x128xf32>
    %823 = vector.extract_strided_slice %677 {offsets = [0, 5], sizes = [32, 1], strides = [1, 1]} : vector<32x8xi32> to vector<32x1xi32>
    %824 = vector.broadcast %823 : vector<32x1xi32> to vector<32x128xi32>
    %825 = vector.broadcast %120 : vector<1x128xi32> to vector<32x128xi32>
    %826 = arith.cmpi eq, %824, %825 : vector<32x128xi32>
    %827 = vector.extract_strided_slice %670 {offsets = [0, 5], sizes = [32, 1], strides = [1, 1]} : vector<32x8xf32> to vector<32x1xf32>
    %cst_173 = arith.constant 0.000000e+00 : f32
    %828 = vector.shape_cast %827 : vector<32x1xf32> to vector<32x1xf32>
    %829 = vector.broadcast %828 : vector<32x1xf32> to vector<32x128xf32>
    %830 = vector.broadcast %cst_173 : f32 to vector<32x128xf32>
    %831 = arith.select %826, %829, %830 : vector<32x128xi1>, vector<32x128xf32>
    %832 = arith.addf %804, %831 : vector<32x128xf32>
    %833 = vector.extract_strided_slice %672 {offsets = [0, 5], sizes = [32, 1], strides = [1, 1]} : vector<32x8xf32> to vector<32x1xf32>
    %cst_174 = arith.constant 0.000000e+00 : f32
    %834 = vector.shape_cast %833 : vector<32x1xf32> to vector<32x1xf32>
    %835 = vector.broadcast %834 : vector<32x1xf32> to vector<32x128xf32>
    %836 = vector.broadcast %cst_174 : f32 to vector<32x128xf32>
    %837 = arith.select %826, %835, %836 : vector<32x128xi1>, vector<32x128xf32>
    %838 = arith.addf %810, %837 : vector<32x128xf32>
    %839 = vector.extract_strided_slice %674 {offsets = [0, 5], sizes = [32, 1], strides = [1, 1]} : vector<32x8xf32> to vector<32x1xf32>
    %cst_175 = arith.constant 0.000000e+00 : f32
    %840 = vector.shape_cast %839 : vector<32x1xf32> to vector<32x1xf32>
    %841 = vector.broadcast %840 : vector<32x1xf32> to vector<32x128xf32>
    %842 = vector.broadcast %cst_175 : f32 to vector<32x128xf32>
    %843 = arith.select %826, %841, %842 : vector<32x128xi1>, vector<32x128xf32>
    %844 = arith.addf %816, %843 : vector<32x128xf32>
    %845 = vector.extract_strided_slice %676 {offsets = [0, 5], sizes = [32, 1], strides = [1, 1]} : vector<32x8xf32> to vector<32x1xf32>
    %cst_176 = arith.constant 0.000000e+00 : f32
    %846 = vector.shape_cast %845 : vector<32x1xf32> to vector<32x1xf32>
    %847 = vector.broadcast %846 : vector<32x1xf32> to vector<32x128xf32>
    %848 = vector.broadcast %cst_176 : f32 to vector<32x128xf32>
    %849 = arith.select %826, %847, %848 : vector<32x128xi1>, vector<32x128xf32>
    %850 = arith.addf %822, %849 : vector<32x128xf32>
    %851 = vector.extract_strided_slice %677 {offsets = [0, 6], sizes = [32, 1], strides = [1, 1]} : vector<32x8xi32> to vector<32x1xi32>
    %852 = vector.broadcast %851 : vector<32x1xi32> to vector<32x128xi32>
    %853 = vector.broadcast %120 : vector<1x128xi32> to vector<32x128xi32>
    %854 = arith.cmpi eq, %852, %853 : vector<32x128xi32>
    %855 = vector.extract_strided_slice %670 {offsets = [0, 6], sizes = [32, 1], strides = [1, 1]} : vector<32x8xf32> to vector<32x1xf32>
    %cst_177 = arith.constant 0.000000e+00 : f32
    %856 = vector.shape_cast %855 : vector<32x1xf32> to vector<32x1xf32>
    %857 = vector.broadcast %856 : vector<32x1xf32> to vector<32x128xf32>
    %858 = vector.broadcast %cst_177 : f32 to vector<32x128xf32>
    %859 = arith.select %854, %857, %858 : vector<32x128xi1>, vector<32x128xf32>
    %860 = arith.addf %832, %859 : vector<32x128xf32>
    %861 = vector.extract_strided_slice %672 {offsets = [0, 6], sizes = [32, 1], strides = [1, 1]} : vector<32x8xf32> to vector<32x1xf32>
    %cst_178 = arith.constant 0.000000e+00 : f32
    %862 = vector.shape_cast %861 : vector<32x1xf32> to vector<32x1xf32>
    %863 = vector.broadcast %862 : vector<32x1xf32> to vector<32x128xf32>
    %864 = vector.broadcast %cst_178 : f32 to vector<32x128xf32>
    %865 = arith.select %854, %863, %864 : vector<32x128xi1>, vector<32x128xf32>
    %866 = arith.addf %838, %865 : vector<32x128xf32>
    %867 = vector.extract_strided_slice %674 {offsets = [0, 6], sizes = [32, 1], strides = [1, 1]} : vector<32x8xf32> to vector<32x1xf32>
    %cst_179 = arith.constant 0.000000e+00 : f32
    %868 = vector.shape_cast %867 : vector<32x1xf32> to vector<32x1xf32>
    %869 = vector.broadcast %868 : vector<32x1xf32> to vector<32x128xf32>
    %870 = vector.broadcast %cst_179 : f32 to vector<32x128xf32>
    %871 = arith.select %854, %869, %870 : vector<32x128xi1>, vector<32x128xf32>
    %872 = arith.addf %844, %871 : vector<32x128xf32>
    %873 = vector.extract_strided_slice %676 {offsets = [0, 6], sizes = [32, 1], strides = [1, 1]} : vector<32x8xf32> to vector<32x1xf32>
    %cst_180 = arith.constant 0.000000e+00 : f32
    %874 = vector.shape_cast %873 : vector<32x1xf32> to vector<32x1xf32>
    %875 = vector.broadcast %874 : vector<32x1xf32> to vector<32x128xf32>
    %876 = vector.broadcast %cst_180 : f32 to vector<32x128xf32>
    %877 = arith.select %854, %875, %876 : vector<32x128xi1>, vector<32x128xf32>
    %878 = arith.addf %850, %877 : vector<32x128xf32>
    %879 = vector.extract_strided_slice %677 {offsets = [0, 7], sizes = [32, 1], strides = [1, 1]} : vector<32x8xi32> to vector<32x1xi32>
    %880 = vector.broadcast %879 : vector<32x1xi32> to vector<32x128xi32>
    %881 = vector.broadcast %120 : vector<1x128xi32> to vector<32x128xi32>
    %882 = arith.cmpi eq, %880, %881 : vector<32x128xi32>
    %883 = vector.extract_strided_slice %670 {offsets = [0, 7], sizes = [32, 1], strides = [1, 1]} : vector<32x8xf32> to vector<32x1xf32>
    %cst_181 = arith.constant 0.000000e+00 : f32
    %884 = vector.shape_cast %883 : vector<32x1xf32> to vector<32x1xf32>
    %885 = vector.broadcast %884 : vector<32x1xf32> to vector<32x128xf32>
    %886 = vector.broadcast %cst_181 : f32 to vector<32x128xf32>
    %887 = arith.select %882, %885, %886 : vector<32x128xi1>, vector<32x128xf32>
    %888 = arith.addf %860, %887 : vector<32x128xf32>
    %889 = vector.extract_strided_slice %672 {offsets = [0, 7], sizes = [32, 1], strides = [1, 1]} : vector<32x8xf32> to vector<32x1xf32>
    %cst_182 = arith.constant 0.000000e+00 : f32
    %890 = vector.shape_cast %889 : vector<32x1xf32> to vector<32x1xf32>
    %891 = vector.broadcast %890 : vector<32x1xf32> to vector<32x128xf32>
    %892 = vector.broadcast %cst_182 : f32 to vector<32x128xf32>
    %893 = arith.select %882, %891, %892 : vector<32x128xi1>, vector<32x128xf32>
    %894 = arith.addf %866, %893 : vector<32x128xf32>
    %895 = vector.extract_strided_slice %674 {offsets = [0, 7], sizes = [32, 1], strides = [1, 1]} : vector<32x8xf32> to vector<32x1xf32>
    %cst_183 = arith.constant 0.000000e+00 : f32
    %896 = vector.shape_cast %895 : vector<32x1xf32> to vector<32x1xf32>
    %897 = vector.broadcast %896 : vector<32x1xf32> to vector<32x128xf32>
    %898 = vector.broadcast %cst_183 : f32 to vector<32x128xf32>
    %899 = arith.select %882, %897, %898 : vector<32x128xi1>, vector<32x128xf32>
    %900 = arith.addf %872, %899 : vector<32x128xf32>
    %901 = vector.extract_strided_slice %676 {offsets = [0, 7], sizes = [32, 1], strides = [1, 1]} : vector<32x8xf32> to vector<32x1xf32>
    %cst_184 = arith.constant 0.000000e+00 : f32
    %902 = vector.shape_cast %901 : vector<32x1xf32> to vector<32x1xf32>
    %903 = vector.broadcast %902 : vector<32x1xf32> to vector<32x128xf32>
    %904 = vector.broadcast %cst_184 : f32 to vector<32x128xf32>
    %905 = arith.select %882, %903, %904 : vector<32x128xi1>, vector<32x128xf32>
    %906 = arith.addf %878, %905 : vector<32x128xf32>
    %907 = arith.truncf %888 : vector<32x128xf32> to vector<32x128xbf16>
    %908 = vector.extract_strided_slice %110 {offsets = [0, 16], sizes = [128, 8], strides = [1, 1]} : vector<128x32xbf16> to vector<128x8xbf16>
    %cst_185 = arith.constant dense<0.000000e+00> : vector<32x8xf32>
    %909 = tpu.matmul %907, %908, %cst_185 {dimension_numbers = #tpu.dot_dimension_numbers<[1], [0], [0], [1], [0, 0, 1, 1], [], []>} : vector<32x128xbf16>, vector<128x8xbf16>, vector<32x8xf32> -> vector<32x8xf32>
    %910 = arith.addf %678, %909 : vector<32x8xf32>
    %911 = arith.truncf %894 : vector<32x128xf32> to vector<32x128xbf16>
    %912 = vector.extract_strided_slice %113 {offsets = [0, 16], sizes = [128, 8], strides = [1, 1]} : vector<128x32xbf16> to vector<128x8xbf16>
    %cst_186 = arith.constant dense<0.000000e+00> : vector<32x8xf32>
    %913 = tpu.matmul %911, %912, %cst_186 {dimension_numbers = #tpu.dot_dimension_numbers<[1], [0], [0], [1], [0, 0, 1, 1], [], []>} : vector<32x128xbf16>, vector<128x8xbf16>, vector<32x8xf32> -> vector<32x8xf32>
    %914 = arith.addf %910, %913 : vector<32x8xf32>
    %915 = arith.truncf %900 : vector<32x128xf32> to vector<32x128xbf16>
    %916 = vector.extract_strided_slice %115 {offsets = [0, 16], sizes = [128, 8], strides = [1, 1]} : vector<128x32xbf16> to vector<128x8xbf16>
    %cst_187 = arith.constant dense<0.000000e+00> : vector<32x8xf32>
    %917 = tpu.matmul %915, %916, %cst_187 {dimension_numbers = #tpu.dot_dimension_numbers<[1], [0], [0], [1], [0, 0, 1, 1], [], []>} : vector<32x128xbf16>, vector<128x8xbf16>, vector<32x8xf32> -> vector<32x8xf32>
    %918 = arith.addf %914, %917 : vector<32x8xf32>
    %919 = arith.truncf %906 : vector<32x128xf32> to vector<32x128xbf16>
    %920 = vector.extract_strided_slice %117 {offsets = [0, 16], sizes = [128, 8], strides = [1, 1]} : vector<128x32xbf16> to vector<128x8xbf16>
    %cst_188 = arith.constant dense<0.000000e+00> : vector<32x8xf32>
    %921 = tpu.matmul %919, %920, %cst_188 {dimension_numbers = #tpu.dot_dimension_numbers<[1], [0], [0], [1], [0, 0, 1, 1], [], []>} : vector<32x128xbf16>, vector<128x8xbf16>, vector<32x8xf32> -> vector<32x8xf32>
    %922 = arith.addf %918, %921 : vector<32x8xf32>
    %923 = tpu.reciprocal %668 {approx = true} : vector<32x1xf32> -> vector<32x1xf32>
    %924 = vector.broadcast %923 : vector<32x1xf32> to vector<32x8xf32>
    %925 = arith.mulf %922, %924 : vector<32x8xf32>
    %926 = arith.truncf %925 : vector<32x8xf32> to vector<32x8xbf16>
    %927 = vector.extract_strided_slice %121 {offsets = [16, 0], sizes = [8, 32], strides = [1, 1]} : vector<32x32xbf16> to vector<8x32xbf16>
    %cst_189 = arith.constant dense<0.000000e+00> : vector<32x32xf32>
    %928 = tpu.matmul %926, %927, %cst_189 {dimension_numbers = #tpu.dot_dimension_numbers<[1], [0], [0], [1], [0, 0, 1, 1], [], []>} : vector<32x8xbf16>, vector<8x32xbf16>, vector<32x32xf32> -> vector<32x32xf32>
    %929 = arith.addf %660, %928 : vector<32x32xf32>
    %930 = vector.extract_strided_slice %12 {offsets = [0, 24], sizes = [32, 8], strides = [1, 1]} : vector<32x32xf32> to vector<32x8xf32>
    %cst_190 = arith.constant dense<0xFF800000> : vector<32xf32>
    %931 = vector.multi_reduction <maximumf>, %930, %cst_190 [1] : vector<32x8xf32> to vector<32xf32>
    %932 = vector.shape_cast %931 : vector<32xf32> to vector<32x1xf32>
    %933 = vector.broadcast %932 : vector<32x1xf32> to vector<32x8xf32>
    %934 = arith.subf %930, %933 : vector<32x8xf32>
    %935 = math.exp %934 : vector<32x8xf32>
    %cst_191 = arith.constant dense<0.000000e+00> : vector<32xf32>
    %936 = vector.multi_reduction <add>, %935, %cst_191 [1] : vector<32x8xf32> to vector<32xf32>
    %937 = vector.shape_cast %936 : vector<32xf32> to vector<32x1xf32>
    %938 = vector.extract_strided_slice %50 {offsets = [0, 24], sizes = [32, 8], strides = [1, 1]} : vector<32x32xf32> to vector<32x8xf32>
    %939 = arith.mulf %935, %938 : vector<32x8xf32>
    %940 = vector.extract_strided_slice %70 {offsets = [0, 24], sizes = [32, 8], strides = [1, 1]} : vector<32x32xf32> to vector<32x8xf32>
    %941 = arith.mulf %935, %940 : vector<32x8xf32>
    %942 = vector.extract_strided_slice %90 {offsets = [0, 24], sizes = [32, 8], strides = [1, 1]} : vector<32x32xf32> to vector<32x8xf32>
    %943 = arith.mulf %935, %942 : vector<32x8xf32>
    %944 = vector.extract_strided_slice %108 {offsets = [0, 24], sizes = [32, 8], strides = [1, 1]} : vector<32x32xf32> to vector<32x8xf32>
    %945 = arith.mulf %935, %944 : vector<32x8xf32>
    %946 = vector.extract_strided_slice %28 {offsets = [0, 24], sizes = [32, 8], strides = [1, 1]} : vector<32x32xi32> to vector<32x8xi32>
    %cst_192 = arith.constant 0.000000e+00 : f32
    %947 = vector.broadcast %cst_192 : f32 to vector<32x8xf32>
    %cst_193 = arith.constant 0.000000e+00 : f32
    %948 = vector.broadcast %cst_193 : f32 to vector<32x128xf32>
    %cst_194 = arith.constant 0.000000e+00 : f32
    %949 = vector.broadcast %cst_194 : f32 to vector<32x128xf32>
    %cst_195 = arith.constant 0.000000e+00 : f32
    %950 = vector.broadcast %cst_195 : f32 to vector<32x128xf32>
    %cst_196 = arith.constant 0.000000e+00 : f32
    %951 = vector.broadcast %cst_196 : f32 to vector<32x128xf32>
    %952 = vector.extract_strided_slice %946 {offsets = [0, 0], sizes = [32, 1], strides = [1, 1]} : vector<32x8xi32> to vector<32x1xi32>
    %953 = vector.broadcast %952 : vector<32x1xi32> to vector<32x128xi32>
    %954 = vector.broadcast %120 : vector<1x128xi32> to vector<32x128xi32>
    %955 = arith.cmpi eq, %953, %954 : vector<32x128xi32>
    %956 = vector.extract_strided_slice %939 {offsets = [0, 0], sizes = [32, 1], strides = [1, 1]} : vector<32x8xf32> to vector<32x1xf32>
    %cst_197 = arith.constant 0.000000e+00 : f32
    %957 = vector.shape_cast %956 : vector<32x1xf32> to vector<32x1xf32>
    %958 = vector.broadcast %957 : vector<32x1xf32> to vector<32x128xf32>
    %959 = vector.broadcast %cst_197 : f32 to vector<32x128xf32>
    %960 = arith.select %955, %958, %959 : vector<32x128xi1>, vector<32x128xf32>
    %961 = arith.addf %948, %960 : vector<32x128xf32>
    %962 = vector.extract_strided_slice %941 {offsets = [0, 0], sizes = [32, 1], strides = [1, 1]} : vector<32x8xf32> to vector<32x1xf32>
    %cst_198 = arith.constant 0.000000e+00 : f32
    %963 = vector.shape_cast %962 : vector<32x1xf32> to vector<32x1xf32>
    %964 = vector.broadcast %963 : vector<32x1xf32> to vector<32x128xf32>
    %965 = vector.broadcast %cst_198 : f32 to vector<32x128xf32>
    %966 = arith.select %955, %964, %965 : vector<32x128xi1>, vector<32x128xf32>
    %967 = arith.addf %949, %966 : vector<32x128xf32>
    %968 = vector.extract_strided_slice %943 {offsets = [0, 0], sizes = [32, 1], strides = [1, 1]} : vector<32x8xf32> to vector<32x1xf32>
    %cst_199 = arith.constant 0.000000e+00 : f32
    %969 = vector.shape_cast %968 : vector<32x1xf32> to vector<32x1xf32>
    %970 = vector.broadcast %969 : vector<32x1xf32> to vector<32x128xf32>
    %971 = vector.broadcast %cst_199 : f32 to vector<32x128xf32>
    %972 = arith.select %955, %970, %971 : vector<32x128xi1>, vector<32x128xf32>
    %973 = arith.addf %950, %972 : vector<32x128xf32>
    %974 = vector.extract_strided_slice %945 {offsets = [0, 0], sizes = [32, 1], strides = [1, 1]} : vector<32x8xf32> to vector<32x1xf32>
    %cst_200 = arith.constant 0.000000e+00 : f32
    %975 = vector.shape_cast %974 : vector<32x1xf32> to vector<32x1xf32>
    %976 = vector.broadcast %975 : vector<32x1xf32> to vector<32x128xf32>
    %977 = vector.broadcast %cst_200 : f32 to vector<32x128xf32>
    %978 = arith.select %955, %976, %977 : vector<32x128xi1>, vector<32x128xf32>
    %979 = arith.addf %951, %978 : vector<32x128xf32>
    %980 = vector.extract_strided_slice %946 {offsets = [0, 1], sizes = [32, 1], strides = [1, 1]} : vector<32x8xi32> to vector<32x1xi32>
    %981 = vector.broadcast %980 : vector<32x1xi32> to vector<32x128xi32>
    %982 = vector.broadcast %120 : vector<1x128xi32> to vector<32x128xi32>
    %983 = arith.cmpi eq, %981, %982 : vector<32x128xi32>
    %984 = vector.extract_strided_slice %939 {offsets = [0, 1], sizes = [32, 1], strides = [1, 1]} : vector<32x8xf32> to vector<32x1xf32>
    %cst_201 = arith.constant 0.000000e+00 : f32
    %985 = vector.shape_cast %984 : vector<32x1xf32> to vector<32x1xf32>
    %986 = vector.broadcast %985 : vector<32x1xf32> to vector<32x128xf32>
    %987 = vector.broadcast %cst_201 : f32 to vector<32x128xf32>
    %988 = arith.select %983, %986, %987 : vector<32x128xi1>, vector<32x128xf32>
    %989 = arith.addf %961, %988 : vector<32x128xf32>
    %990 = vector.extract_strided_slice %941 {offsets = [0, 1], sizes = [32, 1], strides = [1, 1]} : vector<32x8xf32> to vector<32x1xf32>
    %cst_202 = arith.constant 0.000000e+00 : f32
    %991 = vector.shape_cast %990 : vector<32x1xf32> to vector<32x1xf32>
    %992 = vector.broadcast %991 : vector<32x1xf32> to vector<32x128xf32>
    %993 = vector.broadcast %cst_202 : f32 to vector<32x128xf32>
    %994 = arith.select %983, %992, %993 : vector<32x128xi1>, vector<32x128xf32>
    %995 = arith.addf %967, %994 : vector<32x128xf32>
    %996 = vector.extract_strided_slice %943 {offsets = [0, 1], sizes = [32, 1], strides = [1, 1]} : vector<32x8xf32> to vector<32x1xf32>
    %cst_203 = arith.constant 0.000000e+00 : f32
    %997 = vector.shape_cast %996 : vector<32x1xf32> to vector<32x1xf32>
    %998 = vector.broadcast %997 : vector<32x1xf32> to vector<32x128xf32>
    %999 = vector.broadcast %cst_203 : f32 to vector<32x128xf32>
    %1000 = arith.select %983, %998, %999 : vector<32x128xi1>, vector<32x128xf32>
    %1001 = arith.addf %973, %1000 : vector<32x128xf32>
    %1002 = vector.extract_strided_slice %945 {offsets = [0, 1], sizes = [32, 1], strides = [1, 1]} : vector<32x8xf32> to vector<32x1xf32>
    %cst_204 = arith.constant 0.000000e+00 : f32
    %1003 = vector.shape_cast %1002 : vector<32x1xf32> to vector<32x1xf32>
    %1004 = vector.broadcast %1003 : vector<32x1xf32> to vector<32x128xf32>
    %1005 = vector.broadcast %cst_204 : f32 to vector<32x128xf32>
    %1006 = arith.select %983, %1004, %1005 : vector<32x128xi1>, vector<32x128xf32>
    %1007 = arith.addf %979, %1006 : vector<32x128xf32>
    %1008 = vector.extract_strided_slice %946 {offsets = [0, 2], sizes = [32, 1], strides = [1, 1]} : vector<32x8xi32> to vector<32x1xi32>
    %1009 = vector.broadcast %1008 : vector<32x1xi32> to vector<32x128xi32>
    %1010 = vector.broadcast %120 : vector<1x128xi32> to vector<32x128xi32>
    %1011 = arith.cmpi eq, %1009, %1010 : vector<32x128xi32>
    %1012 = vector.extract_strided_slice %939 {offsets = [0, 2], sizes = [32, 1], strides = [1, 1]} : vector<32x8xf32> to vector<32x1xf32>
    %cst_205 = arith.constant 0.000000e+00 : f32
    %1013 = vector.shape_cast %1012 : vector<32x1xf32> to vector<32x1xf32>
    %1014 = vector.broadcast %1013 : vector<32x1xf32> to vector<32x128xf32>
    %1015 = vector.broadcast %cst_205 : f32 to vector<32x128xf32>
    %1016 = arith.select %1011, %1014, %1015 : vector<32x128xi1>, vector<32x128xf32>
    %1017 = arith.addf %989, %1016 : vector<32x128xf32>
    %1018 = vector.extract_strided_slice %941 {offsets = [0, 2], sizes = [32, 1], strides = [1, 1]} : vector<32x8xf32> to vector<32x1xf32>
    %cst_206 = arith.constant 0.000000e+00 : f32
    %1019 = vector.shape_cast %1018 : vector<32x1xf32> to vector<32x1xf32>
    %1020 = vector.broadcast %1019 : vector<32x1xf32> to vector<32x128xf32>
    %1021 = vector.broadcast %cst_206 : f32 to vector<32x128xf32>
    %1022 = arith.select %1011, %1020, %1021 : vector<32x128xi1>, vector<32x128xf32>
    %1023 = arith.addf %995, %1022 : vector<32x128xf32>
    %1024 = vector.extract_strided_slice %943 {offsets = [0, 2], sizes = [32, 1], strides = [1, 1]} : vector<32x8xf32> to vector<32x1xf32>
    %cst_207 = arith.constant 0.000000e+00 : f32
    %1025 = vector.shape_cast %1024 : vector<32x1xf32> to vector<32x1xf32>
    %1026 = vector.broadcast %1025 : vector<32x1xf32> to vector<32x128xf32>
    %1027 = vector.broadcast %cst_207 : f32 to vector<32x128xf32>
    %1028 = arith.select %1011, %1026, %1027 : vector<32x128xi1>, vector<32x128xf32>
    %1029 = arith.addf %1001, %1028 : vector<32x128xf32>
    %1030 = vector.extract_strided_slice %945 {offsets = [0, 2], sizes = [32, 1], strides = [1, 1]} : vector<32x8xf32> to vector<32x1xf32>
    %cst_208 = arith.constant 0.000000e+00 : f32
    %1031 = vector.shape_cast %1030 : vector<32x1xf32> to vector<32x1xf32>
    %1032 = vector.broadcast %1031 : vector<32x1xf32> to vector<32x128xf32>
    %1033 = vector.broadcast %cst_208 : f32 to vector<32x128xf32>
    %1034 = arith.select %1011, %1032, %1033 : vector<32x128xi1>, vector<32x128xf32>
    %1035 = arith.addf %1007, %1034 : vector<32x128xf32>
    %1036 = vector.extract_strided_slice %946 {offsets = [0, 3], sizes = [32, 1], strides = [1, 1]} : vector<32x8xi32> to vector<32x1xi32>
    %1037 = vector.broadcast %1036 : vector<32x1xi32> to vector<32x128xi32>
    %1038 = vector.broadcast %120 : vector<1x128xi32> to vector<32x128xi32>
    %1039 = arith.cmpi eq, %1037, %1038 : vector<32x128xi32>
    %1040 = vector.extract_strided_slice %939 {offsets = [0, 3], sizes = [32, 1], strides = [1, 1]} : vector<32x8xf32> to vector<32x1xf32>
    %cst_209 = arith.constant 0.000000e+00 : f32
    %1041 = vector.shape_cast %1040 : vector<32x1xf32> to vector<32x1xf32>
    %1042 = vector.broadcast %1041 : vector<32x1xf32> to vector<32x128xf32>
    %1043 = vector.broadcast %cst_209 : f32 to vector<32x128xf32>
    %1044 = arith.select %1039, %1042, %1043 : vector<32x128xi1>, vector<32x128xf32>
    %1045 = arith.addf %1017, %1044 : vector<32x128xf32>
    %1046 = vector.extract_strided_slice %941 {offsets = [0, 3], sizes = [32, 1], strides = [1, 1]} : vector<32x8xf32> to vector<32x1xf32>
    %cst_210 = arith.constant 0.000000e+00 : f32
    %1047 = vector.shape_cast %1046 : vector<32x1xf32> to vector<32x1xf32>
    %1048 = vector.broadcast %1047 : vector<32x1xf32> to vector<32x128xf32>
    %1049 = vector.broadcast %cst_210 : f32 to vector<32x128xf32>
    %1050 = arith.select %1039, %1048, %1049 : vector<32x128xi1>, vector<32x128xf32>
    %1051 = arith.addf %1023, %1050 : vector<32x128xf32>
    %1052 = vector.extract_strided_slice %943 {offsets = [0, 3], sizes = [32, 1], strides = [1, 1]} : vector<32x8xf32> to vector<32x1xf32>
    %cst_211 = arith.constant 0.000000e+00 : f32
    %1053 = vector.shape_cast %1052 : vector<32x1xf32> to vector<32x1xf32>
    %1054 = vector.broadcast %1053 : vector<32x1xf32> to vector<32x128xf32>
    %1055 = vector.broadcast %cst_211 : f32 to vector<32x128xf32>
    %1056 = arith.select %1039, %1054, %1055 : vector<32x128xi1>, vector<32x128xf32>
    %1057 = arith.addf %1029, %1056 : vector<32x128xf32>
    %1058 = vector.extract_strided_slice %945 {offsets = [0, 3], sizes = [32, 1], strides = [1, 1]} : vector<32x8xf32> to vector<32x1xf32>
    %cst_212 = arith.constant 0.000000e+00 : f32
    %1059 = vector.shape_cast %1058 : vector<32x1xf32> to vector<32x1xf32>
    %1060 = vector.broadcast %1059 : vector<32x1xf32> to vector<32x128xf32>
    %1061 = vector.broadcast %cst_212 : f32 to vector<32x128xf32>
    %1062 = arith.select %1039, %1060, %1061 : vector<32x128xi1>, vector<32x128xf32>
    %1063 = arith.addf %1035, %1062 : vector<32x128xf32>
    %1064 = vector.extract_strided_slice %946 {offsets = [0, 4], sizes = [32, 1], strides = [1, 1]} : vector<32x8xi32> to vector<32x1xi32>
    %1065 = vector.broadcast %1064 : vector<32x1xi32> to vector<32x128xi32>
    %1066 = vector.broadcast %120 : vector<1x128xi32> to vector<32x128xi32>
    %1067 = arith.cmpi eq, %1065, %1066 : vector<32x128xi32>
    %1068 = vector.extract_strided_slice %939 {offsets = [0, 4], sizes = [32, 1], strides = [1, 1]} : vector<32x8xf32> to vector<32x1xf32>
    %cst_213 = arith.constant 0.000000e+00 : f32
    %1069 = vector.shape_cast %1068 : vector<32x1xf32> to vector<32x1xf32>
    %1070 = vector.broadcast %1069 : vector<32x1xf32> to vector<32x128xf32>
    %1071 = vector.broadcast %cst_213 : f32 to vector<32x128xf32>
    %1072 = arith.select %1067, %1070, %1071 : vector<32x128xi1>, vector<32x128xf32>
    %1073 = arith.addf %1045, %1072 : vector<32x128xf32>
    %1074 = vector.extract_strided_slice %941 {offsets = [0, 4], sizes = [32, 1], strides = [1, 1]} : vector<32x8xf32> to vector<32x1xf32>
    %cst_214 = arith.constant 0.000000e+00 : f32
    %1075 = vector.shape_cast %1074 : vector<32x1xf32> to vector<32x1xf32>
    %1076 = vector.broadcast %1075 : vector<32x1xf32> to vector<32x128xf32>
    %1077 = vector.broadcast %cst_214 : f32 to vector<32x128xf32>
    %1078 = arith.select %1067, %1076, %1077 : vector<32x128xi1>, vector<32x128xf32>
    %1079 = arith.addf %1051, %1078 : vector<32x128xf32>
    %1080 = vector.extract_strided_slice %943 {offsets = [0, 4], sizes = [32, 1], strides = [1, 1]} : vector<32x8xf32> to vector<32x1xf32>
    %cst_215 = arith.constant 0.000000e+00 : f32
    %1081 = vector.shape_cast %1080 : vector<32x1xf32> to vector<32x1xf32>
    %1082 = vector.broadcast %1081 : vector<32x1xf32> to vector<32x128xf32>
    %1083 = vector.broadcast %cst_215 : f32 to vector<32x128xf32>
    %1084 = arith.select %1067, %1082, %1083 : vector<32x128xi1>, vector<32x128xf32>
    %1085 = arith.addf %1057, %1084 : vector<32x128xf32>
    %1086 = vector.extract_strided_slice %945 {offsets = [0, 4], sizes = [32, 1], strides = [1, 1]} : vector<32x8xf32> to vector<32x1xf32>
    %cst_216 = arith.constant 0.000000e+00 : f32
    %1087 = vector.shape_cast %1086 : vector<32x1xf32> to vector<32x1xf32>
    %1088 = vector.broadcast %1087 : vector<32x1xf32> to vector<32x128xf32>
    %1089 = vector.broadcast %cst_216 : f32 to vector<32x128xf32>
    %1090 = arith.select %1067, %1088, %1089 : vector<32x128xi1>, vector<32x128xf32>
    %1091 = arith.addf %1063, %1090 : vector<32x128xf32>
    %1092 = vector.extract_strided_slice %946 {offsets = [0, 5], sizes = [32, 1], strides = [1, 1]} : vector<32x8xi32> to vector<32x1xi32>
    %1093 = vector.broadcast %1092 : vector<32x1xi32> to vector<32x128xi32>
    %1094 = vector.broadcast %120 : vector<1x128xi32> to vector<32x128xi32>
    %1095 = arith.cmpi eq, %1093, %1094 : vector<32x128xi32>
    %1096 = vector.extract_strided_slice %939 {offsets = [0, 5], sizes = [32, 1], strides = [1, 1]} : vector<32x8xf32> to vector<32x1xf32>
    %cst_217 = arith.constant 0.000000e+00 : f32
    %1097 = vector.shape_cast %1096 : vector<32x1xf32> to vector<32x1xf32>
    %1098 = vector.broadcast %1097 : vector<32x1xf32> to vector<32x128xf32>
    %1099 = vector.broadcast %cst_217 : f32 to vector<32x128xf32>
    %1100 = arith.select %1095, %1098, %1099 : vector<32x128xi1>, vector<32x128xf32>
    %1101 = arith.addf %1073, %1100 : vector<32x128xf32>
    %1102 = vector.extract_strided_slice %941 {offsets = [0, 5], sizes = [32, 1], strides = [1, 1]} : vector<32x8xf32> to vector<32x1xf32>
    %cst_218 = arith.constant 0.000000e+00 : f32
    %1103 = vector.shape_cast %1102 : vector<32x1xf32> to vector<32x1xf32>
    %1104 = vector.broadcast %1103 : vector<32x1xf32> to vector<32x128xf32>
    %1105 = vector.broadcast %cst_218 : f32 to vector<32x128xf32>
    %1106 = arith.select %1095, %1104, %1105 : vector<32x128xi1>, vector<32x128xf32>
    %1107 = arith.addf %1079, %1106 : vector<32x128xf32>
    %1108 = vector.extract_strided_slice %943 {offsets = [0, 5], sizes = [32, 1], strides = [1, 1]} : vector<32x8xf32> to vector<32x1xf32>
    %cst_219 = arith.constant 0.000000e+00 : f32
    %1109 = vector.shape_cast %1108 : vector<32x1xf32> to vector<32x1xf32>
    %1110 = vector.broadcast %1109 : vector<32x1xf32> to vector<32x128xf32>
    %1111 = vector.broadcast %cst_219 : f32 to vector<32x128xf32>
    %1112 = arith.select %1095, %1110, %1111 : vector<32x128xi1>, vector<32x128xf32>
    %1113 = arith.addf %1085, %1112 : vector<32x128xf32>
    %1114 = vector.extract_strided_slice %945 {offsets = [0, 5], sizes = [32, 1], strides = [1, 1]} : vector<32x8xf32> to vector<32x1xf32>
    %cst_220 = arith.constant 0.000000e+00 : f32
    %1115 = vector.shape_cast %1114 : vector<32x1xf32> to vector<32x1xf32>
    %1116 = vector.broadcast %1115 : vector<32x1xf32> to vector<32x128xf32>
    %1117 = vector.broadcast %cst_220 : f32 to vector<32x128xf32>
    %1118 = arith.select %1095, %1116, %1117 : vector<32x128xi1>, vector<32x128xf32>
    %1119 = arith.addf %1091, %1118 : vector<32x128xf32>
    %1120 = vector.extract_strided_slice %946 {offsets = [0, 6], sizes = [32, 1], strides = [1, 1]} : vector<32x8xi32> to vector<32x1xi32>
    %1121 = vector.broadcast %1120 : vector<32x1xi32> to vector<32x128xi32>
    %1122 = vector.broadcast %120 : vector<1x128xi32> to vector<32x128xi32>
    %1123 = arith.cmpi eq, %1121, %1122 : vector<32x128xi32>
    %1124 = vector.extract_strided_slice %939 {offsets = [0, 6], sizes = [32, 1], strides = [1, 1]} : vector<32x8xf32> to vector<32x1xf32>
    %cst_221 = arith.constant 0.000000e+00 : f32
    %1125 = vector.shape_cast %1124 : vector<32x1xf32> to vector<32x1xf32>
    %1126 = vector.broadcast %1125 : vector<32x1xf32> to vector<32x128xf32>
    %1127 = vector.broadcast %cst_221 : f32 to vector<32x128xf32>
    %1128 = arith.select %1123, %1126, %1127 : vector<32x128xi1>, vector<32x128xf32>
    %1129 = arith.addf %1101, %1128 : vector<32x128xf32>
    %1130 = vector.extract_strided_slice %941 {offsets = [0, 6], sizes = [32, 1], strides = [1, 1]} : vector<32x8xf32> to vector<32x1xf32>
    %cst_222 = arith.constant 0.000000e+00 : f32
    %1131 = vector.shape_cast %1130 : vector<32x1xf32> to vector<32x1xf32>
    %1132 = vector.broadcast %1131 : vector<32x1xf32> to vector<32x128xf32>
    %1133 = vector.broadcast %cst_222 : f32 to vector<32x128xf32>
    %1134 = arith.select %1123, %1132, %1133 : vector<32x128xi1>, vector<32x128xf32>
    %1135 = arith.addf %1107, %1134 : vector<32x128xf32>
    %1136 = vector.extract_strided_slice %943 {offsets = [0, 6], sizes = [32, 1], strides = [1, 1]} : vector<32x8xf32> to vector<32x1xf32>
    %cst_223 = arith.constant 0.000000e+00 : f32
    %1137 = vector.shape_cast %1136 : vector<32x1xf32> to vector<32x1xf32>
    %1138 = vector.broadcast %1137 : vector<32x1xf32> to vector<32x128xf32>
    %1139 = vector.broadcast %cst_223 : f32 to vector<32x128xf32>
    %1140 = arith.select %1123, %1138, %1139 : vector<32x128xi1>, vector<32x128xf32>
    %1141 = arith.addf %1113, %1140 : vector<32x128xf32>
    %1142 = vector.extract_strided_slice %945 {offsets = [0, 6], sizes = [32, 1], strides = [1, 1]} : vector<32x8xf32> to vector<32x1xf32>
    %cst_224 = arith.constant 0.000000e+00 : f32
    %1143 = vector.shape_cast %1142 : vector<32x1xf32> to vector<32x1xf32>
    %1144 = vector.broadcast %1143 : vector<32x1xf32> to vector<32x128xf32>
    %1145 = vector.broadcast %cst_224 : f32 to vector<32x128xf32>
    %1146 = arith.select %1123, %1144, %1145 : vector<32x128xi1>, vector<32x128xf32>
    %1147 = arith.addf %1119, %1146 : vector<32x128xf32>
    %1148 = vector.extract_strided_slice %946 {offsets = [0, 7], sizes = [32, 1], strides = [1, 1]} : vector<32x8xi32> to vector<32x1xi32>
    %1149 = vector.broadcast %1148 : vector<32x1xi32> to vector<32x128xi32>
    %1150 = vector.broadcast %120 : vector<1x128xi32> to vector<32x128xi32>
    %1151 = arith.cmpi eq, %1149, %1150 : vector<32x128xi32>
    %1152 = vector.extract_strided_slice %939 {offsets = [0, 7], sizes = [32, 1], strides = [1, 1]} : vector<32x8xf32> to vector<32x1xf32>
    %cst_225 = arith.constant 0.000000e+00 : f32
    %1153 = vector.shape_cast %1152 : vector<32x1xf32> to vector<32x1xf32>
    %1154 = vector.broadcast %1153 : vector<32x1xf32> to vector<32x128xf32>
    %1155 = vector.broadcast %cst_225 : f32 to vector<32x128xf32>
    %1156 = arith.select %1151, %1154, %1155 : vector<32x128xi1>, vector<32x128xf32>
    %1157 = arith.addf %1129, %1156 : vector<32x128xf32>
    %1158 = vector.extract_strided_slice %941 {offsets = [0, 7], sizes = [32, 1], strides = [1, 1]} : vector<32x8xf32> to vector<32x1xf32>
    %cst_226 = arith.constant 0.000000e+00 : f32
    %1159 = vector.shape_cast %1158 : vector<32x1xf32> to vector<32x1xf32>
    %1160 = vector.broadcast %1159 : vector<32x1xf32> to vector<32x128xf32>
    %1161 = vector.broadcast %cst_226 : f32 to vector<32x128xf32>
    %1162 = arith.select %1151, %1160, %1161 : vector<32x128xi1>, vector<32x128xf32>
    %1163 = arith.addf %1135, %1162 : vector<32x128xf32>
    %1164 = vector.extract_strided_slice %943 {offsets = [0, 7], sizes = [32, 1], strides = [1, 1]} : vector<32x8xf32> to vector<32x1xf32>
    %cst_227 = arith.constant 0.000000e+00 : f32
    %1165 = vector.shape_cast %1164 : vector<32x1xf32> to vector<32x1xf32>
    %1166 = vector.broadcast %1165 : vector<32x1xf32> to vector<32x128xf32>
    %1167 = vector.broadcast %cst_227 : f32 to vector<32x128xf32>
    %1168 = arith.select %1151, %1166, %1167 : vector<32x128xi1>, vector<32x128xf32>
    %1169 = arith.addf %1141, %1168 : vector<32x128xf32>
    %1170 = vector.extract_strided_slice %945 {offsets = [0, 7], sizes = [32, 1], strides = [1, 1]} : vector<32x8xf32> to vector<32x1xf32>
    %cst_228 = arith.constant 0.000000e+00 : f32
    %1171 = vector.shape_cast %1170 : vector<32x1xf32> to vector<32x1xf32>
    %1172 = vector.broadcast %1171 : vector<32x1xf32> to vector<32x128xf32>
    %1173 = vector.broadcast %cst_228 : f32 to vector<32x128xf32>
    %1174 = arith.select %1151, %1172, %1173 : vector<32x128xi1>, vector<32x128xf32>
    %1175 = arith.addf %1147, %1174 : vector<32x128xf32>
    %1176 = arith.truncf %1157 : vector<32x128xf32> to vector<32x128xbf16>
    %1177 = vector.extract_strided_slice %110 {offsets = [0, 24], sizes = [128, 8], strides = [1, 1]} : vector<128x32xbf16> to vector<128x8xbf16>
    %cst_229 = arith.constant dense<0.000000e+00> : vector<32x8xf32>
    %1178 = tpu.matmul %1176, %1177, %cst_229 {dimension_numbers = #tpu.dot_dimension_numbers<[1], [0], [0], [1], [0, 0, 1, 1], [], []>} : vector<32x128xbf16>, vector<128x8xbf16>, vector<32x8xf32> -> vector<32x8xf32>
    %1179 = arith.addf %947, %1178 : vector<32x8xf32>
    %1180 = arith.truncf %1163 : vector<32x128xf32> to vector<32x128xbf16>
    %1181 = vector.extract_strided_slice %113 {offsets = [0, 24], sizes = [128, 8], strides = [1, 1]} : vector<128x32xbf16> to vector<128x8xbf16>
    %cst_230 = arith.constant dense<0.000000e+00> : vector<32x8xf32>
    %1182 = tpu.matmul %1180, %1181, %cst_230 {dimension_numbers = #tpu.dot_dimension_numbers<[1], [0], [0], [1], [0, 0, 1, 1], [], []>} : vector<32x128xbf16>, vector<128x8xbf16>, vector<32x8xf32> -> vector<32x8xf32>
    %1183 = arith.addf %1179, %1182 : vector<32x8xf32>
    %1184 = arith.truncf %1169 : vector<32x128xf32> to vector<32x128xbf16>
    %1185 = vector.extract_strided_slice %115 {offsets = [0, 24], sizes = [128, 8], strides = [1, 1]} : vector<128x32xbf16> to vector<128x8xbf16>
    %cst_231 = arith.constant dense<0.000000e+00> : vector<32x8xf32>
    %1186 = tpu.matmul %1184, %1185, %cst_231 {dimension_numbers = #tpu.dot_dimension_numbers<[1], [0], [0], [1], [0, 0, 1, 1], [], []>} : vector<32x128xbf16>, vector<128x8xbf16>, vector<32x8xf32> -> vector<32x8xf32>
    %1187 = arith.addf %1183, %1186 : vector<32x8xf32>
    %1188 = arith.truncf %1175 : vector<32x128xf32> to vector<32x128xbf16>
    %1189 = vector.extract_strided_slice %117 {offsets = [0, 24], sizes = [128, 8], strides = [1, 1]} : vector<128x32xbf16> to vector<128x8xbf16>
    %cst_232 = arith.constant dense<0.000000e+00> : vector<32x8xf32>
    %1190 = tpu.matmul %1188, %1189, %cst_232 {dimension_numbers = #tpu.dot_dimension_numbers<[1], [0], [0], [1], [0, 0, 1, 1], [], []>} : vector<32x128xbf16>, vector<128x8xbf16>, vector<32x8xf32> -> vector<32x8xf32>
    %1191 = arith.addf %1187, %1190 : vector<32x8xf32>
    %1192 = tpu.reciprocal %937 {approx = true} : vector<32x1xf32> -> vector<32x1xf32>
    %1193 = vector.broadcast %1192 : vector<32x1xf32> to vector<32x8xf32>
    %1194 = arith.mulf %1191, %1193 : vector<32x8xf32>
    %1195 = arith.truncf %1194 : vector<32x8xf32> to vector<32x8xbf16>
    %1196 = vector.extract_strided_slice %121 {offsets = [24, 0], sizes = [8, 32], strides = [1, 1]} : vector<32x32xbf16> to vector<8x32xbf16>
    %cst_233 = arith.constant dense<0.000000e+00> : vector<32x32xf32>
    %1197 = tpu.matmul %1195, %1196, %cst_233 {dimension_numbers = #tpu.dot_dimension_numbers<[1], [0], [0], [1], [0, 0, 1, 1], [], []>} : vector<32x8xbf16>, vector<8x32xbf16>, vector<32x32xf32> -> vector<32x32xf32>
    %1198 = arith.addf %929, %1197 : vector<32x32xf32>
    %c0_234 = arith.constant 0 : index
    %c0_235 = arith.constant 0 : index
    %1199 = vector.load %arg11[%c0_234, %c0_235] : memref<1x32xf32, #tpu.memory_space<vmem>>, vector<1x32xf32>
    %1200 = vector.broadcast %1199 : vector<1x32xf32> to vector<32x32xf32>
    %1201 = arith.addf %1198, %1200 : vector<32x32xf32>
    %c0_236 = arith.constant 0 : index
    %c0_237 = arith.constant 0 : index
    %c0_238 = arith.constant 0 : index
    %1202 = vector.load %arg7[%c0_236, %c0_237, %c0_238] : memref<1x32x1xf32, #tpu.memory_space<vmem>>, vector<1x32x1xf32>
    %1203 = vector.shape_cast %1202 : vector<1x32x1xf32> to vector<32x1xf32>
    %c0_239 = arith.constant 0 : index
    %c0_240 = arith.constant 0 : index
    %1204 = vector.load %arg15[%c0_239, %c0_240] : memref<32x32xf32, #tpu.memory_space<vmem>>, vector<32x32xf32>
    %1205 = vector.broadcast %1203 : vector<32x1xf32> to vector<32x32xf32>
    %1206 = arith.mulf %1201, %1205 : vector<32x32xf32>
    %1207 = arith.addf %1204, %1206 : vector<32x32xf32>
    %c0_241 = arith.constant 0 : index
    %c0_242 = arith.constant 0 : index
    %1208 = vector.load %arg15[%c0_241, %c0_242] : memref<32x32xf32, #tpu.memory_space<vmem>>, vector<32x32xf32>
    tpu.vector_store %arg15[%c0_241, %c0_242], %1207 {strides = array<i32>} : memref<32x32xf32, #tpu.memory_space<vmem>>, vector<32x32xf32>,
    %c0_243 = arith.constant 0 : index
    %c0_244 = arith.constant 0 : index
    %1209 = vector.load %arg16[%c0_243, %c0_244] : memref<32x1xf32, #tpu.memory_space<vmem>>, vector<32x1xf32>
    %1210 = arith.addf %1209, %1203 : vector<32x1xf32>
    %c0_245 = arith.constant 0 : index
    %c0_246 = arith.constant 0 : index
    %1211 = vector.load %arg16[%c0_245, %c0_246] : memref<32x1xf32, #tpu.memory_space<vmem>>, vector<32x1xf32>
    tpu.vector_store %arg16[%c0_245, %c0_246], %1210 {strides = array<i32>} : memref<32x1xf32, #tpu.memory_space<vmem>>, vector<32x1xf32>,
    %c1_i32 = arith.constant 1 : i32
    %1212 = arith.cmpi eq, %arg2, %c1_i32 : i32
    %1213 = arith.extui %1212 : i1 to i32
    %c0_i32_247 = arith.constant 0 : i32
    %1214 = arith.cmpi ne, %1213, %c0_i32_247 : i32
    scf.if %1214 {
      %c0_248 = arith.constant 0 : index
      %c0_249 = arith.constant 0 : index
      %1215 = vector.load %arg16[%c0_248, %c0_249] : memref<32x1xf32, #tpu.memory_space<vmem>>, vector<32x1xf32>
      %cst_250 = arith.constant 2.000000e+00 : f32
      %1216 = vector.broadcast %cst_250 : f32 to vector<32x1xf32>
      %1217 = arith.mulf %1215, %1216 : vector<32x1xf32>
      %cst_251 = arith.constant 1.000000e+00 : f32
      %1218 = vector.broadcast %cst_251 : f32 to vector<32x1xf32>
      %1219 = arith.maximumf %1217, %1218 : vector<32x1xf32>
      %c0_252 = arith.constant 0 : index
      %c0_253 = arith.constant 0 : index
      %1220 = vector.load %arg15[%c0_252, %c0_253] : memref<32x32xf32, #tpu.memory_space<vmem>>, vector<32x32xf32>
      %1221 = vector.broadcast %1219 : vector<32x1xf32> to vector<32x32xf32>
      %1222 = arith.divf %1220, %1221 : vector<32x32xf32>
      %1223 = arith.truncf %1222 : vector<32x32xf32> to vector<32x32xbf16>
      %c0_254 = arith.constant 0 : index
      %c0_255 = arith.constant 0 : index
      %1224 = vector.load %arg12[%c0_254, %c0_255] : memref<32x32xbf16, #tpu.memory_space<vmem>>, vector<32x32xbf16>
      %cst_256 = arith.constant dense<0.000000e+00> : vector<32x32xf32>
      %1225 = tpu.matmul %1223, %1224, %cst_256 {dimension_numbers = #tpu.dot_dimension_numbers<[1], [0], [0], [1], [0, 0, 1, 1], [], []>} : vector<32x32xbf16>, vector<32x32xbf16>, vector<32x32xf32> -> vector<32x32xf32>
      %c0_257 = arith.constant 0 : index
      %c0_258 = arith.constant 0 : index
      %1226 = vector.load %arg13[%c0_257, %c0_258] : memref<1x32xf32, #tpu.memory_space<vmem>>, vector<1x32xf32>
      %1227 = vector.broadcast %1226 : vector<1x32xf32> to vector<32x32xf32>
      %1228 = arith.addf %1225, %1227 : vector<32x32xf32>
      %c0_259 = arith.constant 0 : index
      %c0_260 = arith.constant 0 : index
      %c0_261 = arith.constant 0 : index
      %1229 = vector.load %arg14[%c0_259, %c0_260, %c0_261] : memref<1x32x32xf32, #tpu.memory_space<vmem>>, vector<1x32x32xf32>
      %1230 = vector.shape_cast %1229 : vector<1x32x32xf32> to vector<32x32xf32>
      %1231 = vector.shape_cast %1228 : vector<32x32xf32> to vector<1x32x32xf32>
      tpu.vector_store %arg14[%c0_259, %c0_260, %c0_261], %1231 {strides = array<i32>} : memref<1x32x32xf32, #tpu.memory_space<vmem>>, vector<1x32x32xf32>,
    } else {
    }
    return
  }
  func.func @transform_0(%arg0: i32, %arg1: i32, %arg2: i32) -> (i32, i32, i32, i32) {
    %c0_i32 = arith.constant 0 : i32
    %c0_i32_0 = arith.constant 0 : i32
    return %arg0, %arg2, %arg1, %c0_i32 : i32, i32, i32, i32
  }
  func.func @transform_1(%arg0: i32, %arg1: i32, %arg2: i32) -> (i32, i32, i32, i32) {
    %c0_i32 = arith.constant 0 : i32
    %c0_i32_0 = arith.constant 0 : i32
    %c0_i32_1 = arith.constant 0 : i32
    return %arg0, %arg2, %c0_i32, %c0_i32_0 : i32, i32, i32, i32
  }
  func.func @transform_2(%arg0: i32, %arg1: i32, %arg2: i32) -> (i32, i32, i32, i32) {
    %c0_i32 = arith.constant 0 : i32
    %c0_i32_0 = arith.constant 0 : i32
    return %arg0, %arg2, %arg1, %c0_i32 : i32, i32, i32, i32
  }
  func.func @transform_3(%arg0: i32, %arg1: i32, %arg2: i32) -> (i32, i32, i32, i32) {
    %c0_i32 = arith.constant 0 : i32
    %c0_i32_0 = arith.constant 0 : i32
    return %arg0, %arg2, %arg1, %c0_i32 : i32, i32, i32, i32
  }
  func.func @transform_4(%arg0: i32, %arg1: i32, %arg2: i32) -> (i32, i32, i32) {
    %c0_i32 = arith.constant 0 : i32
    %c0_i32_0 = arith.constant 0 : i32
    return %arg2, %arg1, %c0_i32 : i32, i32, i32
  }
  func.func @transform_5(%arg0: i32, %arg1: i32, %arg2: i32) -> (i32, i32) {
    %c0_i32 = arith.constant 0 : i32
    %c0_i32_0 = arith.constant 0 : i32
    %c0_i32_1 = arith.constant 0 : i32
    return %c0_i32, %c0_i32_0 : i32, i32
  }
  func.func @transform_6(%arg0: i32, %arg1: i32, %arg2: i32) -> (i32, i32) {
    %c0_i32 = arith.constant 0 : i32
    %c0_i32_0 = arith.constant 0 : i32
    %c0_i32_1 = arith.constant 0 : i32
    return %c0_i32, %c0_i32_0 : i32, i32
  }
  func.func @transform_7(%arg0: i32, %arg1: i32, %arg2: i32) -> (i32, i32) {
    %c0_i32 = arith.constant 0 : i32
    %c0_i32_0 = arith.constant 0 : i32
    %c0_i32_1 = arith.constant 0 : i32
    return %c0_i32, %c0_i32_0 : i32, i32
  }
  func.func @transform_8(%arg0: i32, %arg1: i32, %arg2: i32) -> (i32, i32) {
    %c0_i32 = arith.constant 0 : i32
    %c0_i32_0 = arith.constant 0 : i32
    %c0_i32_1 = arith.constant 0 : i32
    return %c0_i32, %c0_i32_0 : i32, i32
  }
  func.func @transform_9(%arg0: i32, %arg1: i32, %arg2: i32) -> (i32, i32) {
    %c0_i32 = arith.constant 0 : i32
    %c0_i32_0 = arith.constant 0 : i32
    %c0_i32_1 = arith.constant 0 : i32
    return %c0_i32, %c0_i32_0 : i32, i32
  }
  func.func @transform_10(%arg0: i32, %arg1: i32, %arg2: i32) -> (i32, i32) {
    %c0_i32 = arith.constant 0 : i32
    %c0_i32_0 = arith.constant 0 : i32
    %c0_i32_1 = arith.constant 0 : i32
    return %c0_i32, %c0_i32_0 : i32, i32
  }
  func.func @transform_11(%arg0: i32, %arg1: i32, %arg2: i32) -> (i32, i32, i32) {
    %c0_i32 = arith.constant 0 : i32
    %c0_i32_0 = arith.constant 0 : i32
    return %arg0, %arg1, %c0_i32 : i32, i32, i32
  }
}

</mosaic_0001>

<llo_original>
// kernel: tpu_custom_call.1
$region0: #{tpu_custom_call.1}
  #allocation0 [shape = 'u32[]', space=smem, size = 0x4, offset = 0x4, fixed_abs, tag = 'smem constant byte address 0x4 - core index']
  #allocation1 [shape = 'u32[144,128]{1,0:T(1,128)}', space=vmem, size = 0x12000, scoped, tag = 'internal scratch']
  #allocation2 [shape = 'f32[32,32]{1,0:T(8,128)}', space=vmem, size = 0x4000, scoped, tag = 'scratch operand']
  #allocation3 [shape = 'f32[32,1]{1,0:T(8,128)}', space=vmem, size = 0x4000, scoped, tag = 'scratch operand']
  %s0 = inlined_call_operand.vmem [shape: bf16[2,2,64,32], index: 0, kind: input, shape index: {}]
  %s1 = inlined_call_operand.vmem [shape: bf16[2,2,128,32], index: 1, kind: input, shape index: {}]
  %s2 = inlined_call_operand.vmem [shape: f32[2,2,64,32], index: 2, kind: input, shape index: {}]
  %s3 = inlined_call_operand.vmem [shape: f32[2,2,64,32], index: 3, kind: input, shape index: {}]
  %s4 = inlined_call_operand.vmem [shape: f32[2,64,1], index: 4, kind: input, shape index: {}]
  %s5 = inlined_call_operand.vmem [shape: bf16[32,96], index: 5, kind: input, shape index: {}]
  %s6 = inlined_call_operand.vmem [shape: f32[1,96], index: 6, kind: input, shape index: {}]
  %s7 = inlined_call_operand.vmem [shape: bf16[32,32], index: 7, kind: input, shape index: {}]
  %s8 = inlined_call_operand.vmem [shape: f32[1,32], index: 8, kind: input, shape index: {}]
  %s9 = inlined_call_operand.vmem [shape: bf16[32,32], index: 9, kind: input, shape index: {}]
  %s10 = inlined_call_operand.vmem [shape: f32[1,32], index: 10, kind: input, shape index: {}]
  %s11 = inlined_call_operand.vmem [shape: f32[2,64,32], index: 11, kind: output, shape index: {}]
  %s12 = sld [smem:[#allocation0]]
  $region85: #{tpu_custom_call.1} parent=0
    _
  %s14 = ssub.s32 1, %s12
  %s15 = scalar_select 0, %s14, %s12
  loop: start=0, step=1, limit=10
  $region2: #{tpu_custom_call.1} parent=0 // loop_pre_header
    _
  $region3: #{tpu_custom_call.1} parent=0 // loop_header
    %s17 = sphi 0, %s21
    %p18 = scmp.ge.s32.totalorder %s17, 10
    %s24 = sphi 0, %s43
    %s25 = sphi 0, %s39
    %s26 = sphi 0, %s35
    %s27 = sphi 0, %s24
    %s28 = sphi 0, %s25
    %s29 = sphi 0, %s26
    %s30 = sphi 0, %s27
    %s31 = sphi 0, %s28
    %s32 = sphi 0, %s29
    %s50 = sphi 0, %s52
    %s53 = sphi 0, %s50
    %s54 = sphi 0, %s53
    %s70 = sphi 0, %s54
    %s78 = sphi 0, %s80
    %s81 = sphi 0, %s78
    %s82 = sphi 0, %s81
    %s98 = sphi 0, %s82
    %s108 = sphi 0, %s110
    %s111 = sphi 0, %s108
    %s112 = sphi 0, %s111
    %s128 = sphi 0, %s112
    %s138 = sphi 0, %s140
    %s141 = sphi 0, %s138
    %s142 = sphi 0, %s141
    %s158 = sphi 0, %s142
    %s166 = sphi 0, %s168
    %s169 = sphi 0, %s166
    %s170 = sphi 0, %s169
    %s186 = sphi 0, %s170
    %s190 = sphi 0, %s190
    %s192 = sphi 0, %s190
    %s193 = sphi 0, %s192
    %s207 = sphi 0, %s193
    %s211 = sphi 0, %s211
    %s213 = sphi 0, %s211
    %s214 = sphi 0, %s213
    %s228 = sphi 0, %s214
    %s232 = sphi 0, %s232
    %s234 = sphi 0, %s232
    %s235 = sphi 0, %s234
    %s249 = sphi 0, %s235
    %s253 = sphi 0, %s253
    %s255 = sphi 0, %s253
    %s256 = sphi 0, %s255
    %s270 = sphi 0, %s256
    %s274 = sphi 0, %s274
    %s276 = sphi 0, %s274
    %s277 = sphi 0, %s276
    %s291 = sphi 0, %s277
    %s295 = sphi 0, %s295
    %s297 = sphi 0, %s295
    %s298 = sphi 0, %s297
    %s312 = sphi 0, %s298
    %s320 = sphi 0, %s322
    %s323 = sphi 0, %s320
    %s324 = sphi 0, %s323
    %s340 = sphi 0, %s324
  $region4: #{tpu_custom_call.1} parent=0 // loop_header_branch
    %20 = sbr.rel (%p18) target = $region8
  $region5: #{tpu_custom_call.1} parent=0 // loop_body
    %s22 = ssub.s32 %s17, 1
    %s23 = ssub.s32 %s17, 2
    %s33 = sadd.s32 1, %s26
    %p34 = scmp.ge.s32.totalorder %s33, 2
    %s35 = scalar_select %p34, 0, %s33
    %s36 = sadd.s32 1, %s25
    %s37 = scalar_select %p34, %s36, %s25
    %p38 = scmp.ge.s32.totalorder %s37, 2
    %s39 = scalar_select %p38, 0, %s37
    %s40 = sadd.s32 1, %s24
    %s41 = scalar_select %p38, %s40, %s24
    %p42 = scmp.ge.s32.totalorder %s41, 2
    %s43 = scalar_select %p42, 0, %s41
    %s44 = ssub.s32 %s24, %s43
    %s45 = ssub.s32 %s26, %s35
    %s46 = sor.u32 %s44, %s45
    %s47 = ssub.s32 %s25, %s39
    %s48 = sor.u32 %s46, %s47
    %p49 = scmp.eq.s32.totalorder %s48, 0
    %s51 = sadd.s32 %s50, 1
    %s52 = scalar_select %p49, %s50, %s51
    %p55 = pneg %p49
    %p56 = scmp.eq.s32.totalorder %s17, 7
    %p57 = por %p55, %p56
    %p58 = scmp.ne.s32.totalorder %s50, %s53
    %p59 = scmp.eq.s32.totalorder %s17, 0
    %p60 = por %p58, %p59
    %p61 = scmp.ne.s32.totalorder %s50, %s53
    %p62 = scmp.eq.s32.totalorder %s22, 7
    %p63 = por %p61, %p62
    %p64 = scmp.ne.s32.totalorder %s53, %s54
    %p65 = scmp.eq.s32.totalorder %s22, 0
    %p66 = por %p64, %p65
    %p67 = scmp.ne.s32.totalorder %s53, %s54
    %p68 = scmp.eq.s32.totalorder %s23, 7
    %p69 = por %p67, %p68
    %p71 = scmp.ne.s32.totalorder %s54, %s70
    %p72 = scmp.eq.s32.totalorder %s23, 0
    %p73 = por %p71, %p72
    %s74 = ssub.s32 %s24, %s43
    %s75 = ssub.s32 %s26, %s35
    %s76 = sor.u32 %s74, %s75
    %p77 = scmp.eq.s32.totalorder %s76, 0
    %s79 = sadd.s32 %s78, 1
    %s80 = scalar_select %p77, %s78, %s79
    %p83 = pneg %p77
    %p84 = scmp.eq.s32.totalorder %s17, 7
    %p85 = por %p83, %p84
    %p86 = scmp.ne.s32.totalorder %s78, %s81
    %p87 = scmp.eq.s32.totalorder %s17, 0
    %p88 = por %p86, %p87
    %p89 = scmp.ne.s32.totalorder %s78, %s81
    %p90 = scmp.eq.s32.totalorder %s22, 7
    %p91 = por %p89, %p90
    %p92 = scmp.ne.s32.totalorder %s81, %s82
    %p93 = scmp.eq.s32.totalorder %s22, 0
    %p94 = por %p92, %p93
    %p95 = scmp.ne.s32.totalorder %s81, %s82
    %p96 = scmp.eq.s32.totalorder %s23, 7
    %p97 = por %p95, %p96
    %p99 = scmp.ne.s32.totalorder %s82, %s98
    %p100 = scmp.eq.s32.totalorder %s23, 0
    %p101 = por %p99, %p100
    %s102 = ssub.s32 %s24, %s43
    %s103 = ssub.s32 %s26, %s35
    %s104 = sor.u32 %s102, %s103
    %s105 = ssub.s32 %s25, %s39
    %s106 = sor.u32 %s104, %s105
    %p107 = scmp.eq.s32.totalorder %s106, 0
    %s109 = sadd.s32 %s108, 1
    %s110 = scalar_select %p107, %s108, %s109
    %p113 = pneg %p107
    %p114 = scmp.eq.s32.totalorder %s17, 7
    %p115 = por %p113, %p114
    %p116 = scmp.ne.s32.totalorder %s108, %s111
    %p117 = scmp.eq.s32.totalorder %s17, 0
    %p118 = por %p116, %p117
    %p119 = scmp.ne.s32.totalorder %s108, %s111
    %p120 = scmp.eq.s32.totalorder %s22, 7
    %p121 = por %p119, %p120
    %p122 = scmp.ne.s32.totalorder %s111, %s112
    %p123 = scmp.eq.s32.totalorder %s22, 0
    %p124 = por %p122, %p123
    %p125 = scmp.ne.s32.totalorder %s111, %s112
    %p126 = scmp.eq.s32.totalorder %s23, 7
    %p127 = por %p125, %p126
    %p129 = scmp.ne.s32.totalorder %s112, %s128
    %p130 = scmp.eq.s32.totalorder %s23, 0
    %p131 = por %p129, %p130
    %s132 = ssub.s32 %s24, %s43
    %s133 = ssub.s32 %s26, %s35
    %s134 = sor.u32 %s132, %s133
    %s135 = ssub.s32 %s25, %s39
    %s136 = sor.u32 %s134, %s135
    %p137 = scmp.eq.s32.totalorder %s136, 0
    %s139 = sadd.s32 %s138, 1
    %s140 = scalar_select %p137, %s138, %s139
    %p143 = pneg %p137
    %p144 = scmp.eq.s32.totalorder %s17, 7
    %p145 = por %p143, %p144
    %p146 = scmp.ne.s32.totalorder %s138, %s141
    %p147 = scmp.eq.s32.totalorder %s17, 0
    %p148 = por %p146, %p147
    %p149 = scmp.ne.s32.totalorder %s138, %s141
    %p150 = scmp.eq.s32.totalorder %s22, 7
    %p151 = por %p149, %p150
    %p152 = scmp.ne.s32.totalorder %s141, %s142
    %p153 = scmp.eq.s32.totalorder %s22, 0
    %p154 = por %p152, %p153
    %p155 = scmp.ne.s32.totalorder %s141, %s142
    %p156 = scmp.eq.s32.totalorder %s23, 7
    %p157 = por %p155, %p156
    %p159 = scmp.ne.s32.totalorder %s142, %s158
    %p160 = scmp.eq.s32.totalorder %s23, 0
    %p161 = por %p159, %p160
    %s162 = ssub.s32 %s26, %s35
    %s163 = ssub.s32 %s25, %s39
    %s164 = sor.u32 %s162, %s163
    %p165 = scmp.eq.s32.totalorder %s164, 0
    %s167 = sadd.s32 %s166, 1
    %s168 = scalar_select %p165, %s166, %s167
    %p171 = pneg %p165
    %p172 = scmp.eq.s32.totalorder %s17, 7
    %p173 = por %p171, %p172
    %p174 = scmp.ne.s32.totalorder %s166, %s169
    %p175 = scmp.eq.s32.totalorder %s17, 0
    %p176 = por %p174, %p175
    %p177 = scmp.ne.s32.totalorder %s166, %s169
    %p178 = scmp.eq.s32.totalorder %s22, 7
    %p179 = por %p177, %p178
    %p180 = scmp.ne.s32.totalorder %s169, %s170
    %p181 = scmp.eq.s32.totalorder %s22, 0
    %p182 = por %p180, %p181
    %p183 = scmp.ne.s32.totalorder %s169, %s170
    %p184 = scmp.eq.s32.totalorder %s23, 7
    %p185 = por %p183, %p184
    %p187 = scmp.ne.s32.totalorder %s170, %s186
    %p188 = scmp.eq.s32.totalorder %s23, 0
    %p189 = por %p187, %p188
    %s191 = sadd.s32 %s190, 1
    %p194 = scmp.eq.s32.totalorder %s17, 7
    %p195 = scmp.ne.s32.totalorder %s190, %s192
    %p196 = scmp.eq.s32.totalorder %s17, 0
    %p197 = por %p195, %p196
    %p198 = scmp.ne.s32.totalorder %s190, %s192
    %p199 = scmp.eq.s32.totalorder %s22, 7
    %p200 = por %p198, %p199
    %p201 = scmp.ne.s32.totalorder %s192, %s193
    %p202 = scmp.eq.s32.totalorder %s22, 0
    %p203 = por %p201, %p202
    %p204 = scmp.ne.s32.totalorder %s192, %s193
    %p205 = scmp.eq.s32.totalorder %s23, 7
    %p206 = por %p204, %p205
    %p208 = scmp.ne.s32.totalorder %s193, %s207
    %p209 = scmp.eq.s32.totalorder %s23, 0
    %p210 = por %p208, %p209
    %s212 = sadd.s32 %s211, 1
    %p215 = scmp.eq.s32.totalorder %s17, 7
    %p216 = scmp.ne.s32.totalorder %s211, %s213
    %p217 = scmp.eq.s32.totalorder %s17, 0
    %p218 = por %p216, %p217
    %p219 = scmp.ne.s32.totalorder %s211, %s213
    %p220 = scmp.eq.s32.totalorder %s22, 7
    %p221 = por %p219, %p220
    %p222 = scmp.ne.s32.totalorder %s213, %s214
    %p223 = scmp.eq.s32.totalorder %s22, 0
    %p224 = por %p222, %p223
    %p225 = scmp.ne.s32.totalorder %s213, %s214
    %p226 = scmp.eq.s32.totalorder %s23, 7
    %p227 = por %p225, %p226
    %p229 = scmp.ne.s32.totalorder %s214, %s228
    %p230 = scmp.eq.s32.totalorder %s23, 0
    %p231 = por %p229, %p230
    %s233 = sadd.s32 %s232, 1
    %p236 = scmp.eq.s32.totalorder %s17, 7
    %p237 = scmp.ne.s32.totalorder %s232, %s234
    %p238 = scmp.eq.s32.totalorder %s17, 0
    %p239 = por %p237, %p238
    %p240 = scmp.ne.s32.totalorder %s232, %s234
    %p241 = scmp.eq.s32.totalorder %s22, 7
    %p242 = por %p240, %p241
    %p243 = scmp.ne.s32.totalorder %s234, %s235
    %p244 = scmp.eq.s32.totalorder %s22, 0
    %p245 = por %p243, %p244
    %p246 = scmp.ne.s32.totalorder %s234, %s235
    %p247 = scmp.eq.s32.totalorder %s23, 7
    %p248 = por %p246, %p247
    %p250 = scmp.ne.s32.totalorder %s235, %s249
    %p251 = scmp.eq.s32.totalorder %s23, 0
    %p252 = por %p250, %p251
    %s254 = sadd.s32 %s253, 1
    %p257 = scmp.eq.s32.totalorder %s17, 7
    %p258 = scmp.ne.s32.totalorder %s253, %s255
    %p259 = scmp.eq.s32.totalorder %s17, 0
    %p260 = por %p258, %p259
    %p261 = scmp.ne.s32.totalorder %s253, %s255
    %p262 = scmp.eq.s32.totalorder %s22, 7
    %p263 = por %p261, %p262
    %p264 = scmp.ne.s32.totalorder %s255, %s256
    %p265 = scmp.eq.s32.totalorder %s22, 0
    %p266 = por %p264, %p265
    %p267 = scmp.ne.s32.totalorder %s255, %s256
    %p268 = scmp.eq.s32.totalorder %s23, 7
    %p269 = por %p267, %p268
    %p271 = scmp.ne.s32.totalorder %s256, %s270
    %p272 = scmp.eq.s32.totalorder %s23, 0
    %p273 = por %p271, %p272
    %s275 = sadd.s32 %s274, 1
    %p278 = scmp.eq.s32.totalorder %s17, 7
    %p279 = scmp.ne.s32.totalorder %s274, %s276
    %p280 = scmp.eq.s32.totalorder %s17, 0
    %p281 = por %p279, %p280
    %p282 = scmp.ne.s32.totalorder %s274, %s276
    %p283 = scmp.eq.s32.totalorder %s22, 7
    %p284 = por %p282, %p283
    %p285 = scmp.ne.s32.totalorder %s276, %s277
    %p286 = scmp.eq.s32.totalorder %s22, 0
    %p287 = por %p285, %p286
    %p288 = scmp.ne.s32.totalorder %s276, %s277
    %p289 = scmp.eq.s32.totalorder %s23, 7
    %p290 = por %p288, %p289
    %p292 = scmp.ne.s32.totalorder %s277, %s291
    %p293 = scmp.eq.s32.totalorder %s23, 0
    %p294 = por %p292, %p293
    %s296 = sadd.s32 %s295, 1
    %p299 = scmp.eq.s32.totalorder %s17, 7
    %p300 = scmp.ne.s32.totalorder %s295, %s297
    %p301 = scmp.eq.s32.totalorder %s17, 0
    %p302 = por %p300, %p301
    %p303 = scmp.ne.s32.totalorder %s295, %s297
    %p304 = scmp.eq.s32.totalorder %s22, 7
    %p305 = por %p303, %p304
    %p306 = scmp.ne.s32.totalorder %s297, %s298
    %p307 = scmp.eq.s32.totalorder %s22, 0
    %p308 = por %p306, %p307
    %p309 = scmp.ne.s32.totalorder %s297, %s298
    %p310 = scmp.eq.s32.totalorder %s23, 7
    %p311 = por %p309, %p310
    %p313 = scmp.ne.s32.totalorder %s298, %s312
    %p314 = scmp.eq.s32.totalorder %s23, 0
    %p315 = por %p313, %p314
    %s316 = ssub.s32 %s24, %s43
    %s317 = ssub.s32 %s25, %s39
    %s318 = sor.u32 %s316, %s317
    %p319 = scmp.eq.s32.totalorder %s318, 0
    %s321 = sadd.s32 %s320, 1
    %s322 = scalar_select %p319, %s320, %s321
    %p325 = pneg %p319
    %p326 = scmp.eq.s32.totalorder %s17, 7
    %p327 = por %p325, %p326
    %p328 = scmp.ne.s32.totalorder %s320, %s323
    %p329 = scmp.eq.s32.totalorder %s17, 0
    %p330 = por %p328, %p329
    %p331 = scmp.ne.s32.totalorder %s320, %s323
    %p332 = scmp.eq.s32.totalorder %s22, 7
    %p333 = por %p331, %p332
    %p334 = scmp.ne.s32.totalorder %s323, %s324
    %p335 = scmp.eq.s32.totalorder %s22, 0
    %p336 = por %p334, %p335
    %p337 = scmp.ne.s32.totalorder %s323, %s324
    %p338 = scmp.eq.s32.totalorder %s23, 7
    %p339 = por %p337, %p338
    %p341 = scmp.ne.s32.totalorder %s324, %s340
    %p342 = scmp.eq.s32.totalorder %s23, 0
    %p343 = por %p341, %p342
    %p344 = scmp.le.s32.totalorder 1, %s17
    %p345 = scmp.lt.s32.totalorder %s17, 9
    %p346 = pnand %p344, %p345
    %p347 = pneg %p346
    // Predicated region
    $region9: #{tpu_custom_call.1} parent=5 // pred_check
      _
    $region10: #{tpu_custom_call.1} parent=5 // pred_check_branch
      %349 = sbr.rel (%p346) target = $region12
    $region11: #{tpu_custom_call.1} parent=5 // pred_region
      %s350 = ssub.s32 %s17, 1
      // Predicated region
      $region13: #{tpu_custom_call.1} parent=11 // pred_check
        %p351 = pneg %p203
      $region14: #{tpu_custom_call.1} parent=11 // pred_check_branch
        %353 = sbr.rel (%p351) target = $region16
      $region15: #{tpu_custom_call.1} parent=11 // pred_region
        _
      $region16: #{tpu_custom_call.1} parent=11 // pred_fallthru
        _
      // Predicated region
      $region17: #{tpu_custom_call.1} parent=11 // pred_check
        %p354 = pneg %p224
      $region18: #{tpu_custom_call.1} parent=11 // pred_check_branch
        %356 = sbr.rel (%p354) target = $region20
      $region19: #{tpu_custom_call.1} parent=11 // pred_region
        _
      $region20: #{tpu_custom_call.1} parent=11 // pred_fallthru
        _
      // Predicated region
      $region21: #{tpu_custom_call.1} parent=11 // pred_check
        %p357 = pneg %p245
      $region22: #{tpu_custom_call.1} parent=11 // pred_check_branch
        %359 = sbr.rel (%p357) target = $region24
      $region23: #{tpu_custom_call.1} parent=11 // pred_region
        _
      $region24: #{tpu_custom_call.1} parent=11 // pred_fallthru
        _
      // Predicated region
      $region25: #{tpu_custom_call.1} parent=11 // pred_check
        %p360 = pneg %p266
      $region26: #{tpu_custom_call.1} parent=11 // pred_check_branch
        %362 = sbr.rel (%p360) target = $region28
      $region27: #{tpu_custom_call.1} parent=11 // pred_region
        _
      $region28: #{tpu_custom_call.1} parent=11 // pred_fallthru
        _
      // Predicated region
      $region29: #{tpu_custom_call.1} parent=11 // pred_check
        %p363 = pneg %p287
      $region30: #{tpu_custom_call.1} parent=11 // pred_check_branch
        %365 = sbr.rel (%p363) target = $region32
      $region31: #{tpu_custom_call.1} parent=11 // pred_region
        _
      $region32: #{tpu_custom_call.1} parent=11 // pred_fallthru
        _
      // Predicated region
      $region33: #{tpu_custom_call.1} parent=11 // pred_check
        %p366 = pneg %p308
      $region34: #{tpu_custom_call.1} parent=11 // pred_check_branch
        %368 = sbr.rel (%p366) target = $region36
      $region35: #{tpu_custom_call.1} parent=11 // pred_region
        _
      $region36: #{tpu_custom_call.1} parent=11 // pred_fallthru
        _
    $region12: #{tpu_custom_call.1} parent=5 // pred_fallthru
      _
    %p369 = scmp.lt.s32.totalorder %s17, 8
    // Predicated region
    $region37: #{tpu_custom_call.1} parent=5 // pred_check
      %p370 = pneg %p369
    $region38: #{tpu_custom_call.1} parent=5 // pred_check_branch
      %372 = sbr.rel (%p370) target = $region40
    $region39: #{tpu_custom_call.1} parent=5 // pred_region
      // Predicated region
      $region41: #{tpu_custom_call.1} parent=39 // pred_check
        %p373 = pneg %p60
      $region42: #{tpu_custom_call.1} parent=39 // pred_check_branch
        %375 = sbr.rel (%p373) target = $region44
      $region43: #{tpu_custom_call.1} parent=39 // pred_region
        %s376 = smul.u32 4, %s25
        %p377 = scmp.lt.s32.totalorder %s24, 1
        %s378 = scalar_select %p377, %s24, 1
        %p379 = scmp.lt.s32.totalorder %s26, 1
        %s380 = scalar_select %p379, %s26, 1
        %p381 = scmp.lt.s32.totalorder %s376, 7
        %s382 = scalar_select %p381, %s376, 7
        %s383 = smul.addr %s380, 8
        %s384 = sadd.s32 %s382, %s383
        %s385 = smul.addr %s378, 16
        %s386 = sadd.s32 %s384, %s385
        %s387 = smul.addr %s386, 4
        %s388 = scalar_lea.vmem %s0, %s387
        %s389 = smul.u32 4, %s25
      $region44: #{tpu_custom_call.1} parent=39 // pred_fallthru
        _
      // Predicated region
      $region45: #{tpu_custom_call.1} parent=39 // pred_check
        %p390 = pneg %p88
      $region46: #{tpu_custom_call.1} parent=39 // pred_check_branch
        %392 = sbr.rel (%p390) target = $region48
      $region47: #{tpu_custom_call.1} parent=39 // pred_region
        %p393 = scmp.lt.s32.totalorder %s24, 1
        %s394 = scalar_select %p393, %s24, 1
        %p395 = scmp.lt.s32.totalorder %s26, 1
        %s396 = scalar_select %p395, %s26, 1
        %s397 = smul.addr %s396, 16
        %s398 = smul.addr %s394, 32
        %s399 = sadd.s32 %s397, %s398
        %s400 = smul.addr %s399, 4
        %s401 = scalar_lea.vmem %s1, %s400
      $region48: #{tpu_custom_call.1} parent=39 // pred_fallthru
        _
      // Predicated region
      $region49: #{tpu_custom_call.1} parent=39 // pred_check
        %p402 = pneg %p118
      $region50: #{tpu_custom_call.1} parent=39 // pred_check_branch
        %404 = sbr.rel (%p402) target = $region52
      $region51: #{tpu_custom_call.1} parent=39 // pred_region
        %s405 = smul.u32 4, %s25
        %p406 = scmp.lt.s32.totalorder %s24, 1
        %s407 = scalar_select %p406, %s24, 1
        %p408 = scmp.lt.s32.totalorder %s26, 1
        %s409 = scalar_select %p408, %s26, 1
        %p410 = scmp.lt.s32.totalorder %s405, 7
        %s411 = scalar_select %p410, %s405, 7
        %s412 = smul.addr %s409, 8
        %s413 = sadd.s32 %s411, %s412
        %s414 = smul.addr %s407, 16
        %s415 = sadd.s32 %s413, %s414
        %s416 = smul.addr %s415, 8
        %s417 = scalar_lea.vmem %s2, %s416
        %s418 = smul.u32 4, %s25
      $region52: #{tpu_custom_call.1} parent=39 // pred_fallthru
        _
      // Predicated region
      $region53: #{tpu_custom_call.1} parent=39 // pred_check
        %p419 = pneg %p148
      $region54: #{tpu_custom_call.1} parent=39 // pred_check_branch
        %421 = sbr.rel (%p419) target = $region56
      $region55: #{tpu_custom_call.1} parent=39 // pred_region
        %s422 = smul.u32 4, %s25
        %p423 = scmp.lt.s32.totalorder %s24, 1
        %s424 = scalar_select %p423, %s24, 1
        %p425 = scmp.lt.s32.totalorder %s26, 1
        %s426 = scalar_select %p425, %s26, 1
        %p427 = scmp.lt.s32.totalorder %s422, 7
        %s428 = scalar_select %p427, %s422, 7
        %s429 = smul.addr %s426, 8
        %s430 = sadd.s32 %s428, %s429
        %s431 = smul.addr %s424, 16
        %s432 = sadd.s32 %s430, %s431
        %s433 = smul.addr %s432, 8
        %s434 = scalar_lea.vmem %s3, %s433
        %s435 = smul.u32 4, %s25
      $region56: #{tpu_custom_call.1} parent=39 // pred_fallthru
        _
      // Predicated region
      $region57: #{tpu_custom_call.1} parent=39 // pred_check
        %p436 = pneg %p176
      $region58: #{tpu_custom_call.1} parent=39 // pred_check_branch
        %438 = sbr.rel (%p436) target = $region60
      $region59: #{tpu_custom_call.1} parent=39 // pred_region
        %s439 = smul.u32 4, %s25
        %p440 = scmp.lt.s32.totalorder %s26, 1
        %s441 = scalar_select %p440, %s26, 1
        %p442 = scmp.lt.s32.totalorder %s439, 7
        %s443 = scalar_select %p442, %s439, 7
        %s444 = smul.addr %s441, 8
        %s445 = sadd.s32 %s443, %s444
        %s446 = smul.addr %s445, 8
        %s447 = scalar_lea.vmem %s4, %s446
        %s448 = smul.u32 4, %s25
      $region60: #{tpu_custom_call.1} parent=39 // pred_fallthru
        _
    $region40: #{tpu_custom_call.1} parent=5 // pred_fallthru
      _
    %p449 = scmp.le.s32.totalorder 1, %s17
    %p450 = scmp.lt.s32.totalorder %s17, 9
    %p451 = pnand %p449, %p450
    %p452 = pneg %p451
    // Predicated region
    $region61: #{tpu_custom_call.1} parent=5 // pred_check
      _
    $region62: #{tpu_custom_call.1} parent=5 // pred_check_branch
      %454 = sbr.rel (%p451) target = $region64
    $region63: #{tpu_custom_call.1} parent=5 // pred_region
      %s455 = ssub.s32 %s17, 1
      %s456 = smul.u32 4, %s28
      %p457 = scmp.lt.s32.totalorder %s27, 1
      %s458 = scalar_select %p457, %s27, 1
      %p459 = scmp.lt.s32.totalorder %s29, 1
      %s460 = scalar_select %p459, %s29, 1
      %p461 = scmp.lt.s32.totalorder %s456, 7
      %s462 = scalar_select %p461, %s456, 7
      %s463 = smul.addr %s460, 8
      %s464 = sadd.s32 %s462, %s463
      %s465 = smul.addr %s458, 16
      %s466 = sadd.s32 %s464, %s465
      %s467 = smul.addr %s466, 4
      %s468 = scalar_lea.vmem %s0, %s467
      %p469 = pneg %p66
      %p470 = pneg %p63
      %p471 = scmp.lt.s32.totalorder %s27, 1
      %s472 = scalar_select %p471, %s27, 1
      %p473 = scmp.lt.s32.totalorder %s29, 1
      %s474 = scalar_select %p473, %s29, 1
      %s475 = smul.addr %s474, 16
      %s476 = smul.addr %s472, 32
      %s477 = sadd.s32 %s475, %s476
      %s478 = smul.addr %s477, 4
      %s479 = scalar_lea.vmem %s1, %s478
      %p480 = pneg %p94
      %p481 = pneg %p91
      %s482 = smul.u32 4, %s28
      %p483 = scmp.lt.s32.totalorder %s27, 1
      %s484 = scalar_select %p483, %s27, 1
      %p485 = scmp.lt.s32.totalorder %s29, 1
      %s486 = scalar_select %p485, %s29, 1
      %p487 = scmp.lt.s32.totalorder %s482, 7
      %s488 = scalar_select %p487, %s482, 7
      %s489 = smul.addr %s486, 8
      %s490 = sadd.s32 %s488, %s489
      %s491 = smul.addr %s484, 16
      %s492 = sadd.s32 %s490, %s491
      %s493 = smul.addr %s492, 8
      %s494 = scalar_lea.vmem %s2, %s493
      %p495 = pneg %p124
      %p496 = pneg %p121
      %s497 = smul.u32 4, %s28
      %p498 = scmp.lt.s32.totalorder %s27, 1
      %s499 = scalar_select %p498, %s27, 1
      %p500 = scmp.lt.s32.totalorder %s29, 1
      %s501 = scalar_select %p500, %s29, 1
      %p502 = scmp.lt.s32.totalorder %s497, 7
      %s503 = scalar_select %p502, %s497, 7
      %s504 = smul.addr %s501, 8
      %s505 = sadd.s32 %s503, %s504
      %s506 = smul.addr %s499, 16
      %s507 = sadd.s32 %s505, %s506
      %s508 = smul.addr %s507, 8
      %s509 = scalar_lea.vmem %s3, %s508
      %p510 = pneg %p154
      %p511 = pneg %p151
      %s512 = smul.u32 4, %s28
      %p513 = scmp.lt.s32.totalorder %s29, 1
      %s514 = scalar_select %p513, %s29, 1
      %p515 = scmp.lt.s32.totalorder %s512, 7
      %s516 = scalar_select %p515, %s512, 7
      %s517 = smul.addr %s514, 8
      %s518 = sadd.s32 %s516, %s517
      %s519 = smul.addr %s518, 8
      %s520 = scalar_lea.vmem %s4, %s519
      %p521 = pneg %p182
      %p522 = pneg %p179
      %p523 = pneg %p203
      %p524 = pneg %p200
      %p525 = pneg %p224
      %p526 = pneg %p221
      %p527 = pneg %p245
      %p528 = pneg %p242
      %p529 = pneg %p266
      %p530 = pneg %p263
      %p531 = pneg %p287
      %p532 = pneg %p284
      %p533 = pneg %p308
      %p534 = pneg %p305
      %p535 = pneg %p336
      %p536 = pneg %p333
      %s537 = smul.u32 4, %s28
      %p538 = scmp.lt.s32.totalorder %s27, 1
      %s539 = scalar_select %p538, %s27, 1
      %p540 = scmp.lt.s32.totalorder %s537, 7
      %s541 = scalar_select %p540, %s537, 7
      %s542 = smul.addr %s539, 8
      %s543 = sadd.s32 %s541, %s542
      %s544 = smul.addr %s543, 8
      %s545 = scalar_lea.vmem %s11, %s544
      %s546 = smul.u32 4, %s28
      %p547 = scmp.lt.s32.totalorder %s27, 1
      %s548 = scalar_select %p547, %s27, 1
      %p549 = scmp.lt.s32.totalorder %s29, 1
      %s550 = scalar_select %p549, %s29, 1
      %p551 = scmp.lt.s32.totalorder %s546, 7
      %s552 = scalar_select %p551, %s546, 7
      %s553 = smul.addr %s550, 8
      %s554 = sadd.s32 %s552, %s553
      %s555 = smul.addr %s548, 16
      %s556 = sadd.s32 %s554, %s555
      %s557 = smul.addr %s556, 4
      %s558 = scalar_lea.vmem %s0, %s557
      %s559 = smul.u32 4, %s28
      %p560 = scmp.lt.s32.totalorder %s27, 1
      %s561 = scalar_select %p560, %s27, 1
      %p562 = scmp.lt.s32.totalorder %s29, 1
      %s563 = scalar_select %p562, %s29, 1
      %s564 = smul.addr %s563, 16
      %s565 = smul.addr %s561, 32
      %s566 = sadd.s32 %s564, %s565
      %s567 = smul.addr %s566, 4
      %s568 = scalar_lea.vmem %s1, %s567
      %s569 = smul.u32 4, %s28
      %p570 = scmp.lt.s32.totalorder %s27, 1
      %s571 = scalar_select %p570, %s27, 1
      %p572 = scmp.lt.s32.totalorder %s29, 1
      %s573 = scalar_select %p572, %s29, 1
      %p574 = scmp.lt.s32.totalorder %s569, 7
      %s575 = scalar_select %p574, %s569, 7
      %s576 = smul.addr %s573, 8
      %s577 = sadd.s32 %s575, %s576
      %s578 = smul.addr %s571, 16
      %s579 = sadd.s32 %s577, %s578
      %s580 = smul.addr %s579, 8
      %s581 = scalar_lea.vmem %s2, %s580
      %s582 = smul.u32 4, %s28
      %s583 = smul.u32 4, %s28
      %p584 = scmp.lt.s32.totalorder %s27, 1
      %s585 = scalar_select %p584, %s27, 1
      %p586 = scmp.lt.s32.totalorder %s29, 1
      %s587 = scalar_select %p586, %s29, 1
      %p588 = scmp.lt.s32.totalorder %s583, 7
      %s589 = scalar_select %p588, %s583, 7
      %s590 = smul.addr %s587, 8
      %s591 = sadd.s32 %s589, %s590
      %s592 = smul.addr %s585, 16
      %s593 = sadd.s32 %s591, %s592
      %s594 = smul.addr %s593, 8
      %s595 = scalar_lea.vmem %s3, %s594
      %s596 = smul.u32 4, %s28
      %s597 = smul.u32 4, %s28
      %p598 = scmp.lt.s32.totalorder %s29, 1
      %s599 = scalar_select %p598, %s29, 1
      %p600 = scmp.lt.s32.totalorder %s597, 7
      %s601 = scalar_select %p600, %s597, 7
      %s602 = smul.addr %s599, 8
      %s603 = sadd.s32 %s601, %s602
      %s604 = smul.addr %s603, 8
      %s605 = scalar_lea.vmem %s4, %s604
      %s606 = smul.u32 4, %s28
      %s607 = smul.u32 4, %s28
      %p608 = scmp.lt.s32.totalorder %s27, 1
      %s609 = scalar_select %p608, %s27, 1
      %p610 = scmp.lt.s32.totalorder %s607, 7
      %s611 = scalar_select %p610, %s607, 7
      %s612 = smul.addr %s609, 8
      %s613 = sadd.s32 %s611, %s612
      %s614 = smul.addr %s613, 8
      %s615 = scalar_lea.vmem %s11, %s614
      %s616 = smul.u32 4, %s28
      %p618 = scmp.eq.s32.totalorder %s29, 0
      // Predicated region
      $region65: #{tpu_custom_call.1} parent=63 // pred_check
        %p619 = pneg %p618
      $region66: #{tpu_custom_call.1} parent=63 // pred_check_branch
        %621 = sbr.rel (%p619) target = $region68
      $region67: #{tpu_custom_call.1} parent=63 // pred_region
        %vm622 = vcmask 261120
        %623 = vst.msk [vmem:[#allocation2] sm:$0xff] %vm622, 0.0
        %624 = vst.msk [vmem:[#allocation2 + $0x8] sm:$0xff] %vm622, 0.0
        %625 = vst.msk [vmem:[#allocation2 + $0x10] sm:$0xff] %vm622, 0.0
        %626 = vst.msk [vmem:[#allocation2 + $0x18] sm:$0xff] %vm622, 0.0
        %vm627 = vcmask 7168
        %628 = vst.msk [vmem:[#allocation3] sm:$0xff] %vm627, 0.0
        %629 = vst.msk [vmem:[#allocation3 + $0x8] sm:$0xff] %vm627, 0.0
        %630 = vst.msk [vmem:[#allocation3 + $0x10] sm:$0xff] %vm627, 0.0
        %631 = vst.msk [vmem:[#allocation3 + $0x18] sm:$0xff] %vm627, 0.0
      $region68: #{tpu_custom_call.1} parent=63 // pred_fallthru
        _
      %v632 = vld [vmem:[%s558] sm:$0xf]
      %v633 = vld [vmem:[%s558 + $0x4] sm:$0xf]
      %v634 = vld [vmem:[%s558 + $0x8] sm:$0xf]
      %v635 = vld [vmem:[%s558 + $0xc] sm:$0xf]
      %v636 = vld [vmem:[%s5] sm:$0xf]
      %v637 = vld [vmem:[%s5 + $0x4] sm:$0xf]
      %v638 = vld [vmem:[%s5 + $0x8] sm:$0xf]
      %v639 = vld [vmem:[%s5 + $0xc] sm:$0xf]
      %v640 = vld [vmem:[%s6] sm:$0x1]
      %v642 = vlaneseq
      %v643 = vshrl.u32 %v642, 7
      %v644 = vsub.s32 0, %v643
      %v645 = vrot.slane %v640, %v644
      %v651 = vunpack.c.l.b16 %v632
      %v652 = vunpack.c.l.b16 %v633
      %v653 = vunpack.c.l.b16 %v634
      %v654 = vunpack.c.l.b16 %v635
      %v655 = vpack.c.b16 %v652, %v651
      %v656 = vpack.c.b16 %v654, %v653
      %v661 = vunpack.c.l.b16 %v636
      %v662 = vunpack.c.l.b16 %v637
      %v663 = vunpack.c.l.b16 %v638
      %v664 = vunpack.c.l.b16 %v639
      %v665 = vpack.c.b16 %v662, %v661
      %v666 = vpack.c.b16 %v664, %v663
      %vm669 = vcmask 261120
      %v671 = vsel %vm669, %v655, 0
      %v674 = vsel %vm669, %v656, 0
      %676 = vmatprep.subr.bf16.mxu0 0
      %677 = vmatpush1.bf16.msra.mxu0 %v665
      %678 = vmatprep.subr.bf16.mxu0 0
      %679 = vmatpush1.bf16.msra.mxu0 %v666
      %680 = vmatprep.subr.bf16.mxu0 0
      %681 = vmatpush1.bf16.msra.mxu0 0
      %682 = vmatprep.subr.bf16.mxu0 0
      %683 = vmatpush1.bf16.msra.mxu0 0
      %684 = vmatprep.subr.bf16.mxu0 0
      %685 = vmatpush1.bf16.msra.mxu0 0
      %686 = vmatprep.subr.bf16.mxu0 0
      %687 = vmatpush1.bf16.msra.mxu0 0
      %688 = vmatprep.subr.bf16.mxu0 0
      %689 = vmatpush1.bf16.msra.mxu0 0
      %690 = vmatprep.subr.bf16.mxu0 0
      %691 = vmatpush1.bf16.msra.mxu0 0
      %692 = vmatprep.subr.bf16.mxu0 0
      %693 = vmatpush1.bf16.msra.mxu0 0
      %694 = vmatprep.subr.bf16.mxu0 0
      %695 = vmatpush1.bf16.msra.mxu0 0
      %696 = vmatprep.subr.bf16.mxu0 0
      %697 = vmatpush1.bf16.msra.mxu0 0
      %698 = vmatprep.subr.bf16.mxu0 0
      %699 = vmatpush1.bf16.msra.mxu0 0
      %700 = vmatprep.subr.bf16.mxu0 0
      %701 = vmatpush1.bf16.msra.mxu0 0
      %702 = vmatprep.subr.bf16.mxu0 0
      %703 = vmatpush1.bf16.msra.mxu0 0
      %704 = vmatprep.subr.bf16.mxu0 0
      %705 = vmatpush1.bf16.msra.mxu0 0
      %706 = vmatprep.subr.bf16.mxu0 0
      %707 = vmatpush1.bf16.msra.mxu0 0
      %708 = vmatprep.mubr.bf16.mxu0 0
      %709 = vmatmul.mubr.bf16.gmra.mrb[0].mxu0 %v671
      %v710 = vpop.f32.mrb[0].mxu0
      %v711 = vadd.f32 %v645, %v710
      %v712 = vpop.f32.mrb[0].mxu0
      %v713 = vpop.f32.mrb[0].mxu0
      %v714 = vadd.f32 %v645, %v713
      %v715 = vpop.f32.mrb[0].mxu0
      %716 = vmatprep.mubr.bf16.mxu0 0
      %717 = vmatmul.mubr.bf16.gmra.mrb[0].mxu0 %v674
      %v718 = vpop.f32.mrb[0].mxu0
      %v719 = vadd.f32 %v645, %v718
      %v720 = vpop.f32.mrb[0].mxu0
      %v721 = vpop.f32.mrb[0].mxu0
      %v722 = vadd.f32 %v645, %v721
      %v723 = vpop.f32.mrb[0].mxu0
      %724 = vdwg.mxu0
      %v725 = vld [vmem:[%s581] sm:$0xff]
      %v726 = vld [vmem:[%s581 + $0x8] sm:$0xff]
      %v727 = vld [vmem:[%s581 + $0x10] sm:$0xff]
      %v728 = vld [vmem:[%s581 + $0x18] sm:$0xff]
      %v729 = vadd.f32 %v725, %v711
      %v730 = vadd.f32 %v726, %v714
      %v731 = vadd.f32 %v727, %v719
      %v732 = vadd.f32 %v728, %v722
      %v733 = vld [vmem:[%s595] sm:$0xff]
      %v734 = vld [vmem:[%s595 + $0x8] sm:$0xff]
      %v735 = vld [vmem:[%s595 + $0x10] sm:$0xff]
      %v736 = vld [vmem:[%s595 + $0x18] sm:$0xff]
      %741 = vrot.lane.b32.xlu0 %v711, 96
      %v742 = vpop.permute.xlu0 %741
      %743 = vrot.lane.b32.xlu0 %v714, 96
      %v744 = vpop.permute.xlu0 %743
      %745 = vrot.lane.b32.xlu0 %v719, 96
      %v746 = vpop.permute.xlu0 %745
      %747 = vrot.lane.b32.xlu0 %v722, 96
      %v748 = vpop.permute.xlu0 %747
      %v753 = vadd.f32 %v733, %v742
      %v754 = vadd.f32 %v734, %v744
      %v755 = vadd.f32 %v735, %v746
      %v756 = vadd.f32 %v736, %v748
      %v757 = vfloor.f32 %v729
      %v758 = vfloor.f32 %v730
      %v759 = vfloor.f32 %v731
      %v760 = vfloor.f32 %v732
      %v761 = vfloor.f32 %v753
      %v762 = vfloor.f32 %v754
      %v763 = vfloor.f32 %v755
      %v764 = vfloor.f32 %v756
      %v765 = vsub.f32 %v729, %v757
      %v766 = vsub.f32 %v730, %v758
      %v767 = vsub.f32 %v731, %v759
      %v768 = vsub.f32 %v732, %v760
      %v769 = vsub.f32 %v753, %v761
      %v770 = vsub.f32 %v754, %v762
      %v771 = vsub.f32 %v755, %v763
      %v772 = vsub.f32 %v756, %v764
      %v773 = vmul.f32 %v761, 8.0
      %v774 = vmul.f32 %v762, 8.0
      %v775 = vmul.f32 %v763, 8.0
      %v776 = vmul.f32 %v764, 8.0
      %v777 = vadd.f32 %v773, %v757
      %v778 = vadd.f32 %v774, %v758
      %v779 = vadd.f32 %v775, %v759
      %v780 = vadd.f32 %v776, %v760
      %v781 = vadd.f32 %v777, 9.0
      %v782 = vadd.f32 %v778, 9.0
      %v783 = vadd.f32 %v779, 9.0
      %v784 = vadd.f32 %v780, 9.0
      %v785 = vcvt.f32.s32.to.zero.pseudo %v781
      %v786 = vcvt.f32.s32.to.zero.pseudo %v782
      %v787 = vcvt.f32.s32.to.zero.pseudo %v783
      %v788 = vcvt.f32.s32.to.zero.pseudo %v784
      %v789 = vadd.f32 %v757, 0.0
      %v790 = vadd.f32 %v758, 0.0
      %v791 = vadd.f32 %v759, 0.0
      %v792 = vadd.f32 %v760, 0.0
      %v793 = vadd.f32 %v761, 0.0
      %v794 = vadd.f32 %v762, 0.0
      %v795 = vadd.f32 %v763, 0.0
      %v796 = vadd.f32 %v764, 0.0
      %v797 = vsub.f32 1.0, %v765
      %v798 = vsub.f32 1.0, %v766
      %v799 = vsub.f32 1.0, %v767
      %v800 = vsub.f32 1.0, %v768
      %v801 = vsub.f32 1.0, %v769
      %v802 = vsub.f32 1.0, %v770
      %v803 = vsub.f32 1.0, %v771
      %v804 = vsub.f32 1.0, %v772
      %v805 = vmul.f32 %v797, %v801
      %v806 = vmul.f32 %v798, %v802
      %v807 = vmul.f32 %v799, %v803
      %v808 = vmul.f32 %v800, %v804
      %vm809 = vcmp.ge.f32.partialorder %v789, 0.0
      %vm810 = vcmp.ge.f32.partialorder %v790, 0.0
      %vm811 = vcmp.ge.f32.partialorder %v791, 0.0
      %vm812 = vcmp.ge.f32.partialorder %v792, 0.0
      %vm813 = vcmp.le.f32.partialorder %v789, 7.0
      %vm814 = vcmp.le.f32.partialorder %v790, 7.0
      %vm815 = vcmp.le.f32.partialorder %v791, 7.0
      %vm816 = vcmp.le.f32.partialorder %v792, 7.0
      %vm817 = vmand %vm809, %vm813
      %vm818 = vmand %vm810, %vm814
      %vm819 = vmand %vm811, %vm815
      %vm820 = vmand %vm812, %vm816
      %vm821 = vcmp.ge.f32.partialorder %v793, 0.0
      %vm822 = vcmp.ge.f32.partialorder %v794, 0.0
      %vm823 = vcmp.ge.f32.partialorder %v795, 0.0
      %vm824 = vcmp.ge.f32.partialorder %v796, 0.0
      %vm825 = vmand %vm817, %vm821
      %vm826 = vmand %vm818, %vm822
      %vm827 = vmand %vm819, %vm823
      %vm828 = vmand %vm820, %vm824
      %vm829 = vcmp.le.f32.partialorder %v793, 7.0
      %vm830 = vcmp.le.f32.partialorder %v794, 7.0
      %vm831 = vcmp.le.f32.partialorder %v795, 7.0
      %vm832 = vcmp.le.f32.partialorder %v796, 7.0
      %vm833 = vmand %vm825, %vm829
      %vm834 = vmand %vm826, %vm830
      %vm835 = vmand %vm827, %vm831
      %vm836 = vmand %vm828, %vm832
      %v837 = vsel %vm833, %v805, 0.0
      %v838 = vsel %vm834, %v806, 0.0
      %v839 = vsel %vm835, %v807, 0.0
      %v840 = vsel %vm836, %v808, 0.0
      %v841 = vadd.f32 %v757, 1.0
      %v842 = vadd.f32 %v758, 1.0
      %v843 = vadd.f32 %v759, 1.0
      %v844 = vadd.f32 %v760, 1.0
      %v845 = vmul.f32 %v765, %v801
      %v846 = vmul.f32 %v766, %v802
      %v847 = vmul.f32 %v767, %v803
      %v848 = vmul.f32 %v768, %v804
      %vm849 = vcmp.ge.f32.partialorder %v841, 0.0
      %vm850 = vcmp.ge.f32.partialorder %v842, 0.0
      %vm851 = vcmp.ge.f32.partialorder %v843, 0.0
      %vm852 = vcmp.ge.f32.partialorder %v844, 0.0
      %vm853 = vcmp.le.f32.partialorder %v841, 7.0
      %vm854 = vcmp.le.f32.partialorder %v842, 7.0
      %vm855 = vcmp.le.f32.partialorder %v843, 7.0
      %vm856 = vcmp.le.f32.partialorder %v844, 7.0
      %vm857 = vmand %vm849, %vm853
      %vm858 = vmand %vm850, %vm854
      %vm859 = vmand %vm851, %vm855
      %vm860 = vmand %vm852, %vm856
      %vm861 = vmand %vm857, %vm821
      %vm862 = vmand %vm858, %vm822
      %vm863 = vmand %vm859, %vm823
      %vm864 = vmand %vm860, %vm824
      %vm865 = vmand %vm861, %vm829
      %vm866 = vmand %vm862, %vm830
      %vm867 = vmand %vm863, %vm831
      %vm868 = vmand %vm864, %vm832
      %v869 = vsel %vm865, %v845, 0.0
      %v870 = vsel %vm866, %v846, 0.0
      %v871 = vsel %vm867, %v847, 0.0
      %v872 = vsel %vm868, %v848, 0.0
      %v873 = vadd.f32 %v761, 1.0
      %v874 = vadd.f32 %v762, 1.0
      %v875 = vadd.f32 %v763, 1.0
      %v876 = vadd.f32 %v764, 1.0
      %v877 = vmul.f32 %v797, %v769
      %v878 = vmul.f32 %v798, %v770
      %v879 = vmul.f32 %v799, %v771
      %v880 = vmul.f32 %v800, %v772
      %vm881 = vcmp.ge.f32.partialorder %v873, 0.0
      %vm882 = vcmp.ge.f32.partialorder %v874, 0.0
      %vm883 = vcmp.ge.f32.partialorder %v875, 0.0
      %vm884 = vcmp.ge.f32.partialorder %v876, 0.0
      %vm885 = vmand %vm817, %vm881
      %vm886 = vmand %vm818, %vm882
      %vm887 = vmand %vm819, %vm883
      %vm888 = vmand %vm820, %vm884
      %vm889 = vcmp.le.f32.partialorder %v873, 7.0
      %vm890 = vcmp.le.f32.partialorder %v874, 7.0
      %vm891 = vcmp.le.f32.partialorder %v875, 7.0
      %vm892 = vcmp.le.f32.partialorder %v876, 7.0
      %vm893 = vmand %vm885, %vm889
      %vm894 = vmand %vm886, %vm890
      %vm895 = vmand %vm887, %vm891
      %vm896 = vmand %vm888, %vm892
      %v897 = vsel %vm893, %v877, 0.0
      %v898 = vsel %vm894, %v878, 0.0
      %v899 = vsel %vm895, %v879, 0.0
      %v900 = vsel %vm896, %v880, 0.0
      %v901 = vmul.f32 %v765, %v769
      %v902 = vmul.f32 %v766, %v770
      %v903 = vmul.f32 %v767, %v771
      %v904 = vmul.f32 %v768, %v772
      %vm905 = vmand %vm857, %vm881
      %vm906 = vmand %vm858, %vm882
      %vm907 = vmand %vm859, %vm883
      %vm908 = vmand %vm860, %vm884
      %vm909 = vmand %vm905, %vm889
      %vm910 = vmand %vm906, %vm890
      %vm911 = vmand %vm907, %vm891
      %vm912 = vmand %vm908, %vm892
      %v913 = vsel %vm909, %v901, 0.0
      %v914 = vsel %vm910, %v902, 0.0
      %v915 = vsel %vm911, %v903, 0.0
      %v916 = vsel %vm912, %v904, 0.0
      %v917 = vld [vmem:[%s568] sm:$0xf]
      %v918 = vld [vmem:[%s568 + $0x4] sm:$0xf]
      %v919 = vld [vmem:[%s568 + $0x8] sm:$0xf]
      %v920 = vld [vmem:[%s568 + $0xc] sm:$0xf]
      %v921 = vld [vmem:[%s568 + $0x10] sm:$0xf]
      %v922 = vld [vmem:[%s568 + $0x14] sm:$0xf]
      %v923 = vld [vmem:[%s568 + $0x18] sm:$0xf]
      %v924 = vld [vmem:[%s568 + $0x1c] sm:$0xf]
      %v925 = vld [vmem:[%s568 + $0x20] sm:$0xf]
      %v926 = vld [vmem:[%s568 + $0x24] sm:$0xf]
      %v927 = vld [vmem:[%s568 + $0x28] sm:$0xf]
      %v928 = vld [vmem:[%s568 + $0x2c] sm:$0xf]
      %v929 = vld [vmem:[%s568 + $0x30] sm:$0xf]
      %v930 = vld [vmem:[%s568 + $0x34] sm:$0xf]
      %v931 = vld [vmem:[%s568 + $0x38] sm:$0xf]
      %v932 = vld [vmem:[%s568 + $0x3c] sm:$0xf]
      %v933 = vunpack.c.l.bf16 %v917
      %v934 = vunpack.c.l.bf16 %v918
      %v935 = vunpack.c.l.bf16 %v919
      %v936 = vunpack.c.l.bf16 %v920
      %v937 = vunpack.c.l.bf16 %v921
      %v938 = vunpack.c.l.bf16 %v922
      %v939 = vunpack.c.l.bf16 %v923
      %v940 = vunpack.c.l.bf16 %v924
      %v941 = vunpack.c.l.bf16 %v925
      %v942 = vunpack.c.l.bf16 %v926
      %v943 = vunpack.c.l.bf16 %v927
      %v944 = vunpack.c.l.bf16 %v928
      %v945 = vunpack.c.l.bf16 %v929
      %v946 = vunpack.c.l.bf16 %v930
      %v947 = vunpack.c.l.bf16 %v931
      %v948 = vunpack.c.l.bf16 %v932
      %v949 = vrot.slane %v933, 1
      %v950 = vrot.slane %v934, 1
      %v951 = vrot.slane %v935, 1
      %v952 = vrot.slane %v936, 1
      %v953 = vrot.slane %v937, 1
      %v954 = vrot.slane %v938, 1
      %v955 = vrot.slane %v939, 1
      %v956 = vrot.slane %v940, 1
      %v957 = vrot.slane %v941, 1
      %v958 = vrot.slane %v942, 1
      %v959 = vrot.slane %v943, 1
      %v960 = vrot.slane %v944, 1
      %v961 = vrot.slane %v945, 1
      %v962 = vrot.slane %v946, 1
      %v963 = vrot.slane %v947, 1
      %v964 = vrot.slane %v948, 1
      %v965 = vlaneseq
      %v966 = vshrl.u32 %v965, 7
      %vm967 = vcmp.lt.s32.totalorder %v966, 7
      %v968 = vsel %vm967, %v963, %v964
      %v969 = vsel %vm967, %v962, %v963
      %v970 = vsel %vm967, %v961, %v962
      %v971 = vsel %vm967, %v960, %v961
      %v972 = vsel %vm967, %v959, %v960
      %v973 = vsel %vm967, %v958, %v959
      %v974 = vsel %vm967, %v957, %v958
      %v975 = vsel %vm967, %v956, %v957
      %v976 = vsel %vm967, %v955, %v956
      %v977 = vsel %vm967, %v954, %v955
      %v978 = vsel %vm967, %v953, %v954
      %v979 = vsel %vm967, %v952, %v953
      %v980 = vsel %vm967, %v951, %v952
      %v981 = vsel %vm967, %v950, %v951
      %v982 = vsel %vm967, %v949, %v950
      %v983 = vsel %vm967, %v964, %v949
      %v984 = vpack.c.bf16 %v981, %v982
      %v985 = vpack.c.bf16 %v979, %v980
      %v986 = vpack.c.bf16 %v977, %v978
      %v987 = vpack.c.bf16 %v975, %v976
      %v988 = vpack.c.bf16 %v973, %v974
      %v989 = vpack.c.bf16 %v971, %v972
      %v990 = vpack.c.bf16 %v969, %v970
      %v991 = vpack.c.bf16 %v983, %v968
      %v992 = vpack.c.bf16 %v935, %v934
      %v993 = vpack.c.bf16 %v937, %v936
      %v994 = vpack.c.bf16 %v939, %v938
      %v995 = vpack.c.bf16 %v941, %v940
      %v996 = vpack.c.bf16 %v943, %v942
      %v997 = vpack.c.bf16 %v945, %v944
      %v998 = vpack.c.bf16 %v947, %v946
      %v999 = vpack.c.bf16 %v933, %v948
      %v1000 = vpack.c.bf16 %v980, %v981
      %v1001 = vpack.c.bf16 %v978, %v979
      %v1002 = vpack.c.bf16 %v976, %v977
      %v1003 = vpack.c.bf16 %v974, %v975
      %v1004 = vpack.c.bf16 %v972, %v973
      %v1005 = vpack.c.bf16 %v970, %v971
      %v1006 = vpack.c.bf16 %v968, %v969
      %v1007 = vpack.c.bf16 %v982, %v983
      %v1008 = vlaneseq
      %v1009 = vand.u32 %v1008, 127
      %v1010 = vld [vmem:[%s7] sm:$0xf]
      %v1011 = vld [vmem:[%s7 + $0x4] sm:$0xf]
      %v1012 = vld [vmem:[%s7 + $0x8] sm:$0xf]
      %v1013 = vld [vmem:[%s7 + $0xc] sm:$0xf]
      %vm1014 = vcmask 589312
      %v1015 = vsel %vm1014, %v711, -inf
      %1016 = vmax.xlane.f32.xlu0 %v1015
      %v1017 = vpop.xlane.xlu0 %1016
      %v1018 = vsel %vm1014, %v714, -inf
      %1019 = vmax.xlane.f32.xlu0 %v1018
      %v1020 = vpop.xlane.xlu0 %1019
      %v1021 = vsel %vm1014, %v719, -inf
      %1022 = vmax.xlane.f32.xlu0 %v1021
      %v1023 = vpop.xlane.xlu0 %1022
      %v1024 = vsel %vm1014, %v722, -inf
      %1025 = vmax.xlane.f32.xlu0 %v1024
      %v1026 = vpop.xlane.xlu0 %1025
      %v1027 = vsub.f32 %v711, %v1017
      %v1028 = vsub.f32 %v714, %v1020
      %v1029 = vsub.f32 %v719, %v1023
      %v1030 = vsub.f32 %v722, %v1026
      %v1031 = vmul.f32 %v1027, 1.442695
      %v1032 = vpow.pop %v1031
      %v1033 = vmul.f32 %v1028, 1.442695
      %v1034 = vpow.pop %v1033
      %v1035 = vmul.f32 %v1029, 1.442695
      %v1036 = vpow.pop %v1035
      %v1037 = vmul.f32 %v1030, 1.442695
      %v1038 = vpow.pop %v1037
      %1043 = vrot.lane.b32.xlu0 %v1032, 64
      %v1044 = vpop.permute.xlu0 %1043
      %1045 = vrot.lane.b32.xlu0 %v1034, 64
      %v1046 = vpop.permute.xlu0 %1045
      %1047 = vrot.lane.b32.xlu0 %v1036, 64
      %v1048 = vpop.permute.xlu0 %1047
      %1049 = vrot.lane.b32.xlu0 %v1038, 64
      %v1050 = vpop.permute.xlu0 %1049
      %vm1055 = vcmask 64512
      %v1056 = vsel %vm1055, %v1044, 0.0
      %1057 = vadd.xlane.f32.xlu0 %v1056
      %v1058 = vpop.xlane.xlu0 %1057
      %v1059 = vsel %vm1055, %v1046, 0.0
      %1060 = vadd.xlane.f32.xlu0 %v1059
      %v1061 = vpop.xlane.xlu0 %1060
      %v1062 = vsel %vm1055, %v1048, 0.0
      %1063 = vadd.xlane.f32.xlu0 %v1062
      %v1064 = vpop.xlane.xlu0 %1063
      %v1065 = vsel %vm1055, %v1050, 0.0
      %1066 = vadd.xlane.f32.xlu0 %v1065
      %v1067 = vpop.xlane.xlu0 %1066
      %1072 = vrot.lane.b32.xlu0 %v837, 64
      %v1073 = vpop.permute.xlu0 %1072
      %1074 = vrot.lane.b32.xlu0 %v838, 64
      %v1075 = vpop.permute.xlu0 %1074
      %1076 = vrot.lane.b32.xlu0 %v839, 64
      %v1077 = vpop.permute.xlu0 %1076
      %1078 = vrot.lane.b32.xlu0 %v840, 64
      %v1079 = vpop.permute.xlu0 %1078
      %v1084 = vmul.f32 %v1032, %v1073
      %v1085 = vmul.f32 %v1034, %v1075
      %v1086 = vmul.f32 %v1036, %v1077
      %v1087 = vmul.f32 %v1038, %v1079
      %1092 = vrot.lane.b32.xlu0 %v869, 64
      %v1093 = vpop.permute.xlu0 %1092
      %1094 = vrot.lane.b32.xlu0 %v870, 64
      %v1095 = vpop.permute.xlu0 %1094
      %1096 = vrot.lane.b32.xlu0 %v871, 64
      %v1097 = vpop.permute.xlu0 %1096
      %1098 = vrot.lane.b32.xlu0 %v872, 64
      %v1099 = vpop.permute.xlu0 %1098
      %v1104 = vmul.f32 %v1032, %v1093
      %v1105 = vmul.f32 %v1034, %v1095
      %v1106 = vmul.f32 %v1036, %v1097
      %v1107 = vmul.f32 %v1038, %v1099
      %1112 = vrot.lane.b32.xlu0 %v897, 64
      %v1113 = vpop.permute.xlu0 %1112
      %1114 = vrot.lane.b32.xlu0 %v898, 64
      %v1115 = vpop.permute.xlu0 %1114
      %1116 = vrot.lane.b32.xlu0 %v899, 64
      %v1117 = vpop.permute.xlu0 %1116
      %1118 = vrot.lane.b32.xlu0 %v900, 64
      %v1119 = vpop.permute.xlu0 %1118
      %v1124 = vmul.f32 %v1032, %v1113
      %v1125 = vmul.f32 %v1034, %v1115
      %v1126 = vmul.f32 %v1036, %v1117
      %v1127 = vmul.f32 %v1038, %v1119
      %1132 = vrot.lane.b32.xlu0 %v913, 64
      %v1133 = vpop.permute.xlu0 %1132
      %1134 = vrot.lane.b32.xlu0 %v914, 64
      %v1135 = vpop.permute.xlu0 %1134
      %1136 = vrot.lane.b32.xlu0 %v915, 64
      %v1137 = vpop.permute.xlu0 %1136
      %1138 = vrot.lane.b32.xlu0 %v916, 64
      %v1139 = vpop.permute.xlu0 %1138
      %v1144 = vmul.f32 %v1032, %v1133
      %v1145 = vmul.f32 %v1034, %v1135
      %v1146 = vmul.f32 %v1036, %v1137
      %v1147 = vmul.f32 %v1038, %v1139
      %1148 = vset.pattern.permute.xlu0 0
      %1149 = vperm.xlu0 %1148, %v785
      %v1150 = vpop.permute.xlu0 %1149
      %1151 = vset.pattern.permute.xlu0 0
      %1152 = vperm.xlu0 %1151, %v786
      %v1153 = vpop.permute.xlu0 %1152
      %1154 = vset.pattern.permute.xlu0 0
      %1155 = vperm.xlu0 %1154, %v787
      %v1156 = vpop.permute.xlu0 %1155
      %1157 = vset.pattern.permute.xlu0 0
      %1158 = vperm.xlu0 %1157, %v788
      %v1159 = vpop.permute.xlu0 %1158
      %vm1160 = vcmp.eq.s32.totalorder %v1150, %v1009
      %vm1161 = vcmp.eq.s32.totalorder %v1153, %v1009
      %vm1162 = vcmp.eq.s32.totalorder %v1156, %v1009
      %vm1163 = vcmp.eq.s32.totalorder %v1159, %v1009
      %1165 = vset.pattern.permute.xlu0 64
      %1166 = vperm.xlu0 %1165, %v1084
      %v1167 = vpop.permute.xlu0 %1166
      %1170 = vset.pattern.permute.xlu0 64
      %1171 = vperm.xlu0 %1170, %v1085
      %v1172 = vpop.permute.xlu0 %1171
      %1175 = vset.pattern.permute.xlu0 64
      %1176 = vperm.xlu0 %1175, %v1086
      %v1177 = vpop.permute.xlu0 %1176
      %1180 = vset.pattern.permute.xlu0 64
      %1181 = vperm.xlu0 %1180, %v1087
      %v1182 = vpop.permute.xlu0 %1181
      %v1184 = vsel %vm1160, %v1167, 0.0
      %v1185 = vsel %vm1161, %v1172, 0.0
      %v1186 = vsel %vm1162, %v1177, 0.0
      %v1187 = vsel %vm1163, %v1182, 0.0
      %v1188 = vadd.f32 %v1184, 0.0
      %v1189 = vadd.f32 %v1185, 0.0
      %v1190 = vadd.f32 %v1186, 0.0
      %v1191 = vadd.f32 %v1187, 0.0
      %1193 = vset.pattern.permute.xlu0 64
      %1194 = vperm.xlu0 %1193, %v1104
      %v1195 = vpop.permute.xlu0 %1194
      %1198 = vset.pattern.permute.xlu0 64
      %1199 = vperm.xlu0 %1198, %v1105
      %v1200 = vpop.permute.xlu0 %1199
      %1203 = vset.pattern.permute.xlu0 64
      %1204 = vperm.xlu0 %1203, %v1106
      %v1205 = vpop.permute.xlu0 %1204
      %1208 = vset.pattern.permute.xlu0 64
      %1209 = vperm.xlu0 %1208, %v1107
      %v1210 = vpop.permute.xlu0 %1209
      %v1212 = vsel %vm1160, %v1195, 0.0
      %v1213 = vsel %vm1161, %v1200, 0.0
      %v1214 = vsel %vm1162, %v1205, 0.0
      %v1215 = vsel %vm1163, %v1210, 0.0
      %v1216 = vadd.f32 %v1212, 0.0
      %v1217 = vadd.f32 %v1213, 0.0
      %v1218 = vadd.f32 %v1214, 0.0
      %v1219 = vadd.f32 %v1215, 0.0
      %1221 = vset.pattern.permute.xlu0 64
      %1222 = vperm.xlu0 %1221, %v1124
      %v1223 = vpop.permute.xlu0 %1222
      %1226 = vset.pattern.permute.xlu0 64
      %1227 = vperm.xlu0 %1226, %v1125
      %v1228 = vpop.permute.xlu0 %1227
      %1231 = vset.pattern.permute.xlu0 64
      %1232 = vperm.xlu0 %1231, %v1126
      %v1233 = vpop.permute.xlu0 %1232
      %1236 = vset.pattern.permute.xlu0 64
      %1237 = vperm.xlu0 %1236, %v1127
      %v1238 = vpop.permute.xlu0 %1237
      %v1240 = vsel %vm1160, %v1223, 0.0
      %v1241 = vsel %vm1161, %v1228, 0.0
      %v1242 = vsel %vm1162, %v1233, 0.0
      %v1243 = vsel %vm1163, %v1238, 0.0
      %v1244 = vadd.f32 %v1240, 0.0
      %v1245 = vadd.f32 %v1241, 0.0
      %v1246 = vadd.f32 %v1242, 0.0
      %v1247 = vadd.f32 %v1243, 0.0
      %1249 = vset.pattern.permute.xlu0 64
      %1250 = vperm.xlu0 %1249, %v1144
      %v1251 = vpop.permute.xlu0 %1250
      %1254 = vset.pattern.permute.xlu0 64
      %1255 = vperm.xlu0 %1254, %v1145
      %v1256 = vpop.permute.xlu0 %1255
      %1259 = vset.pattern.permute.xlu0 64
      %1260 = vperm.xlu0 %1259, %v1146
      %v1261 = vpop.permute.xlu0 %1260
      %1264 = vset.pattern.permute.xlu0 64
      %1265 = vperm.xlu0 %1264, %v1147
      %v1266 = vpop.permute.xlu0 %1265
      %v1268 = vsel %vm1160, %v1251, 0.0
      %v1269 = vsel %vm1161, %v1256, 0.0
      %v1270 = vsel %vm1162, %v1261, 0.0
      %v1271 = vsel %vm1163, %v1266, 0.0
      %v1272 = vadd.f32 %v1268, 0.0
      %v1273 = vadd.f32 %v1269, 0.0
      %v1274 = vadd.f32 %v1270, 0.0
      %v1275 = vadd.f32 %v1271, 0.0
      %1276 = vset.pattern.permute.xlu0 1
      %1277 = vperm.xlu0 %1276, %v785
      %v1278 = vpop.permute.xlu0 %1277
      %1279 = vset.pattern.permute.xlu0 1
      %1280 = vperm.xlu0 %1279, %v786
      %v1281 = vpop.permute.xlu0 %1280
      %1282 = vset.pattern.permute.xlu0 1
      %1283 = vperm.xlu0 %1282, %v787
      %v1284 = vpop.permute.xlu0 %1283
      %1285 = vset.pattern.permute.xlu0 1
      %1286 = vperm.xlu0 %1285, %v788
      %v1287 = vpop.permute.xlu0 %1286
      %vm1288 = vcmp.eq.s32.totalorder %v1278, %v1009
      %vm1289 = vcmp.eq.s32.totalorder %v1281, %v1009
      %vm1290 = vcmp.eq.s32.totalorder %v1284, %v1009
      %vm1291 = vcmp.eq.s32.totalorder %v1287, %v1009
      %1292 = vset.pattern.permute.xlu0 65
      %1293 = vperm.xlu0 %1292, %v1084
      %v1294 = vpop.permute.xlu0 %1293
      %1296 = vset.pattern.permute.xlu0 65
      %1297 = vperm.xlu0 %1296, %v1085
      %v1298 = vpop.permute.xlu0 %1297
      %1300 = vset.pattern.permute.xlu0 65
      %1301 = vperm.xlu0 %1300, %v1086
      %v1302 = vpop.permute.xlu0 %1301
      %1304 = vset.pattern.permute.xlu0 65
      %1305 = vperm.xlu0 %1304, %v1087
      %v1306 = vpop.permute.xlu0 %1305
      %v1308 = vsel %vm1288, %v1294, 0.0
      %v1309 = vsel %vm1289, %v1298, 0.0
      %v1310 = vsel %vm1290, %v1302, 0.0
      %v1311 = vsel %vm1291, %v1306, 0.0
      %v1312 = vadd.f32 %v1188, %v1308
      %v1313 = vadd.f32 %v1189, %v1309
      %v1314 = vadd.f32 %v1190, %v1310
      %v1315 = vadd.f32 %v1191, %v1311
      %1316 = vset.pattern.permute.xlu0 65
      %1317 = vperm.xlu0 %1316, %v1104
      %v1318 = vpop.permute.xlu0 %1317
      %1320 = vset.pattern.permute.xlu0 65
      %1321 = vperm.xlu0 %1320, %v1105
      %v1322 = vpop.permute.xlu0 %1321
      %1324 = vset.pattern.permute.xlu0 65
      %1325 = vperm.xlu0 %1324, %v1106
      %v1326 = vpop.permute.xlu0 %1325
      %1328 = vset.pattern.permute.xlu0 65
      %1329 = vperm.xlu0 %1328, %v1107
      %v1330 = vpop.permute.xlu0 %1329
      %v1332 = vsel %vm1288, %v1318, 0.0
      %v1333 = vsel %vm1289, %v1322, 0.0
      %v1334 = vsel %vm1290, %v1326, 0.0
      %v1335 = vsel %vm1291, %v1330, 0.0
      %v1336 = vadd.f32 %v1216, %v1332
      %v1337 = vadd.f32 %v1217, %v1333
      %v1338 = vadd.f32 %v1218, %v1334
      %v1339 = vadd.f32 %v1219, %v1335
      %1340 = vset.pattern.permute.xlu0 65
      %1341 = vperm.xlu0 %1340, %v1124
      %v1342 = vpop.permute.xlu0 %1341
      %1344 = vset.pattern.permute.xlu0 65
      %1345 = vperm.xlu0 %1344, %v1125
      %v1346 = vpop.permute.xlu0 %1345
      %1348 = vset.pattern.permute.xlu0 65
      %1349 = vperm.xlu0 %1348, %v1126
      %v1350 = vpop.permute.xlu0 %1349
      %1352 = vset.pattern.permute.xlu0 65
      %1353 = vperm.xlu0 %1352, %v1127
      %v1354 = vpop.permute.xlu0 %1353
      %v1356 = vsel %vm1288, %v1342, 0.0
      %v1357 = vsel %vm1289, %v1346, 0.0
      %v1358 = vsel %vm1290, %v1350, 0.0
      %v1359 = vsel %vm1291, %v1354, 0.0
      %v1360 = vadd.f32 %v1244, %v1356
      %v1361 = vadd.f32 %v1245, %v1357
      %v1362 = vadd.f32 %v1246, %v1358
      %v1363 = vadd.f32 %v1247, %v1359
      %1364 = vset.pattern.permute.xlu0 65
      %1365 = vperm.xlu0 %1364, %v1144
      %v1366 = vpop.permute.xlu0 %1365
      %1368 = vset.pattern.permute.xlu0 65
      %1369 = vperm.xlu0 %1368, %v1145
      %v1370 = vpop.permute.xlu0 %1369
      %1372 = vset.pattern.permute.xlu0 65
      %1373 = vperm.xlu0 %1372, %v1146
      %v1374 = vpop.permute.xlu0 %1373
      %1376 = vset.pattern.permute.xlu0 65
      %1377 = vperm.xlu0 %1376, %v1147
      %v1378 = vpop.permute.xlu0 %1377
      %v1380 = vsel %vm1288, %v1366, 0.0
      %v1381 = vsel %vm1289, %v1370, 0.0
      %v1382 = vsel %vm1290, %v1374, 0.0
      %v1383 = vsel %vm1291, %v1378, 0.0
      %v1384 = vadd.f32 %v1272, %v1380
      %v1385 = vadd.f32 %v1273, %v1381
      %v1386 = vadd.f32 %v1274, %v1382
      %v1387 = vadd.f32 %v1275, %v1383
      %1388 = vset.pattern.permute.xlu0 2
      %1389 = vperm.xlu0 %1388, %v785
      %v1390 = vpop.permute.xlu0 %1389
      %1391 = vset.pattern.permute.xlu0 2
      %1392 = vperm.xlu0 %1391, %v786
      %v1393 = vpop.permute.xlu0 %1392
      %1394 = vset.pattern.permute.xlu0 2
      %1395 = vperm.xlu0 %1394, %v787
      %v1396 = vpop.permute.xlu0 %1395
      %1397 = vset.pattern.permute.xlu0 2
      %1398 = vperm.xlu0 %1397, %v788
      %v1399 = vpop.permute.xlu0 %1398
      %vm1400 = vcmp.eq.s32.totalorder %v1390, %v1009
      %vm1401 = vcmp.eq.s32.totalorder %v1393, %v1009
      %vm1402 = vcmp.eq.s32.totalorder %v1396, %v1009
      %vm1403 = vcmp.eq.s32.totalorder %v1399, %v1009
      %1404 = vset.pattern.permute.xlu0 66
      %1405 = vperm.xlu0 %1404, %v1084
      %v1406 = vpop.permute.xlu0 %1405
      %1408 = vset.pattern.permute.xlu0 66
      %1409 = vperm.xlu0 %1408, %v1085
      %v1410 = vpop.permute.xlu0 %1409
      %1412 = vset.pattern.permute.xlu0 66
      %1413 = vperm.xlu0 %1412, %v1086
      %v1414 = vpop.permute.xlu0 %1413
      %1416 = vset.pattern.permute.xlu0 66
      %1417 = vperm.xlu0 %1416, %v1087
      %v1418 = vpop.permute.xlu0 %1417
      %v1420 = vsel %vm1400, %v1406, 0.0
      %v1421 = vsel %vm1401, %v1410, 0.0
      %v1422 = vsel %vm1402, %v1414, 0.0
      %v1423 = vsel %vm1403, %v1418, 0.0
      %v1424 = vadd.f32 %v1312, %v1420
      %v1425 = vadd.f32 %v1313, %v1421
      %v1426 = vadd.f32 %v1314, %v1422
      %v1427 = vadd.f32 %v1315, %v1423
      %1428 = vset.pattern.permute.xlu0 66
      %1429 = vperm.xlu0 %1428, %v1104
      %v1430 = vpop.permute.xlu0 %1429
      %1432 = vset.pattern.permute.xlu0 66
      %1433 = vperm.xlu0 %1432, %v1105
      %v1434 = vpop.permute.xlu0 %1433
      %1436 = vset.pattern.permute.xlu0 66
      %1437 = vperm.xlu0 %1436, %v1106
      %v1438 = vpop.permute.xlu0 %1437
      %1440 = vset.pattern.permute.xlu0 66
      %1441 = vperm.xlu0 %1440, %v1107
      %v1442 = vpop.permute.xlu0 %1441
      %v1444 = vsel %vm1400, %v1430, 0.0
      %v1445 = vsel %vm1401, %v1434, 0.0
      %v1446 = vsel %vm1402, %v1438, 0.0
      %v1447 = vsel %vm1403, %v1442, 0.0
      %v1448 = vadd.f32 %v1336, %v1444
      %v1449 = vadd.f32 %v1337, %v1445
      %v1450 = vadd.f32 %v1338, %v1446
      %v1451 = vadd.f32 %v1339, %v1447
      %1452 = vset.pattern.permute.xlu0 66
      %1453 = vperm.xlu0 %1452, %v1124
      %v1454 = vpop.permute.xlu0 %1453
      %1456 = vset.pattern.permute.xlu0 66
      %1457 = vperm.xlu0 %1456, %v1125
      %v1458 = vpop.permute.xlu0 %1457
      %1460 = vset.pattern.permute.xlu0 66
      %1461 = vperm.xlu0 %1460, %v1126
      %v1462 = vpop.permute.xlu0 %1461
      %1464 = vset.pattern.permute.xlu0 66
      %1465 = vperm.xlu0 %1464, %v1127
      %v1466 = vpop.permute.xlu0 %1465
      %v1468 = vsel %vm1400, %v1454, 0.0
      %v1469 = vsel %vm1401, %v1458, 0.0
      %v1470 = vsel %vm1402, %v1462, 0.0
      %v1471 = vsel %vm1403, %v1466, 0.0
      %v1472 = vadd.f32 %v1360, %v1468
      %v1473 = vadd.f32 %v1361, %v1469
      %v1474 = vadd.f32 %v1362, %v1470
      %v1475 = vadd.f32 %v1363, %v1471
      %1476 = vset.pattern.permute.xlu0 66
      %1477 = vperm.xlu0 %1476, %v1144
      %v1478 = vpop.permute.xlu0 %1477
      %1480 = vset.pattern.permute.xlu0 66
      %1481 = vperm.xlu0 %1480, %v1145
      %v1482 = vpop.permute.xlu0 %1481
      %1484 = vset.pattern.permute.xlu0 66
      %1485 = vperm.xlu0 %1484, %v1146
      %v1486 = vpop.permute.xlu0 %1485
      %1488 = vset.pattern.permute.xlu0 66
      %1489 = vperm.xlu0 %1488, %v1147
      %v1490 = vpop.permute.xlu0 %1489
      %v1492 = vsel %vm1400, %v1478, 0.0
      %v1493 = vsel %vm1401, %v1482, 0.0
      %v1494 = vsel %vm1402, %v1486, 0.0
      %v1495 = vsel %vm1403, %v1490, 0.0
      %v1496 = vadd.f32 %v1384, %v1492
      %v1497 = vadd.f32 %v1385, %v1493
      %v1498 = vadd.f32 %v1386, %v1494
      %v1499 = vadd.f32 %v1387, %v1495
      %1500 = vset.pattern.permute.xlu0 3
      %1501 = vperm.xlu0 %1500, %v785
      %v1502 = vpop.permute.xlu0 %1501
      %1503 = vset.pattern.permute.xlu0 3
      %1504 = vperm.xlu0 %1503, %v786
      %v1505 = vpop.permute.xlu0 %1504
      %1506 = vset.pattern.permute.xlu0 3
      %1507 = vperm.xlu0 %1506, %v787
      %v1508 = vpop.permute.xlu0 %1507
      %1509 = vset.pattern.permute.xlu0 3
      %1510 = vperm.xlu0 %1509, %v788
      %v1511 = vpop.permute.xlu0 %1510
      %vm1512 = vcmp.eq.s32.totalorder %v1502, %v1009
      %vm1513 = vcmp.eq.s32.totalorder %v1505, %v1009
      %vm1514 = vcmp.eq.s32.totalorder %v1508, %v1009
      %vm1515 = vcmp.eq.s32.totalorder %v1511, %v1009
      %1516 = vset.pattern.permute.xlu0 67
      %1517 = vperm.xlu0 %1516, %v1084
      %v1518 = vpop.permute.xlu0 %1517
      %1520 = vset.pattern.permute.xlu0 67
      %1521 = vperm.xlu0 %1520, %v1085
      %v1522 = vpop.permute.xlu0 %1521
      %1524 = vset.pattern.permute.xlu0 67
      %1525 = vperm.xlu0 %1524, %v1086
      %v1526 = vpop.permute.xlu0 %1525
      %1528 = vset.pattern.permute.xlu0 67
      %1529 = vperm.xlu0 %1528, %v1087
      %v1530 = vpop.permute.xlu0 %1529
      %v1532 = vsel %vm1512, %v1518, 0.0
      %v1533 = vsel %vm1513, %v1522, 0.0
      %v1534 = vsel %vm1514, %v1526, 0.0
      %v1535 = vsel %vm1515, %v1530, 0.0
      %v1536 = vadd.f32 %v1424, %v1532
      %v1537 = vadd.f32 %v1425, %v1533
      %v1538 = vadd.f32 %v1426, %v1534
      %v1539 = vadd.f32 %v1427, %v1535
      %1540 = vset.pattern.permute.xlu0 67
      %1541 = vperm.xlu0 %1540, %v1104
      %v1542 = vpop.permute.xlu0 %1541
      %1544 = vset.pattern.permute.xlu0 67
      %1545 = vperm.xlu0 %1544, %v1105
      %v1546 = vpop.permute.xlu0 %1545
      %1548 = vset.pattern.permute.xlu0 67
      %1549 = vperm.xlu0 %1548, %v1106
      %v1550 = vpop.permute.xlu0 %1549
      %1552 = vset.pattern.permute.xlu0 67
      %1553 = vperm.xlu0 %1552, %v1107
      %v1554 = vpop.permute.xlu0 %1553
      %v1556 = vsel %vm1512, %v1542, 0.0
      %v1557 = vsel %vm1513, %v1546, 0.0
      %v1558 = vsel %vm1514, %v1550, 0.0
      %v1559 = vsel %vm1515, %v1554, 0.0
      %v1560 = vadd.f32 %v1448, %v1556
      %v1561 = vadd.f32 %v1449, %v1557
      %v1562 = vadd.f32 %v1450, %v1558
      %v1563 = vadd.f32 %v1451, %v1559
      %1564 = vset.pattern.permute.xlu0 67
      %1565 = vperm.xlu0 %1564, %v1124
      %v1566 = vpop.permute.xlu0 %1565
      %1568 = vset.pattern.permute.xlu0 67
      %1569 = vperm.xlu0 %1568, %v1125
      %v1570 = vpop.permute.xlu0 %1569
      %1572 = vset.pattern.permute.xlu0 67
      %1573 = vperm.xlu0 %1572, %v1126
      %v1574 = vpop.permute.xlu0 %1573
      %1576 = vset.pattern.permute.xlu0 67
      %1577 = vperm.xlu0 %1576, %v1127
      %v1578 = vpop.permute.xlu0 %1577
      %v1580 = vsel %vm1512, %v1566, 0.0
      %v1581 = vsel %vm1513, %v1570, 0.0
      %v1582 = vsel %vm1514, %v1574, 0.0
      %v1583 = vsel %vm1515, %v1578, 0.0
      %v1584 = vadd.f32 %v1472, %v1580
      %v1585 = vadd.f32 %v1473, %v1581
      %v1586 = vadd.f32 %v1474, %v1582
      %v1587 = vadd.f32 %v1475, %v1583
      %1588 = vset.pattern.permute.xlu0 67
      %1589 = vperm.xlu0 %1588, %v1144
      %v1590 = vpop.permute.xlu0 %1589
      %1592 = vset.pattern.permute.xlu0 67
      %1593 = vperm.xlu0 %1592, %v1145
      %v1594 = vpop.permute.xlu0 %1593
      %1596 = vset.pattern.permute.xlu0 67
      %1597 = vperm.xlu0 %1596, %v1146
      %v1598 = vpop.permute.xlu0 %1597
      %1600 = vset.pattern.permute.xlu0 67
      %1601 = vperm.xlu0 %1600, %v1147
      %v1602 = vpop.permute.xlu0 %1601
      %v1604 = vsel %vm1512, %v1590, 0.0
      %v1605 = vsel %vm1513, %v1594, 0.0
      %v1606 = vsel %vm1514, %v1598, 0.0
      %v1607 = vsel %vm1515, %v1602, 0.0
      %v1608 = vadd.f32 %v1496, %v1604
      %v1609 = vadd.f32 %v1497, %v1605
      %v1610 = vadd.f32 %v1498, %v1606
      %v1611 = vadd.f32 %v1499, %v1607
      %1612 = vset.pattern.permute.xlu0 4
      %1613 = vperm.xlu0 %1612, %v785
      %v1614 = vpop.permute.xlu0 %1613
      %1615 = vset.pattern.permute.xlu0 4
      %1616 = vperm.xlu0 %1615, %v786
      %v1617 = vpop.permute.xlu0 %1616
      %1618 = vset.pattern.permute.xlu0 4
      %1619 = vperm.xlu0 %1618, %v787
      %v1620 = vpop.permute.xlu0 %1619
      %1621 = vset.pattern.permute.xlu0 4
      %1622 = vperm.xlu0 %1621, %v788
      %v1623 = vpop.permute.xlu0 %1622
      %vm1624 = vcmp.eq.s32.totalorder %v1614, %v1009
      %vm1625 = vcmp.eq.s32.totalorder %v1617, %v1009
      %vm1626 = vcmp.eq.s32.totalorder %v1620, %v1009
      %vm1627 = vcmp.eq.s32.totalorder %v1623, %v1009
      %1628 = vset.pattern.permute.xlu0 68
      %1629 = vperm.xlu0 %1628, %v1084
      %v1630 = vpop.permute.xlu0 %1629
      %1632 = vset.pattern.permute.xlu0 68
      %1633 = vperm.xlu0 %1632, %v1085
      %v1634 = vpop.permute.xlu0 %1633
      %1636 = vset.pattern.permute.xlu0 68
      %1637 = vperm.xlu0 %1636, %v1086
      %v1638 = vpop.permute.xlu0 %1637
      %1640 = vset.pattern.permute.xlu0 68
      %1641 = vperm.xlu0 %1640, %v1087
      %v1642 = vpop.permute.xlu0 %1641
      %v1644 = vsel %vm1624, %v1630, 0.0
      %v1645 = vsel %vm1625, %v1634, 0.0
      %v1646 = vsel %vm1626, %v1638, 0.0
      %v1647 = vsel %vm1627, %v1642, 0.0
      %v1648 = vadd.f32 %v1536, %v1644
      %v1649 = vadd.f32 %v1537, %v1645
      %v1650 = vadd.f32 %v1538, %v1646
      %v1651 = vadd.f32 %v1539, %v1647
      %1652 = vset.pattern.permute.xlu0 68
      %1653 = vperm.xlu0 %1652, %v1104
      %v1654 = vpop.permute.xlu0 %1653
      %1656 = vset.pattern.permute.xlu0 68
      %1657 = vperm.xlu0 %1656, %v1105
      %v1658 = vpop.permute.xlu0 %1657
      %1660 = vset.pattern.permute.xlu0 68
      %1661 = vperm.xlu0 %1660, %v1106
      %v1662 = vpop.permute.xlu0 %1661
      %1664 = vset.pattern.permute.xlu0 68
      %1665 = vperm.xlu0 %1664, %v1107
      %v1666 = vpop.permute.xlu0 %1665
      %v1668 = vsel %vm1624, %v1654, 0.0
      %v1669 = vsel %vm1625, %v1658, 0.0
      %v1670 = vsel %vm1626, %v1662, 0.0
      %v1671 = vsel %vm1627, %v1666, 0.0
      %v1672 = vadd.f32 %v1560, %v1668
      %v1673 = vadd.f32 %v1561, %v1669
      %v1674 = vadd.f32 %v1562, %v1670
      %v1675 = vadd.f32 %v1563, %v1671
      %1676 = vset.pattern.permute.xlu0 68
      %1677 = vperm.xlu0 %1676, %v1124
      %v1678 = vpop.permute.xlu0 %1677
      %1680 = vset.pattern.permute.xlu0 68
      %1681 = vperm.xlu0 %1680, %v1125
      %v1682 = vpop.permute.xlu0 %1681
      %1684 = vset.pattern.permute.xlu0 68
      %1685 = vperm.xlu0 %1684, %v1126
      %v1686 = vpop.permute.xlu0 %1685
      %1688 = vset.pattern.permute.xlu0 68
      %1689 = vperm.xlu0 %1688, %v1127
      %v1690 = vpop.permute.xlu0 %1689
      %v1692 = vsel %vm1624, %v1678, 0.0
      %v1693 = vsel %vm1625, %v1682, 0.0
      %v1694 = vsel %vm1626, %v1686, 0.0
      %v1695 = vsel %vm1627, %v1690, 0.0
      %v1696 = vadd.f32 %v1584, %v1692
      %v1697 = vadd.f32 %v1585, %v1693
      %v1698 = vadd.f32 %v1586, %v1694
      %v1699 = vadd.f32 %v1587, %v1695
      %1700 = vset.pattern.permute.xlu0 68
      %1701 = vperm.xlu0 %1700, %v1144
      %v1702 = vpop.permute.xlu0 %1701
      %1704 = vset.pattern.permute.xlu0 68
      %1705 = vperm.xlu0 %1704, %v1145
      %v1706 = vpop.permute.xlu0 %1705
      %1708 = vset.pattern.permute.xlu0 68
      %1709 = vperm.xlu0 %1708, %v1146
      %v1710 = vpop.permute.xlu0 %1709
      %1712 = vset.pattern.permute.xlu0 68
      %1713 = vperm.xlu0 %1712, %v1147
      %v1714 = vpop.permute.xlu0 %1713
      %v1716 = vsel %vm1624, %v1702, 0.0
      %v1717 = vsel %vm1625, %v1706, 0.0
      %v1718 = vsel %vm1626, %v1710, 0.0
      %v1719 = vsel %vm1627, %v1714, 0.0
      %v1720 = vadd.f32 %v1608, %v1716
      %v1721 = vadd.f32 %v1609, %v1717
      %v1722 = vadd.f32 %v1610, %v1718
      %v1723 = vadd.f32 %v1611, %v1719
      %1724 = vset.pattern.permute.xlu0 5
      %1725 = vperm.xlu0 %1724, %v785
      %v1726 = vpop.permute.xlu0 %1725
      %1727 = vset.pattern.permute.xlu0 5
      %1728 = vperm.xlu0 %1727, %v786
      %v1729 = vpop.permute.xlu0 %1728
      %1730 = vset.pattern.permute.xlu0 5
      %1731 = vperm.xlu0 %1730, %v787
      %v1732 = vpop.permute.xlu0 %1731
      %1733 = vset.pattern.permute.xlu0 5
      %1734 = vperm.xlu0 %1733, %v788
      %v1735 = vpop.permute.xlu0 %1734
      %vm1736 = vcmp.eq.s32.totalorder %v1726, %v1009
      %vm1737 = vcmp.eq.s32.totalorder %v1729, %v1009
      %vm1738 = vcmp.eq.s32.totalorder %v1732, %v1009
      %vm1739 = vcmp.eq.s32.totalorder %v1735, %v1009
      %1740 = vset.pattern.permute.xlu0 69
      %1741 = vperm.xlu0 %1740, %v1084
      %v1742 = vpop.permute.xlu0 %1741
      %1744 = vset.pattern.permute.xlu0 69
      %1745 = vperm.xlu0 %1744, %v1085
      %v1746 = vpop.permute.xlu0 %1745
      %1748 = vset.pattern.permute.xlu0 69
      %1749 = vperm.xlu0 %1748, %v1086
      %v1750 = vpop.permute.xlu0 %1749
      %1752 = vset.pattern.permute.xlu0 69
      %1753 = vperm.xlu0 %1752, %v1087
      %v1754 = vpop.permute.xlu0 %1753
      %v1756 = vsel %vm1736, %v1742, 0.0
      %v1757 = vsel %vm1737, %v1746, 0.0
      %v1758 = vsel %vm1738, %v1750, 0.0
      %v1759 = vsel %vm1739, %v1754, 0.0
      %v1760 = vadd.f32 %v1648, %v1756
      %v1761 = vadd.f32 %v1649, %v1757
      %v1762 = vadd.f32 %v1650, %v1758
      %v1763 = vadd.f32 %v1651, %v1759
      %1764 = vset.pattern.permute.xlu0 69
      %1765 = vperm.xlu0 %1764, %v1104
      %v1766 = vpop.permute.xlu0 %1765
      %1768 = vset.pattern.permute.xlu0 69
      %1769 = vperm.xlu0 %1768, %v1105
      %v1770 = vpop.permute.xlu0 %1769
      %1772 = vset.pattern.permute.xlu0 69
      %1773 = vperm.xlu0 %1772, %v1106
      %v1774 = vpop.permute.xlu0 %1773
      %1776 = vset.pattern.permute.xlu0 69
      %1777 = vperm.xlu0 %1776, %v1107
      %v1778 = vpop.permute.xlu0 %1777
      %v1780 = vsel %vm1736, %v1766, 0.0
      %v1781 = vsel %vm1737, %v1770, 0.0
      %v1782 = vsel %vm1738, %v1774, 0.0
      %v1783 = vsel %vm1739, %v1778, 0.0
      %v1784 = vadd.f32 %v1672, %v1780
      %v1785 = vadd.f32 %v1673, %v1781
      %v1786 = vadd.f32 %v1674, %v1782
      %v1787 = vadd.f32 %v1675, %v1783
      %1788 = vset.pattern.permute.xlu0 69
      %1789 = vperm.xlu0 %1788, %v1124
      %v1790 = vpop.permute.xlu0 %1789
      %1792 = vset.pattern.permute.xlu0 69
      %1793 = vperm.xlu0 %1792, %v1125
      %v1794 = vpop.permute.xlu0 %1793
      %1796 = vset.pattern.permute.xlu0 69
      %1797 = vperm.xlu0 %1796, %v1126
      %v1798 = vpop.permute.xlu0 %1797
      %1800 = vset.pattern.permute.xlu0 69
      %1801 = vperm.xlu0 %1800, %v1127
      %v1802 = vpop.permute.xlu0 %1801
      %v1804 = vsel %vm1736, %v1790, 0.0
      %v1805 = vsel %vm1737, %v1794, 0.0
      %v1806 = vsel %vm1738, %v1798, 0.0
      %v1807 = vsel %vm1739, %v1802, 0.0
      %v1808 = vadd.f32 %v1696, %v1804
      %v1809 = vadd.f32 %v1697, %v1805
      %v1810 = vadd.f32 %v1698, %v1806
      %v1811 = vadd.f32 %v1699, %v1807
      %1812 = vset.pattern.permute.xlu0 69
      %1813 = vperm.xlu0 %1812, %v1144
      %v1814 = vpop.permute.xlu0 %1813
      %1816 = vset.pattern.permute.xlu0 69
      %1817 = vperm.xlu0 %1816, %v1145
      %v1818 = vpop.permute.xlu0 %1817
      %1820 = vset.pattern.permute.xlu0 69
      %1821 = vperm.xlu0 %1820, %v1146
      %v1822 = vpop.permute.xlu0 %1821
      %1824 = vset.pattern.permute.xlu0 69
      %1825 = vperm.xlu0 %1824, %v1147
      %v1826 = vpop.permute.xlu0 %1825
      %v1828 = vsel %vm1736, %v1814, 0.0
      %v1829 = vsel %vm1737, %v1818, 0.0
      %v1830 = vsel %vm1738, %v1822, 0.0
      %v1831 = vsel %vm1739, %v1826, 0.0
      %v1832 = vadd.f32 %v1720, %v1828
      %v1833 = vadd.f32 %v1721, %v1829
      %v1834 = vadd.f32 %v1722, %v1830
      %v1835 = vadd.f32 %v1723, %v1831
      %1836 = vset.pattern.permute.xlu0 6
      %1837 = vperm.xlu0 %1836, %v785
      %v1838 = vpop.permute.xlu0 %1837
      %1839 = vset.pattern.permute.xlu0 6
      %1840 = vperm.xlu0 %1839, %v786
      %v1841 = vpop.permute.xlu0 %1840
      %1842 = vset.pattern.permute.xlu0 6
      %1843 = vperm.xlu0 %1842, %v787
      %v1844 = vpop.permute.xlu0 %1843
      %1845 = vset.pattern.permute.xlu0 6
      %1846 = vperm.xlu0 %1845, %v788
      %v1847 = vpop.permute.xlu0 %1846
      %vm1848 = vcmp.eq.s32.totalorder %v1838, %v1009
      %vm1849 = vcmp.eq.s32.totalorder %v1841, %v1009
      %vm1850 = vcmp.eq.s32.totalorder %v1844, %v1009
      %vm1851 = vcmp.eq.s32.totalorder %v1847, %v1009
      %1852 = vset.pattern.permute.xlu0 70
      %1853 = vperm.xlu0 %1852, %v1084
      %v1854 = vpop.permute.xlu0 %1853
      %1856 = vset.pattern.permute.xlu0 70
      %1857 = vperm.xlu0 %1856, %v1085
      %v1858 = vpop.permute.xlu0 %1857
      %1860 = vset.pattern.permute.xlu0 70
      %1861 = vperm.xlu0 %1860, %v1086
      %v1862 = vpop.permute.xlu0 %1861
      %1864 = vset.pattern.permute.xlu0 70
      %1865 = vperm.xlu0 %1864, %v1087
      %v1866 = vpop.permute.xlu0 %1865
      %v1868 = vsel %vm1848, %v1854, 0.0
      %v1869 = vsel %vm1849, %v1858, 0.0
      %v1870 = vsel %vm1850, %v1862, 0.0
      %v1871 = vsel %vm1851, %v1866, 0.0
      %v1872 = vadd.f32 %v1760, %v1868
      %v1873 = vadd.f32 %v1761, %v1869
      %v1874 = vadd.f32 %v1762, %v1870
      %v1875 = vadd.f32 %v1763, %v1871
      %1876 = vset.pattern.permute.xlu0 70
      %1877 = vperm.xlu0 %1876, %v1104
      %v1878 = vpop.permute.xlu0 %1877
      %1880 = vset.pattern.permute.xlu0 70
      %1881 = vperm.xlu0 %1880, %v1105
      %v1882 = vpop.permute.xlu0 %1881
      %1884 = vset.pattern.permute.xlu0 70
      %1885 = vperm.xlu0 %1884, %v1106
      %v1886 = vpop.permute.xlu0 %1885
      %1888 = vset.pattern.permute.xlu0 70
      %1889 = vperm.xlu0 %1888, %v1107
      %v1890 = vpop.permute.xlu0 %1889
      %v1892 = vsel %vm1848, %v1878, 0.0
      %v1893 = vsel %vm1849, %v1882, 0.0
      %v1894 = vsel %vm1850, %v1886, 0.0
      %v1895 = vsel %vm1851, %v1890, 0.0
      %v1896 = vadd.f32 %v1784, %v1892
      %v1897 = vadd.f32 %v1785, %v1893
      %v1898 = vadd.f32 %v1786, %v1894
      %v1899 = vadd.f32 %v1787, %v1895
      %1900 = vset.pattern.permute.xlu0 70
      %1901 = vperm.xlu0 %1900, %v1124
      %v1902 = vpop.permute.xlu0 %1901
      %1904 = vset.pattern.permute.xlu0 70
      %1905 = vperm.xlu0 %1904, %v1125
      %v1906 = vpop.permute.xlu0 %1905
      %1908 = vset.pattern.permute.xlu0 70
      %1909 = vperm.xlu0 %1908, %v1126
      %v1910 = vpop.permute.xlu0 %1909
      %1912 = vset.pattern.permute.xlu0 70
      %1913 = vperm.xlu0 %1912, %v1127
      %v1914 = vpop.permute.xlu0 %1913
      %v1916 = vsel %vm1848, %v1902, 0.0
      %v1917 = vsel %vm1849, %v1906, 0.0
      %v1918 = vsel %vm1850, %v1910, 0.0
      %v1919 = vsel %vm1851, %v1914, 0.0
      %v1920 = vadd.f32 %v1808, %v1916
      %v1921 = vadd.f32 %v1809, %v1917
      %v1922 = vadd.f32 %v1810, %v1918
      %v1923 = vadd.f32 %v1811, %v1919
      %1924 = vset.pattern.permute.xlu0 70
      %1925 = vperm.xlu0 %1924, %v1144
      %v1926 = vpop.permute.xlu0 %1925
      %1928 = vset.pattern.permute.xlu0 70
      %1929 = vperm.xlu0 %1928, %v1145
      %v1930 = vpop.permute.xlu0 %1929
      %1932 = vset.pattern.permute.xlu0 70
      %1933 = vperm.xlu0 %1932, %v1146
      %v1934 = vpop.permute.xlu0 %1933
      %1936 = vset.pattern.permute.xlu0 70
      %1937 = vperm.xlu0 %1936, %v1147
      %v1938 = vpop.permute.xlu0 %1937
      %v1940 = vsel %vm1848, %v1926, 0.0
      %v1941 = vsel %vm1849, %v1930, 0.0
      %v1942 = vsel %vm1850, %v1934, 0.0
      %v1943 = vsel %vm1851, %v1938, 0.0
      %v1944 = vadd.f32 %v1832, %v1940
      %v1945 = vadd.f32 %v1833, %v1941
      %v1946 = vadd.f32 %v1834, %v1942
      %v1947 = vadd.f32 %v1835, %v1943
      %1948 = vset.pattern.permute.xlu0 7
      %1949 = vperm.xlu0 %1948, %v785
      %v1950 = vpop.permute.xlu0 %1949
      %1951 = vset.pattern.permute.xlu0 7
      %1952 = vperm.xlu0 %1951, %v786
      %v1953 = vpop.permute.xlu0 %1952
      %1954 = vset.pattern.permute.xlu0 7
      %1955 = vperm.xlu0 %1954, %v787
      %v1956 = vpop.permute.xlu0 %1955
      %1957 = vset.pattern.permute.xlu0 7
      %1958 = vperm.xlu0 %1957, %v788
      %v1959 = vpop.permute.xlu0 %1958
      %vm1960 = vcmp.eq.s32.totalorder %v1950, %v1009
      %vm1961 = vcmp.eq.s32.totalorder %v1953, %v1009
      %vm1962 = vcmp.eq.s32.totalorder %v1956, %v1009
      %vm1963 = vcmp.eq.s32.totalorder %v1959, %v1009
      %1964 = vset.pattern.permute.xlu0 71
      %1965 = vperm.xlu0 %1964, %v1084
      %v1966 = vpop.permute.xlu0 %1965
      %1968 = vset.pattern.permute.xlu0 71
      %1969 = vperm.xlu0 %1968, %v1085
      %v1970 = vpop.permute.xlu0 %1969
      %1972 = vset.pattern.permute.xlu0 71
      %1973 = vperm.xlu0 %1972, %v1086
      %v1974 = vpop.permute.xlu0 %1973
      %1976 = vset.pattern.permute.xlu0 71
      %1977 = vperm.xlu0 %1976, %v1087
      %v1978 = vpop.permute.xlu0 %1977
      %v1980 = vsel %vm1960, %v1966, 0.0
      %v1981 = vsel %vm1961, %v1970, 0.0
      %v1982 = vsel %vm1962, %v1974, 0.0
      %v1983 = vsel %vm1963, %v1978, 0.0
      %v1984 = vadd.f32 %v1872, %v1980
      %v1985 = vadd.f32 %v1873, %v1981
      %v1986 = vadd.f32 %v1874, %v1982
      %v1987 = vadd.f32 %v1875, %v1983
      %1988 = vset.pattern.permute.xlu0 71
      %1989 = vperm.xlu0 %1988, %v1104
      %v1990 = vpop.permute.xlu0 %1989
      %1992 = vset.pattern.permute.xlu0 71
      %1993 = vperm.xlu0 %1992, %v1105
      %v1994 = vpop.permute.xlu0 %1993
      %1996 = vset.pattern.permute.xlu0 71
      %1997 = vperm.xlu0 %1996, %v1106
      %v1998 = vpop.permute.xlu0 %1997
      %2000 = vset.pattern.permute.xlu0 71
      %2001 = vperm.xlu0 %2000, %v1107
      %v2002 = vpop.permute.xlu0 %2001
      %v2004 = vsel %vm1960, %v1990, 0.0
      %v2005 = vsel %vm1961, %v1994, 0.0
      %v2006 = vsel %vm1962, %v1998, 0.0
      %v2007 = vsel %vm1963, %v2002, 0.0
      %v2008 = vadd.f32 %v1896, %v2004
      %v2009 = vadd.f32 %v1897, %v2005
      %v2010 = vadd.f32 %v1898, %v2006
      %v2011 = vadd.f32 %v1899, %v2007
      %2012 = vset.pattern.permute.xlu0 71
      %2013 = vperm.xlu0 %2012, %v1124
      %v2014 = vpop.permute.xlu0 %2013
      %2016 = vset.pattern.permute.xlu0 71
      %2017 = vperm.xlu0 %2016, %v1125
      %v2018 = vpop.permute.xlu0 %2017
      %2020 = vset.pattern.permute.xlu0 71
      %2021 = vperm.xlu0 %2020, %v1126
      %v2022 = vpop.permute.xlu0 %2021
      %2024 = vset.pattern.permute.xlu0 71
      %2025 = vperm.xlu0 %2024, %v1127
      %v2026 = vpop.permute.xlu0 %2025
      %v2028 = vsel %vm1960, %v2014, 0.0
      %v2029 = vsel %vm1961, %v2018, 0.0
      %v2030 = vsel %vm1962, %v2022, 0.0
      %v2031 = vsel %vm1963, %v2026, 0.0
      %v2032 = vadd.f32 %v1920, %v2028
      %v2033 = vadd.f32 %v1921, %v2029
      %v2034 = vadd.f32 %v1922, %v2030
      %v2035 = vadd.f32 %v1923, %v2031
      %2036 = vset.pattern.permute.xlu0 71
      %2037 = vperm.xlu0 %2036, %v1144
      %v2038 = vpop.permute.xlu0 %2037
      %2040 = vset.pattern.permute.xlu0 71
      %2041 = vperm.xlu0 %2040, %v1145
      %v2042 = vpop.permute.xlu0 %2041
      %2044 = vset.pattern.permute.xlu0 71
      %2045 = vperm.xlu0 %2044, %v1146
      %v2046 = vpop.permute.xlu0 %2045
      %2048 = vset.pattern.permute.xlu0 71
      %2049 = vperm.xlu0 %2048, %v1147
      %v2050 = vpop.permute.xlu0 %2049
      %v2052 = vsel %vm1960, %v2038, 0.0
      %v2053 = vsel %vm1961, %v2042, 0.0
      %v2054 = vsel %vm1962, %v2046, 0.0
      %v2055 = vsel %vm1963, %v2050, 0.0
      %v2056 = vadd.f32 %v1944, %v2052
      %v2057 = vadd.f32 %v1945, %v2053
      %v2058 = vadd.f32 %v1946, %v2054
      %v2059 = vadd.f32 %v1947, %v2055
      %v2060 = vpack.c.bf16 %v1985, %v1984
      %v2061 = vpack.c.bf16 %v1987, %v1986
      %v2062 = vpack.c.bf16 %v2009, %v2008
      %v2063 = vpack.c.bf16 %v2011, %v2010
      %2064 = vmatprep.subr.bf16.mxu0 0
      %2065 = vmatpush1.bf16.msra.mxu0 %v984
      %2066 = vmatprep.subr.bf16.mxu0 0
      %2067 = vmatpush1.bf16.msra.mxu0 %v985
      %2068 = vmatprep.subr.bf16.mxu0 0
      %2069 = vmatpush1.bf16.msra.mxu0 %v986
      %2070 = vmatprep.subr.bf16.mxu0 0
      %2071 = vmatpush1.bf16.msra.mxu0 %v987
      %2072 = vmatprep.subr.bf16.mxu0 0
      %2073 = vmatpush1.bf16.msra.mxu0 %v988
      %2074 = vmatprep.subr.bf16.mxu0 0
      %2075 = vmatpush1.bf16.msra.mxu0 %v989
      %2076 = vmatprep.subr.bf16.mxu0 0
      %2077 = vmatpush1.bf16.msra.mxu0 %v990
      %2078 = vmatprep.subr.bf16.mxu0 0
      %2079 = vmatpush1.bf16.msra.mxu0 %v991
      %2080 = vmatprep.subr.bf16.mxu0 0
      %2081 = vmatpush1.bf16.msra.mxu0 0
      %2082 = vmatprep.subr.bf16.mxu0 0
      %2083 = vmatpush1.bf16.msra.mxu0 0
      %2084 = vmatprep.subr.bf16.mxu0 0
      %2085 = vmatpush1.bf16.msra.mxu0 0
      %2086 = vmatprep.subr.bf16.mxu0 0
      %2087 = vmatpush1.bf16.msra.mxu0 0
      %2088 = vmatprep.subr.bf16.mxu0 0
      %2089 = vmatpush1.bf16.msra.mxu0 0
      %2090 = vmatprep.subr.bf16.mxu0 0
      %2091 = vmatpush1.bf16.msra.mxu0 0
      %2092 = vmatprep.subr.bf16.mxu0 0
      %2093 = vmatpush1.bf16.msra.mxu0 0
      %2094 = vmatprep.subr.bf16.mxu0 0
      %2095 = vmatpush1.bf16.msra.mxu0 0
      %2096 = vmatprep.mubr.bf16.mxu0 0
      %2097 = vmatmul.mubr.bf16.gmra.mrb[0].mxu0 %v2062
      %v2098 = vpop.f32.mrb[0].mxu0
      %v2099 = vadd.f32 0.0, %v2098
      %v2100 = vpop.f32.mrb[0].mxu0
      %v2101 = vpop.f32.mrb[0].mxu0
      %v2102 = vadd.f32 0.0, %v2101
      %v2103 = vpop.f32.mrb[0].mxu0
      %2104 = vmatprep.mubr.bf16.mxu0 0
      %2105 = vmatmul.mubr.bf16.gmra.mrb[0].mxu0 %v2063
      %v2106 = vpop.f32.mrb[0].mxu0
      %v2107 = vadd.f32 0.0, %v2106
      %v2108 = vpop.f32.mrb[0].mxu0
      %v2109 = vpop.f32.mrb[0].mxu0
      %v2110 = vadd.f32 0.0, %v2109
      %v2111 = vpop.f32.mrb[0].mxu0
      %2112 = vdwg.mxu0
      %v2129 = vunpack.c.l.b16 %v917
      %v2130 = vunpack.c.l.b16 %v918
      %v2131 = vunpack.c.l.b16 %v919
      %v2132 = vunpack.c.l.b16 %v920
      %v2133 = vunpack.c.l.b16 %v921
      %v2134 = vunpack.c.l.b16 %v922
      %v2135 = vunpack.c.l.b16 %v923
      %v2136 = vunpack.c.l.b16 %v924
      %v2137 = vunpack.c.l.b16 %v925
      %v2138 = vunpack.c.l.b16 %v926
      %v2139 = vunpack.c.l.b16 %v927
      %v2140 = vunpack.c.l.b16 %v928
      %v2141 = vunpack.c.l.b16 %v929
      %v2142 = vunpack.c.l.b16 %v930
      %v2143 = vunpack.c.l.b16 %v931
      %v2144 = vunpack.c.l.b16 %v932
      %v2145 = vpack.c.b16 %v2130, %v2129
      %v2146 = vpack.c.b16 %v2132, %v2131
      %v2147 = vpack.c.b16 %v2134, %v2133
      %v2148 = vpack.c.b16 %v2136, %v2135
      %v2149 = vpack.c.b16 %v2138, %v2137
      %v2150 = vpack.c.b16 %v2140, %v2139
      %v2151 = vpack.c.b16 %v2142, %v2141
      %v2152 = vpack.c.b16 %v2144, %v2143
      %2161 = vmatprep.subr.bf16.mxu0 0
      %2162 = vmatpush1.bf16.msra.mxu0 %v2145
      %2163 = vmatprep.subr.bf16.mxu0 0
      %2164 = vmatpush1.bf16.msra.mxu0 %v2146
      %2165 = vmatprep.subr.bf16.mxu0 0
      %2166 = vmatpush1.bf16.msra.mxu0 %v2147
      %2167 = vmatprep.subr.bf16.mxu0 0
      %2168 = vmatpush1.bf16.msra.mxu0 %v2148
      %2169 = vmatprep.subr.bf16.mxu0 0
      %2170 = vmatpush1.bf16.msra.mxu0 %v2149
      %2171 = vmatprep.subr.bf16.mxu0 0
      %2172 = vmatpush1.bf16.msra.mxu0 %v2150
      %2173 = vmatprep.subr.bf16.mxu0 0
      %2174 = vmatpush1.bf16.msra.mxu0 %v2151
      %2175 = vmatprep.subr.bf16.mxu0 0
      %2176 = vmatpush1.bf16.msra.mxu0 %v2152
      %2177 = vmatprep.subr.bf16.mxu0 0
      %2178 = vmatpush1.bf16.msra.mxu0 0
      %2179 = vmatprep.subr.bf16.mxu0 0
      %2180 = vmatpush1.bf16.msra.mxu0 0
      %2181 = vmatprep.subr.bf16.mxu0 0
      %2182 = vmatpush1.bf16.msra.mxu0 0
      %2183 = vmatprep.subr.bf16.mxu0 0
      %2184 = vmatpush1.bf16.msra.mxu0 0
      %2185 = vmatprep.subr.bf16.mxu0 0
      %2186 = vmatpush1.bf16.msra.mxu0 0
      %2187 = vmatprep.subr.bf16.mxu0 0
      %2188 = vmatpush1.bf16.msra.mxu0 0
      %2189 = vmatprep.subr.bf16.mxu0 0
      %2190 = vmatpush1.bf16.msra.mxu0 0
      %2191 = vmatprep.subr.bf16.mxu0 0
      %2192 = vmatpush1.bf16.msra.mxu0 0
      %2193 = vmatprep.mubr.bf16.mxu0 0
      %2194 = vmatmul.mubr.bf16.gmra.mrb[0].mxu0 %v2060
      %v2195 = vpop.f32.mrb[0].mxu0
      %v2196 = vadd.f32 %v2099, %v2195
      %v2197 = vpop.f32.mrb[0].mxu0
      %v2198 = vpop.f32.mrb[0].mxu0
      %v2199 = vadd.f32 %v2102, %v2198
      %v2200 = vpop.f32.mrb[0].mxu0
      %2201 = vmatprep.mubr.bf16.mxu0 0
      %2202 = vmatmul.mubr.bf16.gmra.mrb[0].mxu0 %v2061
      %v2203 = vpop.f32.mrb[0].mxu0
      %v2204 = vadd.f32 %v2107, %v2203
      %v2205 = vpop.f32.mrb[0].mxu0
      %v2206 = vpop.f32.mrb[0].mxu0
      %v2207 = vadd.f32 %v2110, %v2206
      %v2208 = vpop.f32.mrb[0].mxu0
      %2209 = vdwg.mxu0
      %v2210 = vpack.c.bf16 %v2033, %v2032
      %v2211 = vpack.c.bf16 %v2035, %v2034
      %2212 = vmatprep.subr.bf16.mxu0 0
      %2213 = vmatpush1.bf16.msra.mxu0 %v992
      %2214 = vmatprep.subr.bf16.mxu0 0
      %2215 = vmatpush1.bf16.msra.mxu0 %v993
      %2216 = vmatprep.subr.bf16.mxu0 0
      %2217 = vmatpush1.bf16.msra.mxu0 %v994
      %2218 = vmatprep.subr.bf16.mxu0 0
      %2219 = vmatpush1.bf16.msra.mxu0 %v995
      %2220 = vmatprep.subr.bf16.mxu0 0
      %2221 = vmatpush1.bf16.msra.mxu0 %v996
      %2222 = vmatprep.subr.bf16.mxu0 0
      %2223 = vmatpush1.bf16.msra.mxu0 %v997
      %2224 = vmatprep.subr.bf16.mxu0 0
      %2225 = vmatpush1.bf16.msra.mxu0 %v998
      %2226 = vmatprep.subr.bf16.mxu0 0
      %2227 = vmatpush1.bf16.msra.mxu0 %v999
      %2228 = vmatprep.subr.bf16.mxu0 0
      %2229 = vmatpush1.bf16.msra.mxu0 0
      %2230 = vmatprep.subr.bf16.mxu0 0
      %2231 = vmatpush1.bf16.msra.mxu0 0
      %2232 = vmatprep.subr.bf16.mxu0 0
      %2233 = vmatpush1.bf16.msra.mxu0 0
      %2234 = vmatprep.subr.bf16.mxu0 0
      %2235 = vmatpush1.bf16.msra.mxu0 0
      %2236 = vmatprep.subr.bf16.mxu0 0
      %2237 = vmatpush1.bf16.msra.mxu0 0
      %2238 = vmatprep.subr.bf16.mxu0 0
      %2239 = vmatpush1.bf16.msra.mxu0 0
      %2240 = vmatprep.subr.bf16.mxu0 0
      %2241 = vmatpush1.bf16.msra.mxu0 0
      %2242 = vmatprep.subr.bf16.mxu0 0
      %2243 = vmatpush1.bf16.msra.mxu0 0
      %2244 = vmatprep.mubr.bf16.mxu0 0
      %2245 = vmatmul.mubr.bf16.gmra.mrb[0].mxu0 %v2210
      %v2246 = vpop.f32.mrb[0].mxu0
      %v2247 = vadd.f32 0.0, %v2246
      %v2248 = vpop.f32.mrb[0].mxu0
      %v2249 = vpop.f32.mrb[0].mxu0
      %v2250 = vadd.f32 0.0, %v2249
      %v2251 = vpop.f32.mrb[0].mxu0
      %2252 = vmatprep.mubr.bf16.mxu0 0
      %2253 = vmatmul.mubr.bf16.gmra.mrb[0].mxu0 %v2211
      %v2254 = vpop.f32.mrb[0].mxu0
      %v2255 = vadd.f32 0.0, %v2254
      %v2256 = vpop.f32.mrb[0].mxu0
      %v2257 = vpop.f32.mrb[0].mxu0
      %v2258 = vadd.f32 0.0, %v2257
      %v2259 = vpop.f32.mrb[0].mxu0
      %2260 = vdwg.mxu0
      %v2261 = vadd.f32 %v2196, %v2247
      %v2262 = vadd.f32 %v2199, %v2250
      %v2263 = vadd.f32 %v2204, %v2255
      %v2264 = vadd.f32 %v2207, %v2258
      %v2265 = vpack.c.bf16 %v2057, %v2056
      %v2266 = vpack.c.bf16 %v2059, %v2058
      %2267 = vmatprep.subr.bf16.mxu0 0
      %2268 = vmatpush1.bf16.msra.mxu0 %v1000
      %2269 = vmatprep.subr.bf16.mxu0 0
      %2270 = vmatpush1.bf16.msra.mxu0 %v1001
      %2271 = vmatprep.subr.bf16.mxu0 0
      %2272 = vmatpush1.bf16.msra.mxu0 %v1002
      %2273 = vmatprep.subr.bf16.mxu0 0
      %2274 = vmatpush1.bf16.msra.mxu0 %v1003
      %2275 = vmatprep.subr.bf16.mxu0 0
      %2276 = vmatpush1.bf16.msra.mxu0 %v1004
      %2277 = vmatprep.subr.bf16.mxu0 0
      %2278 = vmatpush1.bf16.msra.mxu0 %v1005
      %2279 = vmatprep.subr.bf16.mxu0 0
      %2280 = vmatpush1.bf16.msra.mxu0 %v1006
      %2281 = vmatprep.subr.bf16.mxu0 0
      %2282 = vmatpush1.bf16.msra.mxu0 %v1007
      %2283 = vmatprep.subr.bf16.mxu0 0
      %2284 = vmatpush1.bf16.msra.mxu0 0
      %2285 = vmatprep.subr.bf16.mxu0 0
      %2286 = vmatpush1.bf16.msra.mxu0 0
      %2287 = vmatprep.subr.bf16.mxu0 0
      %2288 = vmatpush1.bf16.msra.mxu0 0
      %2289 = vmatprep.subr.bf16.mxu0 0
      %2290 = vmatpush1.bf16.msra.mxu0 0
      %2291 = vmatprep.subr.bf16.mxu0 0
      %2292 = vmatpush1.bf16.msra.mxu0 0
      %2293 = vmatprep.subr.bf16.mxu0 0
      %2294 = vmatpush1.bf16.msra.mxu0 0
      %2295 = vmatprep.subr.bf16.mxu0 0
      %2296 = vmatpush1.bf16.msra.mxu0 0
      %2297 = vmatprep.subr.bf16.mxu0 0
      %2298 = vmatpush1.bf16.msra.mxu0 0
      %2299 = vmatprep.mubr.bf16.mxu0 0
      %2300 = vmatmul.mubr.bf16.gmra.mrb[0].mxu0 %v2265
      %v2301 = vpop.f32.mrb[0].mxu0
      %v2302 = vadd.f32 0.0, %v2301
      %v2303 = vpop.f32.mrb[0].mxu0
      %v2304 = vpop.f32.mrb[0].mxu0
      %v2305 = vadd.f32 0.0, %v2304
      %v2306 = vpop.f32.mrb[0].mxu0
      %2307 = vmatprep.mubr.bf16.mxu0 0
      %2308 = vmatmul.mubr.bf16.gmra.mrb[0].mxu0 %v2266
      %v2309 = vpop.f32.mrb[0].mxu0
      %v2310 = vadd.f32 0.0, %v2309
      %v2311 = vpop.f32.mrb[0].mxu0
      %v2312 = vpop.f32.mrb[0].mxu0
      %v2313 = vadd.f32 0.0, %v2312
      %v2314 = vpop.f32.mrb[0].mxu0
      %2315 = vdwg.mxu0
      %v2316 = vadd.f32 %v2261, %v2302
      %v2317 = vadd.f32 %v2262, %v2305
      %v2318 = vadd.f32 %v2263, %v2310
      %v2319 = vadd.f32 %v2264, %v2313
      %v2320 = vrcp.pop %v1058
      %v2321 = vrcp.pop %v1061
      %v2322 = vrcp.pop %v1064
      %v2323 = vrcp.pop %v1067
      %v2324 = vmul.f32 %v2316, %v2320
      %v2325 = vmul.f32 %v2317, %v2321
      %v2326 = vmul.f32 %v2318, %v2322
      %v2327 = vmul.f32 %v2319, %v2323
      %v2328 = vpack.c.bf16 %v2325, %v2324
      %v2329 = vpack.c.bf16 %v2327, %v2326
      %vm2330 = vcmask 654912
      %v2331 = vsel %vm2330, %v711, -inf
      %2332 = vmax.xlane.f32.xlu0 %v2331
      %v2333 = vpop.xlane.xlu0 %2332
      %v2334 = vsel %vm2330, %v714, -inf
      %2335 = vmax.xlane.f32.xlu0 %v2334
      %v2336 = vpop.xlane.xlu0 %2335
      %v2337 = vsel %vm2330, %v719, -inf
      %2338 = vmax.xlane.f32.xlu0 %v2337
      %v2339 = vpop.xlane.xlu0 %2338
      %v2340 = vsel %vm2330, %v722, -inf
      %2341 = vmax.xlane.f32.xlu0 %v2340
      %v2342 = vpop.xlane.xlu0 %2341
      %v2343 = vsub.f32 %v711, %v2333
      %v2344 = vsub.f32 %v714, %v2336
      %v2345 = vsub.f32 %v719, %v2339
      %v2346 = vsub.f32 %v722, %v2342
      %v2347 = vmul.f32 %v2343, 1.442695
      %v2348 = vpow.pop %v2347
      %v2349 = vmul.f32 %v2344, 1.442695
      %v2350 = vpow.pop %v2349
      %v2351 = vmul.f32 %v2345, 1.442695
      %v2352 = vpow.pop %v2351
      %v2353 = vmul.f32 %v2346, 1.442695
      %v2354 = vpow.pop %v2353
      %2359 = vrot.lane.b32.xlu0 %v2348, 56
      %v2360 = vpop.permute.xlu0 %2359
      %2361 = vrot.lane.b32.xlu0 %v2350, 56
      %v2362 = vpop.permute.xlu0 %2361
      %2363 = vrot.lane.b32.xlu0 %v2352, 56
      %v2364 = vpop.permute.xlu0 %2363
      %2365 = vrot.lane.b32.xlu0 %v2354, 56
      %v2366 = vpop.permute.xlu0 %2365
      %v2371 = vsel %vm1055, %v2360, 0.0
      %2372 = vadd.xlane.f32.xlu0 %v2371
      %v2373 = vpop.xlane.xlu0 %2372
      %v2374 = vsel %vm1055, %v2362, 0.0
      %2375 = vadd.xlane.f32.xlu0 %v2374
      %v2376 = vpop.xlane.xlu0 %2375
      %v2377 = vsel %vm1055, %v2364, 0.0
      %2378 = vadd.xlane.f32.xlu0 %v2377
      %v2379 = vpop.xlane.xlu0 %2378
      %v2380 = vsel %vm1055, %v2366, 0.0
      %2381 = vadd.xlane.f32.xlu0 %v2380
      %v2382 = vpop.xlane.xlu0 %2381
      %v2383 = vmul.f32 %v2348, %v1073
      %v2384 = vmul.f32 %v2350, %v1075
      %v2385 = vmul.f32 %v2352, %v1077
      %v2386 = vmul.f32 %v2354, %v1079
      %v2387 = vmul.f32 %v2348, %v1093
      %v2388 = vmul.f32 %v2350, %v1095
      %v2389 = vmul.f32 %v2352, %v1097
      %v2390 = vmul.f32 %v2354, %v1099
      %v2391 = vmul.f32 %v2348, %v1113
      %v2392 = vmul.f32 %v2350, %v1115
      %v2393 = vmul.f32 %v2352, %v1117
      %v2394 = vmul.f32 %v2354, %v1119
      %v2395 = vmul.f32 %v2348, %v1133
      %v2396 = vmul.f32 %v2350, %v1135
      %v2397 = vmul.f32 %v2352, %v1137
      %v2398 = vmul.f32 %v2354, %v1139
      %2399 = vset.pattern.permute.xlu0 8
      %2400 = vperm.xlu0 %2399, %v785
      %v2401 = vpop.permute.xlu0 %2400
      %2402 = vset.pattern.permute.xlu0 8
      %2403 = vperm.xlu0 %2402, %v786
      %v2404 = vpop.permute.xlu0 %2403
      %2405 = vset.pattern.permute.xlu0 8
      %2406 = vperm.xlu0 %2405, %v787
      %v2407 = vpop.permute.xlu0 %2406
      %2408 = vset.pattern.permute.xlu0 8
      %2409 = vperm.xlu0 %2408, %v788
      %v2410 = vpop.permute.xlu0 %2409
      %vm2411 = vcmp.eq.s32.totalorder %v2401, %v1009
      %vm2412 = vcmp.eq.s32.totalorder %v2404, %v1009
      %vm2413 = vcmp.eq.s32.totalorder %v2407, %v1009
      %vm2414 = vcmp.eq.s32.totalorder %v2410, %v1009
      %2416 = vset.pattern.permute.xlu0 72
      %2417 = vperm.xlu0 %2416, %v2383
      %v2418 = vpop.permute.xlu0 %2417
      %2421 = vset.pattern.permute.xlu0 72
      %2422 = vperm.xlu0 %2421, %v2384
      %v2423 = vpop.permute.xlu0 %2422
      %2426 = vset.pattern.permute.xlu0 72
      %2427 = vperm.xlu0 %2426, %v2385
      %v2428 = vpop.permute.xlu0 %2427
      %2431 = vset.pattern.permute.xlu0 72
      %2432 = vperm.xlu0 %2431, %v2386
      %v2433 = vpop.permute.xlu0 %2432
      %v2435 = vsel %vm2411, %v2418, 0.0
      %v2436 = vsel %vm2412, %v2423, 0.0
      %v2437 = vsel %vm2413, %v2428, 0.0
      %v2438 = vsel %vm2414, %v2433, 0.0
      %v2439 = vadd.f32 %v2435, 0.0
      %v2440 = vadd.f32 %v2436, 0.0
      %v2441 = vadd.f32 %v2437, 0.0
      %v2442 = vadd.f32 %v2438, 0.0
      %2444 = vset.pattern.permute.xlu0 72
      %2445 = vperm.xlu0 %2444, %v2387
      %v2446 = vpop.permute.xlu0 %2445
      %2449 = vset.pattern.permute.xlu0 72
      %2450 = vperm.xlu0 %2449, %v2388
      %v2451 = vpop.permute.xlu0 %2450
      %2454 = vset.pattern.permute.xlu0 72
      %2455 = vperm.xlu0 %2454, %v2389
      %v2456 = vpop.permute.xlu0 %2455
      %2459 = vset.pattern.permute.xlu0 72
      %2460 = vperm.xlu0 %2459, %v2390
      %v2461 = vpop.permute.xlu0 %2460
      %v2463 = vsel %vm2411, %v2446, 0.0
      %v2464 = vsel %vm2412, %v2451, 0.0
      %v2465 = vsel %vm2413, %v2456, 0.0
      %v2466 = vsel %vm2414, %v2461, 0.0
      %v2467 = vadd.f32 %v2463, 0.0
      %v2468 = vadd.f32 %v2464, 0.0
      %v2469 = vadd.f32 %v2465, 0.0
      %v2470 = vadd.f32 %v2466, 0.0
      %2472 = vset.pattern.permute.xlu0 72
      %2473 = vperm.xlu0 %2472, %v2391
      %v2474 = vpop.permute.xlu0 %2473
      %2477 = vset.pattern.permute.xlu0 72
      %2478 = vperm.xlu0 %2477, %v2392
      %v2479 = vpop.permute.xlu0 %2478
      %2482 = vset.pattern.permute.xlu0 72
      %2483 = vperm.xlu0 %2482, %v2393
      %v2484 = vpop.permute.xlu0 %2483
      %2487 = vset.pattern.permute.xlu0 72
      %2488 = vperm.xlu0 %2487, %v2394
      %v2489 = vpop.permute.xlu0 %2488
      %v2491 = vsel %vm2411, %v2474, 0.0
      %v2492 = vsel %vm2412, %v2479, 0.0
      %v2493 = vsel %vm2413, %v2484, 0.0
      %v2494 = vsel %vm2414, %v2489, 0.0
      %v2495 = vadd.f32 %v2491, 0.0
      %v2496 = vadd.f32 %v2492, 0.0
      %v2497 = vadd.f32 %v2493, 0.0
      %v2498 = vadd.f32 %v2494, 0.0
      %2500 = vset.pattern.permute.xlu0 72
      %2501 = vperm.xlu0 %2500, %v2395
      %v2502 = vpop.permute.xlu0 %2501
      %2505 = vset.pattern.permute.xlu0 72
      %2506 = vperm.xlu0 %2505, %v2396
      %v2507 = vpop.permute.xlu0 %2506
      %2510 = vset.pattern.permute.xlu0 72
      %2511 = vperm.xlu0 %2510, %v2397
      %v2512 = vpop.permute.xlu0 %2511
      %2515 = vset.pattern.permute.xlu0 72
      %2516 = vperm.xlu0 %2515, %v2398
      %v2517 = vpop.permute.xlu0 %2516
      %v2519 = vsel %vm2411, %v2502, 0.0
      %v2520 = vsel %vm2412, %v2507, 0.0
      %v2521 = vsel %vm2413, %v2512, 0.0
      %v2522 = vsel %vm2414, %v2517, 0.0
      %v2523 = vadd.f32 %v2519, 0.0
      %v2524 = vadd.f32 %v2520, 0.0
      %v2525 = vadd.f32 %v2521, 0.0
      %v2526 = vadd.f32 %v2522, 0.0
      %2527 = vset.pattern.permute.xlu0 9
      %2528 = vperm.xlu0 %2527, %v785
      %v2529 = vpop.permute.xlu0 %2528
      %2530 = vset.pattern.permute.xlu0 9
      %2531 = vperm.xlu0 %2530, %v786
      %v2532 = vpop.permute.xlu0 %2531
      %2533 = vset.pattern.permute.xlu0 9
      %2534 = vperm.xlu0 %2533, %v787
      %v2535 = vpop.permute.xlu0 %2534
      %2536 = vset.pattern.permute.xlu0 9
      %2537 = vperm.xlu0 %2536, %v788
      %v2538 = vpop.permute.xlu0 %2537
      %vm2539 = vcmp.eq.s32.totalorder %v2529, %v1009
      %vm2540 = vcmp.eq.s32.totalorder %v2532, %v1009
      %vm2541 = vcmp.eq.s32.totalorder %v2535, %v1009
      %vm2542 = vcmp.eq.s32.totalorder %v2538, %v1009
      %2543 = vset.pattern.permute.xlu0 73
      %2544 = vperm.xlu0 %2543, %v2383
      %v2545 = vpop.permute.xlu0 %2544
      %2547 = vset.pattern.permute.xlu0 73
      %2548 = vperm.xlu0 %2547, %v2384
      %v2549 = vpop.permute.xlu0 %2548
      %2551 = vset.pattern.permute.xlu0 73
      %2552 = vperm.xlu0 %2551, %v2385
      %v2553 = vpop.permute.xlu0 %2552
      %2555 = vset.pattern.permute.xlu0 73
      %2556 = vperm.xlu0 %2555, %v2386
      %v2557 = vpop.permute.xlu0 %2556
      %v2559 = vsel %vm2539, %v2545, 0.0
      %v2560 = vsel %vm2540, %v2549, 0.0
      %v2561 = vsel %vm2541, %v2553, 0.0
      %v2562 = vsel %vm2542, %v2557, 0.0
      %v2563 = vadd.f32 %v2439, %v2559
      %v2564 = vadd.f32 %v2440, %v2560
      %v2565 = vadd.f32 %v2441, %v2561
      %v2566 = vadd.f32 %v2442, %v2562
      %2567 = vset.pattern.permute.xlu0 73
      %2568 = vperm.xlu0 %2567, %v2387
      %v2569 = vpop.permute.xlu0 %2568
      %2571 = vset.pattern.permute.xlu0 73
      %2572 = vperm.xlu0 %2571, %v2388
      %v2573 = vpop.permute.xlu0 %2572
      %2575 = vset.pattern.permute.xlu0 73
      %2576 = vperm.xlu0 %2575, %v2389
      %v2577 = vpop.permute.xlu0 %2576
      %2579 = vset.pattern.permute.xlu0 73
      %2580 = vperm.xlu0 %2579, %v2390
      %v2581 = vpop.permute.xlu0 %2580
      %v2583 = vsel %vm2539, %v2569, 0.0
      %v2584 = vsel %vm2540, %v2573, 0.0
      %v2585 = vsel %vm2541, %v2577, 0.0
      %v2586 = vsel %vm2542, %v2581, 0.0
      %v2587 = vadd.f32 %v2467, %v2583
      %v2588 = vadd.f32 %v2468, %v2584
      %v2589 = vadd.f32 %v2469, %v2585
      %v2590 = vadd.f32 %v2470, %v2586
      %2591 = vset.pattern.permute.xlu0 73
      %2592 = vperm.xlu0 %2591, %v2391
      %v2593 = vpop.permute.xlu0 %2592
      %2595 = vset.pattern.permute.xlu0 73
      %2596 = vperm.xlu0 %2595, %v2392
      %v2597 = vpop.permute.xlu0 %2596
      %2599 = vset.pattern.permute.xlu0 73
      %2600 = vperm.xlu0 %2599, %v2393
      %v2601 = vpop.permute.xlu0 %2600
      %2603 = vset.pattern.permute.xlu0 73
      %2604 = vperm.xlu0 %2603, %v2394
      %v2605 = vpop.permute.xlu0 %2604
      %v2607 = vsel %vm2539, %v2593, 0.0
      %v2608 = vsel %vm2540, %v2597, 0.0
      %v2609 = vsel %vm2541, %v2601, 0.0
      %v2610 = vsel %vm2542, %v2605, 0.0
      %v2611 = vadd.f32 %v2495, %v2607
      %v2612 = vadd.f32 %v2496, %v2608
      %v2613 = vadd.f32 %v2497, %v2609
      %v2614 = vadd.f32 %v2498, %v2610
      %2615 = vset.pattern.permute.xlu0 73
      %2616 = vperm.xlu0 %2615, %v2395
      %v2617 = vpop.permute.xlu0 %2616
      %2619 = vset.pattern.permute.xlu0 73
      %2620 = vperm.xlu0 %2619, %v2396
      %v2621 = vpop.permute.xlu0 %2620
      %2623 = vset.pattern.permute.xlu0 73
      %2624 = vperm.xlu0 %2623, %v2397
      %v2625 = vpop.permute.xlu0 %2624
      %2627 = vset.pattern.permute.xlu0 73
      %2628 = vperm.xlu0 %2627, %v2398
      %v2629 = vpop.permute.xlu0 %2628
      %v2631 = vsel %vm2539, %v2617, 0.0
      %v2632 = vsel %vm2540, %v2621, 0.0
      %v2633 = vsel %vm2541, %v2625, 0.0
      %v2634 = vsel %vm2542, %v2629, 0.0
      %v2635 = vadd.f32 %v2523, %v2631
      %v2636 = vadd.f32 %v2524, %v2632
      %v2637 = vadd.f32 %v2525, %v2633
      %v2638 = vadd.f32 %v2526, %v2634
      %2639 = vset.pattern.permute.xlu0 10
      %2640 = vperm.xlu0 %2639, %v785
      %v2641 = vpop.permute.xlu0 %2640
      %2642 = vset.pattern.permute.xlu0 10
      %2643 = vperm.xlu0 %2642, %v786
      %v2644 = vpop.permute.xlu0 %2643
      %2645 = vset.pattern.permute.xlu0 10
      %2646 = vperm.xlu0 %2645, %v787
      %v2647 = vpop.permute.xlu0 %2646
      %2648 = vset.pattern.permute.xlu0 10
      %2649 = vperm.xlu0 %2648, %v788
      %v2650 = vpop.permute.xlu0 %2649
      %vm2651 = vcmp.eq.s32.totalorder %v2641, %v1009
      %vm2652 = vcmp.eq.s32.totalorder %v2644, %v1009
      %vm2653 = vcmp.eq.s32.totalorder %v2647, %v1009
      %vm2654 = vcmp.eq.s32.totalorder %v2650, %v1009
      %2655 = vset.pattern.permute.xlu0 74
      %2656 = vperm.xlu0 %2655, %v2383
      %v2657 = vpop.permute.xlu0 %2656
      %2659 = vset.pattern.permute.xlu0 74
      %2660 = vperm.xlu0 %2659, %v2384
      %v2661 = vpop.permute.xlu0 %2660
      %2663 = vset.pattern.permute.xlu0 74
      %2664 = vperm.xlu0 %2663, %v2385
      %v2665 = vpop.permute.xlu0 %2664
      %2667 = vset.pattern.permute.xlu0 74
      %2668 = vperm.xlu0 %2667, %v2386
      %v2669 = vpop.permute.xlu0 %2668
      %v2671 = vsel %vm2651, %v2657, 0.0
      %v2672 = vsel %vm2652, %v2661, 0.0
      %v2673 = vsel %vm2653, %v2665, 0.0
      %v2674 = vsel %vm2654, %v2669, 0.0
      %v2675 = vadd.f32 %v2563, %v2671
      %v2676 = vadd.f32 %v2564, %v2672
      %v2677 = vadd.f32 %v2565, %v2673
      %v2678 = vadd.f32 %v2566, %v2674
      %2679 = vset.pattern.permute.xlu0 74
      %2680 = vperm.xlu0 %2679, %v2387
      %v2681 = vpop.permute.xlu0 %2680
      %2683 = vset.pattern.permute.xlu0 74
      %2684 = vperm.xlu0 %2683, %v2388
      %v2685 = vpop.permute.xlu0 %2684
      %2687 = vset.pattern.permute.xlu0 74
      %2688 = vperm.xlu0 %2687, %v2389
      %v2689 = vpop.permute.xlu0 %2688
      %2691 = vset.pattern.permute.xlu0 74
      %2692 = vperm.xlu0 %2691, %v2390
      %v2693 = vpop.permute.xlu0 %2692
      %v2695 = vsel %vm2651, %v2681, 0.0
      %v2696 = vsel %vm2652, %v2685, 0.0
      %v2697 = vsel %vm2653, %v2689, 0.0
      %v2698 = vsel %vm2654, %v2693, 0.0
      %v2699 = vadd.f32 %v2587, %v2695
      %v2700 = vadd.f32 %v2588, %v2696
      %v2701 = vadd.f32 %v2589, %v2697
      %v2702 = vadd.f32 %v2590, %v2698
      %2703 = vset.pattern.permute.xlu0 74
      %2704 = vperm.xlu0 %2703, %v2391
      %v2705 = vpop.permute.xlu0 %2704
      %2707 = vset.pattern.permute.xlu0 74
      %2708 = vperm.xlu0 %2707, %v2392
      %v2709 = vpop.permute.xlu0 %2708
      %2711 = vset.pattern.permute.xlu0 74
      %2712 = vperm.xlu0 %2711, %v2393
      %v2713 = vpop.permute.xlu0 %2712
      %2715 = vset.pattern.permute.xlu0 74
      %2716 = vperm.xlu0 %2715, %v2394
      %v2717 = vpop.permute.xlu0 %2716
      %v2719 = vsel %vm2651, %v2705, 0.0
      %v2720 = vsel %vm2652, %v2709, 0.0
      %v2721 = vsel %vm2653, %v2713, 0.0
      %v2722 = vsel %vm2654, %v2717, 0.0
      %v2723 = vadd.f32 %v2611, %v2719
      %v2724 = vadd.f32 %v2612, %v2720
      %v2725 = vadd.f32 %v2613, %v2721
      %v2726 = vadd.f32 %v2614, %v2722
      %2727 = vset.pattern.permute.xlu0 74
      %2728 = vperm.xlu0 %2727, %v2395
      %v2729 = vpop.permute.xlu0 %2728
      %2731 = vset.pattern.permute.xlu0 74
      %2732 = vperm.xlu0 %2731, %v2396
      %v2733 = vpop.permute.xlu0 %2732
      %2735 = vset.pattern.permute.xlu0 74
      %2736 = vperm.xlu0 %2735, %v2397
      %v2737 = vpop.permute.xlu0 %2736
      %2739 = vset.pattern.permute.xlu0 74
      %2740 = vperm.xlu0 %2739, %v2398
      %v2741 = vpop.permute.xlu0 %2740
      %v2743 = vsel %vm2651, %v2729, 0.0
      %v2744 = vsel %vm2652, %v2733, 0.0
      %v2745 = vsel %vm2653, %v2737, 0.0
      %v2746 = vsel %vm2654, %v2741, 0.0
      %v2747 = vadd.f32 %v2635, %v2743
      %v2748 = vadd.f32 %v2636, %v2744
      %v2749 = vadd.f32 %v2637, %v2745
      %v2750 = vadd.f32 %v2638, %v2746
      %2751 = vset.pattern.permute.xlu0 11
      %2752 = vperm.xlu0 %2751, %v785
      %v2753 = vpop.permute.xlu0 %2752
      %2754 = vset.pattern.permute.xlu0 11
      %2755 = vperm.xlu0 %2754, %v786
      %v2756 = vpop.permute.xlu0 %2755
      %2757 = vset.pattern.permute.xlu0 11
      %2758 = vperm.xlu0 %2757, %v787
      %v2759 = vpop.permute.xlu0 %2758
      %2760 = vset.pattern.permute.xlu0 11
      %2761 = vperm.xlu0 %2760, %v788
      %v2762 = vpop.permute.xlu0 %2761
      %vm2763 = vcmp.eq.s32.totalorder %v2753, %v1009
      %vm2764 = vcmp.eq.s32.totalorder %v2756, %v1009
      %vm2765 = vcmp.eq.s32.totalorder %v2759, %v1009
      %vm2766 = vcmp.eq.s32.totalorder %v2762, %v1009
      %2767 = vset.pattern.permute.xlu0 75
      %2768 = vperm.xlu0 %2767, %v2383
      %v2769 = vpop.permute.xlu0 %2768
      %2771 = vset.pattern.permute.xlu0 75
      %2772 = vperm.xlu0 %2771, %v2384
      %v2773 = vpop.permute.xlu0 %2772
      %2775 = vset.pattern.permute.xlu0 75
      %2776 = vperm.xlu0 %2775, %v2385
      %v2777 = vpop.permute.xlu0 %2776
      %2779 = vset.pattern.permute.xlu0 75
      %2780 = vperm.xlu0 %2779, %v2386
      %v2781 = vpop.permute.xlu0 %2780
      %v2783 = vsel %vm2763, %v2769, 0.0
      %v2784 = vsel %vm2764, %v2773, 0.0
      %v2785 = vsel %vm2765, %v2777, 0.0
      %v2786 = vsel %vm2766, %v2781, 0.0
      %v2787 = vadd.f32 %v2675, %v2783
      %v2788 = vadd.f32 %v2676, %v2784
      %v2789 = vadd.f32 %v2677, %v2785
      %v2790 = vadd.f32 %v2678, %v2786
      %2791 = vset.pattern.permute.xlu0 75
      %2792 = vperm.xlu0 %2791, %v2387
      %v2793 = vpop.permute.xlu0 %2792
      %2795 = vset.pattern.permute.xlu0 75
      %2796 = vperm.xlu0 %2795, %v2388
      %v2797 = vpop.permute.xlu0 %2796
      %2799 = vset.pattern.permute.xlu0 75
      %2800 = vperm.xlu0 %2799, %v2389
      %v2801 = vpop.permute.xlu0 %2800
      %2803 = vset.pattern.permute.xlu0 75
      %2804 = vperm.xlu0 %2803, %v2390
      %v2805 = vpop.permute.xlu0 %2804
      %v2807 = vsel %vm2763, %v2793, 0.0
      %v2808 = vsel %vm2764, %v2797, 0.0
      %v2809 = vsel %vm2765, %v2801, 0.0
      %v2810 = vsel %vm2766, %v2805, 0.0
      %v2811 = vadd.f32 %v2699, %v2807
      %v2812 = vadd.f32 %v2700, %v2808
      %v2813 = vadd.f32 %v2701, %v2809
      %v2814 = vadd.f32 %v2702, %v2810
      %2815 = vset.pattern.permute.xlu0 75
      %2816 = vperm.xlu0 %2815, %v2391
      %v2817 = vpop.permute.xlu0 %2816
      %2819 = vset.pattern.permute.xlu0 75
      %2820 = vperm.xlu0 %2819, %v2392
      %v2821 = vpop.permute.xlu0 %2820
      %2823 = vset.pattern.permute.xlu0 75
      %2824 = vperm.xlu0 %2823, %v2393
      %v2825 = vpop.permute.xlu0 %2824
      %2827 = vset.pattern.permute.xlu0 75
      %2828 = vperm.xlu0 %2827, %v2394
      %v2829 = vpop.permute.xlu0 %2828
      %v2831 = vsel %vm2763, %v2817, 0.0
      %v2832 = vsel %vm2764, %v2821, 0.0
      %v2833 = vsel %vm2765, %v2825, 0.0
      %v2834 = vsel %vm2766, %v2829, 0.0
      %v2835 = vadd.f32 %v2723, %v2831
      %v2836 = vadd.f32 %v2724, %v2832
      %v2837 = vadd.f32 %v2725, %v2833
      %v2838 = vadd.f32 %v2726, %v2834
      %2839 = vset.pattern.permute.xlu0 75
      %2840 = vperm.xlu0 %2839, %v2395
      %v2841 = vpop.permute.xlu0 %2840
      %2843 = vset.pattern.permute.xlu0 75
      %2844 = vperm.xlu0 %2843, %v2396
      %v2845 = vpop.permute.xlu0 %2844
      %2847 = vset.pattern.permute.xlu0 75
      %2848 = vperm.xlu0 %2847, %v2397
      %v2849 = vpop.permute.xlu0 %2848
      %2851 = vset.pattern.permute.xlu0 75
      %2852 = vperm.xlu0 %2851, %v2398
      %v2853 = vpop.permute.xlu0 %2852
      %v2855 = vsel %vm2763, %v2841, 0.0
      %v2856 = vsel %vm2764, %v2845, 0.0
      %v2857 = vsel %vm2765, %v2849, 0.0
      %v2858 = vsel %vm2766, %v2853, 0.0
      %v2859 = vadd.f32 %v2747, %v2855
      %v2860 = vadd.f32 %v2748, %v2856
      %v2861 = vadd.f32 %v2749, %v2857
      %v2862 = vadd.f32 %v2750, %v2858
      %2863 = vset.pattern.permute.xlu0 12
      %2864 = vperm.xlu0 %2863, %v785
      %v2865 = vpop.permute.xlu0 %2864
      %2866 = vset.pattern.permute.xlu0 12
      %2867 = vperm.xlu0 %2866, %v786
      %v2868 = vpop.permute.xlu0 %2867
      %2869 = vset.pattern.permute.xlu0 12
      %2870 = vperm.xlu0 %2869, %v787
      %v2871 = vpop.permute.xlu0 %2870
      %2872 = vset.pattern.permute.xlu0 12
      %2873 = vperm.xlu0 %2872, %v788
      %v2874 = vpop.permute.xlu0 %2873
      %vm2875 = vcmp.eq.s32.totalorder %v2865, %v1009
      %vm2876 = vcmp.eq.s32.totalorder %v2868, %v1009
      %vm2877 = vcmp.eq.s32.totalorder %v2871, %v1009
      %vm2878 = vcmp.eq.s32.totalorder %v2874, %v1009
      %2879 = vset.pattern.permute.xlu0 76
      %2880 = vperm.xlu0 %2879, %v2383
      %v2881 = vpop.permute.xlu0 %2880
      %2883 = vset.pattern.permute.xlu0 76
      %2884 = vperm.xlu0 %2883, %v2384
      %v2885 = vpop.permute.xlu0 %2884
      %2887 = vset.pattern.permute.xlu0 76
      %2888 = vperm.xlu0 %2887, %v2385
      %v2889 = vpop.permute.xlu0 %2888
      %2891 = vset.pattern.permute.xlu0 76
      %2892 = vperm.xlu0 %2891, %v2386
      %v2893 = vpop.permute.xlu0 %2892
      %v2895 = vsel %vm2875, %v2881, 0.0
      %v2896 = vsel %vm2876, %v2885, 0.0
      %v2897 = vsel %vm2877, %v2889, 0.0
      %v2898 = vsel %vm2878, %v2893, 0.0
      %v2899 = vadd.f32 %v2787, %v2895
      %v2900 = vadd.f32 %v2788, %v2896
      %v2901 = vadd.f32 %v2789, %v2897
      %v2902 = vadd.f32 %v2790, %v2898
      %2903 = vset.pattern.permute.xlu0 76
      %2904 = vperm.xlu0 %2903, %v2387
      %v2905 = vpop.permute.xlu0 %2904
      %2907 = vset.pattern.permute.xlu0 76
      %2908 = vperm.xlu0 %2907, %v2388
      %v2909 = vpop.permute.xlu0 %2908
      %2911 = vset.pattern.permute.xlu0 76
      %2912 = vperm.xlu0 %2911, %v2389
      %v2913 = vpop.permute.xlu0 %2912
      %2915 = vset.pattern.permute.xlu0 76
      %2916 = vperm.xlu0 %2915, %v2390
      %v2917 = vpop.permute.xlu0 %2916
      %v2919 = vsel %vm2875, %v2905, 0.0
      %v2920 = vsel %vm2876, %v2909, 0.0
      %v2921 = vsel %vm2877, %v2913, 0.0
      %v2922 = vsel %vm2878, %v2917, 0.0
      %v2923 = vadd.f32 %v2811, %v2919
      %v2924 = vadd.f32 %v2812, %v2920
      %v2925 = vadd.f32 %v2813, %v2921
      %v2926 = vadd.f32 %v2814, %v2922
      %2927 = vset.pattern.permute.xlu0 76
      %2928 = vperm.xlu0 %2927, %v2391
      %v2929 = vpop.permute.xlu0 %2928
      %2931 = vset.pattern.permute.xlu0 76
      %2932 = vperm.xlu0 %2931, %v2392
      %v2933 = vpop.permute.xlu0 %2932
      %2935 = vset.pattern.permute.xlu0 76
      %2936 = vperm.xlu0 %2935, %v2393
      %v2937 = vpop.permute.xlu0 %2936
      %2939 = vset.pattern.permute.xlu0 76
      %2940 = vperm.xlu0 %2939, %v2394
      %v2941 = vpop.permute.xlu0 %2940
      %v2943 = vsel %vm2875, %v2929, 0.0
      %v2944 = vsel %vm2876, %v2933, 0.0
      %v2945 = vsel %vm2877, %v2937, 0.0
      %v2946 = vsel %vm2878, %v2941, 0.0
      %v2947 = vadd.f32 %v2835, %v2943
      %v2948 = vadd.f32 %v2836, %v2944
      %v2949 = vadd.f32 %v2837, %v2945
      %v2950 = vadd.f32 %v2838, %v2946
      %2951 = vset.pattern.permute.xlu0 76
      %2952 = vperm.xlu0 %2951, %v2395
      %v2953 = vpop.permute.xlu0 %2952
      %2955 = vset.pattern.permute.xlu0 76
      %2956 = vperm.xlu0 %2955, %v2396
      %v2957 = vpop.permute.xlu0 %2956
      %2959 = vset.pattern.permute.xlu0 76
      %2960 = vperm.xlu0 %2959, %v2397
      %v2961 = vpop.permute.xlu0 %2960
      %2963 = vset.pattern.permute.xlu0 76
      %2964 = vperm.xlu0 %2963, %v2398
      %v2965 = vpop.permute.xlu0 %2964
      %v2967 = vsel %vm2875, %v2953, 0.0
      %v2968 = vsel %vm2876, %v2957, 0.0
      %v2969 = vsel %vm2877, %v2961, 0.0
      %v2970 = vsel %vm2878, %v2965, 0.0
      %v2971 = vadd.f32 %v2859, %v2967
      %v2972 = vadd.f32 %v2860, %v2968
      %v2973 = vadd.f32 %v2861, %v2969
      %v2974 = vadd.f32 %v2862, %v2970
      %2975 = vset.pattern.permute.xlu0 13
      %2976 = vperm.xlu0 %2975, %v785
      %v2977 = vpop.permute.xlu0 %2976
      %2978 = vset.pattern.permute.xlu0 13
      %2979 = vperm.xlu0 %2978, %v786
      %v2980 = vpop.permute.xlu0 %2979
      %2981 = vset.pattern.permute.xlu0 13
      %2982 = vperm.xlu0 %2981, %v787
      %v2983 = vpop.permute.xlu0 %2982
      %2984 = vset.pattern.permute.xlu0 13
      %2985 = vperm.xlu0 %2984, %v788
      %v2986 = vpop.permute.xlu0 %2985
      %vm2987 = vcmp.eq.s32.totalorder %v2977, %v1009
      %vm2988 = vcmp.eq.s32.totalorder %v2980, %v1009
      %vm2989 = vcmp.eq.s32.totalorder %v2983, %v1009
      %vm2990 = vcmp.eq.s32.totalorder %v2986, %v1009
      %2991 = vset.pattern.permute.xlu0 77
      %2992 = vperm.xlu0 %2991, %v2383
      %v2993 = vpop.permute.xlu0 %2992
      %2995 = vset.pattern.permute.xlu0 77
      %2996 = vperm.xlu0 %2995, %v2384
      %v2997 = vpop.permute.xlu0 %2996
      %2999 = vset.pattern.permute.xlu0 77
      %3000 = vperm.xlu0 %2999, %v2385
      %v3001 = vpop.permute.xlu0 %3000
      %3003 = vset.pattern.permute.xlu0 77
      %3004 = vperm.xlu0 %3003, %v2386
      %v3005 = vpop.permute.xlu0 %3004
      %v3007 = vsel %vm2987, %v2993, 0.0
      %v3008 = vsel %vm2988, %v2997, 0.0
      %v3009 = vsel %vm2989, %v3001, 0.0
      %v3010 = vsel %vm2990, %v3005, 0.0
      %v3011 = vadd.f32 %v2899, %v3007
      %v3012 = vadd.f32 %v2900, %v3008
      %v3013 = vadd.f32 %v2901, %v3009
      %v3014 = vadd.f32 %v2902, %v3010
      %3015 = vset.pattern.permute.xlu0 77
      %3016 = vperm.xlu0 %3015, %v2387
      %v3017 = vpop.permute.xlu0 %3016
      %3019 = vset.pattern.permute.xlu0 77
      %3020 = vperm.xlu0 %3019, %v2388
      %v3021 = vpop.permute.xlu0 %3020
      %3023 = vset.pattern.permute.xlu0 77
      %3024 = vperm.xlu0 %3023, %v2389
      %v3025 = vpop.permute.xlu0 %3024
      %3027 = vset.pattern.permute.xlu0 77
      %3028 = vperm.xlu0 %3027, %v2390
      %v3029 = vpop.permute.xlu0 %3028
      %v3031 = vsel %vm2987, %v3017, 0.0
      %v3032 = vsel %vm2988, %v3021, 0.0
      %v3033 = vsel %vm2989, %v3025, 0.0
      %v3034 = vsel %vm2990, %v3029, 0.0
      %v3035 = vadd.f32 %v2923, %v3031
      %v3036 = vadd.f32 %v2924, %v3032
      %v3037 = vadd.f32 %v2925, %v3033
      %v3038 = vadd.f32 %v2926, %v3034
      %3039 = vset.pattern.permute.xlu0 77
      %3040 = vperm.xlu0 %3039, %v2391
      %v3041 = vpop.permute.xlu0 %3040
      %3043 = vset.pattern.permute.xlu0 77
      %3044 = vperm.xlu0 %3043, %v2392
      %v3045 = vpop.permute.xlu0 %3044
      %3047 = vset.pattern.permute.xlu0 77
      %3048 = vperm.xlu0 %3047, %v2393
      %v3049 = vpop.permute.xlu0 %3048
      %3051 = vset.pattern.permute.xlu0 77
      %3052 = vperm.xlu0 %3051, %v2394
      %v3053 = vpop.permute.xlu0 %3052
      %v3055 = vsel %vm2987, %v3041, 0.0
      %v3056 = vsel %vm2988, %v3045, 0.0
      %v3057 = vsel %vm2989, %v3049, 0.0
      %v3058 = vsel %vm2990, %v3053, 0.0
      %v3059 = vadd.f32 %v2947, %v3055
      %v3060 = vadd.f32 %v2948, %v3056
      %v3061 = vadd.f32 %v2949, %v3057
      %v3062 = vadd.f32 %v2950, %v3058
      %3063 = vset.pattern.permute.xlu0 77
      %3064 = vperm.xlu0 %3063, %v2395
      %v3065 = vpop.permute.xlu0 %3064
      %3067 = vset.pattern.permute.xlu0 77
      %3068 = vperm.xlu0 %3067, %v2396
      %v3069 = vpop.permute.xlu0 %3068
      %3071 = vset.pattern.permute.xlu0 77
      %3072 = vperm.xlu0 %3071, %v2397
      %v3073 = vpop.permute.xlu0 %3072
      %3075 = vset.pattern.permute.xlu0 77
      %3076 = vperm.xlu0 %3075, %v2398
      %v3077 = vpop.permute.xlu0 %3076
      %v3079 = vsel %vm2987, %v3065, 0.0
      %v3080 = vsel %vm2988, %v3069, 0.0
      %v3081 = vsel %vm2989, %v3073, 0.0
      %v3082 = vsel %vm2990, %v3077, 0.0
      %v3083 = vadd.f32 %v2971, %v3079
      %v3084 = vadd.f32 %v2972, %v3080
      %v3085 = vadd.f32 %v2973, %v3081
      %v3086 = vadd.f32 %v2974, %v3082
      %3087 = vset.pattern.permute.xlu0 14
      %3088 = vperm.xlu0 %3087, %v785
      %v3089 = vpop.permute.xlu0 %3088
      %3090 = vset.pattern.permute.xlu0 14
      %3091 = vperm.xlu0 %3090, %v786
      %v3092 = vpop.permute.xlu0 %3091
      %3093 = vset.pattern.permute.xlu0 14
      %3094 = vperm.xlu0 %3093, %v787
      %v3095 = vpop.permute.xlu0 %3094
      %3096 = vset.pattern.permute.xlu0 14
      %3097 = vperm.xlu0 %3096, %v788
      %v3098 = vpop.permute.xlu0 %3097
      %vm3099 = vcmp.eq.s32.totalorder %v3089, %v1009
      %vm3100 = vcmp.eq.s32.totalorder %v3092, %v1009
      %vm3101 = vcmp.eq.s32.totalorder %v3095, %v1009
      %vm3102 = vcmp.eq.s32.totalorder %v3098, %v1009
      %3103 = vset.pattern.permute.xlu0 78
      %3104 = vperm.xlu0 %3103, %v2383
      %v3105 = vpop.permute.xlu0 %3104
      %3107 = vset.pattern.permute.xlu0 78
      %3108 = vperm.xlu0 %3107, %v2384
      %v3109 = vpop.permute.xlu0 %3108
      %3111 = vset.pattern.permute.xlu0 78
      %3112 = vperm.xlu0 %3111, %v2385
      %v3113 = vpop.permute.xlu0 %3112
      %3115 = vset.pattern.permute.xlu0 78
      %3116 = vperm.xlu0 %3115, %v2386
      %v3117 = vpop.permute.xlu0 %3116
      %v3119 = vsel %vm3099, %v3105, 0.0
      %v3120 = vsel %vm3100, %v3109, 0.0
      %v3121 = vsel %vm3101, %v3113, 0.0
      %v3122 = vsel %vm3102, %v3117, 0.0
      %v3123 = vadd.f32 %v3011, %v3119
      %v3124 = vadd.f32 %v3012, %v3120
      %v3125 = vadd.f32 %v3013, %v3121
      %v3126 = vadd.f32 %v3014, %v3122
      %3127 = vset.pattern.permute.xlu0 78
      %3128 = vperm.xlu0 %3127, %v2387
      %v3129 = vpop.permute.xlu0 %3128
      %3131 = vset.pattern.permute.xlu0 78
      %3132 = vperm.xlu0 %3131, %v2388
      %v3133 = vpop.permute.xlu0 %3132
      %3135 = vset.pattern.permute.xlu0 78
      %3136 = vperm.xlu0 %3135, %v2389
      %v3137 = vpop.permute.xlu0 %3136
      %3139 = vset.pattern.permute.xlu0 78
      %3140 = vperm.xlu0 %3139, %v2390
      %v3141 = vpop.permute.xlu0 %3140
      %v3143 = vsel %vm3099, %v3129, 0.0
      %v3144 = vsel %vm3100, %v3133, 0.0
      %v3145 = vsel %vm3101, %v3137, 0.0
      %v3146 = vsel %vm3102, %v3141, 0.0
      %v3147 = vadd.f32 %v3035, %v3143
      %v3148 = vadd.f32 %v3036, %v3144
      %v3149 = vadd.f32 %v3037, %v3145
      %v3150 = vadd.f32 %v3038, %v3146
      %3151 = vset.pattern.permute.xlu0 78
      %3152 = vperm.xlu0 %3151, %v2391
      %v3153 = vpop.permute.xlu0 %3152
      %3155 = vset.pattern.permute.xlu0 78
      %3156 = vperm.xlu0 %3155, %v2392
      %v3157 = vpop.permute.xlu0 %3156
      %3159 = vset.pattern.permute.xlu0 78
      %3160 = vperm.xlu0 %3159, %v2393
      %v3161 = vpop.permute.xlu0 %3160
      %3163 = vset.pattern.permute.xlu0 78
      %3164 = vperm.xlu0 %3163, %v2394
      %v3165 = vpop.permute.xlu0 %3164
      %v3167 = vsel %vm3099, %v3153, 0.0
      %v3168 = vsel %vm3100, %v3157, 0.0
      %v3169 = vsel %vm3101, %v3161, 0.0
      %v3170 = vsel %vm3102, %v3165, 0.0
      %v3171 = vadd.f32 %v3059, %v3167
      %v3172 = vadd.f32 %v3060, %v3168
      %v3173 = vadd.f32 %v3061, %v3169
      %v3174 = vadd.f32 %v3062, %v3170
      %3175 = vset.pattern.permute.xlu0 78
      %3176 = vperm.xlu0 %3175, %v2395
      %v3177 = vpop.permute.xlu0 %3176
      %3179 = vset.pattern.permute.xlu0 78
      %3180 = vperm.xlu0 %3179, %v2396
      %v3181 = vpop.permute.xlu0 %3180
      %3183 = vset.pattern.permute.xlu0 78
      %3184 = vperm.xlu0 %3183, %v2397
      %v3185 = vpop.permute.xlu0 %3184
      %3187 = vset.pattern.permute.xlu0 78
      %3188 = vperm.xlu0 %3187, %v2398
      %v3189 = vpop.permute.xlu0 %3188
      %v3191 = vsel %vm3099, %v3177, 0.0
      %v3192 = vsel %vm3100, %v3181, 0.0
      %v3193 = vsel %vm3101, %v3185, 0.0
      %v3194 = vsel %vm3102, %v3189, 0.0
      %v3195 = vadd.f32 %v3083, %v3191
      %v3196 = vadd.f32 %v3084, %v3192
      %v3197 = vadd.f32 %v3085, %v3193
      %v3198 = vadd.f32 %v3086, %v3194
      %3199 = vset.pattern.permute.xlu0 15
      %3200 = vperm.xlu0 %3199, %v785
      %v3201 = vpop.permute.xlu0 %3200
      %3202 = vset.pattern.permute.xlu0 15
      %3203 = vperm.xlu0 %3202, %v786
      %v3204 = vpop.permute.xlu0 %3203
      %3205 = vset.pattern.permute.xlu0 15
      %3206 = vperm.xlu0 %3205, %v787
      %v3207 = vpop.permute.xlu0 %3206
      %3208 = vset.pattern.permute.xlu0 15
      %3209 = vperm.xlu0 %3208, %v788
      %v3210 = vpop.permute.xlu0 %3209
      %vm3211 = vcmp.eq.s32.totalorder %v3201, %v1009
      %vm3212 = vcmp.eq.s32.totalorder %v3204, %v1009
      %vm3213 = vcmp.eq.s32.totalorder %v3207, %v1009
      %vm3214 = vcmp.eq.s32.totalorder %v3210, %v1009
      %3215 = vset.pattern.permute.xlu0 79
      %3216 = vperm.xlu0 %3215, %v2383
      %v3217 = vpop.permute.xlu0 %3216
      %3219 = vset.pattern.permute.xlu0 79
      %3220 = vperm.xlu0 %3219, %v2384
      %v3221 = vpop.permute.xlu0 %3220
      %3223 = vset.pattern.permute.xlu0 79
      %3224 = vperm.xlu0 %3223, %v2385
      %v3225 = vpop.permute.xlu0 %3224
      %3227 = vset.pattern.permute.xlu0 79
      %3228 = vperm.xlu0 %3227, %v2386
      %v3229 = vpop.permute.xlu0 %3228
      %v3231 = vsel %vm3211, %v3217, 0.0
      %v3232 = vsel %vm3212, %v3221, 0.0
      %v3233 = vsel %vm3213, %v3225, 0.0
      %v3234 = vsel %vm3214, %v3229, 0.0
      %v3235 = vadd.f32 %v3123, %v3231
      %v3236 = vadd.f32 %v3124, %v3232
      %v3237 = vadd.f32 %v3125, %v3233
      %v3238 = vadd.f32 %v3126, %v3234
      %3239 = vset.pattern.permute.xlu0 79
      %3240 = vperm.xlu0 %3239, %v2387
      %v3241 = vpop.permute.xlu0 %3240
      %3243 = vset.pattern.permute.xlu0 79
      %3244 = vperm.xlu0 %3243, %v2388
      %v3245 = vpop.permute.xlu0 %3244
      %3247 = vset.pattern.permute.xlu0 79
      %3248 = vperm.xlu0 %3247, %v2389
      %v3249 = vpop.permute.xlu0 %3248
      %3251 = vset.pattern.permute.xlu0 79
      %3252 = vperm.xlu0 %3251, %v2390
      %v3253 = vpop.permute.xlu0 %3252
      %v3255 = vsel %vm3211, %v3241, 0.0
      %v3256 = vsel %vm3212, %v3245, 0.0
      %v3257 = vsel %vm3213, %v3249, 0.0
      %v3258 = vsel %vm3214, %v3253, 0.0
      %v3259 = vadd.f32 %v3147, %v3255
      %v3260 = vadd.f32 %v3148, %v3256
      %v3261 = vadd.f32 %v3149, %v3257
      %v3262 = vadd.f32 %v3150, %v3258
      %3263 = vset.pattern.permute.xlu0 79
      %3264 = vperm.xlu0 %3263, %v2391
      %v3265 = vpop.permute.xlu0 %3264
      %3267 = vset.pattern.permute.xlu0 79
      %3268 = vperm.xlu0 %3267, %v2392
      %v3269 = vpop.permute.xlu0 %3268
      %3271 = vset.pattern.permute.xlu0 79
      %3272 = vperm.xlu0 %3271, %v2393
      %v3273 = vpop.permute.xlu0 %3272
      %3275 = vset.pattern.permute.xlu0 79
      %3276 = vperm.xlu0 %3275, %v2394
      %v3277 = vpop.permute.xlu0 %3276
      %v3279 = vsel %vm3211, %v3265, 0.0
      %v3280 = vsel %vm3212, %v3269, 0.0
      %v3281 = vsel %vm3213, %v3273, 0.0
      %v3282 = vsel %vm3214, %v3277, 0.0
      %v3283 = vadd.f32 %v3171, %v3279
      %v3284 = vadd.f32 %v3172, %v3280
      %v3285 = vadd.f32 %v3173, %v3281
      %v3286 = vadd.f32 %v3174, %v3282
      %3287 = vset.pattern.permute.xlu0 79
      %3288 = vperm.xlu0 %3287, %v2395
      %v3289 = vpop.permute.xlu0 %3288
      %3291 = vset.pattern.permute.xlu0 79
      %3292 = vperm.xlu0 %3291, %v2396
      %v3293 = vpop.permute.xlu0 %3292
      %3295 = vset.pattern.permute.xlu0 79
      %3296 = vperm.xlu0 %3295, %v2397
      %v3297 = vpop.permute.xlu0 %3296
      %3299 = vset.pattern.permute.xlu0 79
      %3300 = vperm.xlu0 %3299, %v2398
      %v3301 = vpop.permute.xlu0 %3300
      %v3303 = vsel %vm3211, %v3289, 0.0
      %v3304 = vsel %vm3212, %v3293, 0.0
      %v3305 = vsel %vm3213, %v3297, 0.0
      %v3306 = vsel %vm3214, %v3301, 0.0
      %v3307 = vadd.f32 %v3195, %v3303
      %v3308 = vadd.f32 %v3196, %v3304
      %v3309 = vadd.f32 %v3197, %v3305
      %v3310 = vadd.f32 %v3198, %v3306
      %v3311 = vpack.c.bf16 %v3236, %v3235
      %v3312 = vpack.c.bf16 %v3238, %v3237
      %v3313 = vpack.c.bf16 %v3260, %v3259
      %v3314 = vpack.c.bf16 %v3262, %v3261
      %3323 = vrot.lane.b32.xlu0 %v984, 120
      %v3324 = vpop.permute.xlu0 %3323
      %3325 = vrot.lane.b32.xlu0 %v985, 120
      %v3326 = vpop.permute.xlu0 %3325
      %3327 = vrot.lane.b32.xlu0 %v986, 120
      %v3328 = vpop.permute.xlu0 %3327
      %3329 = vrot.lane.b32.xlu0 %v987, 120
      %v3330 = vpop.permute.xlu0 %3329
      %3331 = vrot.lane.b32.xlu0 %v988, 120
      %v3332 = vpop.permute.xlu0 %3331
      %3333 = vrot.lane.b32.xlu0 %v989, 120
      %v3334 = vpop.permute.xlu0 %3333
      %3335 = vrot.lane.b32.xlu0 %v990, 120
      %v3336 = vpop.permute.xlu0 %3335
      %3337 = vrot.lane.b32.xlu0 %v991, 120
      %v3338 = vpop.permute.xlu0 %3337
      %3347 = vmatprep.subr.bf16.mxu0 0
      %3348 = vmatpush1.bf16.msra.mxu0 %v3324
      %3349 = vmatprep.subr.bf16.mxu0 0
      %3350 = vmatpush1.bf16.msra.mxu0 %v3326
      %3351 = vmatprep.subr.bf16.mxu0 0
      %3352 = vmatpush1.bf16.msra.mxu0 %v3328
      %3353 = vmatprep.subr.bf16.mxu0 0
      %3354 = vmatpush1.bf16.msra.mxu0 %v3330
      %3355 = vmatprep.subr.bf16.mxu0 0
      %3356 = vmatpush1.bf16.msra.mxu0 %v3332
      %3357 = vmatprep.subr.bf16.mxu0 0
      %3358 = vmatpush1.bf16.msra.mxu0 %v3334
      %3359 = vmatprep.subr.bf16.mxu0 0
      %3360 = vmatpush1.bf16.msra.mxu0 %v3336
      %3361 = vmatprep.subr.bf16.mxu0 0
      %3362 = vmatpush1.bf16.msra.mxu0 %v3338
      %3363 = vmatprep.subr.bf16.mxu0 0
      %3364 = vmatpush1.bf16.msra.mxu0 0
      %3365 = vmatprep.subr.bf16.mxu0 0
      %3366 = vmatpush1.bf16.msra.mxu0 0
      %3367 = vmatprep.subr.bf16.mxu0 0
      %3368 = vmatpush1.bf16.msra.mxu0 0
      %3369 = vmatprep.subr.bf16.mxu0 0
      %3370 = vmatpush1.bf16.msra.mxu0 0
      %3371 = vmatprep.subr.bf16.mxu0 0
      %3372 = vmatpush1.bf16.msra.mxu0 0
      %3373 = vmatprep.subr.bf16.mxu0 0
      %3374 = vmatpush1.bf16.msra.mxu0 0
      %3375 = vmatprep.subr.bf16.mxu0 0
      %3376 = vmatpush1.bf16.msra.mxu0 0
      %3377 = vmatprep.subr.bf16.mxu0 0
      %3378 = vmatpush1.bf16.msra.mxu0 0
      %3379 = vmatprep.mubr.bf16.mxu0 0
      %3380 = vmatmul.mubr.bf16.gmra.mrb[0].mxu0 %v3313
      %v3381 = vpop.f32.mrb[0].mxu0
      %v3382 = vadd.f32 0.0, %v3381
      %v3383 = vpop.f32.mrb[0].mxu0
      %v3384 = vpop.f32.mrb[0].mxu0
      %v3385 = vadd.f32 0.0, %v3384
      %v3386 = vpop.f32.mrb[0].mxu0
      %3387 = vmatprep.mubr.bf16.mxu0 0
      %3388 = vmatmul.mubr.bf16.gmra.mrb[0].mxu0 %v3314
      %v3389 = vpop.f32.mrb[0].mxu0
      %v3390 = vadd.f32 0.0, %v3389
      %v3391 = vpop.f32.mrb[0].mxu0
      %v3392 = vpop.f32.mrb[0].mxu0
      %v3393 = vadd.f32 0.0, %v3392
      %v3394 = vpop.f32.mrb[0].mxu0
      %3395 = vdwg.mxu0
      %3396 = vrot.lane.b32.xlu0 %v2145, 120
      %v3397 = vpop.permute.xlu0 %3396
      %3398 = vrot.lane.b32.xlu0 %v2146, 120
      %v3399 = vpop.permute.xlu0 %3398
      %3400 = vrot.lane.b32.xlu0 %v2147, 120
      %v3401 = vpop.permute.xlu0 %3400
      %3402 = vrot.lane.b32.xlu0 %v2148, 120
      %v3403 = vpop.permute.xlu0 %3402
      %3404 = vrot.lane.b32.xlu0 %v2149, 120
      %v3405 = vpop.permute.xlu0 %3404
      %3406 = vrot.lane.b32.xlu0 %v2150, 120
      %v3407 = vpop.permute.xlu0 %3406
      %3408 = vrot.lane.b32.xlu0 %v2151, 120
      %v3409 = vpop.permute.xlu0 %3408
      %3410 = vrot.lane.b32.xlu0 %v2152, 120
      %v3411 = vpop.permute.xlu0 %3410
      %3420 = vmatprep.subr.bf16.mxu0 0
      %3421 = vmatpush1.bf16.msra.mxu0 %v3397
      %3422 = vmatprep.subr.bf16.mxu0 0
      %3423 = vmatpush1.bf16.msra.mxu0 %v3399
      %3424 = vmatprep.subr.bf16.mxu0 0
      %3425 = vmatpush1.bf16.msra.mxu0 %v3401
      %3426 = vmatprep.subr.bf16.mxu0 0
      %3427 = vmatpush1.bf16.msra.mxu0 %v3403
      %3428 = vmatprep.subr.bf16.mxu0 0
      %3429 = vmatpush1.bf16.msra.mxu0 %v3405
      %3430 = vmatprep.subr.bf16.mxu0 0
      %3431 = vmatpush1.bf16.msra.mxu0 %v3407
      %3432 = vmatprep.subr.bf16.mxu0 0
      %3433 = vmatpush1.bf16.msra.mxu0 %v3409
      %3434 = vmatprep.subr.bf16.mxu0 0
      %3435 = vmatpush1.bf16.msra.mxu0 %v3411
      %3436 = vmatprep.subr.bf16.mxu0 0
      %3437 = vmatpush1.bf16.msra.mxu0 0
      %3438 = vmatprep.subr.bf16.mxu0 0
      %3439 = vmatpush1.bf16.msra.mxu0 0
      %3440 = vmatprep.subr.bf16.mxu0 0
      %3441 = vmatpush1.bf16.msra.mxu0 0
      %3442 = vmatprep.subr.bf16.mxu0 0
      %3443 = vmatpush1.bf16.msra.mxu0 0
      %3444 = vmatprep.subr.bf16.mxu0 0
      %3445 = vmatpush1.bf16.msra.mxu0 0
      %3446 = vmatprep.subr.bf16.mxu0 0
      %3447 = vmatpush1.bf16.msra.mxu0 0
      %3448 = vmatprep.subr.bf16.mxu0 0
      %3449 = vmatpush1.bf16.msra.mxu0 0
      %3450 = vmatprep.subr.bf16.mxu0 0
      %3451 = vmatpush1.bf16.msra.mxu0 0
      %3452 = vmatprep.mubr.bf16.mxu0 0
      %3453 = vmatmul.mubr.bf16.gmra.mrb[0].mxu0 %v3311
      %v3454 = vpop.f32.mrb[0].mxu0
      %v3455 = vadd.f32 %v3382, %v3454
      %v3456 = vpop.f32.mrb[0].mxu0
      %v3457 = vpop.f32.mrb[0].mxu0
      %v3458 = vadd.f32 %v3385, %v3457
      %v3459 = vpop.f32.mrb[0].mxu0
      %3460 = vmatprep.mubr.bf16.mxu0 0
      %3461 = vmatmul.mubr.bf16.gmra.mrb[0].mxu0 %v3312
      %v3462 = vpop.f32.mrb[0].mxu0
      %v3463 = vadd.f32 %v3390, %v3462
      %v3464 = vpop.f32.mrb[0].mxu0
      %v3465 = vpop.f32.mrb[0].mxu0
      %v3466 = vadd.f32 %v3393, %v3465
      %v3467 = vpop.f32.mrb[0].mxu0
      %3468 = vdwg.mxu0
      %v3469 = vpack.c.bf16 %v3284, %v3283
      %v3470 = vpack.c.bf16 %v3286, %v3285
      %3479 = vrot.lane.b32.xlu0 %v992, 120
      %v3480 = vpop.permute.xlu0 %3479
      %3481 = vrot.lane.b32.xlu0 %v993, 120
      %v3482 = vpop.permute.xlu0 %3481
      %3483 = vrot.lane.b32.xlu0 %v994, 120
      %v3484 = vpop.permute.xlu0 %3483
      %3485 = vrot.lane.b32.xlu0 %v995, 120
      %v3486 = vpop.permute.xlu0 %3485
      %3487 = vrot.lane.b32.xlu0 %v996, 120
      %v3488 = vpop.permute.xlu0 %3487
      %3489 = vrot.lane.b32.xlu0 %v997, 120
      %v3490 = vpop.permute.xlu0 %3489
      %3491 = vrot.lane.b32.xlu0 %v998, 120
      %v3492 = vpop.permute.xlu0 %3491
      %3493 = vrot.lane.b32.xlu0 %v999, 120
      %v3494 = vpop.permute.xlu0 %3493
      %3503 = vmatprep.subr.bf16.mxu0 0
      %3504 = vmatpush1.bf16.msra.mxu0 %v3480
      %3505 = vmatprep.subr.bf16.mxu0 0
      %3506 = vmatpush1.bf16.msra.mxu0 %v3482
      %3507 = vmatprep.subr.bf16.mxu0 0
      %3508 = vmatpush1.bf16.msra.mxu0 %v3484
      %3509 = vmatprep.subr.bf16.mxu0 0
      %3510 = vmatpush1.bf16.msra.mxu0 %v3486
      %3511 = vmatprep.subr.bf16.mxu0 0
      %3512 = vmatpush1.bf16.msra.mxu0 %v3488
      %3513 = vmatprep.subr.bf16.mxu0 0
      %3514 = vmatpush1.bf16.msra.mxu0 %v3490
      %3515 = vmatprep.subr.bf16.mxu0 0
      %3516 = vmatpush1.bf16.msra.mxu0 %v3492
      %3517 = vmatprep.subr.bf16.mxu0 0
      %3518 = vmatpush1.bf16.msra.mxu0 %v3494
      %3519 = vmatprep.subr.bf16.mxu0 0
      %3520 = vmatpush1.bf16.msra.mxu0 0
      %3521 = vmatprep.subr.bf16.mxu0 0
      %3522 = vmatpush1.bf16.msra.mxu0 0
      %3523 = vmatprep.subr.bf16.mxu0 0
      %3524 = vmatpush1.bf16.msra.mxu0 0
      %3525 = vmatprep.subr.bf16.mxu0 0
      %3526 = vmatpush1.bf16.msra.mxu0 0
      %3527 = vmatprep.subr.bf16.mxu0 0
      %3528 = vmatpush1.bf16.msra.mxu0 0
      %3529 = vmatprep.subr.bf16.mxu0 0
      %3530 = vmatpush1.bf16.msra.mxu0 0
      %3531 = vmatprep.subr.bf16.mxu0 0
      %3532 = vmatpush1.bf16.msra.mxu0 0
      %3533 = vmatprep.subr.bf16.mxu0 0
      %3534 = vmatpush1.bf16.msra.mxu0 0
      %3535 = vmatprep.mubr.bf16.mxu0 0
      %3536 = vmatmul.mubr.bf16.gmra.mrb[0].mxu0 %v3469
      %v3537 = vpop.f32.mrb[0].mxu0
      %v3538 = vadd.f32 0.0, %v3537
      %v3539 = vpop.f32.mrb[0].mxu0
      %v3540 = vpop.f32.mrb[0].mxu0
      %v3541 = vadd.f32 0.0, %v3540
      %v3542 = vpop.f32.mrb[0].mxu0
      %3543 = vmatprep.mubr.bf16.mxu0 0
      %3544 = vmatmul.mubr.bf16.gmra.mrb[0].mxu0 %v3470
      %v3545 = vpop.f32.mrb[0].mxu0
      %v3546 = vadd.f32 0.0, %v3545
      %v3547 = vpop.f32.mrb[0].mxu0
      %v3548 = vpop.f32.mrb[0].mxu0
      %v3549 = vadd.f32 0.0, %v3548
      %v3550 = vpop.f32.mrb[0].mxu0
      %3551 = vdwg.mxu0
      %v3552 = vadd.f32 %v3455, %v3538
      %v3553 = vadd.f32 %v3458, %v3541
      %v3554 = vadd.f32 %v3463, %v3546
      %v3555 = vadd.f32 %v3466, %v3549
      %v3556 = vpack.c.bf16 %v3308, %v3307
      %v3557 = vpack.c.bf16 %v3310, %v3309
      %3566 = vrot.lane.b32.xlu0 %v1000, 120
      %v3567 = vpop.permute.xlu0 %3566
      %3568 = vrot.lane.b32.xlu0 %v1001, 120
      %v3569 = vpop.permute.xlu0 %3568
      %3570 = vrot.lane.b32.xlu0 %v1002, 120
      %v3571 = vpop.permute.xlu0 %3570
      %3572 = vrot.lane.b32.xlu0 %v1003, 120
      %v3573 = vpop.permute.xlu0 %3572
      %3574 = vrot.lane.b32.xlu0 %v1004, 120
      %v3575 = vpop.permute.xlu0 %3574
      %3576 = vrot.lane.b32.xlu0 %v1005, 120
      %v3577 = vpop.permute.xlu0 %3576
      %3578 = vrot.lane.b32.xlu0 %v1006, 120
      %v3579 = vpop.permute.xlu0 %3578
      %3580 = vrot.lane.b32.xlu0 %v1007, 120
      %v3581 = vpop.permute.xlu0 %3580
      %3590 = vmatprep.subr.bf16.mxu0 0
      %3591 = vmatpush1.bf16.msra.mxu0 %v3567
      %3592 = vmatprep.subr.bf16.mxu0 0
      %3593 = vmatpush1.bf16.msra.mxu0 %v3569
      %3594 = vmatprep.subr.bf16.mxu0 0
      %3595 = vmatpush1.bf16.msra.mxu0 %v3571
      %3596 = vmatprep.subr.bf16.mxu0 0
      %3597 = vmatpush1.bf16.msra.mxu0 %v3573
      %3598 = vmatprep.subr.bf16.mxu0 0
      %3599 = vmatpush1.bf16.msra.mxu0 %v3575
      %3600 = vmatprep.subr.bf16.mxu0 0
      %3601 = vmatpush1.bf16.msra.mxu0 %v3577
      %3602 = vmatprep.subr.bf16.mxu0 0
      %3603 = vmatpush1.bf16.msra.mxu0 %v3579
      %3604 = vmatprep.subr.bf16.mxu0 0
      %3605 = vmatpush1.bf16.msra.mxu0 %v3581
      %3606 = vmatprep.subr.bf16.mxu0 0
      %3607 = vmatpush1.bf16.msra.mxu0 0
      %3608 = vmatprep.subr.bf16.mxu0 0
      %3609 = vmatpush1.bf16.msra.mxu0 0
      %3610 = vmatprep.subr.bf16.mxu0 0
      %3611 = vmatpush1.bf16.msra.mxu0 0
      %3612 = vmatprep.subr.bf16.mxu0 0
      %3613 = vmatpush1.bf16.msra.mxu0 0
      %3614 = vmatprep.subr.bf16.mxu0 0
      %3615 = vmatpush1.bf16.msra.mxu0 0
      %3616 = vmatprep.subr.bf16.mxu0 0
      %3617 = vmatpush1.bf16.msra.mxu0 0
      %3618 = vmatprep.subr.bf16.mxu0 0
      %3619 = vmatpush1.bf16.msra.mxu0 0
      %3620 = vmatprep.subr.bf16.mxu0 0
      %3621 = vmatpush1.bf16.msra.mxu0 0
      %3622 = vmatprep.mubr.bf16.mxu0 0
      %3623 = vmatmul.mubr.bf16.gmra.mrb[0].mxu0 %v3556
      %v3624 = vpop.f32.mrb[0].mxu0
      %v3625 = vadd.f32 0.0, %v3624
      %v3626 = vpop.f32.mrb[0].mxu0
      %v3627 = vpop.f32.mrb[0].mxu0
      %v3628 = vadd.f32 0.0, %v3627
      %v3629 = vpop.f32.mrb[0].mxu0
      %3630 = vmatprep.mubr.bf16.mxu0 0
      %3631 = vmatmul.mubr.bf16.gmra.mrb[0].mxu0 %v3557
      %v3632 = vpop.f32.mrb[0].mxu0
      %v3633 = vadd.f32 0.0, %v3632
      %v3634 = vpop.f32.mrb[0].mxu0
      %v3635 = vpop.f32.mrb[0].mxu0
      %v3636 = vadd.f32 0.0, %v3635
      %v3637 = vpop.f32.mrb[0].mxu0
      %3638 = vdwg.mxu0
      %v3639 = vadd.f32 %v3552, %v3625
      %v3640 = vadd.f32 %v3553, %v3628
      %v3641 = vadd.f32 %v3554, %v3633
      %v3642 = vadd.f32 %v3555, %v3636
      %v3643 = vrcp.pop %v2373
      %v3644 = vrcp.pop %v2376
      %v3645 = vrcp.pop %v2379
      %v3646 = vrcp.pop %v2382
      %v3647 = vmul.f32 %v3639, %v3643
      %v3648 = vmul.f32 %v3640, %v3644
      %v3649 = vmul.f32 %v3641, %v3645
      %v3650 = vmul.f32 %v3642, %v3646
      %v3651 = vpack.c.bf16 %v3648, %v3647
      %v3652 = vpack.c.bf16 %v3650, %v3649
      %v3654 = vsel %vm1055, %v3651, 0
      %v3657 = vsel %vm1055, %v3652, 0
      %vm3659 = vcmask 1043456
      %v3661 = vsel %vm3659, %v1011, 0
      %3663 = vmatprep.subr.bf16.mxu0 0
      %3664 = vmatpush1.bf16.msra.mxu0 %v3661
      %3665 = vmatprep.subr.bf16.mxu0 0
      %3666 = vmatpush1.bf16.msra.mxu0 0
      %3667 = vmatprep.subr.bf16.mxu0 0
      %3668 = vmatpush1.bf16.msra.mxu0 0
      %3669 = vmatprep.subr.bf16.mxu0 0
      %3670 = vmatpush1.bf16.msra.mxu0 0
      %3671 = vmatprep.subr.bf16.mxu0 0
      %3672 = vmatpush1.bf16.msra.mxu0 0
      %3673 = vmatprep.subr.bf16.mxu0 0
      %3674 = vmatpush1.bf16.msra.mxu0 0
      %3675 = vmatprep.subr.bf16.mxu0 0
      %3676 = vmatpush1.bf16.msra.mxu0 0
      %3677 = vmatprep.subr.bf16.mxu0 0
      %3678 = vmatpush1.bf16.msra.mxu0 0
      %3679 = vmatprep.subr.bf16.mxu0 0
      %3680 = vmatpush1.bf16.msra.mxu0 0
      %3681 = vmatprep.subr.bf16.mxu0 0
      %3682 = vmatpush1.bf16.msra.mxu0 0
      %3683 = vmatprep.subr.bf16.mxu0 0
      %3684 = vmatpush1.bf16.msra.mxu0 0
      %3685 = vmatprep.subr.bf16.mxu0 0
      %3686 = vmatpush1.bf16.msra.mxu0 0
      %3687 = vmatprep.subr.bf16.mxu0 0
      %3688 = vmatpush1.bf16.msra.mxu0 0
      %3689 = vmatprep.subr.bf16.mxu0 0
      %3690 = vmatpush1.bf16.msra.mxu0 0
      %3691 = vmatprep.subr.bf16.mxu0 0
      %3692 = vmatpush1.bf16.msra.mxu0 0
      %3693 = vmatprep.subr.bf16.mxu0 0
      %3694 = vmatpush1.bf16.msra.mxu0 0
      %3695 = vmatprep.mubr.bf16.mxu0 0
      %3696 = vmatmul.mubr.bf16.gmra.mrb[0].mxu0 %v3654
      %v3697 = vpop.f32.mrb[0].mxu0
      %v3698 = vadd.f32 0.0, %v3697
      %v3699 = vpop.f32.mrb[0].mxu0
      %v3700 = vpop.f32.mrb[0].mxu0
      %v3701 = vadd.f32 0.0, %v3700
      %v3702 = vpop.f32.mrb[0].mxu0
      %3703 = vmatprep.mubr.bf16.mxu0 0
      %3704 = vmatmul.mubr.bf16.gmra.mrb[0].mxu0 %v3657
      %v3705 = vpop.f32.mrb[0].mxu0
      %v3706 = vadd.f32 0.0, %v3705
      %v3707 = vpop.f32.mrb[0].mxu0
      %v3708 = vpop.f32.mrb[0].mxu0
      %v3709 = vadd.f32 0.0, %v3708
      %v3710 = vpop.f32.mrb[0].mxu0
      %3711 = vdwg.mxu0
      %v3713 = vsel %vm1055, %v2328, 0
      %v3716 = vsel %vm1055, %v2329, 0
      %v3719 = vsel %vm3659, %v1010, 0
      %3721 = vmatprep.subr.bf16.mxu0 0
      %3722 = vmatpush1.bf16.msra.mxu0 %v3719
      %3723 = vmatprep.subr.bf16.mxu0 0
      %3724 = vmatpush1.bf16.msra.mxu0 0
      %3725 = vmatprep.subr.bf16.mxu0 0
      %3726 = vmatpush1.bf16.msra.mxu0 0
      %3727 = vmatprep.subr.bf16.mxu0 0
      %3728 = vmatpush1.bf16.msra.mxu0 0
      %3729 = vmatprep.subr.bf16.mxu0 0
      %3730 = vmatpush1.bf16.msra.mxu0 0
      %3731 = vmatprep.subr.bf16.mxu0 0
      %3732 = vmatpush1.bf16.msra.mxu0 0
      %3733 = vmatprep.subr.bf16.mxu0 0
      %3734 = vmatpush1.bf16.msra.mxu0 0
      %3735 = vmatprep.subr.bf16.mxu0 0
      %3736 = vmatpush1.bf16.msra.mxu0 0
      %3737 = vmatprep.subr.bf16.mxu0 0
      %3738 = vmatpush1.bf16.msra.mxu0 0
      %3739 = vmatprep.subr.bf16.mxu0 0
      %3740 = vmatpush1.bf16.msra.mxu0 0
      %3741 = vmatprep.subr.bf16.mxu0 0
      %3742 = vmatpush1.bf16.msra.mxu0 0
      %3743 = vmatprep.subr.bf16.mxu0 0
      %3744 = vmatpush1.bf16.msra.mxu0 0
      %3745 = vmatprep.subr.bf16.mxu0 0
      %3746 = vmatpush1.bf16.msra.mxu0 0
      %3747 = vmatprep.subr.bf16.mxu0 0
      %3748 = vmatpush1.bf16.msra.mxu0 0
      %3749 = vmatprep.subr.bf16.mxu0 0
      %3750 = vmatpush1.bf16.msra.mxu0 0
      %3751 = vmatprep.subr.bf16.mxu0 0
      %3752 = vmatpush1.bf16.msra.mxu0 0
      %3753 = vmatprep.mubr.bf16.mxu0 0
      %3754 = vmatmul.mubr.bf16.gmra.mrb[0].mxu0 %v3713
      %v3755 = vpop.f32.mrb[0].mxu0
      %v3756 = vadd.f32 %v3698, %v3755
      %v3757 = vpop.f32.mrb[0].mxu0
      %v3758 = vpop.f32.mrb[0].mxu0
      %v3759 = vadd.f32 %v3701, %v3758
      %v3760 = vpop.f32.mrb[0].mxu0
      %3761 = vmatprep.mubr.bf16.mxu0 0
      %3762 = vmatmul.mubr.bf16.gmra.mrb[0].mxu0 %v3716
      %v3763 = vpop.f32.mrb[0].mxu0
      %v3764 = vadd.f32 %v3706, %v3763
      %v3765 = vpop.f32.mrb[0].mxu0
      %v3766 = vpop.f32.mrb[0].mxu0
      %v3767 = vadd.f32 %v3709, %v3766
      %v3768 = vpop.f32.mrb[0].mxu0
      %3769 = vdwg.mxu0
      %vm3770 = vcmask 720512
      %v3771 = vsel %vm3770, %v711, -inf
      %3772 = vmax.xlane.f32.xlu0 %v3771
      %v3773 = vpop.xlane.xlu0 %3772
      %v3774 = vsel %vm3770, %v714, -inf
      %3775 = vmax.xlane.f32.xlu0 %v3774
      %v3776 = vpop.xlane.xlu0 %3775
      %v3777 = vsel %vm3770, %v719, -inf
      %3778 = vmax.xlane.f32.xlu0 %v3777
      %v3779 = vpop.xlane.xlu0 %3778
      %v3780 = vsel %vm3770, %v722, -inf
      %3781 = vmax.xlane.f32.xlu0 %v3780
      %v3782 = vpop.xlane.xlu0 %3781
      %v3783 = vsub.f32 %v711, %v3773
      %v3784 = vsub.f32 %v714, %v3776
      %v3785 = vsub.f32 %v719, %v3779
      %v3786 = vsub.f32 %v722, %v3782
      %v3787 = vmul.f32 %v3783, 1.442695
      %v3788 = vpow.pop %v3787
      %v3789 = vmul.f32 %v3784, 1.442695
      %v3790 = vpow.pop %v3789
      %v3791 = vmul.f32 %v3785, 1.442695
      %v3792 = vpow.pop %v3791
      %v3793 = vmul.f32 %v3786, 1.442695
      %v3794 = vpow.pop %v3793
      %3799 = vrot.lane.b32.xlu0 %v3788, 48
      %v3800 = vpop.permute.xlu0 %3799
      %3801 = vrot.lane.b32.xlu0 %v3790, 48
      %v3802 = vpop.permute.xlu0 %3801
      %3803 = vrot.lane.b32.xlu0 %v3792, 48
      %v3804 = vpop.permute.xlu0 %3803
      %3805 = vrot.lane.b32.xlu0 %v3794, 48
      %v3806 = vpop.permute.xlu0 %3805
      %v3811 = vsel %vm1055, %v3800, 0.0
      %3812 = vadd.xlane.f32.xlu0 %v3811
      %v3813 = vpop.xlane.xlu0 %3812
      %v3814 = vsel %vm1055, %v3802, 0.0
      %3815 = vadd.xlane.f32.xlu0 %v3814
      %v3816 = vpop.xlane.xlu0 %3815
      %v3817 = vsel %vm1055, %v3804, 0.0
      %3818 = vadd.xlane.f32.xlu0 %v3817
      %v3819 = vpop.xlane.xlu0 %3818
      %v3820 = vsel %vm1055, %v3806, 0.0
      %3821 = vadd.xlane.f32.xlu0 %v3820
      %v3822 = vpop.xlane.xlu0 %3821
      %v3823 = vmul.f32 %v3788, %v1073
      %v3824 = vmul.f32 %v3790, %v1075
      %v3825 = vmul.f32 %v3792, %v1077
      %v3826 = vmul.f32 %v3794, %v1079
      %v3827 = vmul.f32 %v3788, %v1093
      %v3828 = vmul.f32 %v3790, %v1095
      %v3829 = vmul.f32 %v3792, %v1097
      %v3830 = vmul.f32 %v3794, %v1099
      %v3831 = vmul.f32 %v3788, %v1113
      %v3832 = vmul.f32 %v3790, %v1115
      %v3833 = vmul.f32 %v3792, %v1117
      %v3834 = vmul.f32 %v3794, %v1119
      %v3835 = vmul.f32 %v3788, %v1133
      %v3836 = vmul.f32 %v3790, %v1135
      %v3837 = vmul.f32 %v3792, %v1137
      %v3838 = vmul.f32 %v3794, %v1139
      %3839 = vset.pattern.permute.xlu0 16
      %3840 = vperm.xlu0 %3839, %v785
      %v3841 = vpop.permute.xlu0 %3840
      %3842 = vset.pattern.permute.xlu0 16
      %3843 = vperm.xlu0 %3842, %v786
      %v3844 = vpop.permute.xlu0 %3843
      %3845 = vset.pattern.permute.xlu0 16
      %3846 = vperm.xlu0 %3845, %v787
      %v3847 = vpop.permute.xlu0 %3846
      %3848 = vset.pattern.permute.xlu0 16
      %3849 = vperm.xlu0 %3848, %v788
      %v3850 = vpop.permute.xlu0 %3849
      %vm3851 = vcmp.eq.s32.totalorder %v3841, %v1009
      %vm3852 = vcmp.eq.s32.totalorder %v3844, %v1009
      %vm3853 = vcmp.eq.s32.totalorder %v3847, %v1009
      %vm3854 = vcmp.eq.s32.totalorder %v3850, %v1009
      %3856 = vset.pattern.permute.xlu0 80
      %3857 = vperm.xlu0 %3856, %v3823
      %v3858 = vpop.permute.xlu0 %3857
      %3861 = vset.pattern.permute.xlu0 80
      %3862 = vperm.xlu0 %3861, %v3824
      %v3863 = vpop.permute.xlu0 %3862
      %3866 = vset.pattern.permute.xlu0 80
      %3867 = vperm.xlu0 %3866, %v3825
      %v3868 = vpop.permute.xlu0 %3867
      %3871 = vset.pattern.permute.xlu0 80
      %3872 = vperm.xlu0 %3871, %v3826
      %v3873 = vpop.permute.xlu0 %3872
      %v3875 = vsel %vm3851, %v3858, 0.0
      %v3876 = vsel %vm3852, %v3863, 0.0
      %v3877 = vsel %vm3853, %v3868, 0.0
      %v3878 = vsel %vm3854, %v3873, 0.0
      %v3879 = vadd.f32 %v3875, 0.0
      %v3880 = vadd.f32 %v3876, 0.0
      %v3881 = vadd.f32 %v3877, 0.0
      %v3882 = vadd.f32 %v3878, 0.0
      %3884 = vset.pattern.permute.xlu0 80
      %3885 = vperm.xlu0 %3884, %v3827
      %v3886 = vpop.permute.xlu0 %3885
      %3889 = vset.pattern.permute.xlu0 80
      %3890 = vperm.xlu0 %3889, %v3828
      %v3891 = vpop.permute.xlu0 %3890
      %3894 = vset.pattern.permute.xlu0 80
      %3895 = vperm.xlu0 %3894, %v3829
      %v3896 = vpop.permute.xlu0 %3895
      %3899 = vset.pattern.permute.xlu0 80
      %3900 = vperm.xlu0 %3899, %v3830
      %v3901 = vpop.permute.xlu0 %3900
      %v3903 = vsel %vm3851, %v3886, 0.0
      %v3904 = vsel %vm3852, %v3891, 0.0
      %v3905 = vsel %vm3853, %v3896, 0.0
      %v3906 = vsel %vm3854, %v3901, 0.0
      %v3907 = vadd.f32 %v3903, 0.0
      %v3908 = vadd.f32 %v3904, 0.0
      %v3909 = vadd.f32 %v3905, 0.0
      %v3910 = vadd.f32 %v3906, 0.0
      %3912 = vset.pattern.permute.xlu0 80
      %3913 = vperm.xlu0 %3912, %v3831
      %v3914 = vpop.permute.xlu0 %3913
      %3917 = vset.pattern.permute.xlu0 80
      %3918 = vperm.xlu0 %3917, %v3832
      %v3919 = vpop.permute.xlu0 %3918
      %3922 = vset.pattern.permute.xlu0 80
      %3923 = vperm.xlu0 %3922, %v3833
      %v3924 = vpop.permute.xlu0 %3923
      %3927 = vset.pattern.permute.xlu0 80
      %3928 = vperm.xlu0 %3927, %v3834
      %v3929 = vpop.permute.xlu0 %3928
      %v3931 = vsel %vm3851, %v3914, 0.0
      %v3932 = vsel %vm3852, %v3919, 0.0
      %v3933 = vsel %vm3853, %v3924, 0.0
      %v3934 = vsel %vm3854, %v3929, 0.0
      %v3935 = vadd.f32 %v3931, 0.0
      %v3936 = vadd.f32 %v3932, 0.0
      %v3937 = vadd.f32 %v3933, 0.0
      %v3938 = vadd.f32 %v3934, 0.0
      %3940 = vset.pattern.permute.xlu0 80
      %3941 = vperm.xlu0 %3940, %v3835
      %v3942 = vpop.permute.xlu0 %3941
      %3945 = vset.pattern.permute.xlu0 80
      %3946 = vperm.xlu0 %3945, %v3836
      %v3947 = vpop.permute.xlu0 %3946
      %3950 = vset.pattern.permute.xlu0 80
      %3951 = vperm.xlu0 %3950, %v3837
      %v3952 = vpop.permute.xlu0 %3951
      %3955 = vset.pattern.permute.xlu0 80
      %3956 = vperm.xlu0 %3955, %v3838
      %v3957 = vpop.permute.xlu0 %3956
      %v3959 = vsel %vm3851, %v3942, 0.0
      %v3960 = vsel %vm3852, %v3947, 0.0
      %v3961 = vsel %vm3853, %v3952, 0.0
      %v3962 = vsel %vm3854, %v3957, 0.0
      %v3963 = vadd.f32 %v3959, 0.0
      %v3964 = vadd.f32 %v3960, 0.0
      %v3965 = vadd.f32 %v3961, 0.0
      %v3966 = vadd.f32 %v3962, 0.0
      %3967 = vset.pattern.permute.xlu0 17
      %3968 = vperm.xlu0 %3967, %v785
      %v3969 = vpop.permute.xlu0 %3968
      %3970 = vset.pattern.permute.xlu0 17
      %3971 = vperm.xlu0 %3970, %v786
      %v3972 = vpop.permute.xlu0 %3971
      %3973 = vset.pattern.permute.xlu0 17
      %3974 = vperm.xlu0 %3973, %v787
      %v3975 = vpop.permute.xlu0 %3974
      %3976 = vset.pattern.permute.xlu0 17
      %3977 = vperm.xlu0 %3976, %v788
      %v3978 = vpop.permute.xlu0 %3977
      %vm3979 = vcmp.eq.s32.totalorder %v3969, %v1009
      %vm3980 = vcmp.eq.s32.totalorder %v3972, %v1009
      %vm3981 = vcmp.eq.s32.totalorder %v3975, %v1009
      %vm3982 = vcmp.eq.s32.totalorder %v3978, %v1009
      %3983 = vset.pattern.permute.xlu0 81
      %3984 = vperm.xlu0 %3983, %v3823
      %v3985 = vpop.permute.xlu0 %3984
      %3987 = vset.pattern.permute.xlu0 81
      %3988 = vperm.xlu0 %3987, %v3824
      %v3989 = vpop.permute.xlu0 %3988
      %3991 = vset.pattern.permute.xlu0 81
      %3992 = vperm.xlu0 %3991, %v3825
      %v3993 = vpop.permute.xlu0 %3992
      %3995 = vset.pattern.permute.xlu0 81
      %3996 = vperm.xlu0 %3995, %v3826
      %v3997 = vpop.permute.xlu0 %3996
      %v3999 = vsel %vm3979, %v3985, 0.0
      %v4000 = vsel %vm3980, %v3989, 0.0
      %v4001 = vsel %vm3981, %v3993, 0.0
      %v4002 = vsel %vm3982, %v3997, 0.0
      %v4003 = vadd.f32 %v3879, %v3999
      %v4004 = vadd.f32 %v3880, %v4000
      %v4005 = vadd.f32 %v3881, %v4001
      %v4006 = vadd.f32 %v3882, %v4002
      %4007 = vset.pattern.permute.xlu0 81
      %4008 = vperm.xlu0 %4007, %v3827
      %v4009 = vpop.permute.xlu0 %4008
      %4011 = vset.pattern.permute.xlu0 81
      %4012 = vperm.xlu0 %4011, %v3828
      %v4013 = vpop.permute.xlu0 %4012
      %4015 = vset.pattern.permute.xlu0 81
      %4016 = vperm.xlu0 %4015, %v3829
      %v4017 = vpop.permute.xlu0 %4016
      %4019 = vset.pattern.permute.xlu0 81
      %4020 = vperm.xlu0 %4019, %v3830
      %v4021 = vpop.permute.xlu0 %4020
      %v4023 = vsel %vm3979, %v4009, 0.0
      %v4024 = vsel %vm3980, %v4013, 0.0
      %v4025 = vsel %vm3981, %v4017, 0.0
      %v4026 = vsel %vm3982, %v4021, 0.0
      %v4027 = vadd.f32 %v3907, %v4023
      %v4028 = vadd.f32 %v3908, %v4024
      %v4029 = vadd.f32 %v3909, %v4025
      %v4030 = vadd.f32 %v3910, %v4026
      %4031 = vset.pattern.permute.xlu0 81
      %4032 = vperm.xlu0 %4031, %v3831
      %v4033 = vpop.permute.xlu0 %4032
      %4035 = vset.pattern.permute.xlu0 81
      %4036 = vperm.xlu0 %4035, %v3832
      %v4037 = vpop.permute.xlu0 %4036
      %4039 = vset.pattern.permute.xlu0 81
      %4040 = vperm.xlu0 %4039, %v3833
      %v4041 = vpop.permute.xlu0 %4040
      %4043 = vset.pattern.permute.xlu0 81
      %4044 = vperm.xlu0 %4043, %v3834
      %v4045 = vpop.permute.xlu0 %4044
      %v4047 = vsel %vm3979, %v4033, 0.0
      %v4048 = vsel %vm3980, %v4037, 0.0
      %v4049 = vsel %vm3981, %v4041, 0.0
      %v4050 = vsel %vm3982, %v4045, 0.0
      %v4051 = vadd.f32 %v3935, %v4047
      %v4052 = vadd.f32 %v3936, %v4048
      %v4053 = vadd.f32 %v3937, %v4049
      %v4054 = vadd.f32 %v3938, %v4050
      %4055 = vset.pattern.permute.xlu0 81
      %4056 = vperm.xlu0 %4055, %v3835
      %v4057 = vpop.permute.xlu0 %4056
      %4059 = vset.pattern.permute.xlu0 81
      %4060 = vperm.xlu0 %4059, %v3836
      %v4061 = vpop.permute.xlu0 %4060
      %4063 = vset.pattern.permute.xlu0 81
      %4064 = vperm.xlu0 %4063, %v3837
      %v4065 = vpop.permute.xlu0 %4064
      %4067 = vset.pattern.permute.xlu0 81
      %4068 = vperm.xlu0 %4067, %v3838
      %v4069 = vpop.permute.xlu0 %4068
      %v4071 = vsel %vm3979, %v4057, 0.0
      %v4072 = vsel %vm3980, %v4061, 0.0
      %v4073 = vsel %vm3981, %v4065, 0.0
      %v4074 = vsel %vm3982, %v4069, 0.0
      %v4075 = vadd.f32 %v3963, %v4071
      %v4076 = vadd.f32 %v3964, %v4072
      %v4077 = vadd.f32 %v3965, %v4073
      %v4078 = vadd.f32 %v3966, %v4074
      %4079 = vset.pattern.permute.xlu0 18
      %4080 = vperm.xlu0 %4079, %v785
      %v4081 = vpop.permute.xlu0 %4080
      %4082 = vset.pattern.permute.xlu0 18
      %4083 = vperm.xlu0 %4082, %v786
      %v4084 = vpop.permute.xlu0 %4083
      %4085 = vset.pattern.permute.xlu0 18
      %4086 = vperm.xlu0 %4085, %v787
      %v4087 = vpop.permute.xlu0 %4086
      %4088 = vset.pattern.permute.xlu0 18
      %4089 = vperm.xlu0 %4088, %v788
      %v4090 = vpop.permute.xlu0 %4089
      %vm4091 = vcmp.eq.s32.totalorder %v4081, %v1009
      %vm4092 = vcmp.eq.s32.totalorder %v4084, %v1009
      %vm4093 = vcmp.eq.s32.totalorder %v4087, %v1009
      %vm4094 = vcmp.eq.s32.totalorder %v4090, %v1009
      %4095 = vset.pattern.permute.xlu0 82
      %4096 = vperm.xlu0 %4095, %v3823
      %v4097 = vpop.permute.xlu0 %4096
      %4099 = vset.pattern.permute.xlu0 82
      %4100 = vperm.xlu0 %4099, %v3824
      %v4101 = vpop.permute.xlu0 %4100
      %4103 = vset.pattern.permute.xlu0 82
      %4104 = vperm.xlu0 %4103, %v3825
      %v4105 = vpop.permute.xlu0 %4104
      %4107 = vset.pattern.permute.xlu0 82
      %4108 = vperm.xlu0 %4107, %v3826
      %v4109 = vpop.permute.xlu0 %4108
      %v4111 = vsel %vm4091, %v4097, 0.0
      %v4112 = vsel %vm4092, %v4101, 0.0
      %v4113 = vsel %vm4093, %v4105, 0.0
      %v4114 = vsel %vm4094, %v4109, 0.0
      %v4115 = vadd.f32 %v4003, %v4111
      %v4116 = vadd.f32 %v4004, %v4112
      %v4117 = vadd.f32 %v4005, %v4113
      %v4118 = vadd.f32 %v4006, %v4114
      %4119 = vset.pattern.permute.xlu0 82
      %4120 = vperm.xlu0 %4119, %v3827
      %v4121 = vpop.permute.xlu0 %4120
      %4123 = vset.pattern.permute.xlu0 82
      %4124 = vperm.xlu0 %4123, %v3828
      %v4125 = vpop.permute.xlu0 %4124
      %4127 = vset.pattern.permute.xlu0 82
      %4128 = vperm.xlu0 %4127, %v3829
      %v4129 = vpop.permute.xlu0 %4128
      %4131 = vset.pattern.permute.xlu0 82
      %4132 = vperm.xlu0 %4131, %v3830
      %v4133 = vpop.permute.xlu0 %4132
      %v4135 = vsel %vm4091, %v4121, 0.0
      %v4136 = vsel %vm4092, %v4125, 0.0
      %v4137 = vsel %vm4093, %v4129, 0.0
      %v4138 = vsel %vm4094, %v4133, 0.0
      %v4139 = vadd.f32 %v4027, %v4135
      %v4140 = vadd.f32 %v4028, %v4136
      %v4141 = vadd.f32 %v4029, %v4137
      %v4142 = vadd.f32 %v4030, %v4138
      %4143 = vset.pattern.permute.xlu0 82
      %4144 = vperm.xlu0 %4143, %v3831
      %v4145 = vpop.permute.xlu0 %4144
      %4147 = vset.pattern.permute.xlu0 82
      %4148 = vperm.xlu0 %4147, %v3832
      %v4149 = vpop.permute.xlu0 %4148
      %4151 = vset.pattern.permute.xlu0 82
      %4152 = vperm.xlu0 %4151, %v3833
      %v4153 = vpop.permute.xlu0 %4152
      %4155 = vset.pattern.permute.xlu0 82
      %4156 = vperm.xlu0 %4155, %v3834
      %v4157 = vpop.permute.xlu0 %4156
      %v4159 = vsel %vm4091, %v4145, 0.0
      %v4160 = vsel %vm4092, %v4149, 0.0
      %v4161 = vsel %vm4093, %v4153, 0.0
      %v4162 = vsel %vm4094, %v4157, 0.0
      %v4163 = vadd.f32 %v4051, %v4159
      %v4164 = vadd.f32 %v4052, %v4160
      %v4165 = vadd.f32 %v4053, %v4161
      %v4166 = vadd.f32 %v4054, %v4162
      %4167 = vset.pattern.permute.xlu0 82
      %4168 = vperm.xlu0 %4167, %v3835
      %v4169 = vpop.permute.xlu0 %4168
      %4171 = vset.pattern.permute.xlu0 82
      %4172 = vperm.xlu0 %4171, %v3836
      %v4173 = vpop.permute.xlu0 %4172
      %4175 = vset.pattern.permute.xlu0 82
      %4176 = vperm.xlu0 %4175, %v3837
      %v4177 = vpop.permute.xlu0 %4176
      %4179 = vset.pattern.permute.xlu0 82
      %4180 = vperm.xlu0 %4179, %v3838
      %v4181 = vpop.permute.xlu0 %4180
      %v4183 = vsel %vm4091, %v4169, 0.0
      %v4184 = vsel %vm4092, %v4173, 0.0
      %v4185 = vsel %vm4093, %v4177, 0.0
      %v4186 = vsel %vm4094, %v4181, 0.0
      %v4187 = vadd.f32 %v4075, %v4183
      %v4188 = vadd.f32 %v4076, %v4184
      %v4189 = vadd.f32 %v4077, %v4185
      %v4190 = vadd.f32 %v4078, %v4186
      %4191 = vset.pattern.permute.xlu0 19
      %4192 = vperm.xlu0 %4191, %v785
      %v4193 = vpop.permute.xlu0 %4192
      %4194 = vset.pattern.permute.xlu0 19
      %4195 = vperm.xlu0 %4194, %v786
      %v4196 = vpop.permute.xlu0 %4195
      %4197 = vset.pattern.permute.xlu0 19
      %4198 = vperm.xlu0 %4197, %v787
      %v4199 = vpop.permute.xlu0 %4198
      %4200 = vset.pattern.permute.xlu0 19
      %4201 = vperm.xlu0 %4200, %v788
      %v4202 = vpop.permute.xlu0 %4201
      %vm4203 = vcmp.eq.s32.totalorder %v4193, %v1009
      %vm4204 = vcmp.eq.s32.totalorder %v4196, %v1009
      %vm4205 = vcmp.eq.s32.totalorder %v4199, %v1009
      %vm4206 = vcmp.eq.s32.totalorder %v4202, %v1009
      %4207 = vset.pattern.permute.xlu0 83
      %4208 = vperm.xlu0 %4207, %v3823
      %v4209 = vpop.permute.xlu0 %4208
      %4211 = vset.pattern.permute.xlu0 83
      %4212 = vperm.xlu0 %4211, %v3824
      %v4213 = vpop.permute.xlu0 %4212
      %4215 = vset.pattern.permute.xlu0 83
      %4216 = vperm.xlu0 %4215, %v3825
      %v4217 = vpop.permute.xlu0 %4216
      %4219 = vset.pattern.permute.xlu0 83
      %4220 = vperm.xlu0 %4219, %v3826
      %v4221 = vpop.permute.xlu0 %4220
      %v4223 = vsel %vm4203, %v4209, 0.0
      %v4224 = vsel %vm4204, %v4213, 0.0
      %v4225 = vsel %vm4205, %v4217, 0.0
      %v4226 = vsel %vm4206, %v4221, 0.0
      %v4227 = vadd.f32 %v4115, %v4223
      %v4228 = vadd.f32 %v4116, %v4224
      %v4229 = vadd.f32 %v4117, %v4225
      %v4230 = vadd.f32 %v4118, %v4226
      %4231 = vset.pattern.permute.xlu0 83
      %4232 = vperm.xlu0 %4231, %v3827
      %v4233 = vpop.permute.xlu0 %4232
      %4235 = vset.pattern.permute.xlu0 83
      %4236 = vperm.xlu0 %4235, %v3828
      %v4237 = vpop.permute.xlu0 %4236
      %4239 = vset.pattern.permute.xlu0 83
      %4240 = vperm.xlu0 %4239, %v3829
      %v4241 = vpop.permute.xlu0 %4240
      %4243 = vset.pattern.permute.xlu0 83
      %4244 = vperm.xlu0 %4243, %v3830
      %v4245 = vpop.permute.xlu0 %4244
      %v4247 = vsel %vm4203, %v4233, 0.0
      %v4248 = vsel %vm4204, %v4237, 0.0
      %v4249 = vsel %vm4205, %v4241, 0.0
      %v4250 = vsel %vm4206, %v4245, 0.0
      %v4251 = vadd.f32 %v4139, %v4247
      %v4252 = vadd.f32 %v4140, %v4248
      %v4253 = vadd.f32 %v4141, %v4249
      %v4254 = vadd.f32 %v4142, %v4250
      %4255 = vset.pattern.permute.xlu0 83
      %4256 = vperm.xlu0 %4255, %v3831
      %v4257 = vpop.permute.xlu0 %4256
      %4259 = vset.pattern.permute.xlu0 83
      %4260 = vperm.xlu0 %4259, %v3832
      %v4261 = vpop.permute.xlu0 %4260
      %4263 = vset.pattern.permute.xlu0 83
      %4264 = vperm.xlu0 %4263, %v3833
      %v4265 = vpop.permute.xlu0 %4264
      %4267 = vset.pattern.permute.xlu0 83
      %4268 = vperm.xlu0 %4267, %v3834
      %v4269 = vpop.permute.xlu0 %4268
      %v4271 = vsel %vm4203, %v4257, 0.0
      %v4272 = vsel %vm4204, %v4261, 0.0
      %v4273 = vsel %vm4205, %v4265, 0.0
      %v4274 = vsel %vm4206, %v4269, 0.0
      %v4275 = vadd.f32 %v4163, %v4271
      %v4276 = vadd.f32 %v4164, %v4272
      %v4277 = vadd.f32 %v4165, %v4273
      %v4278 = vadd.f32 %v4166, %v4274
      %4279 = vset.pattern.permute.xlu0 83
      %4280 = vperm.xlu0 %4279, %v3835
      %v4281 = vpop.permute.xlu0 %4280
      %4283 = vset.pattern.permute.xlu0 83
      %4284 = vperm.xlu0 %4283, %v3836
      %v4285 = vpop.permute.xlu0 %4284
      %4287 = vset.pattern.permute.xlu0 83
      %4288 = vperm.xlu0 %4287, %v3837
      %v4289 = vpop.permute.xlu0 %4288
      %4291 = vset.pattern.permute.xlu0 83
      %4292 = vperm.xlu0 %4291, %v3838
      %v4293 = vpop.permute.xlu0 %4292
      %v4295 = vsel %vm4203, %v4281, 0.0
      %v4296 = vsel %vm4204, %v4285, 0.0
      %v4297 = vsel %vm4205, %v4289, 0.0
      %v4298 = vsel %vm4206, %v4293, 0.0
      %v4299 = vadd.f32 %v4187, %v4295
      %v4300 = vadd.f32 %v4188, %v4296
      %v4301 = vadd.f32 %v4189, %v4297
      %v4302 = vadd.f32 %v4190, %v4298
      %4303 = vset.pattern.permute.xlu0 20
      %4304 = vperm.xlu0 %4303, %v785
      %v4305 = vpop.permute.xlu0 %4304
      %4306 = vset.pattern.permute.xlu0 20
      %4307 = vperm.xlu0 %4306, %v786
      %v4308 = vpop.permute.xlu0 %4307
      %4309 = vset.pattern.permute.xlu0 20
      %4310 = vperm.xlu0 %4309, %v787
      %v4311 = vpop.permute.xlu0 %4310
      %4312 = vset.pattern.permute.xlu0 20
      %4313 = vperm.xlu0 %4312, %v788
      %v4314 = vpop.permute.xlu0 %4313
      %vm4315 = vcmp.eq.s32.totalorder %v4305, %v1009
      %vm4316 = vcmp.eq.s32.totalorder %v4308, %v1009
      %vm4317 = vcmp.eq.s32.totalorder %v4311, %v1009
      %vm4318 = vcmp.eq.s32.totalorder %v4314, %v1009
      %4319 = vset.pattern.permute.xlu0 84
      %4320 = vperm.xlu0 %4319, %v3823
      %v4321 = vpop.permute.xlu0 %4320
      %4323 = vset.pattern.permute.xlu0 84
      %4324 = vperm.xlu0 %4323, %v3824
      %v4325 = vpop.permute.xlu0 %4324
      %4327 = vset.pattern.permute.xlu0 84
      %4328 = vperm.xlu0 %4327, %v3825
      %v4329 = vpop.permute.xlu0 %4328
      %4331 = vset.pattern.permute.xlu0 84
      %4332 = vperm.xlu0 %4331, %v3826
      %v4333 = vpop.permute.xlu0 %4332
      %v4335 = vsel %vm4315, %v4321, 0.0
      %v4336 = vsel %vm4316, %v4325, 0.0
      %v4337 = vsel %vm4317, %v4329, 0.0
      %v4338 = vsel %vm4318, %v4333, 0.0
      %v4339 = vadd.f32 %v4227, %v4335
      %v4340 = vadd.f32 %v4228, %v4336
      %v4341 = vadd.f32 %v4229, %v4337
      %v4342 = vadd.f32 %v4230, %v4338
      %4343 = vset.pattern.permute.xlu0 84
      %4344 = vperm.xlu0 %4343, %v3827
      %v4345 = vpop.permute.xlu0 %4344
      %4347 = vset.pattern.permute.xlu0 84
      %4348 = vperm.xlu0 %4347, %v3828
      %v4349 = vpop.permute.xlu0 %4348
      %4351 = vset.pattern.permute.xlu0 84
      %4352 = vperm.xlu0 %4351, %v3829
      %v4353 = vpop.permute.xlu0 %4352
      %4355 = vset.pattern.permute.xlu0 84
      %4356 = vperm.xlu0 %4355, %v3830
      %v4357 = vpop.permute.xlu0 %4356
      %v4359 = vsel %vm4315, %v4345, 0.0
      %v4360 = vsel %vm4316, %v4349, 0.0
      %v4361 = vsel %vm4317, %v4353, 0.0
      %v4362 = vsel %vm4318, %v4357, 0.0
      %v4363 = vadd.f32 %v4251, %v4359
      %v4364 = vadd.f32 %v4252, %v4360
      %v4365 = vadd.f32 %v4253, %v4361
      %v4366 = vadd.f32 %v4254, %v4362
      %4367 = vset.pattern.permute.xlu0 84
      %4368 = vperm.xlu0 %4367, %v3831
      %v4369 = vpop.permute.xlu0 %4368
      %4371 = vset.pattern.permute.xlu0 84
      %4372 = vperm.xlu0 %4371, %v3832
      %v4373 = vpop.permute.xlu0 %4372
      %4375 = vset.pattern.permute.xlu0 84
      %4376 = vperm.xlu0 %4375, %v3833
      %v4377 = vpop.permute.xlu0 %4376
      %4379 = vset.pattern.permute.xlu0 84
      %4380 = vperm.xlu0 %4379, %v3834
      %v4381 = vpop.permute.xlu0 %4380
      %v4383 = vsel %vm4315, %v4369, 0.0
      %v4384 = vsel %vm4316, %v4373, 0.0
      %v4385 = vsel %vm4317, %v4377, 0.0
      %v4386 = vsel %vm4318, %v4381, 0.0
      %v4387 = vadd.f32 %v4275, %v4383
      %v4388 = vadd.f32 %v4276, %v4384
      %v4389 = vadd.f32 %v4277, %v4385
      %v4390 = vadd.f32 %v4278, %v4386
      %4391 = vset.pattern.permute.xlu0 84
      %4392 = vperm.xlu0 %4391, %v3835
      %v4393 = vpop.permute.xlu0 %4392
      %4395 = vset.pattern.permute.xlu0 84
      %4396 = vperm.xlu0 %4395, %v3836
      %v4397 = vpop.permute.xlu0 %4396
      %4399 = vset.pattern.permute.xlu0 84
      %4400 = vperm.xlu0 %4399, %v3837
      %v4401 = vpop.permute.xlu0 %4400
      %4403 = vset.pattern.permute.xlu0 84
      %4404 = vperm.xlu0 %4403, %v3838
      %v4405 = vpop.permute.xlu0 %4404
      %v4407 = vsel %vm4315, %v4393, 0.0
      %v4408 = vsel %vm4316, %v4397, 0.0
      %v4409 = vsel %vm4317, %v4401, 0.0
      %v4410 = vsel %vm4318, %v4405, 0.0
      %v4411 = vadd.f32 %v4299, %v4407
      %v4412 = vadd.f32 %v4300, %v4408
      %v4413 = vadd.f32 %v4301, %v4409
      %v4414 = vadd.f32 %v4302, %v4410
      %4415 = vset.pattern.permute.xlu0 21
      %4416 = vperm.xlu0 %4415, %v785
      %v4417 = vpop.permute.xlu0 %4416
      %4418 = vset.pattern.permute.xlu0 21
      %4419 = vperm.xlu0 %4418, %v786
      %v4420 = vpop.permute.xlu0 %4419
      %4421 = vset.pattern.permute.xlu0 21
      %4422 = vperm.xlu0 %4421, %v787
      %v4423 = vpop.permute.xlu0 %4422
      %4424 = vset.pattern.permute.xlu0 21
      %4425 = vperm.xlu0 %4424, %v788
      %v4426 = vpop.permute.xlu0 %4425
      %vm4427 = vcmp.eq.s32.totalorder %v4417, %v1009
      %vm4428 = vcmp.eq.s32.totalorder %v4420, %v1009
      %vm4429 = vcmp.eq.s32.totalorder %v4423, %v1009
      %vm4430 = vcmp.eq.s32.totalorder %v4426, %v1009
      %4431 = vset.pattern.permute.xlu0 85
      %4432 = vperm.xlu0 %4431, %v3823
      %v4433 = vpop.permute.xlu0 %4432
      %4435 = vset.pattern.permute.xlu0 85
      %4436 = vperm.xlu0 %4435, %v3824
      %v4437 = vpop.permute.xlu0 %4436
      %4439 = vset.pattern.permute.xlu0 85
      %4440 = vperm.xlu0 %4439, %v3825
      %v4441 = vpop.permute.xlu0 %4440
      %4443 = vset.pattern.permute.xlu0 85
      %4444 = vperm.xlu0 %4443, %v3826
      %v4445 = vpop.permute.xlu0 %4444
      %v4447 = vsel %vm4427, %v4433, 0.0
      %v4448 = vsel %vm4428, %v4437, 0.0
      %v4449 = vsel %vm4429, %v4441, 0.0
      %v4450 = vsel %vm4430, %v4445, 0.0
      %v4451 = vadd.f32 %v4339, %v4447
      %v4452 = vadd.f32 %v4340, %v4448
      %v4453 = vadd.f32 %v4341, %v4449
      %v4454 = vadd.f32 %v4342, %v4450
      %4455 = vset.pattern.permute.xlu0 85
      %4456 = vperm.xlu0 %4455, %v3827
      %v4457 = vpop.permute.xlu0 %4456
      %4459 = vset.pattern.permute.xlu0 85
      %4460 = vperm.xlu0 %4459, %v3828
      %v4461 = vpop.permute.xlu0 %4460
      %4463 = vset.pattern.permute.xlu0 85
      %4464 = vperm.xlu0 %4463, %v3829
      %v4465 = vpop.permute.xlu0 %4464
      %4467 = vset.pattern.permute.xlu0 85
      %4468 = vperm.xlu0 %4467, %v3830
      %v4469 = vpop.permute.xlu0 %4468
      %v4471 = vsel %vm4427, %v4457, 0.0
      %v4472 = vsel %vm4428, %v4461, 0.0
      %v4473 = vsel %vm4429, %v4465, 0.0
      %v4474 = vsel %vm4430, %v4469, 0.0
      %v4475 = vadd.f32 %v4363, %v4471
      %v4476 = vadd.f32 %v4364, %v4472
      %v4477 = vadd.f32 %v4365, %v4473
      %v4478 = vadd.f32 %v4366, %v4474
      %4479 = vset.pattern.permute.xlu0 85
      %4480 = vperm.xlu0 %4479, %v3831
      %v4481 = vpop.permute.xlu0 %4480
      %4483 = vset.pattern.permute.xlu0 85
      %4484 = vperm.xlu0 %4483, %v3832
      %v4485 = vpop.permute.xlu0 %4484
      %4487 = vset.pattern.permute.xlu0 85
      %4488 = vperm.xlu0 %4487, %v3833
      %v4489 = vpop.permute.xlu0 %4488
      %4491 = vset.pattern.permute.xlu0 85
      %4492 = vperm.xlu0 %4491, %v3834
      %v4493 = vpop.permute.xlu0 %4492
      %v4495 = vsel %vm4427, %v4481, 0.0
      %v4496 = vsel %vm4428, %v4485, 0.0
      %v4497 = vsel %vm4429, %v4489, 0.0
      %v4498 = vsel %vm4430, %v4493, 0.0
      %v4499 = vadd.f32 %v4387, %v4495
      %v4500 = vadd.f32 %v4388, %v4496
      %v4501 = vadd.f32 %v4389, %v4497
      %v4502 = vadd.f32 %v4390, %v4498
      %4503 = vset.pattern.permute.xlu0 85
      %4504 = vperm.xlu0 %4503, %v3835
      %v4505 = vpop.permute.xlu0 %4504
      %4507 = vset.pattern.permute.xlu0 85
      %4508 = vperm.xlu0 %4507, %v3836
      %v4509 = vpop.permute.xlu0 %4508
      %4511 = vset.pattern.permute.xlu0 85
      %4512 = vperm.xlu0 %4511, %v3837
      %v4513 = vpop.permute.xlu0 %4512
      %4515 = vset.pattern.permute.xlu0 85
      %4516 = vperm.xlu0 %4515, %v3838
      %v4517 = vpop.permute.xlu0 %4516
      %v4519 = vsel %vm4427, %v4505, 0.0
      %v4520 = vsel %vm4428, %v4509, 0.0
      %v4521 = vsel %vm4429, %v4513, 0.0
      %v4522 = vsel %vm4430, %v4517, 0.0
      %v4523 = vadd.f32 %v4411, %v4519
      %v4524 = vadd.f32 %v4412, %v4520
      %v4525 = vadd.f32 %v4413, %v4521
      %v4526 = vadd.f32 %v4414, %v4522
      %4527 = vset.pattern.permute.xlu0 22
      %4528 = vperm.xlu0 %4527, %v785
      %v4529 = vpop.permute.xlu0 %4528
      %4530 = vset.pattern.permute.xlu0 22
      %4531 = vperm.xlu0 %4530, %v786
      %v4532 = vpop.permute.xlu0 %4531
      %4533 = vset.pattern.permute.xlu0 22
      %4534 = vperm.xlu0 %4533, %v787
      %v4535 = vpop.permute.xlu0 %4534
      %4536 = vset.pattern.permute.xlu0 22
      %4537 = vperm.xlu0 %4536, %v788
      %v4538 = vpop.permute.xlu0 %4537
      %vm4539 = vcmp.eq.s32.totalorder %v4529, %v1009
      %vm4540 = vcmp.eq.s32.totalorder %v4532, %v1009
      %vm4541 = vcmp.eq.s32.totalorder %v4535, %v1009
      %vm4542 = vcmp.eq.s32.totalorder %v4538, %v1009
      %4543 = vset.pattern.permute.xlu0 86
      %4544 = vperm.xlu0 %4543, %v3823
      %v4545 = vpop.permute.xlu0 %4544
      %4547 = vset.pattern.permute.xlu0 86
      %4548 = vperm.xlu0 %4547, %v3824
      %v4549 = vpop.permute.xlu0 %4548
      %4551 = vset.pattern.permute.xlu0 86
      %4552 = vperm.xlu0 %4551, %v3825
      %v4553 = vpop.permute.xlu0 %4552
      %4555 = vset.pattern.permute.xlu0 86
      %4556 = vperm.xlu0 %4555, %v3826
      %v4557 = vpop.permute.xlu0 %4556
      %v4559 = vsel %vm4539, %v4545, 0.0
      %v4560 = vsel %vm4540, %v4549, 0.0
      %v4561 = vsel %vm4541, %v4553, 0.0
      %v4562 = vsel %vm4542, %v4557, 0.0
      %v4563 = vadd.f32 %v4451, %v4559
      %v4564 = vadd.f32 %v4452, %v4560
      %v4565 = vadd.f32 %v4453, %v4561
      %v4566 = vadd.f32 %v4454, %v4562
      %4567 = vset.pattern.permute.xlu0 86
      %4568 = vperm.xlu0 %4567, %v3827
      %v4569 = vpop.permute.xlu0 %4568
      %4571 = vset.pattern.permute.xlu0 86
      %4572 = vperm.xlu0 %4571, %v3828
      %v4573 = vpop.permute.xlu0 %4572
      %4575 = vset.pattern.permute.xlu0 86
      %4576 = vperm.xlu0 %4575, %v3829
      %v4577 = vpop.permute.xlu0 %4576
      %4579 = vset.pattern.permute.xlu0 86
      %4580 = vperm.xlu0 %4579, %v3830
      %v4581 = vpop.permute.xlu0 %4580
      %v4583 = vsel %vm4539, %v4569, 0.0
      %v4584 = vsel %vm4540, %v4573, 0.0
      %v4585 = vsel %vm4541, %v4577, 0.0
      %v4586 = vsel %vm4542, %v4581, 0.0
      %v4587 = vadd.f32 %v4475, %v4583
      %v4588 = vadd.f32 %v4476, %v4584
      %v4589 = vadd.f32 %v4477, %v4585
      %v4590 = vadd.f32 %v4478, %v4586
      %4591 = vset.pattern.permute.xlu0 86
      %4592 = vperm.xlu0 %4591, %v3831
      %v4593 = vpop.permute.xlu0 %4592
      %4595 = vset.pattern.permute.xlu0 86
      %4596 = vperm.xlu0 %4595, %v3832
      %v4597 = vpop.permute.xlu0 %4596
      %4599 = vset.pattern.permute.xlu0 86
      %4600 = vperm.xlu0 %4599, %v3833
      %v4601 = vpop.permute.xlu0 %4600
      %4603 = vset.pattern.permute.xlu0 86
      %4604 = vperm.xlu0 %4603, %v3834
      %v4605 = vpop.permute.xlu0 %4604
      %v4607 = vsel %vm4539, %v4593, 0.0
      %v4608 = vsel %vm4540, %v4597, 0.0
      %v4609 = vsel %vm4541, %v4601, 0.0
      %v4610 = vsel %vm4542, %v4605, 0.0
      %v4611 = vadd.f32 %v4499, %v4607
      %v4612 = vadd.f32 %v4500, %v4608
      %v4613 = vadd.f32 %v4501, %v4609
      %v4614 = vadd.f32 %v4502, %v4610
      %4615 = vset.pattern.permute.xlu0 86
      %4616 = vperm.xlu0 %4615, %v3835
      %v4617 = vpop.permute.xlu0 %4616
      %4619 = vset.pattern.permute.xlu0 86
      %4620 = vperm.xlu0 %4619, %v3836
      %v4621 = vpop.permute.xlu0 %4620
      %4623 = vset.pattern.permute.xlu0 86
      %4624 = vperm.xlu0 %4623, %v3837
      %v4625 = vpop.permute.xlu0 %4624
      %4627 = vset.pattern.permute.xlu0 86
      %4628 = vperm.xlu0 %4627, %v3838
      %v4629 = vpop.permute.xlu0 %4628
      %v4631 = vsel %vm4539, %v4617, 0.0
      %v4632 = vsel %vm4540, %v4621, 0.0
      %v4633 = vsel %vm4541, %v4625, 0.0
      %v4634 = vsel %vm4542, %v4629, 0.0
      %v4635 = vadd.f32 %v4523, %v4631
      %v4636 = vadd.f32 %v4524, %v4632
      %v4637 = vadd.f32 %v4525, %v4633
      %v4638 = vadd.f32 %v4526, %v4634
      %4639 = vset.pattern.permute.xlu0 23
      %4640 = vperm.xlu0 %4639, %v785
      %v4641 = vpop.permute.xlu0 %4640
      %4642 = vset.pattern.permute.xlu0 23
      %4643 = vperm.xlu0 %4642, %v786
      %v4644 = vpop.permute.xlu0 %4643
      %4645 = vset.pattern.permute.xlu0 23
      %4646 = vperm.xlu0 %4645, %v787
      %v4647 = vpop.permute.xlu0 %4646
      %4648 = vset.pattern.permute.xlu0 23
      %4649 = vperm.xlu0 %4648, %v788
      %v4650 = vpop.permute.xlu0 %4649
      %vm4651 = vcmp.eq.s32.totalorder %v4641, %v1009
      %vm4652 = vcmp.eq.s32.totalorder %v4644, %v1009
      %vm4653 = vcmp.eq.s32.totalorder %v4647, %v1009
      %vm4654 = vcmp.eq.s32.totalorder %v4650, %v1009
      %4655 = vset.pattern.permute.xlu0 87
      %4656 = vperm.xlu0 %4655, %v3823
      %v4657 = vpop.permute.xlu0 %4656
      %4659 = vset.pattern.permute.xlu0 87
      %4660 = vperm.xlu0 %4659, %v3824
      %v4661 = vpop.permute.xlu0 %4660
      %4663 = vset.pattern.permute.xlu0 87
      %4664 = vperm.xlu0 %4663, %v3825
      %v4665 = vpop.permute.xlu0 %4664
      %4667 = vset.pattern.permute.xlu0 87
      %4668 = vperm.xlu0 %4667, %v3826
      %v4669 = vpop.permute.xlu0 %4668
      %v4671 = vsel %vm4651, %v4657, 0.0
      %v4672 = vsel %vm4652, %v4661, 0.0
      %v4673 = vsel %vm4653, %v4665, 0.0
      %v4674 = vsel %vm4654, %v4669, 0.0
      %v4675 = vadd.f32 %v4563, %v4671
      %v4676 = vadd.f32 %v4564, %v4672
      %v4677 = vadd.f32 %v4565, %v4673
      %v4678 = vadd.f32 %v4566, %v4674
      %4679 = vset.pattern.permute.xlu0 87
      %4680 = vperm.xlu0 %4679, %v3827
      %v4681 = vpop.permute.xlu0 %4680
      %4683 = vset.pattern.permute.xlu0 87
      %4684 = vperm.xlu0 %4683, %v3828
      %v4685 = vpop.permute.xlu0 %4684
      %4687 = vset.pattern.permute.xlu0 87
      %4688 = vperm.xlu0 %4687, %v3829
      %v4689 = vpop.permute.xlu0 %4688
      %4691 = vset.pattern.permute.xlu0 87
      %4692 = vperm.xlu0 %4691, %v3830
      %v4693 = vpop.permute.xlu0 %4692
      %v4695 = vsel %vm4651, %v4681, 0.0
      %v4696 = vsel %vm4652, %v4685, 0.0
      %v4697 = vsel %vm4653, %v4689, 0.0
      %v4698 = vsel %vm4654, %v4693, 0.0
      %v4699 = vadd.f32 %v4587, %v4695
      %v4700 = vadd.f32 %v4588, %v4696
      %v4701 = vadd.f32 %v4589, %v4697
      %v4702 = vadd.f32 %v4590, %v4698
      %4703 = vset.pattern.permute.xlu0 87
      %4704 = vperm.xlu0 %4703, %v3831
      %v4705 = vpop.permute.xlu0 %4704
      %4707 = vset.pattern.permute.xlu0 87
      %4708 = vperm.xlu0 %4707, %v3832
      %v4709 = vpop.permute.xlu0 %4708
      %4711 = vset.pattern.permute.xlu0 87
      %4712 = vperm.xlu0 %4711, %v3833
      %v4713 = vpop.permute.xlu0 %4712
      %4715 = vset.pattern.permute.xlu0 87
      %4716 = vperm.xlu0 %4715, %v3834
      %v4717 = vpop.permute.xlu0 %4716
      %v4719 = vsel %vm4651, %v4705, 0.0
      %v4720 = vsel %vm4652, %v4709, 0.0
      %v4721 = vsel %vm4653, %v4713, 0.0
      %v4722 = vsel %vm4654, %v4717, 0.0
      %v4723 = vadd.f32 %v4611, %v4719
      %v4724 = vadd.f32 %v4612, %v4720
      %v4725 = vadd.f32 %v4613, %v4721
      %v4726 = vadd.f32 %v4614, %v4722
      %4727 = vset.pattern.permute.xlu0 87
      %4728 = vperm.xlu0 %4727, %v3835
      %v4729 = vpop.permute.xlu0 %4728
      %4731 = vset.pattern.permute.xlu0 87
      %4732 = vperm.xlu0 %4731, %v3836
      %v4733 = vpop.permute.xlu0 %4732
      %4735 = vset.pattern.permute.xlu0 87
      %4736 = vperm.xlu0 %4735, %v3837
      %v4737 = vpop.permute.xlu0 %4736
      %4739 = vset.pattern.permute.xlu0 87
      %4740 = vperm.xlu0 %4739, %v3838
      %v4741 = vpop.permute.xlu0 %4740
      %v4743 = vsel %vm4651, %v4729, 0.0
      %v4744 = vsel %vm4652, %v4733, 0.0
      %v4745 = vsel %vm4653, %v4737, 0.0
      %v4746 = vsel %vm4654, %v4741, 0.0
      %v4747 = vadd.f32 %v4635, %v4743
      %v4748 = vadd.f32 %v4636, %v4744
      %v4749 = vadd.f32 %v4637, %v4745
      %v4750 = vadd.f32 %v4638, %v4746
      %v4751 = vpack.c.bf16 %v4676, %v4675
      %v4752 = vpack.c.bf16 %v4678, %v4677
      %v4753 = vpack.c.bf16 %v4700, %v4699
      %v4754 = vpack.c.bf16 %v4702, %v4701
      %4755 = vrot.lane.b32.xlu0 %v984, 112
      %v4756 = vpop.permute.xlu0 %4755
      %4757 = vrot.lane.b32.xlu0 %v985, 112
      %v4758 = vpop.permute.xlu0 %4757
      %4759 = vrot.lane.b32.xlu0 %v986, 112
      %v4760 = vpop.permute.xlu0 %4759
      %4761 = vrot.lane.b32.xlu0 %v987, 112
      %v4762 = vpop.permute.xlu0 %4761
      %4763 = vrot.lane.b32.xlu0 %v988, 112
      %v4764 = vpop.permute.xlu0 %4763
      %4765 = vrot.lane.b32.xlu0 %v989, 112
      %v4766 = vpop.permute.xlu0 %4765
      %4767 = vrot.lane.b32.xlu0 %v990, 112
      %v4768 = vpop.permute.xlu0 %4767
      %4769 = vrot.lane.b32.xlu0 %v991, 112
      %v4770 = vpop.permute.xlu0 %4769
      %4779 = vmatprep.subr.bf16.mxu0 0
      %4780 = vmatpush1.bf16.msra.mxu0 %v4756
      %4781 = vmatprep.subr.bf16.mxu0 0
      %4782 = vmatpush1.bf16.msra.mxu0 %v4758
      %4783 = vmatprep.subr.bf16.mxu0 0
      %4784 = vmatpush1.bf16.msra.mxu0 %v4760
      %4785 = vmatprep.subr.bf16.mxu0 0
      %4786 = vmatpush1.bf16.msra.mxu0 %v4762
      %4787 = vmatprep.subr.bf16.mxu0 0
      %4788 = vmatpush1.bf16.msra.mxu0 %v4764
      %4789 = vmatprep.subr.bf16.mxu0 0
      %4790 = vmatpush1.bf16.msra.mxu0 %v4766
      %4791 = vmatprep.subr.bf16.mxu0 0
      %4792 = vmatpush1.bf16.msra.mxu0 %v4768
      %4793 = vmatprep.subr.bf16.mxu0 0
      %4794 = vmatpush1.bf16.msra.mxu0 %v4770
      %4795 = vmatprep.subr.bf16.mxu0 0
      %4796 = vmatpush1.bf16.msra.mxu0 0
      %4797 = vmatprep.subr.bf16.mxu0 0
      %4798 = vmatpush1.bf16.msra.mxu0 0
      %4799 = vmatprep.subr.bf16.mxu0 0
      %4800 = vmatpush1.bf16.msra.mxu0 0
      %4801 = vmatprep.subr.bf16.mxu0 0
      %4802 = vmatpush1.bf16.msra.mxu0 0
      %4803 = vmatprep.subr.bf16.mxu0 0
      %4804 = vmatpush1.bf16.msra.mxu0 0
      %4805 = vmatprep.subr.bf16.mxu0 0
      %4806 = vmatpush1.bf16.msra.mxu0 0
      %4807 = vmatprep.subr.bf16.mxu0 0
      %4808 = vmatpush1.bf16.msra.mxu0 0
      %4809 = vmatprep.subr.bf16.mxu0 0
      %4810 = vmatpush1.bf16.msra.mxu0 0
      %4811 = vmatprep.mubr.bf16.mxu0 0
      %4812 = vmatmul.mubr.bf16.gmra.mrb[0].mxu0 %v4753
      %v4813 = vpop.f32.mrb[0].mxu0
      %v4814 = vadd.f32 0.0, %v4813
      %v4815 = vpop.f32.mrb[0].mxu0
      %v4816 = vpop.f32.mrb[0].mxu0
      %v4817 = vadd.f32 0.0, %v4816
      %v4818 = vpop.f32.mrb[0].mxu0
      %4819 = vmatprep.mubr.bf16.mxu0 0
      %4820 = vmatmul.mubr.bf16.gmra.mrb[0].mxu0 %v4754
      %v4821 = vpop.f32.mrb[0].mxu0
      %v4822 = vadd.f32 0.0, %v4821
      %v4823 = vpop.f32.mrb[0].mxu0
      %v4824 = vpop.f32.mrb[0].mxu0
      %v4825 = vadd.f32 0.0, %v4824
      %v4826 = vpop.f32.mrb[0].mxu0
      %4827 = vdwg.mxu0
      %4828 = vrot.lane.b32.xlu0 %v2145, 112
      %v4829 = vpop.permute.xlu0 %4828
      %4830 = vrot.lane.b32.xlu0 %v2146, 112
      %v4831 = vpop.permute.xlu0 %4830
      %4832 = vrot.lane.b32.xlu0 %v2147, 112
      %v4833 = vpop.permute.xlu0 %4832
      %4834 = vrot.lane.b32.xlu0 %v2148, 112
      %v4835 = vpop.permute.xlu0 %4834
      %4836 = vrot.lane.b32.xlu0 %v2149, 112
      %v4837 = vpop.permute.xlu0 %4836
      %4838 = vrot.lane.b32.xlu0 %v2150, 112
      %v4839 = vpop.permute.xlu0 %4838
      %4840 = vrot.lane.b32.xlu0 %v2151, 112
      %v4841 = vpop.permute.xlu0 %4840
      %4842 = vrot.lane.b32.xlu0 %v2152, 112
      %v4843 = vpop.permute.xlu0 %4842
      %4852 = vmatprep.subr.bf16.mxu0 0
      %4853 = vmatpush1.bf16.msra.mxu0 %v4829
      %4854 = vmatprep.subr.bf16.mxu0 0
      %4855 = vmatpush1.bf16.msra.mxu0 %v4831
      %4856 = vmatprep.subr.bf16.mxu0 0
      %4857 = vmatpush1.bf16.msra.mxu0 %v4833
      %4858 = vmatprep.subr.bf16.mxu0 0
      %4859 = vmatpush1.bf16.msra.mxu0 %v4835
      %4860 = vmatprep.subr.bf16.mxu0 0
      %4861 = vmatpush1.bf16.msra.mxu0 %v4837
      %4862 = vmatprep.subr.bf16.mxu0 0
      %4863 = vmatpush1.bf16.msra.mxu0 %v4839
      %4864 = vmatprep.subr.bf16.mxu0 0
      %4865 = vmatpush1.bf16.msra.mxu0 %v4841
      %4866 = vmatprep.subr.bf16.mxu0 0
      %4867 = vmatpush1.bf16.msra.mxu0 %v4843
      %4868 = vmatprep.subr.bf16.mxu0 0
      %4869 = vmatpush1.bf16.msra.mxu0 0
      %4870 = vmatprep.subr.bf16.mxu0 0
      %4871 = vmatpush1.bf16.msra.mxu0 0
      %4872 = vmatprep.subr.bf16.mxu0 0
      %4873 = vmatpush1.bf16.msra.mxu0 0
      %4874 = vmatprep.subr.bf16.mxu0 0
      %4875 = vmatpush1.bf16.msra.mxu0 0
      %4876 = vmatprep.subr.bf16.mxu0 0
      %4877 = vmatpush1.bf16.msra.mxu0 0
      %4878 = vmatprep.subr.bf16.mxu0 0
      %4879 = vmatpush1.bf16.msra.mxu0 0
      %4880 = vmatprep.subr.bf16.mxu0 0
      %4881 = vmatpush1.bf16.msra.mxu0 0
      %4882 = vmatprep.subr.bf16.mxu0 0
      %4883 = vmatpush1.bf16.msra.mxu0 0
      %4884 = vmatprep.mubr.bf16.mxu0 0
      %4885 = vmatmul.mubr.bf16.gmra.mrb[0].mxu0 %v4751
      %v4886 = vpop.f32.mrb[0].mxu0
      %v4887 = vadd.f32 %v4814, %v4886
      %v4888 = vpop.f32.mrb[0].mxu0
      %v4889 = vpop.f32.mrb[0].mxu0
      %v4890 = vadd.f32 %v4817, %v4889
      %v4891 = vpop.f32.mrb[0].mxu0
      %4892 = vmatprep.mubr.bf16.mxu0 0
      %4893 = vmatmul.mubr.bf16.gmra.mrb[0].mxu0 %v4752
      %v4894 = vpop.f32.mrb[0].mxu0
      %v4895 = vadd.f32 %v4822, %v4894
      %v4896 = vpop.f32.mrb[0].mxu0
      %v4897 = vpop.f32.mrb[0].mxu0
      %v4898 = vadd.f32 %v4825, %v4897
      %v4899 = vpop.f32.mrb[0].mxu0
      %4900 = vdwg.mxu0
      %v4901 = vpack.c.bf16 %v4724, %v4723
      %v4902 = vpack.c.bf16 %v4726, %v4725
      %4903 = vrot.lane.b32.xlu0 %v992, 112
      %v4904 = vpop.permute.xlu0 %4903
      %4905 = vrot.lane.b32.xlu0 %v993, 112
      %v4906 = vpop.permute.xlu0 %4905
      %4907 = vrot.lane.b32.xlu0 %v994, 112
      %v4908 = vpop.permute.xlu0 %4907
      %4909 = vrot.lane.b32.xlu0 %v995, 112
      %v4910 = vpop.permute.xlu0 %4909
      %4911 = vrot.lane.b32.xlu0 %v996, 112
      %v4912 = vpop.permute.xlu0 %4911
      %4913 = vrot.lane.b32.xlu0 %v997, 112
      %v4914 = vpop.permute.xlu0 %4913
      %4915 = vrot.lane.b32.xlu0 %v998, 112
      %v4916 = vpop.permute.xlu0 %4915
      %4917 = vrot.lane.b32.xlu0 %v999, 112
      %v4918 = vpop.permute.xlu0 %4917
      %4927 = vmatprep.subr.bf16.mxu0 0
      %4928 = vmatpush1.bf16.msra.mxu0 %v4904
      %4929 = vmatprep.subr.bf16.mxu0 0
      %4930 = vmatpush1.bf16.msra.mxu0 %v4906
      %4931 = vmatprep.subr.bf16.mxu0 0
      %4932 = vmatpush1.bf16.msra.mxu0 %v4908
      %4933 = vmatprep.subr.bf16.mxu0 0
      %4934 = vmatpush1.bf16.msra.mxu0 %v4910
      %4935 = vmatprep.subr.bf16.mxu0 0
      %4936 = vmatpush1.bf16.msra.mxu0 %v4912
      %4937 = vmatprep.subr.bf16.mxu0 0
      %4938 = vmatpush1.bf16.msra.mxu0 %v4914
      %4939 = vmatprep.subr.bf16.mxu0 0
      %4940 = vmatpush1.bf16.msra.mxu0 %v4916
      %4941 = vmatprep.subr.bf16.mxu0 0
      %4942 = vmatpush1.bf16.msra.mxu0 %v4918
      %4943 = vmatprep.subr.bf16.mxu0 0
      %4944 = vmatpush1.bf16.msra.mxu0 0
      %4945 = vmatprep.subr.bf16.mxu0 0
      %4946 = vmatpush1.bf16.msra.mxu0 0
      %4947 = vmatprep.subr.bf16.mxu0 0
      %4948 = vmatpush1.bf16.msra.mxu0 0
      %4949 = vmatprep.subr.bf16.mxu0 0
      %4950 = vmatpush1.bf16.msra.mxu0 0
      %4951 = vmatprep.subr.bf16.mxu0 0
      %4952 = vmatpush1.bf16.msra.mxu0 0
      %4953 = vmatprep.subr.bf16.mxu0 0
      %4954 = vmatpush1.bf16.msra.mxu0 0
      %4955 = vmatprep.subr.bf16.mxu0 0
      %4956 = vmatpush1.bf16.msra.mxu0 0
      %4957 = vmatprep.subr.bf16.mxu0 0
      %4958 = vmatpush1.bf16.msra.mxu0 0
      %4959 = vmatprep.mubr.bf16.mxu0 0
      %4960 = vmatmul.mubr.bf16.gmra.mrb[0].mxu0 %v4901
      %v4961 = vpop.f32.mrb[0].mxu0
      %v4962 = vadd.f32 0.0, %v4961
      %v4963 = vpop.f32.mrb[0].mxu0
      %v4964 = vpop.f32.mrb[0].mxu0
      %v4965 = vadd.f32 0.0, %v4964
      %v4966 = vpop.f32.mrb[0].mxu0
      %4967 = vmatprep.mubr.bf16.mxu0 0
      %4968 = vmatmul.mubr.bf16.gmra.mrb[0].mxu0 %v4902
      %v4969 = vpop.f32.mrb[0].mxu0
      %v4970 = vadd.f32 0.0, %v4969
      %v4971 = vpop.f32.mrb[0].mxu0
      %v4972 = vpop.f32.mrb[0].mxu0
      %v4973 = vadd.f32 0.0, %v4972
      %v4974 = vpop.f32.mrb[0].mxu0
      %4975 = vdwg.mxu0
      %v4976 = vadd.f32 %v4887, %v4962
      %v4977 = vadd.f32 %v4890, %v4965
      %v4978 = vadd.f32 %v4895, %v4970
      %v4979 = vadd.f32 %v4898, %v4973
      %v4980 = vpack.c.bf16 %v4748, %v4747
      %v4981 = vpack.c.bf16 %v4750, %v4749
      %4982 = vrot.lane.b32.xlu0 %v1000, 112
      %v4983 = vpop.permute.xlu0 %4982
      %4984 = vrot.lane.b32.xlu0 %v1001, 112
      %v4985 = vpop.permute.xlu0 %4984
      %4986 = vrot.lane.b32.xlu0 %v1002, 112
      %v4987 = vpop.permute.xlu0 %4986
      %4988 = vrot.lane.b32.xlu0 %v1003, 112
      %v4989 = vpop.permute.xlu0 %4988
      %4990 = vrot.lane.b32.xlu0 %v1004, 112
      %v4991 = vpop.permute.xlu0 %4990
      %4992 = vrot.lane.b32.xlu0 %v1005, 112
      %v4993 = vpop.permute.xlu0 %4992
      %4994 = vrot.lane.b32.xlu0 %v1006, 112
      %v4995 = vpop.permute.xlu0 %4994
      %4996 = vrot.lane.b32.xlu0 %v1007, 112
      %v4997 = vpop.permute.xlu0 %4996
      %5006 = vmatprep.subr.bf16.mxu0 0
      %5007 = vmatpush1.bf16.msra.mxu0 %v4983
      %5008 = vmatprep.subr.bf16.mxu0 0
      %5009 = vmatpush1.bf16.msra.mxu0 %v4985
      %5010 = vmatprep.subr.bf16.mxu0 0
      %5011 = vmatpush1.bf16.msra.mxu0 %v4987
      %5012 = vmatprep.subr.bf16.mxu0 0
      %5013 = vmatpush1.bf16.msra.mxu0 %v4989
      %5014 = vmatprep.subr.bf16.mxu0 0
      %5015 = vmatpush1.bf16.msra.mxu0 %v4991
      %5016 = vmatprep.subr.bf16.mxu0 0
      %5017 = vmatpush1.bf16.msra.mxu0 %v4993
      %5018 = vmatprep.subr.bf16.mxu0 0
      %5019 = vmatpush1.bf16.msra.mxu0 %v4995
      %5020 = vmatprep.subr.bf16.mxu0 0
      %5021 = vmatpush1.bf16.msra.mxu0 %v4997
      %5022 = vmatprep.subr.bf16.mxu0 0
      %5023 = vmatpush1.bf16.msra.mxu0 0
      %5024 = vmatprep.subr.bf16.mxu0 0
      %5025 = vmatpush1.bf16.msra.mxu0 0
      %5026 = vmatprep.subr.bf16.mxu0 0
      %5027 = vmatpush1.bf16.msra.mxu0 0
      %5028 = vmatprep.subr.bf16.mxu0 0
      %5029 = vmatpush1.bf16.msra.mxu0 0
      %5030 = vmatprep.subr.bf16.mxu0 0
      %5031 = vmatpush1.bf16.msra.mxu0 0
      %5032 = vmatprep.subr.bf16.mxu0 0
      %5033 = vmatpush1.bf16.msra.mxu0 0
      %5034 = vmatprep.subr.bf16.mxu0 0
      %5035 = vmatpush1.bf16.msra.mxu0 0
      %5036 = vmatprep.subr.bf16.mxu0 0
      %5037 = vmatpush1.bf16.msra.mxu0 0
      %5038 = vmatprep.mubr.bf16.mxu0 0
      %5039 = vmatmul.mubr.bf16.gmra.mrb[0].mxu0 %v4980
      %v5040 = vpop.f32.mrb[0].mxu0
      %v5041 = vadd.f32 0.0, %v5040
      %v5042 = vpop.f32.mrb[0].mxu0
      %v5043 = vpop.f32.mrb[0].mxu0
      %v5044 = vadd.f32 0.0, %v5043
      %v5045 = vpop.f32.mrb[0].mxu0
      %5046 = vmatprep.mubr.bf16.mxu0 0
      %5047 = vmatmul.mubr.bf16.gmra.mrb[0].mxu0 %v4981
      %v5048 = vpop.f32.mrb[0].mxu0
      %v5049 = vadd.f32 0.0, %v5048
      %v5050 = vpop.f32.mrb[0].mxu0
      %v5051 = vpop.f32.mrb[0].mxu0
      %v5052 = vadd.f32 0.0, %v5051
      %v5053 = vpop.f32.mrb[0].mxu0
      %5054 = vdwg.mxu0
      %v5055 = vadd.f32 %v4976, %v5041
      %v5056 = vadd.f32 %v4977, %v5044
      %v5057 = vadd.f32 %v4978, %v5049
      %v5058 = vadd.f32 %v4979, %v5052
      %v5059 = vrcp.pop %v3813
      %v5060 = vrcp.pop %v3816
      %v5061 = vrcp.pop %v3819
      %v5062 = vrcp.pop %v3822
      %v5063 = vmul.f32 %v5055, %v5059
      %v5064 = vmul.f32 %v5056, %v5060
      %v5065 = vmul.f32 %v5057, %v5061
      %v5066 = vmul.f32 %v5058, %v5062
      %v5067 = vpack.c.bf16 %v5064, %v5063
      %v5068 = vpack.c.bf16 %v5066, %v5065
      %v5070 = vsel %vm1055, %v5067, 0
      %v5073 = vsel %vm1055, %v5068, 0
      %v5076 = vsel %vm3659, %v1012, 0
      %5078 = vmatprep.subr.bf16.mxu0 0
      %5079 = vmatpush1.bf16.msra.mxu0 %v5076
      %5080 = vmatprep.subr.bf16.mxu0 0
      %5081 = vmatpush1.bf16.msra.mxu0 0
      %5082 = vmatprep.subr.bf16.mxu0 0
      %5083 = vmatpush1.bf16.msra.mxu0 0
      %5084 = vmatprep.subr.bf16.mxu0 0
      %5085 = vmatpush1.bf16.msra.mxu0 0
      %5086 = vmatprep.subr.bf16.mxu0 0
      %5087 = vmatpush1.bf16.msra.mxu0 0
      %5088 = vmatprep.subr.bf16.mxu0 0
      %5089 = vmatpush1.bf16.msra.mxu0 0
      %5090 = vmatprep.subr.bf16.mxu0 0
      %5091 = vmatpush1.bf16.msra.mxu0 0
      %5092 = vmatprep.subr.bf16.mxu0 0
      %5093 = vmatpush1.bf16.msra.mxu0 0
      %5094 = vmatprep.subr.bf16.mxu0 0
      %5095 = vmatpush1.bf16.msra.mxu0 0
      %5096 = vmatprep.subr.bf16.mxu0 0
      %5097 = vmatpush1.bf16.msra.mxu0 0
      %5098 = vmatprep.subr.bf16.mxu0 0
      %5099 = vmatpush1.bf16.msra.mxu0 0
      %5100 = vmatprep.subr.bf16.mxu0 0
      %5101 = vmatpush1.bf16.msra.mxu0 0
      %5102 = vmatprep.subr.bf16.mxu0 0
      %5103 = vmatpush1.bf16.msra.mxu0 0
      %5104 = vmatprep.subr.bf16.mxu0 0
      %5105 = vmatpush1.bf16.msra.mxu0 0
      %5106 = vmatprep.subr.bf16.mxu0 0
      %5107 = vmatpush1.bf16.msra.mxu0 0
      %5108 = vmatprep.subr.bf16.mxu0 0
      %5109 = vmatpush1.bf16.msra.mxu0 0
      %5110 = vmatprep.mubr.bf16.mxu0 0
      %5111 = vmatmul.mubr.bf16.gmra.mrb[0].mxu0 %v5070
      %v5112 = vpop.f32.mrb[0].mxu0
      %v5113 = vadd.f32 0.0, %v5112
      %v5114 = vpop.f32.mrb[0].mxu0
      %v5115 = vpop.f32.mrb[0].mxu0
      %v5116 = vadd.f32 0.0, %v5115
      %v5117 = vpop.f32.mrb[0].mxu0
      %5118 = vmatprep.mubr.bf16.mxu0 0
      %5119 = vmatmul.mubr.bf16.gmra.mrb[0].mxu0 %v5073
      %v5120 = vpop.f32.mrb[0].mxu0
      %v5121 = vadd.f32 0.0, %v5120
      %v5122 = vpop.f32.mrb[0].mxu0
      %v5123 = vpop.f32.mrb[0].mxu0
      %v5124 = vadd.f32 0.0, %v5123
      %v5125 = vpop.f32.mrb[0].mxu0
      %5126 = vdwg.mxu0
      %v5127 = vadd.f32 %v3756, %v5113
      %v5128 = vadd.f32 %v3759, %v5116
      %v5129 = vadd.f32 %v3764, %v5121
      %v5130 = vadd.f32 %v3767, %v5124
      %vm5131 = vcmask 786112
      %v5132 = vsel %vm5131, %v711, -inf
      %5133 = vmax.xlane.f32.xlu0 %v5132
      %v5134 = vpop.xlane.xlu0 %5133
      %v5135 = vsel %vm5131, %v714, -inf
      %5136 = vmax.xlane.f32.xlu0 %v5135
      %v5137 = vpop.xlane.xlu0 %5136
      %v5138 = vsel %vm5131, %v719, -inf
      %5139 = vmax.xlane.f32.xlu0 %v5138
      %v5140 = vpop.xlane.xlu0 %5139
      %v5141 = vsel %vm5131, %v722, -inf
      %5142 = vmax.xlane.f32.xlu0 %v5141
      %v5143 = vpop.xlane.xlu0 %5142
      %v5144 = vsub.f32 %v711, %v5134
      %v5145 = vsub.f32 %v714, %v5137
      %v5146 = vsub.f32 %v719, %v5140
      %v5147 = vsub.f32 %v722, %v5143
      %v5148 = vmul.f32 %v5144, 1.442695
      %v5149 = vpow.pop %v5148
      %v5150 = vmul.f32 %v5145, 1.442695
      %v5151 = vpow.pop %v5150
      %v5152 = vmul.f32 %v5146, 1.442695
      %v5153 = vpow.pop %v5152
      %v5154 = vmul.f32 %v5147, 1.442695
      %v5155 = vpow.pop %v5154
      %5160 = vrot.lane.b32.xlu0 %v5149, 40
      %v5161 = vpop.permute.xlu0 %5160
      %5162 = vrot.lane.b32.xlu0 %v5151, 40
      %v5163 = vpop.permute.xlu0 %5162
      %5164 = vrot.lane.b32.xlu0 %v5153, 40
      %v5165 = vpop.permute.xlu0 %5164
      %5166 = vrot.lane.b32.xlu0 %v5155, 40
      %v5167 = vpop.permute.xlu0 %5166
      %v5172 = vsel %vm1055, %v5161, 0.0
      %5173 = vadd.xlane.f32.xlu0 %v5172
      %v5174 = vpop.xlane.xlu0 %5173
      %v5175 = vsel %vm1055, %v5163, 0.0
      %5176 = vadd.xlane.f32.xlu0 %v5175
      %v5177 = vpop.xlane.xlu0 %5176
      %v5178 = vsel %vm1055, %v5165, 0.0
      %5179 = vadd.xlane.f32.xlu0 %v5178
      %v5180 = vpop.xlane.xlu0 %5179
      %v5181 = vsel %vm1055, %v5167, 0.0
      %5182 = vadd.xlane.f32.xlu0 %v5181
      %v5183 = vpop.xlane.xlu0 %5182
      %v5184 = vmul.f32 %v5149, %v1073
      %v5185 = vmul.f32 %v5151, %v1075
      %v5186 = vmul.f32 %v5153, %v1077
      %v5187 = vmul.f32 %v5155, %v1079
      %v5188 = vmul.f32 %v5149, %v1093
      %v5189 = vmul.f32 %v5151, %v1095
      %v5190 = vmul.f32 %v5153, %v1097
      %v5191 = vmul.f32 %v5155, %v1099
      %v5192 = vmul.f32 %v5149, %v1113
      %v5193 = vmul.f32 %v5151, %v1115
      %v5194 = vmul.f32 %v5153, %v1117
      %v5195 = vmul.f32 %v5155, %v1119
      %v5196 = vmul.f32 %v5149, %v1133
      %v5197 = vmul.f32 %v5151, %v1135
      %v5198 = vmul.f32 %v5153, %v1137
      %v5199 = vmul.f32 %v5155, %v1139
      %5200 = vset.pattern.permute.xlu0 24
      %5201 = vperm.xlu0 %5200, %v785
      %v5202 = vpop.permute.xlu0 %5201
      %5203 = vset.pattern.permute.xlu0 24
      %5204 = vperm.xlu0 %5203, %v786
      %v5205 = vpop.permute.xlu0 %5204
      %5206 = vset.pattern.permute.xlu0 24
      %5207 = vperm.xlu0 %5206, %v787
      %v5208 = vpop.permute.xlu0 %5207
      %5209 = vset.pattern.permute.xlu0 24
      %5210 = vperm.xlu0 %5209, %v788
      %v5211 = vpop.permute.xlu0 %5210
      %vm5212 = vcmp.eq.s32.totalorder %v5202, %v1009
      %vm5213 = vcmp.eq.s32.totalorder %v5205, %v1009
      %vm5214 = vcmp.eq.s32.totalorder %v5208, %v1009
      %vm5215 = vcmp.eq.s32.totalorder %v5211, %v1009
      %5217 = vset.pattern.permute.xlu0 88
      %5218 = vperm.xlu0 %5217, %v5184
      %v5219 = vpop.permute.xlu0 %5218
      %5222 = vset.pattern.permute.xlu0 88
      %5223 = vperm.xlu0 %5222, %v5185
      %v5224 = vpop.permute.xlu0 %5223
      %5227 = vset.pattern.permute.xlu0 88
      %5228 = vperm.xlu0 %5227, %v5186
      %v5229 = vpop.permute.xlu0 %5228
      %5232 = vset.pattern.permute.xlu0 88
      %5233 = vperm.xlu0 %5232, %v5187
      %v5234 = vpop.permute.xlu0 %5233
      %v5236 = vsel %vm5212, %v5219, 0.0
      %v5237 = vsel %vm5213, %v5224, 0.0
      %v5238 = vsel %vm5214, %v5229, 0.0
      %v5239 = vsel %vm5215, %v5234, 0.0
      %v5240 = vadd.f32 %v5236, 0.0
      %v5241 = vadd.f32 %v5237, 0.0
      %v5242 = vadd.f32 %v5238, 0.0
      %v5243 = vadd.f32 %v5239, 0.0
      %5245 = vset.pattern.permute.xlu0 88
      %5246 = vperm.xlu0 %5245, %v5188
      %v5247 = vpop.permute.xlu0 %5246
      %5250 = vset.pattern.permute.xlu0 88
      %5251 = vperm.xlu0 %5250, %v5189
      %v5252 = vpop.permute.xlu0 %5251
      %5255 = vset.pattern.permute.xlu0 88
      %5256 = vperm.xlu0 %5255, %v5190
      %v5257 = vpop.permute.xlu0 %5256
      %5260 = vset.pattern.permute.xlu0 88
      %5261 = vperm.xlu0 %5260, %v5191
      %v5262 = vpop.permute.xlu0 %5261
      %v5264 = vsel %vm5212, %v5247, 0.0
      %v5265 = vsel %vm5213, %v5252, 0.0
      %v5266 = vsel %vm5214, %v5257, 0.0
      %v5267 = vsel %vm5215, %v5262, 0.0
      %v5268 = vadd.f32 %v5264, 0.0
      %v5269 = vadd.f32 %v5265, 0.0
      %v5270 = vadd.f32 %v5266, 0.0
      %v5271 = vadd.f32 %v5267, 0.0
      %5273 = vset.pattern.permute.xlu0 88
      %5274 = vperm.xlu0 %5273, %v5192
      %v5275 = vpop.permute.xlu0 %5274
      %5278 = vset.pattern.permute.xlu0 88
      %5279 = vperm.xlu0 %5278, %v5193
      %v5280 = vpop.permute.xlu0 %5279
      %5283 = vset.pattern.permute.xlu0 88
      %5284 = vperm.xlu0 %5283, %v5194
      %v5285 = vpop.permute.xlu0 %5284
      %5288 = vset.pattern.permute.xlu0 88
      %5289 = vperm.xlu0 %5288, %v5195
      %v5290 = vpop.permute.xlu0 %5289
      %v5292 = vsel %vm5212, %v5275, 0.0
      %v5293 = vsel %vm5213, %v5280, 0.0
      %v5294 = vsel %vm5214, %v5285, 0.0
      %v5295 = vsel %vm5215, %v5290, 0.0
      %v5296 = vadd.f32 %v5292, 0.0
      %v5297 = vadd.f32 %v5293, 0.0
      %v5298 = vadd.f32 %v5294, 0.0
      %v5299 = vadd.f32 %v5295, 0.0
      %5301 = vset.pattern.permute.xlu0 88
      %5302 = vperm.xlu0 %5301, %v5196
      %v5303 = vpop.permute.xlu0 %5302
      %5306 = vset.pattern.permute.xlu0 88
      %5307 = vperm.xlu0 %5306, %v5197
      %v5308 = vpop.permute.xlu0 %5307
      %5311 = vset.pattern.permute.xlu0 88
      %5312 = vperm.xlu0 %5311, %v5198
      %v5313 = vpop.permute.xlu0 %5312
      %5316 = vset.pattern.permute.xlu0 88
      %5317 = vperm.xlu0 %5316, %v5199
      %v5318 = vpop.permute.xlu0 %5317
      %v5320 = vsel %vm5212, %v5303, 0.0
      %v5321 = vsel %vm5213, %v5308, 0.0
      %v5322 = vsel %vm5214, %v5313, 0.0
      %v5323 = vsel %vm5215, %v5318, 0.0
      %v5324 = vadd.f32 %v5320, 0.0
      %v5325 = vadd.f32 %v5321, 0.0
      %v5326 = vadd.f32 %v5322, 0.0
      %v5327 = vadd.f32 %v5323, 0.0
      %5328 = vset.pattern.permute.xlu0 25
      %5329 = vperm.xlu0 %5328, %v785
      %v5330 = vpop.permute.xlu0 %5329
      %5331 = vset.pattern.permute.xlu0 25
      %5332 = vperm.xlu0 %5331, %v786
      %v5333 = vpop.permute.xlu0 %5332
      %5334 = vset.pattern.permute.xlu0 25
      %5335 = vperm.xlu0 %5334, %v787
      %v5336 = vpop.permute.xlu0 %5335
      %5337 = vset.pattern.permute.xlu0 25
      %5338 = vperm.xlu0 %5337, %v788
      %v5339 = vpop.permute.xlu0 %5338
      %vm5340 = vcmp.eq.s32.totalorder %v5330, %v1009
      %vm5341 = vcmp.eq.s32.totalorder %v5333, %v1009
      %vm5342 = vcmp.eq.s32.totalorder %v5336, %v1009
      %vm5343 = vcmp.eq.s32.totalorder %v5339, %v1009
      %5344 = vset.pattern.permute.xlu0 89
      %5345 = vperm.xlu0 %5344, %v5184
      %v5346 = vpop.permute.xlu0 %5345
      %5348 = vset.pattern.permute.xlu0 89
      %5349 = vperm.xlu0 %5348, %v5185
      %v5350 = vpop.permute.xlu0 %5349
      %5352 = vset.pattern.permute.xlu0 89
      %5353 = vperm.xlu0 %5352, %v5186
      %v5354 = vpop.permute.xlu0 %5353
      %5356 = vset.pattern.permute.xlu0 89
      %5357 = vperm.xlu0 %5356, %v5187
      %v5358 = vpop.permute.xlu0 %5357
      %v5360 = vsel %vm5340, %v5346, 0.0
      %v5361 = vsel %vm5341, %v5350, 0.0
      %v5362 = vsel %vm5342, %v5354, 0.0
      %v5363 = vsel %vm5343, %v5358, 0.0
      %v5364 = vadd.f32 %v5240, %v5360
      %v5365 = vadd.f32 %v5241, %v5361
      %v5366 = vadd.f32 %v5242, %v5362
      %v5367 = vadd.f32 %v5243, %v5363
      %5368 = vset.pattern.permute.xlu0 89
      %5369 = vperm.xlu0 %5368, %v5188
      %v5370 = vpop.permute.xlu0 %5369
      %5372 = vset.pattern.permute.xlu0 89
      %5373 = vperm.xlu0 %5372, %v5189
      %v5374 = vpop.permute.xlu0 %5373
      %5376 = vset.pattern.permute.xlu0 89
      %5377 = vperm.xlu0 %5376, %v5190
      %v5378 = vpop.permute.xlu0 %5377
      %5380 = vset.pattern.permute.xlu0 89
      %5381 = vperm.xlu0 %5380, %v5191
      %v5382 = vpop.permute.xlu0 %5381
      %v5384 = vsel %vm5340, %v5370, 0.0
      %v5385 = vsel %vm5341, %v5374, 0.0
      %v5386 = vsel %vm5342, %v5378, 0.0
      %v5387 = vsel %vm5343, %v5382, 0.0
      %v5388 = vadd.f32 %v5268, %v5384
      %v5389 = vadd.f32 %v5269, %v5385
      %v5390 = vadd.f32 %v5270, %v5386
      %v5391 = vadd.f32 %v5271, %v5387
      %5392 = vset.pattern.permute.xlu0 89
      %5393 = vperm.xlu0 %5392, %v5192
      %v5394 = vpop.permute.xlu0 %5393
      %5396 = vset.pattern.permute.xlu0 89
      %5397 = vperm.xlu0 %5396, %v5193
      %v5398 = vpop.permute.xlu0 %5397
      %5400 = vset.pattern.permute.xlu0 89
      %5401 = vperm.xlu0 %5400, %v5194
      %v5402 = vpop.permute.xlu0 %5401
      %5404 = vset.pattern.permute.xlu0 89
      %5405 = vperm.xlu0 %5404, %v5195
      %v5406 = vpop.permute.xlu0 %5405
      %v5408 = vsel %vm5340, %v5394, 0.0
      %v5409 = vsel %vm5341, %v5398, 0.0
      %v5410 = vsel %vm5342, %v5402, 0.0
      %v5411 = vsel %vm5343, %v5406, 0.0
      %v5412 = vadd.f32 %v5296, %v5408
      %v5413 = vadd.f32 %v5297, %v5409
      %v5414 = vadd.f32 %v5298, %v5410
      %v5415 = vadd.f32 %v5299, %v5411
      %5416 = vset.pattern.permute.xlu0 89
      %5417 = vperm.xlu0 %5416, %v5196
      %v5418 = vpop.permute.xlu0 %5417
      %5420 = vset.pattern.permute.xlu0 89
      %5421 = vperm.xlu0 %5420, %v5197
      %v5422 = vpop.permute.xlu0 %5421
      %5424 = vset.pattern.permute.xlu0 89
      %5425 = vperm.xlu0 %5424, %v5198
      %v5426 = vpop.permute.xlu0 %5425
      %5428 = vset.pattern.permute.xlu0 89
      %5429 = vperm.xlu0 %5428, %v5199
      %v5430 = vpop.permute.xlu0 %5429
      %v5432 = vsel %vm5340, %v5418, 0.0
      %v5433 = vsel %vm5341, %v5422, 0.0
      %v5434 = vsel %vm5342, %v5426, 0.0
      %v5435 = vsel %vm5343, %v5430, 0.0
      %v5436 = vadd.f32 %v5324, %v5432
      %v5437 = vadd.f32 %v5325, %v5433
      %v5438 = vadd.f32 %v5326, %v5434
      %v5439 = vadd.f32 %v5327, %v5435
      %5440 = vset.pattern.permute.xlu0 26
      %5441 = vperm.xlu0 %5440, %v785
      %v5442 = vpop.permute.xlu0 %5441
      %5443 = vset.pattern.permute.xlu0 26
      %5444 = vperm.xlu0 %5443, %v786
      %v5445 = vpop.permute.xlu0 %5444
      %5446 = vset.pattern.permute.xlu0 26
      %5447 = vperm.xlu0 %5446, %v787
      %v5448 = vpop.permute.xlu0 %5447
      %5449 = vset.pattern.permute.xlu0 26
      %5450 = vperm.xlu0 %5449, %v788
      %v5451 = vpop.permute.xlu0 %5450
      %vm5452 = vcmp.eq.s32.totalorder %v5442, %v1009
      %vm5453 = vcmp.eq.s32.totalorder %v5445, %v1009
      %vm5454 = vcmp.eq.s32.totalorder %v5448, %v1009
      %vm5455 = vcmp.eq.s32.totalorder %v5451, %v1009
      %5456 = vset.pattern.permute.xlu0 90
      %5457 = vperm.xlu0 %5456, %v5184
      %v5458 = vpop.permute.xlu0 %5457
      %5460 = vset.pattern.permute.xlu0 90
      %5461 = vperm.xlu0 %5460, %v5185
      %v5462 = vpop.permute.xlu0 %5461
      %5464 = vset.pattern.permute.xlu0 90
      %5465 = vperm.xlu0 %5464, %v5186
      %v5466 = vpop.permute.xlu0 %5465
      %5468 = vset.pattern.permute.xlu0 90
      %5469 = vperm.xlu0 %5468, %v5187
      %v5470 = vpop.permute.xlu0 %5469
      %v5472 = vsel %vm5452, %v5458, 0.0
      %v5473 = vsel %vm5453, %v5462, 0.0
      %v5474 = vsel %vm5454, %v5466, 0.0
      %v5475 = vsel %vm5455, %v5470, 0.0
      %v5476 = vadd.f32 %v5364, %v5472
      %v5477 = vadd.f32 %v5365, %v5473
      %v5478 = vadd.f32 %v5366, %v5474
      %v5479 = vadd.f32 %v5367, %v5475
      %5480 = vset.pattern.permute.xlu0 90
      %5481 = vperm.xlu0 %5480, %v5188
      %v5482 = vpop.permute.xlu0 %5481
      %5484 = vset.pattern.permute.xlu0 90
      %5485 = vperm.xlu0 %5484, %v5189
      %v5486 = vpop.permute.xlu0 %5485
      %5488 = vset.pattern.permute.xlu0 90
      %5489 = vperm.xlu0 %5488, %v5190
      %v5490 = vpop.permute.xlu0 %5489
      %5492 = vset.pattern.permute.xlu0 90
      %5493 = vperm.xlu0 %5492, %v5191
      %v5494 = vpop.permute.xlu0 %5493
      %v5496 = vsel %vm5452, %v5482, 0.0
      %v5497 = vsel %vm5453, %v5486, 0.0
      %v5498 = vsel %vm5454, %v5490, 0.0
      %v5499 = vsel %vm5455, %v5494, 0.0
      %v5500 = vadd.f32 %v5388, %v5496
      %v5501 = vadd.f32 %v5389, %v5497
      %v5502 = vadd.f32 %v5390, %v5498
      %v5503 = vadd.f32 %v5391, %v5499
      %5504 = vset.pattern.permute.xlu0 90
      %5505 = vperm.xlu0 %5504, %v5192
      %v5506 = vpop.permute.xlu0 %5505
      %5508 = vset.pattern.permute.xlu0 90
      %5509 = vperm.xlu0 %5508, %v5193
      %v5510 = vpop.permute.xlu0 %5509
      %5512 = vset.pattern.permute.xlu0 90
      %5513 = vperm.xlu0 %5512, %v5194
      %v5514 = vpop.permute.xlu0 %5513
      %5516 = vset.pattern.permute.xlu0 90
      %5517 = vperm.xlu0 %5516, %v5195
      %v5518 = vpop.permute.xlu0 %5517
      %v5520 = vsel %vm5452, %v5506, 0.0
      %v5521 = vsel %vm5453, %v5510, 0.0
      %v5522 = vsel %vm5454, %v5514, 0.0
      %v5523 = vsel %vm5455, %v5518, 0.0
      %v5524 = vadd.f32 %v5412, %v5520
      %v5525 = vadd.f32 %v5413, %v5521
      %v5526 = vadd.f32 %v5414, %v5522
      %v5527 = vadd.f32 %v5415, %v5523
      %5528 = vset.pattern.permute.xlu0 90
      %5529 = vperm.xlu0 %5528, %v5196
      %v5530 = vpop.permute.xlu0 %5529
      %5532 = vset.pattern.permute.xlu0 90
      %5533 = vperm.xlu0 %5532, %v5197
      %v5534 = vpop.permute.xlu0 %5533
      %5536 = vset.pattern.permute.xlu0 90
      %5537 = vperm.xlu0 %5536, %v5198
      %v5538 = vpop.permute.xlu0 %5537
      %5540 = vset.pattern.permute.xlu0 90
      %5541 = vperm.xlu0 %5540, %v5199
      %v5542 = vpop.permute.xlu0 %5541
      %v5544 = vsel %vm5452, %v5530, 0.0
      %v5545 = vsel %vm5453, %v5534, 0.0
      %v5546 = vsel %vm5454, %v5538, 0.0
      %v5547 = vsel %vm5455, %v5542, 0.0
      %v5548 = vadd.f32 %v5436, %v5544
      %v5549 = vadd.f32 %v5437, %v5545
      %v5550 = vadd.f32 %v5438, %v5546
      %v5551 = vadd.f32 %v5439, %v5547
      %5552 = vset.pattern.permute.xlu0 27
      %5553 = vperm.xlu0 %5552, %v785
      %v5554 = vpop.permute.xlu0 %5553
      %5555 = vset.pattern.permute.xlu0 27
      %5556 = vperm.xlu0 %5555, %v786
      %v5557 = vpop.permute.xlu0 %5556
      %5558 = vset.pattern.permute.xlu0 27
      %5559 = vperm.xlu0 %5558, %v787
      %v5560 = vpop.permute.xlu0 %5559
      %5561 = vset.pattern.permute.xlu0 27
      %5562 = vperm.xlu0 %5561, %v788
      %v5563 = vpop.permute.xlu0 %5562
      %vm5564 = vcmp.eq.s32.totalorder %v5554, %v1009
      %vm5565 = vcmp.eq.s32.totalorder %v5557, %v1009
      %vm5566 = vcmp.eq.s32.totalorder %v5560, %v1009
      %vm5567 = vcmp.eq.s32.totalorder %v5563, %v1009
      %5568 = vset.pattern.permute.xlu0 91
      %5569 = vperm.xlu0 %5568, %v5184
      %v5570 = vpop.permute.xlu0 %5569
      %5572 = vset.pattern.permute.xlu0 91
      %5573 = vperm.xlu0 %5572, %v5185
      %v5574 = vpop.permute.xlu0 %5573
      %5576 = vset.pattern.permute.xlu0 91
      %5577 = vperm.xlu0 %5576, %v5186
      %v5578 = vpop.permute.xlu0 %5577
      %5580 = vset.pattern.permute.xlu0 91
      %5581 = vperm.xlu0 %5580, %v5187
      %v5582 = vpop.permute.xlu0 %5581
      %v5584 = vsel %vm5564, %v5570, 0.0
      %v5585 = vsel %vm5565, %v5574, 0.0
      %v5586 = vsel %vm5566, %v5578, 0.0
      %v5587 = vsel %vm5567, %v5582, 0.0
      %v5588 = vadd.f32 %v5476, %v5584
      %v5589 = vadd.f32 %v5477, %v5585
      %v5590 = vadd.f32 %v5478, %v5586
      %v5591 = vadd.f32 %v5479, %v5587
      %5592 = vset.pattern.permute.xlu0 91
      %5593 = vperm.xlu0 %5592, %v5188
      %v5594 = vpop.permute.xlu0 %5593
      %5596 = vset.pattern.permute.xlu0 91
      %5597 = vperm.xlu0 %5596, %v5189
      %v5598 = vpop.permute.xlu0 %5597
      %5600 = vset.pattern.permute.xlu0 91
      %5601 = vperm.xlu0 %5600, %v5190
      %v5602 = vpop.permute.xlu0 %5601
      %5604 = vset.pattern.permute.xlu0 91
      %5605 = vperm.xlu0 %5604, %v5191
      %v5606 = vpop.permute.xlu0 %5605
      %v5608 = vsel %vm5564, %v5594, 0.0
      %v5609 = vsel %vm5565, %v5598, 0.0
      %v5610 = vsel %vm5566, %v5602, 0.0
      %v5611 = vsel %vm5567, %v5606, 0.0
      %v5612 = vadd.f32 %v5500, %v5608
      %v5613 = vadd.f32 %v5501, %v5609
      %v5614 = vadd.f32 %v5502, %v5610
      %v5615 = vadd.f32 %v5503, %v5611
      %5616 = vset.pattern.permute.xlu0 91
      %5617 = vperm.xlu0 %5616, %v5192
      %v5618 = vpop.permute.xlu0 %5617
      %5620 = vset.pattern.permute.xlu0 91
      %5621 = vperm.xlu0 %5620, %v5193
      %v5622 = vpop.permute.xlu0 %5621
      %5624 = vset.pattern.permute.xlu0 91
      %5625 = vperm.xlu0 %5624, %v5194
      %v5626 = vpop.permute.xlu0 %5625
      %5628 = vset.pattern.permute.xlu0 91
      %5629 = vperm.xlu0 %5628, %v5195
      %v5630 = vpop.permute.xlu0 %5629
      %v5632 = vsel %vm5564, %v5618, 0.0
      %v5633 = vsel %vm5565, %v5622, 0.0
      %v5634 = vsel %vm5566, %v5626, 0.0
      %v5635 = vsel %vm5567, %v5630, 0.0
      %v5636 = vadd.f32 %v5524, %v5632
      %v5637 = vadd.f32 %v5525, %v5633
      %v5638 = vadd.f32 %v5526, %v5634
      %v5639 = vadd.f32 %v5527, %v5635
      %5640 = vset.pattern.permute.xlu0 91
      %5641 = vperm.xlu0 %5640, %v5196
      %v5642 = vpop.permute.xlu0 %5641
      %5644 = vset.pattern.permute.xlu0 91
      %5645 = vperm.xlu0 %5644, %v5197
      %v5646 = vpop.permute.xlu0 %5645
      %5648 = vset.pattern.permute.xlu0 91
      %5649 = vperm.xlu0 %5648, %v5198
      %v5650 = vpop.permute.xlu0 %5649
      %5652 = vset.pattern.permute.xlu0 91
      %5653 = vperm.xlu0 %5652, %v5199
      %v5654 = vpop.permute.xlu0 %5653
      %v5656 = vsel %vm5564, %v5642, 0.0
      %v5657 = vsel %vm5565, %v5646, 0.0
      %v5658 = vsel %vm5566, %v5650, 0.0
      %v5659 = vsel %vm5567, %v5654, 0.0
      %v5660 = vadd.f32 %v5548, %v5656
      %v5661 = vadd.f32 %v5549, %v5657
      %v5662 = vadd.f32 %v5550, %v5658
      %v5663 = vadd.f32 %v5551, %v5659
      %5664 = vset.pattern.permute.xlu0 28
      %5665 = vperm.xlu0 %5664, %v785
      %v5666 = vpop.permute.xlu0 %5665
      %5667 = vset.pattern.permute.xlu0 28
      %5668 = vperm.xlu0 %5667, %v786
      %v5669 = vpop.permute.xlu0 %5668
      %5670 = vset.pattern.permute.xlu0 28
      %5671 = vperm.xlu0 %5670, %v787
      %v5672 = vpop.permute.xlu0 %5671
      %5673 = vset.pattern.permute.xlu0 28
      %5674 = vperm.xlu0 %5673, %v788
      %v5675 = vpop.permute.xlu0 %5674
      %vm5676 = vcmp.eq.s32.totalorder %v5666, %v1009
      %vm5677 = vcmp.eq.s32.totalorder %v5669, %v1009
      %vm5678 = vcmp.eq.s32.totalorder %v5672, %v1009
      %vm5679 = vcmp.eq.s32.totalorder %v5675, %v1009
      %5680 = vset.pattern.permute.xlu0 92
      %5681 = vperm.xlu0 %5680, %v5184
      %v5682 = vpop.permute.xlu0 %5681
      %5684 = vset.pattern.permute.xlu0 92
      %5685 = vperm.xlu0 %5684, %v5185
      %v5686 = vpop.permute.xlu0 %5685
      %5688 = vset.pattern.permute.xlu0 92
      %5689 = vperm.xlu0 %5688, %v5186
      %v5690 = vpop.permute.xlu0 %5689
      %5692 = vset.pattern.permute.xlu0 92
      %5693 = vperm.xlu0 %5692, %v5187
      %v5694 = vpop.permute.xlu0 %5693
      %v5696 = vsel %vm5676, %v5682, 0.0
      %v5697 = vsel %vm5677, %v5686, 0.0
      %v5698 = vsel %vm5678, %v5690, 0.0
      %v5699 = vsel %vm5679, %v5694, 0.0
      %v5700 = vadd.f32 %v5588, %v5696
      %v5701 = vadd.f32 %v5589, %v5697
      %v5702 = vadd.f32 %v5590, %v5698
      %v5703 = vadd.f32 %v5591, %v5699
      %5704 = vset.pattern.permute.xlu0 92
      %5705 = vperm.xlu0 %5704, %v5188
      %v5706 = vpop.permute.xlu0 %5705
      %5708 = vset.pattern.permute.xlu0 92
      %5709 = vperm.xlu0 %5708, %v5189
      %v5710 = vpop.permute.xlu0 %5709
      %5712 = vset.pattern.permute.xlu0 92
      %5713 = vperm.xlu0 %5712, %v5190
      %v5714 = vpop.permute.xlu0 %5713
      %5716 = vset.pattern.permute.xlu0 92
      %5717 = vperm.xlu0 %5716, %v5191
      %v5718 = vpop.permute.xlu0 %5717
      %v5720 = vsel %vm5676, %v5706, 0.0
      %v5721 = vsel %vm5677, %v5710, 0.0
      %v5722 = vsel %vm5678, %v5714, 0.0
      %v5723 = vsel %vm5679, %v5718, 0.0
      %v5724 = vadd.f32 %v5612, %v5720
      %v5725 = vadd.f32 %v5613, %v5721
      %v5726 = vadd.f32 %v5614, %v5722
      %v5727 = vadd.f32 %v5615, %v5723
      %5728 = vset.pattern.permute.xlu0 92
      %5729 = vperm.xlu0 %5728, %v5192
      %v5730 = vpop.permute.xlu0 %5729
      %5732 = vset.pattern.permute.xlu0 92
      %5733 = vperm.xlu0 %5732, %v5193
      %v5734 = vpop.permute.xlu0 %5733
      %5736 = vset.pattern.permute.xlu0 92
      %5737 = vperm.xlu0 %5736, %v5194
      %v5738 = vpop.permute.xlu0 %5737
      %5740 = vset.pattern.permute.xlu0 92
      %5741 = vperm.xlu0 %5740, %v5195
      %v5742 = vpop.permute.xlu0 %5741
      %v5744 = vsel %vm5676, %v5730, 0.0
      %v5745 = vsel %vm5677, %v5734, 0.0
      %v5746 = vsel %vm5678, %v5738, 0.0
      %v5747 = vsel %vm5679, %v5742, 0.0
      %v5748 = vadd.f32 %v5636, %v5744
      %v5749 = vadd.f32 %v5637, %v5745
      %v5750 = vadd.f32 %v5638, %v5746
      %v5751 = vadd.f32 %v5639, %v5747
      %5752 = vset.pattern.permute.xlu0 92
      %5753 = vperm.xlu0 %5752, %v5196
      %v5754 = vpop.permute.xlu0 %5753
      %5756 = vset.pattern.permute.xlu0 92
      %5757 = vperm.xlu0 %5756, %v5197
      %v5758 = vpop.permute.xlu0 %5757
      %5760 = vset.pattern.permute.xlu0 92
      %5761 = vperm.xlu0 %5760, %v5198
      %v5762 = vpop.permute.xlu0 %5761
      %5764 = vset.pattern.permute.xlu0 92
      %5765 = vperm.xlu0 %5764, %v5199
      %v5766 = vpop.permute.xlu0 %5765
      %v5768 = vsel %vm5676, %v5754, 0.0
      %v5769 = vsel %vm5677, %v5758, 0.0
      %v5770 = vsel %vm5678, %v5762, 0.0
      %v5771 = vsel %vm5679, %v5766, 0.0
      %v5772 = vadd.f32 %v5660, %v5768
      %v5773 = vadd.f32 %v5661, %v5769
      %v5774 = vadd.f32 %v5662, %v5770
      %v5775 = vadd.f32 %v5663, %v5771
      %5776 = vset.pattern.permute.xlu0 29
      %5777 = vperm.xlu0 %5776, %v785
      %v5778 = vpop.permute.xlu0 %5777
      %5779 = vset.pattern.permute.xlu0 29
      %5780 = vperm.xlu0 %5779, %v786
      %v5781 = vpop.permute.xlu0 %5780
      %5782 = vset.pattern.permute.xlu0 29
      %5783 = vperm.xlu0 %5782, %v787
      %v5784 = vpop.permute.xlu0 %5783
      %5785 = vset.pattern.permute.xlu0 29
      %5786 = vperm.xlu0 %5785, %v788
      %v5787 = vpop.permute.xlu0 %5786
      %vm5788 = vcmp.eq.s32.totalorder %v5778, %v1009
      %vm5789 = vcmp.eq.s32.totalorder %v5781, %v1009
      %vm5790 = vcmp.eq.s32.totalorder %v5784, %v1009
      %vm5791 = vcmp.eq.s32.totalorder %v5787, %v1009
      %5792 = vset.pattern.permute.xlu0 93
      %5793 = vperm.xlu0 %5792, %v5184
      %v5794 = vpop.permute.xlu0 %5793
      %5796 = vset.pattern.permute.xlu0 93
      %5797 = vperm.xlu0 %5796, %v5185
      %v5798 = vpop.permute.xlu0 %5797
      %5800 = vset.pattern.permute.xlu0 93
      %5801 = vperm.xlu0 %5800, %v5186
      %v5802 = vpop.permute.xlu0 %5801
      %5804 = vset.pattern.permute.xlu0 93
      %5805 = vperm.xlu0 %5804, %v5187
      %v5806 = vpop.permute.xlu0 %5805
      %v5808 = vsel %vm5788, %v5794, 0.0
      %v5809 = vsel %vm5789, %v5798, 0.0
      %v5810 = vsel %vm5790, %v5802, 0.0
      %v5811 = vsel %vm5791, %v5806, 0.0
      %v5812 = vadd.f32 %v5700, %v5808
      %v5813 = vadd.f32 %v5701, %v5809
      %v5814 = vadd.f32 %v5702, %v5810
      %v5815 = vadd.f32 %v5703, %v5811
      %5816 = vset.pattern.permute.xlu0 93
      %5817 = vperm.xlu0 %5816, %v5188
      %v5818 = vpop.permute.xlu0 %5817
      %5820 = vset.pattern.permute.xlu0 93
      %5821 = vperm.xlu0 %5820, %v5189
      %v5822 = vpop.permute.xlu0 %5821
      %5824 = vset.pattern.permute.xlu0 93
      %5825 = vperm.xlu0 %5824, %v5190
      %v5826 = vpop.permute.xlu0 %5825
      %5828 = vset.pattern.permute.xlu0 93
      %5829 = vperm.xlu0 %5828, %v5191
      %v5830 = vpop.permute.xlu0 %5829
      %v5832 = vsel %vm5788, %v5818, 0.0
      %v5833 = vsel %vm5789, %v5822, 0.0
      %v5834 = vsel %vm5790, %v5826, 0.0
      %v5835 = vsel %vm5791, %v5830, 0.0
      %v5836 = vadd.f32 %v5724, %v5832
      %v5837 = vadd.f32 %v5725, %v5833
      %v5838 = vadd.f32 %v5726, %v5834
      %v5839 = vadd.f32 %v5727, %v5835
      %5840 = vset.pattern.permute.xlu0 93
      %5841 = vperm.xlu0 %5840, %v5192
      %v5842 = vpop.permute.xlu0 %5841
      %5844 = vset.pattern.permute.xlu0 93
      %5845 = vperm.xlu0 %5844, %v5193
      %v5846 = vpop.permute.xlu0 %5845
      %5848 = vset.pattern.permute.xlu0 93
      %5849 = vperm.xlu0 %5848, %v5194
      %v5850 = vpop.permute.xlu0 %5849
      %5852 = vset.pattern.permute.xlu0 93
      %5853 = vperm.xlu0 %5852, %v5195
      %v5854 = vpop.permute.xlu0 %5853
      %v5856 = vsel %vm5788, %v5842, 0.0
      %v5857 = vsel %vm5789, %v5846, 0.0
      %v5858 = vsel %vm5790, %v5850, 0.0
      %v5859 = vsel %vm5791, %v5854, 0.0
      %v5860 = vadd.f32 %v5748, %v5856
      %v5861 = vadd.f32 %v5749, %v5857
      %v5862 = vadd.f32 %v5750, %v5858
      %v5863 = vadd.f32 %v5751, %v5859
      %5864 = vset.pattern.permute.xlu0 93
      %5865 = vperm.xlu0 %5864, %v5196
      %v5866 = vpop.permute.xlu0 %5865
      %5868 = vset.pattern.permute.xlu0 93
      %5869 = vperm.xlu0 %5868, %v5197
      %v5870 = vpop.permute.xlu0 %5869
      %5872 = vset.pattern.permute.xlu0 93
      %5873 = vperm.xlu0 %5872, %v5198
      %v5874 = vpop.permute.xlu0 %5873
      %5876 = vset.pattern.permute.xlu0 93
      %5877 = vperm.xlu0 %5876, %v5199
      %v5878 = vpop.permute.xlu0 %5877
      %v5880 = vsel %vm5788, %v5866, 0.0
      %v5881 = vsel %vm5789, %v5870, 0.0
      %v5882 = vsel %vm5790, %v5874, 0.0
      %v5883 = vsel %vm5791, %v5878, 0.0
      %v5884 = vadd.f32 %v5772, %v5880
      %v5885 = vadd.f32 %v5773, %v5881
      %v5886 = vadd.f32 %v5774, %v5882
      %v5887 = vadd.f32 %v5775, %v5883
      %5888 = vset.pattern.permute.xlu0 30
      %5889 = vperm.xlu0 %5888, %v785
      %v5890 = vpop.permute.xlu0 %5889
      %5891 = vset.pattern.permute.xlu0 30
      %5892 = vperm.xlu0 %5891, %v786
      %v5893 = vpop.permute.xlu0 %5892
      %5894 = vset.pattern.permute.xlu0 30
      %5895 = vperm.xlu0 %5894, %v787
      %v5896 = vpop.permute.xlu0 %5895
      %5897 = vset.pattern.permute.xlu0 30
      %5898 = vperm.xlu0 %5897, %v788
      %v5899 = vpop.permute.xlu0 %5898
      %vm5900 = vcmp.eq.s32.totalorder %v5890, %v1009
      %vm5901 = vcmp.eq.s32.totalorder %v5893, %v1009
      %vm5902 = vcmp.eq.s32.totalorder %v5896, %v1009
      %vm5903 = vcmp.eq.s32.totalorder %v5899, %v1009
      %5904 = vset.pattern.permute.xlu0 94
      %5905 = vperm.xlu0 %5904, %v5184
      %v5906 = vpop.permute.xlu0 %5905
      %5908 = vset.pattern.permute.xlu0 94
      %5909 = vperm.xlu0 %5908, %v5185
      %v5910 = vpop.permute.xlu0 %5909
      %5912 = vset.pattern.permute.xlu0 94
      %5913 = vperm.xlu0 %5912, %v5186
      %v5914 = vpop.permute.xlu0 %5913
      %5916 = vset.pattern.permute.xlu0 94
      %5917 = vperm.xlu0 %5916, %v5187
      %v5918 = vpop.permute.xlu0 %5917
      %v5920 = vsel %vm5900, %v5906, 0.0
      %v5921 = vsel %vm5901, %v5910, 0.0
      %v5922 = vsel %vm5902, %v5914, 0.0
      %v5923 = vsel %vm5903, %v5918, 0.0
      %v5924 = vadd.f32 %v5812, %v5920
      %v5925 = vadd.f32 %v5813, %v5921
      %v5926 = vadd.f32 %v5814, %v5922
      %v5927 = vadd.f32 %v5815, %v5923
      %5928 = vset.pattern.permute.xlu0 94
      %5929 = vperm.xlu0 %5928, %v5188
      %v5930 = vpop.permute.xlu0 %5929
      %5932 = vset.pattern.permute.xlu0 94
      %5933 = vperm.xlu0 %5932, %v5189
      %v5934 = vpop.permute.xlu0 %5933
      %5936 = vset.pattern.permute.xlu0 94
      %5937 = vperm.xlu0 %5936, %v5190
      %v5938 = vpop.permute.xlu0 %5937
      %5940 = vset.pattern.permute.xlu0 94
      %5941 = vperm.xlu0 %5940, %v5191
      %v5942 = vpop.permute.xlu0 %5941
      %v5944 = vsel %vm5900, %v5930, 0.0
      %v5945 = vsel %vm5901, %v5934, 0.0
      %v5946 = vsel %vm5902, %v5938, 0.0
      %v5947 = vsel %vm5903, %v5942, 0.0
      %v5948 = vadd.f32 %v5836, %v5944
      %v5949 = vadd.f32 %v5837, %v5945
      %v5950 = vadd.f32 %v5838, %v5946
      %v5951 = vadd.f32 %v5839, %v5947
      %5952 = vset.pattern.permute.xlu0 94
      %5953 = vperm.xlu0 %5952, %v5192
      %v5954 = vpop.permute.xlu0 %5953
      %5956 = vset.pattern.permute.xlu0 94
      %5957 = vperm.xlu0 %5956, %v5193
      %v5958 = vpop.permute.xlu0 %5957
      %5960 = vset.pattern.permute.xlu0 94
      %5961 = vperm.xlu0 %5960, %v5194
      %v5962 = vpop.permute.xlu0 %5961
      %5964 = vset.pattern.permute.xlu0 94
      %5965 = vperm.xlu0 %5964, %v5195
      %v5966 = vpop.permute.xlu0 %5965
      %v5968 = vsel %vm5900, %v5954, 0.0
      %v5969 = vsel %vm5901, %v5958, 0.0
      %v5970 = vsel %vm5902, %v5962, 0.0
      %v5971 = vsel %vm5903, %v5966, 0.0
      %v5972 = vadd.f32 %v5860, %v5968
      %v5973 = vadd.f32 %v5861, %v5969
      %v5974 = vadd.f32 %v5862, %v5970
      %v5975 = vadd.f32 %v5863, %v5971
      %5976 = vset.pattern.permute.xlu0 94
      %5977 = vperm.xlu0 %5976, %v5196
      %v5978 = vpop.permute.xlu0 %5977
      %5980 = vset.pattern.permute.xlu0 94
      %5981 = vperm.xlu0 %5980, %v5197
      %v5982 = vpop.permute.xlu0 %5981
      %5984 = vset.pattern.permute.xlu0 94
      %5985 = vperm.xlu0 %5984, %v5198
      %v5986 = vpop.permute.xlu0 %5985
      %5988 = vset.pattern.permute.xlu0 94
      %5989 = vperm.xlu0 %5988, %v5199
      %v5990 = vpop.permute.xlu0 %5989
      %v5992 = vsel %vm5900, %v5978, 0.0
      %v5993 = vsel %vm5901, %v5982, 0.0
      %v5994 = vsel %vm5902, %v5986, 0.0
      %v5995 = vsel %vm5903, %v5990, 0.0
      %v5996 = vadd.f32 %v5884, %v5992
      %v5997 = vadd.f32 %v5885, %v5993
      %v5998 = vadd.f32 %v5886, %v5994
      %v5999 = vadd.f32 %v5887, %v5995
      %6000 = vset.pattern.permute.xlu0 31
      %6001 = vperm.xlu0 %6000, %v785
      %v6002 = vpop.permute.xlu0 %6001
      %6003 = vset.pattern.permute.xlu0 31
      %6004 = vperm.xlu0 %6003, %v786
      %v6005 = vpop.permute.xlu0 %6004
      %6006 = vset.pattern.permute.xlu0 31
      %6007 = vperm.xlu0 %6006, %v787
      %v6008 = vpop.permute.xlu0 %6007
      %6009 = vset.pattern.permute.xlu0 31
      %6010 = vperm.xlu0 %6009, %v788
      %v6011 = vpop.permute.xlu0 %6010
      %vm6012 = vcmp.eq.s32.totalorder %v6002, %v1009
      %vm6013 = vcmp.eq.s32.totalorder %v6005, %v1009
      %vm6014 = vcmp.eq.s32.totalorder %v6008, %v1009
      %vm6015 = vcmp.eq.s32.totalorder %v6011, %v1009
      %6016 = vset.pattern.permute.xlu0 95
      %6017 = vperm.xlu0 %6016, %v5184
      %v6018 = vpop.permute.xlu0 %6017
      %6020 = vset.pattern.permute.xlu0 95
      %6021 = vperm.xlu0 %6020, %v5185
      %v6022 = vpop.permute.xlu0 %6021
      %6024 = vset.pattern.permute.xlu0 95
      %6025 = vperm.xlu0 %6024, %v5186
      %v6026 = vpop.permute.xlu0 %6025
      %6028 = vset.pattern.permute.xlu0 95
      %6029 = vperm.xlu0 %6028, %v5187
      %v6030 = vpop.permute.xlu0 %6029
      %v6032 = vsel %vm6012, %v6018, 0.0
      %v6033 = vsel %vm6013, %v6022, 0.0
      %v6034 = vsel %vm6014, %v6026, 0.0
      %v6035 = vsel %vm6015, %v6030, 0.0
      %v6036 = vadd.f32 %v5924, %v6032
      %v6037 = vadd.f32 %v5925, %v6033
      %v6038 = vadd.f32 %v5926, %v6034
      %v6039 = vadd.f32 %v5927, %v6035
      %6040 = vset.pattern.permute.xlu0 95
      %6041 = vperm.xlu0 %6040, %v5188
      %v6042 = vpop.permute.xlu0 %6041
      %6044 = vset.pattern.permute.xlu0 95
      %6045 = vperm.xlu0 %6044, %v5189
      %v6046 = vpop.permute.xlu0 %6045
      %6048 = vset.pattern.permute.xlu0 95
      %6049 = vperm.xlu0 %6048, %v5190
      %v6050 = vpop.permute.xlu0 %6049
      %6052 = vset.pattern.permute.xlu0 95
      %6053 = vperm.xlu0 %6052, %v5191
      %v6054 = vpop.permute.xlu0 %6053
      %v6056 = vsel %vm6012, %v6042, 0.0
      %v6057 = vsel %vm6013, %v6046, 0.0
      %v6058 = vsel %vm6014, %v6050, 0.0
      %v6059 = vsel %vm6015, %v6054, 0.0
      %v6060 = vadd.f32 %v5948, %v6056
      %v6061 = vadd.f32 %v5949, %v6057
      %v6062 = vadd.f32 %v5950, %v6058
      %v6063 = vadd.f32 %v5951, %v6059
      %6064 = vset.pattern.permute.xlu0 95
      %6065 = vperm.xlu0 %6064, %v5192
      %v6066 = vpop.permute.xlu0 %6065
      %6068 = vset.pattern.permute.xlu0 95
      %6069 = vperm.xlu0 %6068, %v5193
      %v6070 = vpop.permute.xlu0 %6069
      %6072 = vset.pattern.permute.xlu0 95
      %6073 = vperm.xlu0 %6072, %v5194
      %v6074 = vpop.permute.xlu0 %6073
      %6076 = vset.pattern.permute.xlu0 95
      %6077 = vperm.xlu0 %6076, %v5195
      %v6078 = vpop.permute.xlu0 %6077
      %v6080 = vsel %vm6012, %v6066, 0.0
      %v6081 = vsel %vm6013, %v6070, 0.0
      %v6082 = vsel %vm6014, %v6074, 0.0
      %v6083 = vsel %vm6015, %v6078, 0.0
      %v6084 = vadd.f32 %v5972, %v6080
      %v6085 = vadd.f32 %v5973, %v6081
      %v6086 = vadd.f32 %v5974, %v6082
      %v6087 = vadd.f32 %v5975, %v6083
      %6088 = vset.pattern.permute.xlu0 95
      %6089 = vperm.xlu0 %6088, %v5196
      %v6090 = vpop.permute.xlu0 %6089
      %6092 = vset.pattern.permute.xlu0 95
      %6093 = vperm.xlu0 %6092, %v5197
      %v6094 = vpop.permute.xlu0 %6093
      %6096 = vset.pattern.permute.xlu0 95
      %6097 = vperm.xlu0 %6096, %v5198
      %v6098 = vpop.permute.xlu0 %6097
      %6100 = vset.pattern.permute.xlu0 95
      %6101 = vperm.xlu0 %6100, %v5199
      %v6102 = vpop.permute.xlu0 %6101
      %v6104 = vsel %vm6012, %v6090, 0.0
      %v6105 = vsel %vm6013, %v6094, 0.0
      %v6106 = vsel %vm6014, %v6098, 0.0
      %v6107 = vsel %vm6015, %v6102, 0.0
      %v6108 = vadd.f32 %v5996, %v6104
      %v6109 = vadd.f32 %v5997, %v6105
      %v6110 = vadd.f32 %v5998, %v6106
      %v6111 = vadd.f32 %v5999, %v6107
      %v6112 = vpack.c.bf16 %v6037, %v6036
      %v6113 = vpack.c.bf16 %v6039, %v6038
      %v6114 = vpack.c.bf16 %v6061, %v6060
      %v6115 = vpack.c.bf16 %v6063, %v6062
      %6116 = vrot.lane.b32.xlu0 %v984, 104
      %v6117 = vpop.permute.xlu0 %6116
      %6118 = vrot.lane.b32.xlu0 %v985, 104
      %v6119 = vpop.permute.xlu0 %6118
      %6120 = vrot.lane.b32.xlu0 %v986, 104
      %v6121 = vpop.permute.xlu0 %6120
      %6122 = vrot.lane.b32.xlu0 %v987, 104
      %v6123 = vpop.permute.xlu0 %6122
      %6124 = vrot.lane.b32.xlu0 %v988, 104
      %v6125 = vpop.permute.xlu0 %6124
      %6126 = vrot.lane.b32.xlu0 %v989, 104
      %v6127 = vpop.permute.xlu0 %6126
      %6128 = vrot.lane.b32.xlu0 %v990, 104
      %v6129 = vpop.permute.xlu0 %6128
      %6130 = vrot.lane.b32.xlu0 %v991, 104
      %v6131 = vpop.permute.xlu0 %6130
      %6140 = vmatprep.subr.bf16.mxu0 0
      %6141 = vmatpush1.bf16.msra.mxu0 %v6117
      %6142 = vmatprep.subr.bf16.mxu0 0
      %6143 = vmatpush1.bf16.msra.mxu0 %v6119
      %6144 = vmatprep.subr.bf16.mxu0 0
      %6145 = vmatpush1.bf16.msra.mxu0 %v6121
      %6146 = vmatprep.subr.bf16.mxu0 0
      %6147 = vmatpush1.bf16.msra.mxu0 %v6123
      %6148 = vmatprep.subr.bf16.mxu0 0
      %6149 = vmatpush1.bf16.msra.mxu0 %v6125
      %6150 = vmatprep.subr.bf16.mxu0 0
      %6151 = vmatpush1.bf16.msra.mxu0 %v6127
      %6152 = vmatprep.subr.bf16.mxu0 0
      %6153 = vmatpush1.bf16.msra.mxu0 %v6129
      %6154 = vmatprep.subr.bf16.mxu0 0
      %6155 = vmatpush1.bf16.msra.mxu0 %v6131
      %6156 = vmatprep.subr.bf16.mxu0 0
      %6157 = vmatpush1.bf16.msra.mxu0 0
      %6158 = vmatprep.subr.bf16.mxu0 0
      %6159 = vmatpush1.bf16.msra.mxu0 0
      %6160 = vmatprep.subr.bf16.mxu0 0
      %6161 = vmatpush1.bf16.msra.mxu0 0
      %6162 = vmatprep.subr.bf16.mxu0 0
      %6163 = vmatpush1.bf16.msra.mxu0 0
      %6164 = vmatprep.subr.bf16.mxu0 0
      %6165 = vmatpush1.bf16.msra.mxu0 0
      %6166 = vmatprep.subr.bf16.mxu0 0
      %6167 = vmatpush1.bf16.msra.mxu0 0
      %6168 = vmatprep.subr.bf16.mxu0 0
      %6169 = vmatpush1.bf16.msra.mxu0 0
      %6170 = vmatprep.subr.bf16.mxu0 0
      %6171 = vmatpush1.bf16.msra.mxu0 0
      %6172 = vmatprep.mubr.bf16.mxu0 0
      %6173 = vmatmul.mubr.bf16.gmra.mrb[0].mxu0 %v6114
      %v6174 = vpop.f32.mrb[0].mxu0
      %v6175 = vadd.f32 0.0, %v6174
      %v6176 = vpop.f32.mrb[0].mxu0
      %v6177 = vpop.f32.mrb[0].mxu0
      %v6178 = vadd.f32 0.0, %v6177
      %v6179 = vpop.f32.mrb[0].mxu0
      %6180 = vmatprep.mubr.bf16.mxu0 0
      %6181 = vmatmul.mubr.bf16.gmra.mrb[0].mxu0 %v6115
      %v6182 = vpop.f32.mrb[0].mxu0
      %v6183 = vadd.f32 0.0, %v6182
      %v6184 = vpop.f32.mrb[0].mxu0
      %v6185 = vpop.f32.mrb[0].mxu0
      %v6186 = vadd.f32 0.0, %v6185
      %v6187 = vpop.f32.mrb[0].mxu0
      %6188 = vdwg.mxu0
      %6189 = vrot.lane.b32.xlu0 %v2145, 104
      %v6190 = vpop.permute.xlu0 %6189
      %6191 = vrot.lane.b32.xlu0 %v2146, 104
      %v6192 = vpop.permute.xlu0 %6191
      %6193 = vrot.lane.b32.xlu0 %v2147, 104
      %v6194 = vpop.permute.xlu0 %6193
      %6195 = vrot.lane.b32.xlu0 %v2148, 104
      %v6196 = vpop.permute.xlu0 %6195
      %6197 = vrot.lane.b32.xlu0 %v2149, 104
      %v6198 = vpop.permute.xlu0 %6197
      %6199 = vrot.lane.b32.xlu0 %v2150, 104
      %v6200 = vpop.permute.xlu0 %6199
      %6201 = vrot.lane.b32.xlu0 %v2151, 104
      %v6202 = vpop.permute.xlu0 %6201
      %6203 = vrot.lane.b32.xlu0 %v2152, 104
      %v6204 = vpop.permute.xlu0 %6203
      %6213 = vmatprep.subr.bf16.mxu0 0
      %6214 = vmatpush1.bf16.msra.mxu0 %v6190
      %6215 = vmatprep.subr.bf16.mxu0 0
      %6216 = vmatpush1.bf16.msra.mxu0 %v6192
      %6217 = vmatprep.subr.bf16.mxu0 0
      %6218 = vmatpush1.bf16.msra.mxu0 %v6194
      %6219 = vmatprep.subr.bf16.mxu0 0
      %6220 = vmatpush1.bf16.msra.mxu0 %v6196
      %6221 = vmatprep.subr.bf16.mxu0 0
      %6222 = vmatpush1.bf16.msra.mxu0 %v6198
      %6223 = vmatprep.subr.bf16.mxu0 0
      %6224 = vmatpush1.bf16.msra.mxu0 %v6200
      %6225 = vmatprep.subr.bf16.mxu0 0
      %6226 = vmatpush1.bf16.msra.mxu0 %v6202
      %6227 = vmatprep.subr.bf16.mxu0 0
      %6228 = vmatpush1.bf16.msra.mxu0 %v6204
      %6229 = vmatprep.subr.bf16.mxu0 0
      %6230 = vmatpush1.bf16.msra.mxu0 0
      %6231 = vmatprep.subr.bf16.mxu0 0
      %6232 = vmatpush1.bf16.msra.mxu0 0
      %6233 = vmatprep.subr.bf16.mxu0 0
      %6234 = vmatpush1.bf16.msra.mxu0 0
      %6235 = vmatprep.subr.bf16.mxu0 0
      %6236 = vmatpush1.bf16.msra.mxu0 0
      %6237 = vmatprep.subr.bf16.mxu0 0
      %6238 = vmatpush1.bf16.msra.mxu0 0
      %6239 = vmatprep.subr.bf16.mxu0 0
      %6240 = vmatpush1.bf16.msra.mxu0 0
      %6241 = vmatprep.subr.bf16.mxu0 0
      %6242 = vmatpush1.bf16.msra.mxu0 0
      %6243 = vmatprep.subr.bf16.mxu0 0
      %6244 = vmatpush1.bf16.msra.mxu0 0
      %6245 = vmatprep.mubr.bf16.mxu0 0
      %6246 = vmatmul.mubr.bf16.gmra.mrb[0].mxu0 %v6112
      %v6247 = vpop.f32.mrb[0].mxu0
      %v6248 = vadd.f32 %v6175, %v6247
      %v6249 = vpop.f32.mrb[0].mxu0
      %v6250 = vpop.f32.mrb[0].mxu0
      %v6251 = vadd.f32 %v6178, %v6250
      %v6252 = vpop.f32.mrb[0].mxu0
      %6253 = vmatprep.mubr.bf16.mxu0 0
      %6254 = vmatmul.mubr.bf16.gmra.mrb[0].mxu0 %v6113
      %v6255 = vpop.f32.mrb[0].mxu0
      %v6256 = vadd.f32 %v6183, %v6255
      %v6257 = vpop.f32.mrb[0].mxu0
      %v6258 = vpop.f32.mrb[0].mxu0
      %v6259 = vadd.f32 %v6186, %v6258
      %v6260 = vpop.f32.mrb[0].mxu0
      %6261 = vdwg.mxu0
      %v6262 = vpack.c.bf16 %v6085, %v6084
      %v6263 = vpack.c.bf16 %v6087, %v6086
      %6264 = vrot.lane.b32.xlu0 %v992, 104
      %v6265 = vpop.permute.xlu0 %6264
      %6266 = vrot.lane.b32.xlu0 %v993, 104
      %v6267 = vpop.permute.xlu0 %6266
      %6268 = vrot.lane.b32.xlu0 %v994, 104
      %v6269 = vpop.permute.xlu0 %6268
      %6270 = vrot.lane.b32.xlu0 %v995, 104
      %v6271 = vpop.permute.xlu0 %6270
      %6272 = vrot.lane.b32.xlu0 %v996, 104
      %v6273 = vpop.permute.xlu0 %6272
      %6274 = vrot.lane.b32.xlu0 %v997, 104
      %v6275 = vpop.permute.xlu0 %6274
      %6276 = vrot.lane.b32.xlu0 %v998, 104
      %v6277 = vpop.permute.xlu0 %6276
      %6278 = vrot.lane.b32.xlu0 %v999, 104
      %v6279 = vpop.permute.xlu0 %6278
      %6288 = vmatprep.subr.bf16.mxu0 0
      %6289 = vmatpush1.bf16.msra.mxu0 %v6265
      %6290 = vmatprep.subr.bf16.mxu0 0
      %6291 = vmatpush1.bf16.msra.mxu0 %v6267
      %6292 = vmatprep.subr.bf16.mxu0 0
      %6293 = vmatpush1.bf16.msra.mxu0 %v6269
      %6294 = vmatprep.subr.bf16.mxu0 0
      %6295 = vmatpush1.bf16.msra.mxu0 %v6271
      %6296 = vmatprep.subr.bf16.mxu0 0
      %6297 = vmatpush1.bf16.msra.mxu0 %v6273
      %6298 = vmatprep.subr.bf16.mxu0 0
      %6299 = vmatpush1.bf16.msra.mxu0 %v6275
      %6300 = vmatprep.subr.bf16.mxu0 0
      %6301 = vmatpush1.bf16.msra.mxu0 %v6277
      %6302 = vmatprep.subr.bf16.mxu0 0
      %6303 = vmatpush1.bf16.msra.mxu0 %v6279
      %6304 = vmatprep.subr.bf16.mxu0 0
      %6305 = vmatpush1.bf16.msra.mxu0 0
      %6306 = vmatprep.subr.bf16.mxu0 0
      %6307 = vmatpush1.bf16.msra.mxu0 0
      %6308 = vmatprep.subr.bf16.mxu0 0
      %6309 = vmatpush1.bf16.msra.mxu0 0
      %6310 = vmatprep.subr.bf16.mxu0 0
      %6311 = vmatpush1.bf16.msra.mxu0 0
      %6312 = vmatprep.subr.bf16.mxu0 0
      %6313 = vmatpush1.bf16.msra.mxu0 0
      %6314 = vmatprep.subr.bf16.mxu0 0
      %6315 = vmatpush1.bf16.msra.mxu0 0
      %6316 = vmatprep.subr.bf16.mxu0 0
      %6317 = vmatpush1.bf16.msra.mxu0 0
      %6318 = vmatprep.subr.bf16.mxu0 0
      %6319 = vmatpush1.bf16.msra.mxu0 0
      %6320 = vmatprep.mubr.bf16.mxu0 0
      %6321 = vmatmul.mubr.bf16.gmra.mrb[0].mxu0 %v6262
      %v6322 = vpop.f32.mrb[0].mxu0
      %v6323 = vadd.f32 0.0, %v6322
      %v6324 = vpop.f32.mrb[0].mxu0
      %v6325 = vpop.f32.mrb[0].mxu0
      %v6326 = vadd.f32 0.0, %v6325
      %v6327 = vpop.f32.mrb[0].mxu0
      %6328 = vmatprep.mubr.bf16.mxu0 0
      %6329 = vmatmul.mubr.bf16.gmra.mrb[0].mxu0 %v6263
      %v6330 = vpop.f32.mrb[0].mxu0
      %v6331 = vadd.f32 0.0, %v6330
      %v6332 = vpop.f32.mrb[0].mxu0
      %v6333 = vpop.f32.mrb[0].mxu0
      %v6334 = vadd.f32 0.0, %v6333
      %v6335 = vpop.f32.mrb[0].mxu0
      %6336 = vdwg.mxu0
      %v6337 = vadd.f32 %v6248, %v6323
      %v6338 = vadd.f32 %v6251, %v6326
      %v6339 = vadd.f32 %v6256, %v6331
      %v6340 = vadd.f32 %v6259, %v6334
      %v6341 = vpack.c.bf16 %v6109, %v6108
      %v6342 = vpack.c.bf16 %v6111, %v6110
      %6343 = vrot.lane.b32.xlu0 %v1000, 104
      %v6344 = vpop.permute.xlu0 %6343
      %6345 = vrot.lane.b32.xlu0 %v1001, 104
      %v6346 = vpop.permute.xlu0 %6345
      %6347 = vrot.lane.b32.xlu0 %v1002, 104
      %v6348 = vpop.permute.xlu0 %6347
      %6349 = vrot.lane.b32.xlu0 %v1003, 104
      %v6350 = vpop.permute.xlu0 %6349
      %6351 = vrot.lane.b32.xlu0 %v1004, 104
      %v6352 = vpop.permute.xlu0 %6351
      %6353 = vrot.lane.b32.xlu0 %v1005, 104
      %v6354 = vpop.permute.xlu0 %6353
      %6355 = vrot.lane.b32.xlu0 %v1006, 104
      %v6356 = vpop.permute.xlu0 %6355
      %6357 = vrot.lane.b32.xlu0 %v1007, 104
      %v6358 = vpop.permute.xlu0 %6357
      %6367 = vmatprep.subr.bf16.mxu0 0
      %6368 = vmatpush1.bf16.msra.mxu0 %v6344
      %6369 = vmatprep.subr.bf16.mxu0 0
      %6370 = vmatpush1.bf16.msra.mxu0 %v6346
      %6371 = vmatprep.subr.bf16.mxu0 0
      %6372 = vmatpush1.bf16.msra.mxu0 %v6348
      %6373 = vmatprep.subr.bf16.mxu0 0
      %6374 = vmatpush1.bf16.msra.mxu0 %v6350
      %6375 = vmatprep.subr.bf16.mxu0 0
      %6376 = vmatpush1.bf16.msra.mxu0 %v6352
      %6377 = vmatprep.subr.bf16.mxu0 0
      %6378 = vmatpush1.bf16.msra.mxu0 %v6354
      %6379 = vmatprep.subr.bf16.mxu0 0
      %6380 = vmatpush1.bf16.msra.mxu0 %v6356
      %6381 = vmatprep.subr.bf16.mxu0 0
      %6382 = vmatpush1.bf16.msra.mxu0 %v6358
      %6383 = vmatprep.subr.bf16.mxu0 0
      %6384 = vmatpush1.bf16.msra.mxu0 0
      %6385 = vmatprep.subr.bf16.mxu0 0
      %6386 = vmatpush1.bf16.msra.mxu0 0
      %6387 = vmatprep.subr.bf16.mxu0 0
      %6388 = vmatpush1.bf16.msra.mxu0 0
      %6389 = vmatprep.subr.bf16.mxu0 0
      %6390 = vmatpush1.bf16.msra.mxu0 0
      %6391 = vmatprep.subr.bf16.mxu0 0
      %6392 = vmatpush1.bf16.msra.mxu0 0
      %6393 = vmatprep.subr.bf16.mxu0 0
      %6394 = vmatpush1.bf16.msra.mxu0 0
      %6395 = vmatprep.subr.bf16.mxu0 0
      %6396 = vmatpush1.bf16.msra.mxu0 0
      %6397 = vmatprep.subr.bf16.mxu0 0
      %6398 = vmatpush1.bf16.msra.mxu0 0
      %6399 = vmatprep.mubr.bf16.mxu0 0
      %6400 = vmatmul.mubr.bf16.gmra.mrb[0].mxu0 %v6341
      %v6401 = vpop.f32.mrb[0].mxu0
      %v6402 = vadd.f32 0.0, %v6401
      %v6403 = vpop.f32.mrb[0].mxu0
      %v6404 = vpop.f32.mrb[0].mxu0
      %v6405 = vadd.f32 0.0, %v6404
      %v6406 = vpop.f32.mrb[0].mxu0
      %6407 = vmatprep.mubr.bf16.mxu0 0
      %6408 = vmatmul.mubr.bf16.gmra.mrb[0].mxu0 %v6342
      %v6409 = vpop.f32.mrb[0].mxu0
      %v6410 = vadd.f32 0.0, %v6409
      %v6411 = vpop.f32.mrb[0].mxu0
      %v6412 = vpop.f32.mrb[0].mxu0
      %v6413 = vadd.f32 0.0, %v6412
      %v6414 = vpop.f32.mrb[0].mxu0
      %6415 = vdwg.mxu0
      %v6416 = vadd.f32 %v6337, %v6402
      %v6417 = vadd.f32 %v6338, %v6405
      %v6418 = vadd.f32 %v6339, %v6410
      %v6419 = vadd.f32 %v6340, %v6413
      %v6420 = vrcp.pop %v5174
      %v6421 = vrcp.pop %v5177
      %v6422 = vrcp.pop %v5180
      %v6423 = vrcp.pop %v5183
      %v6424 = vmul.f32 %v6416, %v6420
      %v6425 = vmul.f32 %v6417, %v6421
      %v6426 = vmul.f32 %v6418, %v6422
      %v6427 = vmul.f32 %v6419, %v6423
      %v6428 = vpack.c.bf16 %v6425, %v6424
      %v6429 = vpack.c.bf16 %v6427, %v6426
      %v6431 = vsel %vm1055, %v6428, 0
      %v6434 = vsel %vm1055, %v6429, 0
      %v6437 = vsel %vm3659, %v1013, 0
      %6439 = vmatprep.subr.bf16.mxu0 0
      %6440 = vmatpush1.bf16.msra.mxu0 %v6437
      %6441 = vmatprep.subr.bf16.mxu0 0
      %6442 = vmatpush1.bf16.msra.mxu0 0
      %6443 = vmatprep.subr.bf16.mxu0 0
      %6444 = vmatpush1.bf16.msra.mxu0 0
      %6445 = vmatprep.subr.bf16.mxu0 0
      %6446 = vmatpush1.bf16.msra.mxu0 0
      %6447 = vmatprep.subr.bf16.mxu0 0
      %6448 = vmatpush1.bf16.msra.mxu0 0
      %6449 = vmatprep.subr.bf16.mxu0 0
      %6450 = vmatpush1.bf16.msra.mxu0 0
      %6451 = vmatprep.subr.bf16.mxu0 0
      %6452 = vmatpush1.bf16.msra.mxu0 0
      %6453 = vmatprep.subr.bf16.mxu0 0
      %6454 = vmatpush1.bf16.msra.mxu0 0
      %6455 = vmatprep.subr.bf16.mxu0 0
      %6456 = vmatpush1.bf16.msra.mxu0 0
      %6457 = vmatprep.subr.bf16.mxu0 0
      %6458 = vmatpush1.bf16.msra.mxu0 0
      %6459 = vmatprep.subr.bf16.mxu0 0
      %6460 = vmatpush1.bf16.msra.mxu0 0
      %6461 = vmatprep.subr.bf16.mxu0 0
      %6462 = vmatpush1.bf16.msra.mxu0 0
      %6463 = vmatprep.subr.bf16.mxu0 0
      %6464 = vmatpush1.bf16.msra.mxu0 0
      %6465 = vmatprep.subr.bf16.mxu0 0
      %6466 = vmatpush1.bf16.msra.mxu0 0
      %6467 = vmatprep.subr.bf16.mxu0 0
      %6468 = vmatpush1.bf16.msra.mxu0 0
      %6469 = vmatprep.subr.bf16.mxu0 0
      %6470 = vmatpush1.bf16.msra.mxu0 0
      %6471 = vmatprep.mubr.bf16.mxu0 0
      %6472 = vmatmul.mubr.bf16.gmra.mrb[0].mxu0 %v6431
      %v6473 = vpop.f32.mrb[0].mxu0
      %v6474 = vadd.f32 0.0, %v6473
      %v6475 = vpop.f32.mrb[0].mxu0
      %v6476 = vpop.f32.mrb[0].mxu0
      %v6477 = vadd.f32 0.0, %v6476
      %v6478 = vpop.f32.mrb[0].mxu0
      %6479 = vmatprep.mubr.bf16.mxu0 0
      %6480 = vmatmul.mubr.bf16.gmra.mrb[0].mxu0 %v6434
      %v6481 = vpop.f32.mrb[0].mxu0
      %v6482 = vadd.f32 0.0, %v6481
      %v6483 = vpop.f32.mrb[0].mxu0
      %v6484 = vpop.f32.mrb[0].mxu0
      %v6485 = vadd.f32 0.0, %v6484
      %v6486 = vpop.f32.mrb[0].mxu0
      %6487 = vdwg.mxu0
      %v6488 = vadd.f32 %v5127, %v6474
      %v6489 = vadd.f32 %v5128, %v6477
      %v6490 = vadd.f32 %v5129, %v6482
      %v6491 = vadd.f32 %v5130, %v6485
      %v6492 = vld [vmem:[%s8] sm:$0x1]
      %v6494 = vlaneseq
      %v6495 = vshrl.u32 %v6494, 7
      %v6496 = vsub.s32 0, %v6495
      %v6497 = vrot.slane %v6492, %v6496
      %v6499 = vadd.f32 %v6488, %v6497
      %v6500 = vadd.f32 %v6489, %v6497
      %v6501 = vadd.f32 %v6490, %v6497
      %v6502 = vadd.f32 %v6491, %v6497
      %v6503 = vld [vmem:[%s605] sm:$0xff]
      %v6504 = vld [vmem:[%s605 + $0x8] sm:$0xff]
      %v6505 = vld [vmem:[%s605 + $0x10] sm:$0xff]
      %v6506 = vld [vmem:[%s605 + $0x18] sm:$0xff]
      %v6507 = vld [vmem:[#allocation2] sm:$0xff]
      %v6508 = vld [vmem:[#allocation2 + $0x8] sm:$0xff]
      %v6509 = vld [vmem:[#allocation2 + $0x10] sm:$0xff]
      %v6510 = vld [vmem:[#allocation2 + $0x18] sm:$0xff]
      %6512 = vset.pattern.permute.xlu0 0
      %6513 = vperm.xlu0 %6512, %v6503
      %v6514 = vpop.permute.xlu0 %6513
      %6517 = vset.pattern.permute.xlu0 0
      %6518 = vperm.xlu0 %6517, %v6504
      %v6519 = vpop.permute.xlu0 %6518
      %6522 = vset.pattern.permute.xlu0 0
      %6523 = vperm.xlu0 %6522, %v6505
      %v6524 = vpop.permute.xlu0 %6523
      %6527 = vset.pattern.permute.xlu0 0
      %6528 = vperm.xlu0 %6527, %v6506
      %v6529 = vpop.permute.xlu0 %6528
      %v6531 = vmul.f32 %v6499, %v6514
      %v6532 = vmul.f32 %v6500, %v6519
      %v6533 = vmul.f32 %v6501, %v6524
      %v6534 = vmul.f32 %v6502, %v6529
      %v6535 = vadd.f32 %v6507, %v6531
      %v6536 = vadd.f32 %v6508, %v6532
      %v6537 = vadd.f32 %v6509, %v6533
      %v6538 = vadd.f32 %v6510, %v6534
      %6539 = vst.msk [vmem:[#allocation2] sm:$0xff] %vm669, %v6535
      %6540 = vst.msk [vmem:[#allocation2 + $0x8] sm:$0xff] %vm669, %v6536
      %6541 = vst.msk [vmem:[#allocation2 + $0x10] sm:$0xff] %vm669, %v6537
      %6542 = vst.msk [vmem:[#allocation2 + $0x18] sm:$0xff] %vm669, %v6538
      %v6543 = vld [vmem:[#allocation3] sm:$0xff]
      %v6544 = vld [vmem:[#allocation3 + $0x8] sm:$0xff]
      %v6545 = vld [vmem:[#allocation3 + $0x10] sm:$0xff]
      %v6546 = vld [vmem:[#allocation3 + $0x18] sm:$0xff]
      %v6547 = vadd.f32 %v6543, %v6503
      %v6548 = vadd.f32 %v6544, %v6504
      %v6549 = vadd.f32 %v6545, %v6505
      %v6550 = vadd.f32 %v6546, %v6506
      %vm6551 = vcmask 7168
      %6552 = vst.msk [vmem:[#allocation3] sm:$0xff] %vm6551, %v6547
      %6553 = vst.msk [vmem:[#allocation3 + $0x8] sm:$0xff] %vm6551, %v6548
      %6554 = vst.msk [vmem:[#allocation3 + $0x10] sm:$0xff] %vm6551, %v6549
      %6555 = vst.msk [vmem:[#allocation3 + $0x18] sm:$0xff] %vm6551, %v6550
      %p6556 = scmp.eq.s32.totalorder %s29, 1
      // Predicated region
      $region69: #{tpu_custom_call.1} parent=63 // pred_check
        %p6557 = pneg %p6556
      $region70: #{tpu_custom_call.1} parent=63 // pred_check_branch
        %6559 = sbr.rel (%p6557) target = $region72
      $region71: #{tpu_custom_call.1} parent=63 // pred_region
        %v6560 = vld [vmem:[#allocation3] sm:$0xff]
        %v6561 = vld [vmem:[#allocation3 + $0x8] sm:$0xff]
        %v6562 = vld [vmem:[#allocation3 + $0x10] sm:$0xff]
        %v6563 = vld [vmem:[#allocation3 + $0x18] sm:$0xff]
        %v6564 = vmul.f32 %v6560, 2.0
        %v6565 = vmul.f32 %v6561, 2.0
        %v6566 = vmul.f32 %v6562, 2.0
        %v6567 = vmul.f32 %v6563, 2.0
        %v6568 = vmax.f32 %v6564, 1.0
        %v6569 = vmax.f32 %v6565, 1.0
        %v6570 = vmax.f32 %v6566, 1.0
        %v6571 = vmax.f32 %v6567, 1.0
        %v6572 = vld [vmem:[#allocation2] sm:$0xff]
        %v6573 = vld [vmem:[#allocation2 + $0x8] sm:$0xff]
        %v6574 = vld [vmem:[#allocation2 + $0x10] sm:$0xff]
        %v6575 = vld [vmem:[#allocation2 + $0x18] sm:$0xff]
        %6577 = vset.pattern.permute.xlu0 0
        %6578 = vperm.xlu0 %6577, %v6568
        %v6579 = vpop.permute.xlu0 %6578
        %6582 = vset.pattern.permute.xlu0 0
        %6583 = vperm.xlu0 %6582, %v6569
        %v6584 = vpop.permute.xlu0 %6583
        %6587 = vset.pattern.permute.xlu0 0
        %6588 = vperm.xlu0 %6587, %v6570
        %v6589 = vpop.permute.xlu0 %6588
        %6592 = vset.pattern.permute.xlu0 0
        %6593 = vperm.xlu0 %6592, %v6571
        %v6594 = vpop.permute.xlu0 %6593
        %v6596 = vrcp.pop %v6579
        %v6597 = vmul.f32 %v6572, %v6596
        %v6598 = vrcp.pop %v6584
        %v6599 = vmul.f32 %v6573, %v6598
        %v6600 = vrcp.pop %v6589
        %v6601 = vmul.f32 %v6574, %v6600
        %v6602 = vrcp.pop %v6594
        %v6603 = vmul.f32 %v6575, %v6602
        %v6604 = vpack.c.bf16 %v6599, %v6597
        %v6605 = vpack.c.bf16 %v6603, %v6601
        %v6606 = vld [vmem:[%s9] sm:$0xf]
        %v6607 = vld [vmem:[%s9 + $0x4] sm:$0xf]
        %v6608 = vld [vmem:[%s9 + $0x8] sm:$0xf]
        %v6609 = vld [vmem:[%s9 + $0xc] sm:$0xf]
        %v6610 = vld [vmem:[%s10] sm:$0x1]
        %v6612 = vlaneseq
        %v6613 = vshrl.u32 %v6612, 7
        %v6614 = vsub.s32 0, %v6613
        %v6615 = vrot.slane %v6610, %v6614
        %v6621 = vunpack.c.l.b16 %v6606
        %v6622 = vunpack.c.l.b16 %v6607
        %v6623 = vunpack.c.l.b16 %v6608
        %v6624 = vunpack.c.l.b16 %v6609
        %v6625 = vpack.c.b16 %v6622, %v6621
        %v6626 = vpack.c.b16 %v6624, %v6623
        %v6630 = vsel %vm669, %v6604, 0
        %v6633 = vsel %vm669, %v6605, 0
        %6635 = vmatprep.subr.bf16.mxu0 0
        %6636 = vmatpush1.bf16.msra.mxu0 %v6625
        %6637 = vmatprep.subr.bf16.mxu0 0
        %6638 = vmatpush1.bf16.msra.mxu0 %v6626
        %6639 = vmatprep.subr.bf16.mxu0 0
        %6640 = vmatpush1.bf16.msra.mxu0 0
        %6641 = vmatprep.subr.bf16.mxu0 0
        %6642 = vmatpush1.bf16.msra.mxu0 0
        %6643 = vmatprep.subr.bf16.mxu0 0
        %6644 = vmatpush1.bf16.msra.mxu0 0
        %6645 = vmatprep.subr.bf16.mxu0 0
        %6646 = vmatpush1.bf16.msra.mxu0 0
        %6647 = vmatprep.subr.bf16.mxu0 0
        %6648 = vmatpush1.bf16.msra.mxu0 0
        %6649 = vmatprep.subr.bf16.mxu0 0
        %6650 = vmatpush1.bf16.msra.mxu0 0
        %6651 = vmatprep.subr.bf16.mxu0 0
        %6652 = vmatpush1.bf16.msra.mxu0 0
        %6653 = vmatprep.subr.bf16.mxu0 0
        %6654 = vmatpush1.bf16.msra.mxu0 0
        %6655 = vmatprep.subr.bf16.mxu0 0
        %6656 = vmatpush1.bf16.msra.mxu0 0
        %6657 = vmatprep.subr.bf16.mxu0 0
        %6658 = vmatpush1.bf16.msra.mxu0 0
        %6659 = vmatprep.subr.bf16.mxu0 0
        %6660 = vmatpush1.bf16.msra.mxu0 0
        %6661 = vmatprep.subr.bf16.mxu0 0
        %6662 = vmatpush1.bf16.msra.mxu0 0
        %6663 = vmatprep.subr.bf16.mxu0 0
        %6664 = vmatpush1.bf16.msra.mxu0 0
        %6665 = vmatprep.subr.bf16.mxu0 0
        %6666 = vmatpush1.bf16.msra.mxu0 0
        %6667 = vmatprep.mubr.bf16.mxu0 0
        %6668 = vmatmul.mubr.bf16.gmra.mrb[0].mxu0 %v6630
        %v6669 = vpop.f32.mrb[0].mxu0
        %v6670 = vadd.f32 %v6615, %v6669
        %v6671 = vpop.f32.mrb[0].mxu0
        %v6672 = vpop.f32.mrb[0].mxu0
        %v6673 = vadd.f32 %v6615, %v6672
        %v6674 = vpop.f32.mrb[0].mxu0
        %6675 = vmatprep.mubr.bf16.mxu0 0
        %6676 = vmatmul.mubr.bf16.gmra.mrb[0].mxu0 %v6633
        %v6677 = vpop.f32.mrb[0].mxu0
        %v6678 = vadd.f32 %v6615, %v6677
        %v6679 = vpop.f32.mrb[0].mxu0
        %v6680 = vpop.f32.mrb[0].mxu0
        %v6681 = vadd.f32 %v6615, %v6680
        %v6682 = vpop.f32.mrb[0].mxu0
        %6683 = vdwg.mxu0
        %6684 = vst.msk [vmem:[%s615] sm:$0xff] %vm669, %v6670
        %6685 = vst.msk [vmem:[%s615 + $0x8] sm:$0xff] %vm669, %v6673
        %6686 = vst.msk [vmem:[%s615 + $0x10] sm:$0xff] %vm669, %v6678
        %6687 = vst.msk [vmem:[%s615 + $0x18] sm:$0xff] %vm669, %v6681
      $region72: #{tpu_custom_call.1} parent=63 // pred_fallthru
        _
      %s6688 = smul.u32 4, %s28
      %p6689 = scmp.lt.s32.totalorder %s27, 1
      %s6690 = scalar_select %p6689, %s27, 1
      %p6691 = scmp.lt.s32.totalorder %s6688, 7
      %s6692 = scalar_select %p6691, %s6688, 7
      %s6693 = smul.addr %s6690, 8
      %s6694 = sadd.s32 %s6692, %s6693
      %s6695 = smul.addr %s6694, 8
      %s6696 = scalar_lea.vmem %s11, %s6695
      // Predicated region
      $region73: #{tpu_custom_call.1} parent=63 // pred_check
        %p6697 = pneg %p333
      $region74: #{tpu_custom_call.1} parent=63 // pred_check_branch
        %6699 = sbr.rel (%p6697) target = $region76
      $region75: #{tpu_custom_call.1} parent=63 // pred_region
        %s6700 = smul.u32 4, %s28
      $region76: #{tpu_custom_call.1} parent=63 // pred_fallthru
        _
    $region64: #{tpu_custom_call.1} parent=5 // pred_fallthru
      _
    %p6701 = scmp.le.s32.totalorder 2, %s17
    // Predicated region
    $region77: #{tpu_custom_call.1} parent=5 // pred_check
      %p6702 = pneg %p6701
    $region78: #{tpu_custom_call.1} parent=5 // pred_check_branch
      %6704 = sbr.rel (%p6702) target = $region80
    $region79: #{tpu_custom_call.1} parent=5 // pred_region
      %s6705 = ssub.s32 %s17, 2
      // Predicated region
      $region81: #{tpu_custom_call.1} parent=79 // pred_check
        %p6706 = pneg %p339
      $region82: #{tpu_custom_call.1} parent=79 // pred_check_branch
        %6708 = sbr.rel (%p6706) target = $region84
      $region83: #{tpu_custom_call.1} parent=79 // pred_region
        %s6709 = smul.u32 4, %s31
        %p6710 = scmp.lt.s32.totalorder %s30, 1
        %s6711 = scalar_select %p6710, %s30, 1
        %p6712 = scmp.lt.s32.totalorder %s6709, 7
        %s6713 = scalar_select %p6712, %s6709, 7
        %s6714 = smul.addr %s6711, 8
        %s6715 = sadd.s32 %s6713, %s6714
        %s6716 = smul.addr %s6715, 8
        %s6717 = scalar_lea.vmem %s11, %s6716
      $region84: #{tpu_custom_call.1} parent=79 // pred_fallthru
        _
    $region80: #{tpu_custom_call.1} parent=5 // pred_fallthru
      _
  $region6: #{tpu_custom_call.1} parent=0 // loop_footer
    %s21 = sadd.s32 1, %s17
  $region7: #{tpu_custom_call.1} parent=0 // loop_footer_branch
    %16 = sbr.rel target = $region3
  $region8: #{tpu_custom_call.1} parent=0 // loop_exit
    _

</llo_original>
